<compile_context>
chip_gen: v5e
topology: v5e:2x2
jax: 0.10.0
libtpu: 0.0.40
codegen_flags: <defaults>
</compile_context>

<pallas_src>
import jax
import jax.numpy as jnp
from jax.experimental import pallas as pl
from jax.experimental.pallas import tpu as pltpu

LANE = 128


def _full_spec(arr):
    nd = arr.ndim
    return pl.BlockSpec(arr.shape, lambda i, nd=nd: (0,) * nd)


# ----------------------------------------------------------------------------
# Bilinear interpolation matrices (align_corners=True), optionally embedded in
# a larger zero matrix so F.pad + the conv halo padding come for free.
# ----------------------------------------------------------------------------
def _bilinear_matrix(n_out, n_in):
    out_idx = jnp.arange(n_out, dtype=jnp.float32)
    if n_out == 1:
        src = jnp.zeros((1,), jnp.float32)
    else:
        src = out_idx * (n_in - 1) / (n_out - 1)
    i0 = jnp.clip(jnp.floor(src).astype(jnp.int32), 0, n_in - 1)
    i1 = jnp.clip(i0 + 1, 0, n_in - 1)
    frac = src - i0.astype(jnp.float32)
    m = jnp.zeros((n_out, n_in), jnp.float32)
    m = m.at[jnp.arange(n_out), i0].add(1.0 - frac)
    m = m.at[jnp.arange(n_out), i1].add(frac)
    return m


def _padded_bilinear_matrix(n_out, n_in, offset, n_total):
    core = _bilinear_matrix(n_out, n_in)
    m = jnp.zeros((n_total, n_in), jnp.float32)
    return m.at[offset:offset + n_out, :].set(core)


# ----------------------------------------------------------------------------
# Kernel 1: whole-batch bilinear upsample (+ all spatial padding) as two
#           batched MXU matmuls. x: (B, Hin, Win) -> o: (B, Hp, Wp)
# ----------------------------------------------------------------------------
def _upsample_pad_kernel(uh_ref, uw_ref, x_ref, o_ref):
    # uh: (B, Hp, Hin)  uw: (B, Wp, Win)  x: (B, Hin, Win)
    t = jnp.einsum('boh,bhw->bow', uh_ref[...], x_ref[...],
                   preferred_element_type=jnp.float32)          # (B, Hp, Win)
    o_ref[...] = jnp.einsum('bow,bpw->bop', t, uw_ref[...],
                            preferred_element_type=jnp.float32)  # (B, Hp, Wp)


def _upsample_and_pad(x1, uh, uw, Hp, Wp):
    """x1: (N, C, H, W) NCHW -> (N*C, Hp, Wp) upsampled + fully padded."""
    N, C, H, W = x1.shape
    B = N * C
    xb = x1.reshape(B, H, W).astype(jnp.float32)
    uh_b = jnp.broadcast_to(uh, (B, Hp, H))
    uw_b = jnp.broadcast_to(uw, (B, Wp, W))
    return pl.pallas_call(
        _upsample_pad_kernel,
        out_shape=jax.ShapeDtypeStruct((B, Hp, Wp), jnp.float32),
        grid=(1,),
        in_specs=[_full_spec(uh_b), _full_spec(uw_b), _full_spec(xb)],
        out_specs=pl.BlockSpec((B, Hp, Wp), lambda i: (0, 0, 0)),
        compiler_params=pltpu.CompilerParams(
            dimension_semantics=("arbitrary",)),
    )(uh_b, uw_b, xb)


# ----------------------------------------------------------------------------
# Kernel 2: fused [concat -> conv3x3 -> BN -> ReLU -> conv3x3 -> BN -> ReLU]
# Inputs are pre-padded (spatial +1) NHWC; output is NHWC with the channel dim
# zero-padded to a 128-lane multiple (lane-dense store).
# ----------------------------------------------------------------------------
def _double_conv_kernel(x2p_ref, x1p_ref, w1_ref, b1_ref, g1_ref, be1_ref,
                        w2_ref, b2_ref, g2_ref, be2_ref, o_ref, hpad_ref):
    N, Hp, Wp, C2 = x2p_ref.shape
    C1 = x1p_ref.shape[3]
    H, W = Hp - 2, Wp - 2
    Cin = C2 + C1
    Cmid = w1_ref.shape[1]
    Coutp = w2_ref.shape[1]
    eps = 1e-5

    def bn_relu(h, g, be):
        # training-mode BatchNorm2d: biased variance over (N*H*W), f32 math
        mu = jnp.mean(h, axis=0, keepdims=True)
        var = jnp.mean(jnp.square(h - mu), axis=0, keepdims=True)
        return jnp.maximum((h - mu) * jax.lax.rsqrt(var + eps) * g + be, 0.0)

    # ---- conv1: im2col, channel concat of the two sources fused here --------
    # column order = (ky, kx, [x2 channels, x1 channels]) to match
    # w1 (HWIO with I ordered as torch.cat([x2, x1], dim=1)).reshape(9*Cin, Cmid)
    taps = []
    for ky in range(3):
        for kx in range(3):
            taps.append(x2p_ref[:, ky:ky + H, kx:kx + W, :].astype(jnp.bfloat16))
            taps.append(x1p_ref[:, ky:ky + H, kx:kx + W, :].astype(jnp.bfloat16))
    p1 = jnp.concatenate(taps, axis=-1)                       # (N, H, W, 9*Cin)
    p1 = p1.reshape(N * H * W, 9 * Cin)
    h = jnp.dot(p1, w1_ref[...], preferred_element_type=jnp.float32)
    h = bn_relu(h + b1_ref[...], g1_ref[...], be1_ref[...])   # (N*H*W, Cmid) f32

    # ---- re-pad BN1 output in VMEM; zero only the 1-px border ---------------
    zrow = jnp.zeros((N, 1, Wp, Cmid), hpad_ref.dtype)
    zcol = jnp.zeros((N, Hp, 1, Cmid), hpad_ref.dtype)
    hpad_ref[:, 0:1, :, :] = zrow
    hpad_ref[:, Hp - 1:Hp, :, :] = zrow
    hpad_ref[:, :, 0:1, :] = zcol
    hpad_ref[:, :, Wp - 1:Wp, :] = zcol
    hpad_ref[:, 1:1 + H, 1:1 + W, :] = h.reshape(N, H, W, Cmid)

    # ---- conv2: im2col matmul, lane-dense (channel-padded) output -----------
    taps2 = [hpad_ref[:, ky:ky + H, kx:kx + W, :].astype(jnp.bfloat16)
             for ky in range(3) for kx in range(3)]
    p2 = jnp.concatenate(taps2, axis=-1)                      # (N, H, W, 9*Cmid)
    p2 = p2.reshape(N * H * W, 9 * Cmid)
    y = jnp.dot(p2, w2_ref[...], preferred_element_type=jnp.float32)
    y = bn_relu(y + b2_ref[...], g2_ref[...], be2_ref[...])   # (N*H*W, Coutp)
    o_ref[...] = y.reshape(N, H, W, Coutp)


def _double_conv(x2p, x1p, w1m, b1, g1, be1, w2m, b2, g2, be2):
    N, Hp, Wp, _ = x2p.shape
    H, W = Hp - 2, Wp - 2
    Cmid = w1m.shape[1]
    Coutp = w2m.shape[1]
    args = (x2p, x1p, w1m, b1, g1, be1, w2m, b2, g2, be2)
    return pl.pallas_call(
        _double_conv_kernel,
        out_shape=jax.ShapeDtypeStruct((N, H, W, Coutp), jnp.float32),
        grid=(1,),
        in_specs=[_full_spec(a) for a in args],
        out_specs=pl.BlockSpec((N, H, W, Coutp), lambda i: (0, 0, 0, 0)),
        scratch_shapes=[pltpu.VMEM((N, Hp, Wp, Cmid), jnp.float32)],
        compiler_params=pltpu.CompilerParams(
            dimension_semantics=("arbitrary",)),
    )(*args)


# ----------------------------------------------------------------------------
# Up.forward
# ----------------------------------------------------------------------------
def up_forward(x1, x2, params, scale_factor=2):
    """x1, x2 in NCHW. Returns NCHW output of DoubleConv(concat([x2, up(x1)]))."""
    N, C1, H1, W1 = x1.shape
    _, C2, H2, W2 = x2.shape
    w1, b1, g1, be1, w2, b2, g2, be2 = params
    Cin = C2 + C1
    Cmid = w1.shape[3]
    Cout = w2.shape[3]
    Coutp = ((Cout + LANE - 1) // LANE) * LANE

    Hup, Wup = H1 * scale_factor, W1 * scale_factor
    diffY, diffX = H2 - Hup, W2 - Wup
    # TODO(synk): negative F.pad (cropping when x2 is smaller than the
    # upsampled x1) is not implemented.
    assert diffY >= 0 and diffX >= 0

    Hp, Wp = H2 + 2, W2 + 2   # +2 = conv1 halo, folded into the pads below

    # 1) bilinear upsample, with F.pad offset AND conv halo folded into the
    #    interpolation matrices; single grid step over all N*C1 images.
    uh = _padded_bilinear_matrix(Hup, H1, 1 + diffY // 2, Hp)   # (Hp, H1)
    uw = _padded_bilinear_matrix(Wup, W1, 1 + diffX // 2, Wp)   # (Wp, W1)
    x1up = _upsample_and_pad(x1, uh, uw, Hp, Wp)                # (N*C1, Hp, Wp)

    # 2) layout conversion NCHW->NHWC + halo pad for x2; the only non-Pallas
    #    data movement left (pad/concat of x1 are fused into the kernels).
    x1p = x1up.reshape(N, C1, Hp, Wp).transpose(0, 2, 3, 1)
    x2p = jnp.pad(x2.astype(jnp.float32).transpose(0, 2, 3, 1),
                  ((0, 0), (1, 1), (1, 1), (0, 0)))

    # 3) trace-time weight packing: HWIO -> (9*Cin, Cout), bf16 for the MXU,
    #    output channels zero-padded to a 128-lane multiple.
    w1m = w1.reshape(9 * Cin, Cmid).astype(jnp.bfloat16)
    w2p = jnp.pad(w2, ((0, 0), (0, 0), (0, 0), (0, Coutp - Cout)))
    w2m = w2p.reshape(9 * Cmid, Coutp).astype(jnp.bfloat16)
    b2p = jnp.pad(b2, ((0, 0), (0, Coutp - Cout)))
    g2p = jnp.pad(g2, ((0, 0), (0, Coutp - Cout)), constant_values=1.0)
    be2p = jnp.pad(be2, ((0, 0), (0, Coutp - Cout)))

    # 4) fused concat + DoubleConv kernel; drop channel padding, back to NCHW.
    y = _double_conv(x2p, x1p, w1m, b1, g1, be1, w2m, b2p, g2p, be2p)
    return y[..., :Cout].transpose(0, 3, 1, 2)


def make_params(key, in_channels, out_channels, mid_channels):
    ks = jax.random.split(key, 4)
    w1 = 0.1 * jax.random.normal(ks[0], (3, 3, in_channels, mid_channels), jnp.float32)
    b1 = 0.1 * jax.random.normal(ks[1], (1, mid_channels), jnp.float32)
    g1 = jnp.ones((1, mid_channels), jnp.float32)
    be1 = jnp.zeros((1, mid_channels), jnp.float32)
    w2 = 0.1 * jax.random.normal(ks[2], (3, 3, mid_channels, out_channels), jnp.float32)
    b2 = 0.1 * jax.random.normal(ks[3], (1, out_channels), jnp.float32)
    g2 = jnp.ones((1, out_channels), jnp.float32)
    be2 = jnp.zeros((1, out_channels), jnp.float32)
    return (w1, b1, g1, be1, w2, b2, g2, be2)


# ----------------------------------------------------------------------------
# Pure-JAX (XLA, f32) reference following the PyTorch module op-for-op.
# ----------------------------------------------------------------------------
def _reference_up_forward(x1, x2, params, scale_factor=2):
    w1, b1, g1, be1, w2, b2, g2, be2 = params
    N, C1, H1, W1 = x1.shape
    _, C2, H2, W2 = x2.shape
    Hup, Wup = H1 * scale_factor, W1 * scale_factor
    uh = _bilinear_matrix(Hup, H1)
    uw = _bilinear_matrix(Wup, W1)
    xu = jnp.einsum('oh,nchw->ncow', uh, x1)
    xu = jnp.einsum('pw,ncow->ncop', uw, xu)                  # (N, C1, Hup, Wup)
    dY, dX = H2 - Hup, W2 - Wup
    xu = jnp.pad(xu, ((0, 0), (0, 0),
                      (dY // 2, dY - dY // 2), (dX // 2, dX - dX // 2)))
    x = jnp.concatenate([x2, xu], axis=1).transpose(0, 2, 3, 1)   # NHWC

    def conv_bn_relu(x, w, b, g, be):
        y = jax.lax.conv_general_dilated(
            x, w, (1, 1), 'SAME',
            dimension_numbers=('NHWC', 'HWIO', 'NHWC')) + b.reshape(1, 1, 1, -1)
        mu = jnp.mean(y, axis=(0, 1, 2), keepdims=True)
        var = jnp.mean(jnp.square(y - mu), axis=(0, 1, 2), keepdims=True)
        yn = (y - mu) * jax.lax.rsqrt(var + 1e-5) * g.reshape(1, 1, 1, -1) \
             + be.reshape(1, 1, 1, -1)
        return jnp.maximum(yn, 0.0)

    y = conv_bn_relu(x, w1, b1, g1, be1)
    y = conv_bn_relu(y, w2, b2, g2, be2)
    return y.transpose(0, 3, 1, 2)


if __name__ == "__main__":
    key = jax.random.PRNGKey(0)
    k1, k2, kp = jax.random.split(key, 3)

    # Up(in_channels=8, out_channels=4, bilinear=True, scale_factor=2)
    # x1: decoder feature (N, 4, 8, 8); x2: skip connection (N, 4, 16, 16)
    # concat channels = 8 == in_channels; mid_channels = in_channels // 2 = 4
    N, C1, C2 = 2, 4, 4
    x1 = jax.random.normal(k1, (N, C1, 8, 8), jnp.float32)
    x2 = jax.random.normal(k2, (N, C2, 16, 16), jnp.float32)

    in_channels, out_channels = C1 + C2, 4
    params = make_params(kp, in_channels, out_channels, in_channels // 2)

    up_fn = jax.jit(up_forward, static_argnames=("scale_factor",))
    out = jax.block_until_ready(up_fn(x1, x2, params, scale_factor=2))
    assert out.shape == (N, out_channels, 16, 16)
    assert bool(jnp.all(jnp.isfinite(out)))

    ref = _reference_up_forward(x1, x2, params, scale_factor=2)
    assert bool(jnp.allclose(out, ref, atol=1e-1, rtol=1e-1)), \
        float(jnp.max(jnp.abs(out - ref)))
    print("KERNEL_OK")
</pallas_src>

<mosaic_0001>
module attributes {stable_mosaic.version = 11 : i64} {
  func.func @_upsample_pad_kernel(%arg0: i32, %arg1: memref<8x18x8xf32, #tpu.memory_space<vmem>>, %arg2: memref<8x18x8xf32, #tpu.memory_space<vmem>>, %arg3: memref<8x8x8xf32, #tpu.memory_space<vmem>>, %arg4: memref<8x18x18xf32, #tpu.memory_space<vmem>>) attributes {dimension_semantics = [#tpu.dimension_semantics<arbitrary>], iteration_bounds = array<i64: 1>, scalar_prefetch = 0 : i64, scratch_operands = 0 : i64, tpu.core_type = #tpu.core_type<tc>, window_params = [{pipeline_mode = #tpu.pipeline_mode<synchronous>, transform_indices = @transform_0, window_bounds = array<i64: 8, 18, 8>}, {pipeline_mode = #tpu.pipeline_mode<synchronous>, transform_indices = @transform_1, window_bounds = array<i64: 8, 18, 8>}, {pipeline_mode = #tpu.pipeline_mode<synchronous>, transform_indices = @transform_2, window_bounds = array<i64: 8, 8, 8>}, {pipeline_mode = #tpu.pipeline_mode<synchronous>, transform_indices = @transform_3, window_bounds = array<i64: 8, 18, 18>}]} {
    %c0 = arith.constant 0 : index
    %c0_0 = arith.constant 0 : index
    %c0_1 = arith.constant 0 : index
    %0 = vector.load %arg1[%c0, %c0_0, %c0_1] : memref<8x18x8xf32, #tpu.memory_space<vmem>>, vector<8x18x8xf32>
    %c0_2 = arith.constant 0 : index
    %c0_3 = arith.constant 0 : index
    %c0_4 = arith.constant 0 : index
    %1 = vector.load %arg3[%c0_2, %c0_3, %c0_4] : memref<8x8x8xf32, #tpu.memory_space<vmem>>, vector<8x8x8xf32>
    "tpu.trace_start"() <{level = 10 : i32, message = "boh,bhw->bow"}> : () -> ()
    %cst = arith.constant dense<0.000000e+00> : vector<8x18x8xf32>
    %2 = tpu.matmul %0, %1, %cst {dimension_numbers = #tpu.dot_dimension_numbers<[2], [1], [1], [2], [0, 0, 0, 1, 1, 2], [0], [0]>} : vector<8x18x8xf32>, vector<8x8x8xf32>, vector<8x18x8xf32> -> vector<8x18x8xf32>
    "tpu.trace_stop"() : () -> ()
    %c0_5 = arith.constant 0 : index
    %c0_6 = arith.constant 0 : index
    %c0_7 = arith.constant 0 : index
    %3 = vector.load %arg2[%c0_5, %c0_6, %c0_7] : memref<8x18x8xf32, #tpu.memory_space<vmem>>, vector<8x18x8xf32>
    "tpu.trace_start"() <{level = 10 : i32, message = "bow,bpw->bop"}> : () -> ()
    %cst_8 = arith.constant dense<0.000000e+00> : vector<8x18x18xf32>
    %4 = tpu.matmul %2, %3, %cst_8 {dimension_numbers = #tpu.dot_dimension_numbers<[2], [2], [1], [1], [0, 0, 0, 1, 1, 1], [0], [0]>} : vector<8x18x8xf32>, vector<8x18x8xf32>, vector<8x18x18xf32> -> vector<8x18x18xf32>
    "tpu.trace_stop"() : () -> ()
    %c0_9 = arith.constant 0 : index
    %c0_10 = arith.constant 0 : index
    %c0_11 = arith.constant 0 : index
    %5 = vector.load %arg4[%c0_9, %c0_10, %c0_11] : memref<8x18x18xf32, #tpu.memory_space<vmem>>, vector<8x18x18xf32>
    tpu.vector_store %arg4[%c0_9, %c0_10, %c0_11], %4 {strides = array<i32>} : memref<8x18x18xf32, #tpu.memory_space<vmem>>, vector<8x18x18xf32>,
    return
  }
  func.func @transform_0(%arg0: i32) -> (i32, i32, i32) {
    %c0_i32 = arith.constant 0 : i32
    %c0_i32_0 = arith.constant 0 : i32
    %c0_i32_1 = arith.constant 0 : i32
    %c0_i32_2 = arith.constant 0 : i32
    return %c0_i32, %c0_i32_0, %c0_i32_1 : i32, i32, i32
  }
  func.func @transform_1(%arg0: i32) -> (i32, i32, i32) {
    %c0_i32 = arith.constant 0 : i32
    %c0_i32_0 = arith.constant 0 : i32
    %c0_i32_1 = arith.constant 0 : i32
    %c0_i32_2 = arith.constant 0 : i32
    return %c0_i32, %c0_i32_0, %c0_i32_1 : i32, i32, i32
  }
  func.func @transform_2(%arg0: i32) -> (i32, i32, i32) {
    %c0_i32 = arith.constant 0 : i32
    %c0_i32_0 = arith.constant 0 : i32
    %c0_i32_1 = arith.constant 0 : i32
    %c0_i32_2 = arith.constant 0 : i32
    return %c0_i32, %c0_i32_0, %c0_i32_1 : i32, i32, i32
  }
  func.func @transform_3(%arg0: i32) -> (i32, i32, i32) {
    %c0_i32 = arith.constant 0 : i32
    %c0_i32_0 = arith.constant 0 : i32
    %c0_i32_1 = arith.constant 0 : i32
    %c0_i32_2 = arith.constant 0 : i32
    return %c0_i32, %c0_i32_0, %c0_i32_1 : i32, i32, i32
  }
}

module attributes {stable_mosaic.version = 11 : i64} {
  func.func @_double_conv_kernel(%arg0: i32, %arg1: memref<2x18x18x4xf32, #tpu.memory_space<vmem>>, %arg2: memref<2x18x18x4xf32, #tpu.memory_space<vmem>>, %arg3: memref<72x4xbf16, #tpu.memory_space<vmem>>, %arg4: memref<1x4xf32, #tpu.memory_space<vmem>>, %arg5: memref<1x4xf32, #tpu.memory_space<vmem>>, %arg6: memref<1x4xf32, #tpu.memory_space<vmem>>, %arg7: memref<36x128xbf16, #tpu.memory_space<vmem>>, %arg8: memref<1x128xf32, #tpu.memory_space<vmem>>, %arg9: memref<1x128xf32, #tpu.memory_space<vmem>>, %arg10: memref<1x128xf32, #tpu.memory_space<vmem>>, %arg11: memref<2x16x16x128xf32, #tpu.memory_space<vmem>>, %arg12: memref<2x18x18x4xf32, #tpu.memory_space<vmem>>) attributes {dimension_semantics = [#tpu.dimension_semantics<arbitrary>], iteration_bounds = array<i64: 1>, scalar_prefetch = 0 : i64, scratch_operands = 1 : i64, tpu.core_type = #tpu.core_type<tc>, window_params = [{pipeline_mode = #tpu.pipeline_mode<synchronous>, transform_indices = @transform_0, window_bounds = array<i64: 2, 18, 18, 4>}, {pipeline_mode = #tpu.pipeline_mode<synchronous>, transform_indices = @transform_1, window_bounds = array<i64: 2, 18, 18, 4>}, {pipeline_mode = #tpu.pipeline_mode<synchronous>, transform_indices = @transform_2, window_bounds = array<i64: 72, 4>}, {pipeline_mode = #tpu.pipeline_mode<synchronous>, transform_indices = @transform_3, window_bounds = array<i64: 1, 4>}, {pipeline_mode = #tpu.pipeline_mode<synchronous>, transform_indices = @transform_4, window_bounds = array<i64: 1, 4>}, {pipeline_mode = #tpu.pipeline_mode<synchronous>, transform_indices = @transform_5, window_bounds = array<i64: 1, 4>}, {pipeline_mode = #tpu.pipeline_mode<synchronous>, transform_indices = @transform_6, window_bounds = array<i64: 36, 128>}, {pipeline_mode = #tpu.pipeline_mode<synchronous>, transform_indices = @transform_7, window_bounds = array<i64: 1, 128>}, {pipeline_mode = #tpu.pipeline_mode<synchronous>, transform_indices = @transform_8, window_bounds = array<i64: 1, 128>}, {pipeline_mode = #tpu.pipeline_mode<synchronous>, transform_indices = @transform_9, window_bounds = array<i64: 1, 128>}, {pipeline_mode = #tpu.pipeline_mode<synchronous>, transform_indices = @transform_10, window_bounds = array<i64: 2, 16, 16, 128>}]} {
    %c0 = arith.constant 0 : index
    %c0_0 = arith.constant 0 : index
    %c0_1 = arith.constant 0 : index
    %c0_2 = arith.constant 0 : index
    %0 = vector.load %arg1[%c0, %c0_0, %c0_1, %c0_2] : memref<2x18x18x4xf32, #tpu.memory_space<vmem>>, vector<2x16x16x4xf32>
    %1 = arith.truncf %0 : vector<2x16x16x4xf32> to vector<2x16x16x4xbf16>
    %c0_3 = arith.constant 0 : index
    %c0_4 = arith.constant 0 : index
    %c0_5 = arith.constant 0 : index
    %c0_6 = arith.constant 0 : index
    %2 = vector.load %arg2[%c0_3, %c0_4, %c0_5, %c0_6] : memref<2x18x18x4xf32, #tpu.memory_space<vmem>>, vector<2x16x16x4xf32>
    %3 = arith.truncf %2 : vector<2x16x16x4xf32> to vector<2x16x16x4xbf16>
    %c0_7 = arith.constant 0 : index
    %c0_8 = arith.constant 0 : index
    %c1 = arith.constant 1 : index
    %c0_9 = arith.constant 0 : index
    %4 = vector.load %arg1[%c0_7, %c0_8, %c1, %c0_9] : memref<2x18x18x4xf32, #tpu.memory_space<vmem>>, vector<2x16x16x4xf32>
    %5 = arith.truncf %4 : vector<2x16x16x4xf32> to vector<2x16x16x4xbf16>
    %c0_10 = arith.constant 0 : index
    %c0_11 = arith.constant 0 : index
    %c1_12 = arith.constant 1 : index
    %c0_13 = arith.constant 0 : index
    %6 = vector.load %arg2[%c0_10, %c0_11, %c1_12, %c0_13] : memref<2x18x18x4xf32, #tpu.memory_space<vmem>>, vector<2x16x16x4xf32>
    %7 = arith.truncf %6 : vector<2x16x16x4xf32> to vector<2x16x16x4xbf16>
    %c0_14 = arith.constant 0 : index
    %c0_15 = arith.constant 0 : index
    %c2 = arith.constant 2 : index
    %c0_16 = arith.constant 0 : index
    %8 = vector.load %arg1[%c0_14, %c0_15, %c2, %c0_16] : memref<2x18x18x4xf32, #tpu.memory_space<vmem>>, vector<2x16x16x4xf32>
    %9 = arith.truncf %8 : vector<2x16x16x4xf32> to vector<2x16x16x4xbf16>
    %c0_17 = arith.constant 0 : index
    %c0_18 = arith.constant 0 : index
    %c2_19 = arith.constant 2 : index
    %c0_20 = arith.constant 0 : index
    %10 = vector.load %arg2[%c0_17, %c0_18, %c2_19, %c0_20] : memref<2x18x18x4xf32, #tpu.memory_space<vmem>>, vector<2x16x16x4xf32>
    %11 = arith.truncf %10 : vector<2x16x16x4xf32> to vector<2x16x16x4xbf16>
    %c0_21 = arith.constant 0 : index
    %c1_22 = arith.constant 1 : index
    %c0_23 = arith.constant 0 : index
    %c0_24 = arith.constant 0 : index
    %12 = vector.load %arg1[%c0_21, %c1_22, %c0_23, %c0_24] : memref<2x18x18x4xf32, #tpu.memory_space<vmem>>, vector<2x16x16x4xf32>
    %13 = arith.truncf %12 : vector<2x16x16x4xf32> to vector<2x16x16x4xbf16>
    %c0_25 = arith.constant 0 : index
    %c1_26 = arith.constant 1 : index
    %c0_27 = arith.constant 0 : index
    %c0_28 = arith.constant 0 : index
    %14 = vector.load %arg2[%c0_25, %c1_26, %c0_27, %c0_28] : memref<2x18x18x4xf32, #tpu.memory_space<vmem>>, vector<2x16x16x4xf32>
    %15 = arith.truncf %14 : vector<2x16x16x4xf32> to vector<2x16x16x4xbf16>
    %c0_29 = arith.constant 0 : index
    %c1_30 = arith.constant 1 : index
    %c1_31 = arith.constant 1 : index
    %c0_32 = arith.constant 0 : index
    %16 = vector.load %arg1[%c0_29, %c1_30, %c1_31, %c0_32] : memref<2x18x18x4xf32, #tpu.memory_space<vmem>>, vector<2x16x16x4xf32>
    %17 = arith.truncf %16 : vector<2x16x16x4xf32> to vector<2x16x16x4xbf16>
    %c0_33 = arith.constant 0 : index
    %c1_34 = arith.constant 1 : index
    %c1_35 = arith.constant 1 : index
    %c0_36 = arith.constant 0 : index
    %18 = vector.load %arg2[%c0_33, %c1_34, %c1_35, %c0_36] : memref<2x18x18x4xf32, #tpu.memory_space<vmem>>, vector<2x16x16x4xf32>
    %19 = arith.truncf %18 : vector<2x16x16x4xf32> to vector<2x16x16x4xbf16>
    %c0_37 = arith.constant 0 : index
    %c1_38 = arith.constant 1 : index
    %c2_39 = arith.constant 2 : index
    %c0_40 = arith.constant 0 : index
    %20 = vector.load %arg1[%c0_37, %c1_38, %c2_39, %c0_40] : memref<2x18x18x4xf32, #tpu.memory_space<vmem>>, vector<2x16x16x4xf32>
    %21 = arith.truncf %20 : vector<2x16x16x4xf32> to vector<2x16x16x4xbf16>
    %c0_41 = arith.constant 0 : index
    %c1_42 = arith.constant 1 : index
    %c2_43 = arith.constant 2 : index
    %c0_44 = arith.constant 0 : index
    %22 = vector.load %arg2[%c0_41, %c1_42, %c2_43, %c0_44] : memref<2x18x18x4xf32, #tpu.memory_space<vmem>>, vector<2x16x16x4xf32>
    %23 = arith.truncf %22 : vector<2x16x16x4xf32> to vector<2x16x16x4xbf16>
    %c0_45 = arith.constant 0 : index
    %c2_46 = arith.constant 2 : index
    %c0_47 = arith.constant 0 : index
    %c0_48 = arith.constant 0 : index
    %24 = vector.load %arg1[%c0_45, %c2_46, %c0_47, %c0_48] : memref<2x18x18x4xf32, #tpu.memory_space<vmem>>, vector<2x16x16x4xf32>
    %25 = arith.truncf %24 : vector<2x16x16x4xf32> to vector<2x16x16x4xbf16>
    %c0_49 = arith.constant 0 : index
    %c2_50 = arith.constant 2 : index
    %c0_51 = arith.constant 0 : index
    %c0_52 = arith.constant 0 : index
    %26 = vector.load %arg2[%c0_49, %c2_50, %c0_51, %c0_52] : memref<2x18x18x4xf32, #tpu.memory_space<vmem>>, vector<2x16x16x4xf32>
    %27 = arith.truncf %26 : vector<2x16x16x4xf32> to vector<2x16x16x4xbf16>
    %c0_53 = arith.constant 0 : index
    %c2_54 = arith.constant 2 : index
    %c1_55 = arith.constant 1 : index
    %c0_56 = arith.constant 0 : index
    %28 = vector.load %arg1[%c0_53, %c2_54, %c1_55, %c0_56] : memref<2x18x18x4xf32, #tpu.memory_space<vmem>>, vector<2x16x16x4xf32>
    %29 = arith.truncf %28 : vector<2x16x16x4xf32> to vector<2x16x16x4xbf16>
    %c0_57 = arith.constant 0 : index
    %c2_58 = arith.constant 2 : index
    %c1_59 = arith.constant 1 : index
    %c0_60 = arith.constant 0 : index
    %30 = vector.load %arg2[%c0_57, %c2_58, %c1_59, %c0_60] : memref<2x18x18x4xf32, #tpu.memory_space<vmem>>, vector<2x16x16x4xf32>
    %31 = arith.truncf %30 : vector<2x16x16x4xf32> to vector<2x16x16x4xbf16>
    %c0_61 = arith.constant 0 : index
    %c2_62 = arith.constant 2 : index
    %c2_63 = arith.constant 2 : index
    %c0_64 = arith.constant 0 : index
    %32 = vector.load %arg1[%c0_61, %c2_62, %c2_63, %c0_64] : memref<2x18x18x4xf32, #tpu.memory_space<vmem>>, vector<2x16x16x4xf32>
    %33 = arith.truncf %32 : vector<2x16x16x4xf32> to vector<2x16x16x4xbf16>
    %c0_65 = arith.constant 0 : index
    %c2_66 = arith.constant 2 : index
    %c2_67 = arith.constant 2 : index
    %c0_68 = arith.constant 0 : index
    %34 = vector.load %arg2[%c0_65, %c2_66, %c2_67, %c0_68] : memref<2x18x18x4xf32, #tpu.memory_space<vmem>>, vector<2x16x16x4xf32>
    %35 = arith.truncf %34 : vector<2x16x16x4xf32> to vector<2x16x16x4xbf16>
    %36 = tpu.concatenate %1, %3, %5, %7, %9, %11, %13, %15, %17, %19, %21, %23, %25, %27, %29, %31 in 3 : vector<2x16x16x4xbf16>, vector<2x16x16x4xbf16>, vector<2x16x16x4xbf16>, vector<2x16x16x4xbf16>, vector<2x16x16x4xbf16>, vector<2x16x16x4xbf16>, vector<2x16x16x4xbf16>, vector<2x16x16x4xbf16>, vector<2x16x16x4xbf16>, vector<2x16x16x4xbf16>, vector<2x16x16x4xbf16>, vector<2x16x16x4xbf16>, vector<2x16x16x4xbf16>, vector<2x16x16x4xbf16>, vector<2x16x16x4xbf16>, vector<2x16x16x4xbf16> -> vector<2x16x16x64xbf16>
    %37 = tpu.concatenate %33, %35 in 3 : vector<2x16x16x4xbf16>, vector<2x16x16x4xbf16> -> vector<2x16x16x8xbf16>
    %38 = tpu.concatenate %36, %37 in 3 : vector<2x16x16x64xbf16>, vector<2x16x16x8xbf16> -> vector<2x16x16x72xbf16>
    %39 = vector.shape_cast %38 : vector<2x16x16x72xbf16> to vector<512x72xbf16>
    %c0_69 = arith.constant 0 : index
    %c0_70 = arith.constant 0 : index
    %40 = vector.load %arg3[%c0_69, %c0_70] : memref<72x4xbf16, #tpu.memory_space<vmem>>, vector<72x4xbf16>
    %cst = arith.constant dense<0.000000e+00> : vector<512x4xf32>
    %41 = tpu.matmul %39, %40, %cst {dimension_numbers = #tpu.dot_dimension_numbers<[1], [0], [0], [1], [0, 0, 1, 1], [], []>} : vector<512x72xbf16>, vector<72x4xbf16>, vector<512x4xf32> -> vector<512x4xf32>
    %c0_71 = arith.constant 0 : index
    %c0_72 = arith.constant 0 : index
    %42 = vector.load %arg4[%c0_71, %c0_72] : memref<1x4xf32, #tpu.memory_space<vmem>>, vector<1x4xf32>
    %43 = vector.broadcast %42 : vector<1x4xf32> to vector<512x4xf32>
    %44 = arith.addf %41, %43 : vector<512x4xf32>
    %c0_73 = arith.constant 0 : index
    %c0_74 = arith.constant 0 : index
    %45 = vector.load %arg5[%c0_73, %c0_74] : memref<1x4xf32, #tpu.memory_space<vmem>>, vector<1x4xf32>
    %c0_75 = arith.constant 0 : index
    %c0_76 = arith.constant 0 : index
    %46 = vector.load %arg6[%c0_75, %c0_76] : memref<1x4xf32, #tpu.memory_space<vmem>>, vector<1x4xf32>
    %cst_77 = arith.constant dense<0.000000e+00> : vector<4xf32>
    %47 = vector.multi_reduction <add>, %44, %cst_77 [0] : vector<512x4xf32> to vector<4xf32>
    %48 = vector.shape_cast %47 : vector<4xf32> to vector<1x4xf32>
    %cst_78 = arith.constant 5.120000e+02 : f32
    %49 = vector.broadcast %cst_78 : f32 to vector<1x4xf32>
    %50 = arith.divf %48, %49 : vector<1x4xf32>
    %51 = vector.broadcast %50 : vector<1x4xf32> to vector<512x4xf32>
    %52 = arith.subf %44, %51 : vector<512x4xf32>
    %53 = arith.mulf %52, %52 : vector<512x4xf32>
    %cst_79 = arith.constant dense<0.000000e+00> : vector<4xf32>
    %54 = vector.multi_reduction <add>, %53, %cst_79 [0] : vector<512x4xf32> to vector<4xf32>
    %55 = vector.shape_cast %54 : vector<4xf32> to vector<1x4xf32>
    %cst_80 = arith.constant 5.120000e+02 : f32
    %56 = vector.broadcast %cst_80 : f32 to vector<1x4xf32>
    %57 = arith.divf %55, %56 : vector<1x4xf32>
    %58 = vector.broadcast %50 : vector<1x4xf32> to vector<512x4xf32>
    %59 = arith.subf %44, %58 : vector<512x4xf32>
    %cst_81 = arith.constant 9.99999974E-6 : f32
    %60 = vector.broadcast %cst_81 : f32 to vector<1x4xf32>
    %61 = arith.addf %57, %60 : vector<1x4xf32>
    %62 = math.rsqrt %61 : vector<1x4xf32>
    %63 = vector.broadcast %62 : vector<1x4xf32> to vector<512x4xf32>
    %64 = arith.mulf %59, %63 : vector<512x4xf32>
    %65 = vector.broadcast %45 : vector<1x4xf32> to vector<512x4xf32>
    %66 = arith.mulf %64, %65 : vector<512x4xf32>
    %67 = vector.broadcast %46 : vector<1x4xf32> to vector<512x4xf32>
    %68 = arith.addf %66, %67 : vector<512x4xf32>
    %cst_82 = arith.constant 0.000000e+00 : f32
    %69 = vector.broadcast %cst_82 : f32 to vector<512x4xf32>
    %70 = arith.maximumf %68, %69 : vector<512x4xf32>
    %cst_83 = arith.constant 0.000000e+00 : f32
    %71 = vector.broadcast %cst_83 : f32 to vector<2x1x18x4xf32>
    %cst_84 = arith.constant 0.000000e+00 : f32
    %72 = vector.broadcast %cst_84 : f32 to vector<2x18x1x4xf32>
    %c0_85 = arith.constant 0 : index
    %c0_86 = arith.constant 0 : index
    %c0_87 = arith.constant 0 : index
    %c0_88 = arith.constant 0 : index
    %73 = vector.load %arg12[%c0_85, %c0_86, %c0_87, %c0_88] : memref<2x18x18x4xf32, #tpu.memory_space<vmem>>, vector<2x1x18x4xf32>
    tpu.vector_store %arg12[%c0_85, %c0_86, %c0_87, %c0_88], %71 {strides = array<i32>} : memref<2x18x18x4xf32, #tpu.memory_space<vmem>>, vector<2x1x18x4xf32>,
    %c0_89 = arith.constant 0 : index
    %c17 = arith.constant 17 : index
    %c0_90 = arith.constant 0 : index
    %c0_91 = arith.constant 0 : index
    %74 = vector.load %arg12[%c0_89, %c17, %c0_90, %c0_91] : memref<2x18x18x4xf32, #tpu.memory_space<vmem>>, vector<2x1x18x4xf32>
    tpu.vector_store %arg12[%c0_89, %c17, %c0_90, %c0_91], %71 {strides = array<i32>} : memref<2x18x18x4xf32, #tpu.memory_space<vmem>>, vector<2x1x18x4xf32>,
    %c0_92 = arith.constant 0 : index
    %c0_93 = arith.constant 0 : index
    %c0_94 = arith.constant 0 : index
    %c0_95 = arith.constant 0 : index
    %75 = vector.load %arg12[%c0_92, %c0_93, %c0_94, %c0_95] : memref<2x18x18x4xf32, #tpu.memory_space<vmem>>, vector<2x18x1x4xf32>
    tpu.vector_store %arg12[%c0_92, %c0_93, %c0_94, %c0_95], %72 {strides = array<i32>} : memref<2x18x18x4xf32, #tpu.memory_space<vmem>>, vector<2x18x1x4xf32>,
    %c0_96 = arith.constant 0 : index
    %c0_97 = arith.constant 0 : index
    %c17_98 = arith.constant 17 : index
    %c0_99 = arith.constant 0 : index
    %76 = vector.load %arg12[%c0_96, %c0_97, %c17_98, %c0_99] : memref<2x18x18x4xf32, #tpu.memory_space<vmem>>, vector<2x18x1x4xf32>
    tpu.vector_store %arg12[%c0_96, %c0_97, %c17_98, %c0_99], %72 {strides = array<i32>} : memref<2x18x18x4xf32, #tpu.memory_space<vmem>>, vector<2x18x1x4xf32>,
    %77 = vector.shape_cast %70 : vector<512x4xf32> to vector<2x16x16x4xf32>
    %c0_100 = arith.constant 0 : index
    %c1_101 = arith.constant 1 : index
    %c1_102 = arith.constant 1 : index
    %c0_103 = arith.constant 0 : index
    %78 = vector.load %arg12[%c0_100, %c1_101, %c1_102, %c0_103] : memref<2x18x18x4xf32, #tpu.memory_space<vmem>>, vector<2x16x16x4xf32>
    tpu.vector_store %arg12[%c0_100, %c1_101, %c1_102, %c0_103], %77 {strides = array<i32>} : memref<2x18x18x4xf32, #tpu.memory_space<vmem>>, vector<2x16x16x4xf32>,
    %c0_104 = arith.constant 0 : index
    %c0_105 = arith.constant 0 : index
    %c0_106 = arith.constant 0 : index
    %c0_107 = arith.constant 0 : index
    %79 = vector.load %arg12[%c0_104, %c0_105, %c0_106, %c0_107] : memref<2x18x18x4xf32, #tpu.memory_space<vmem>>, vector<2x16x16x4xf32>
    %80 = arith.truncf %79 : vector<2x16x16x4xf32> to vector<2x16x16x4xbf16>
    %c0_108 = arith.constant 0 : index
    %c0_109 = arith.constant 0 : index
    %c1_110 = arith.constant 1 : index
    %c0_111 = arith.constant 0 : index
    %81 = vector.load %arg12[%c0_108, %c0_109, %c1_110, %c0_111] : memref<2x18x18x4xf32, #tpu.memory_space<vmem>>, vector<2x16x16x4xf32>
    %82 = arith.truncf %81 : vector<2x16x16x4xf32> to vector<2x16x16x4xbf16>
    %c0_112 = arith.constant 0 : index
    %c0_113 = arith.constant 0 : index
    %c2_114 = arith.constant 2 : index
    %c0_115 = arith.constant 0 : index
    %83 = vector.load %arg12[%c0_112, %c0_113, %c2_114, %c0_115] : memref<2x18x18x4xf32, #tpu.memory_space<vmem>>, vector<2x16x16x4xf32>
    %84 = arith.truncf %83 : vector<2x16x16x4xf32> to vector<2x16x16x4xbf16>
    %c0_116 = arith.constant 0 : index
    %c1_117 = arith.constant 1 : index
    %c0_118 = arith.constant 0 : index
    %c0_119 = arith.constant 0 : index
    %85 = vector.load %arg12[%c0_116, %c1_117, %c0_118, %c0_119] : memref<2x18x18x4xf32, #tpu.memory_space<vmem>>, vector<2x16x16x4xf32>
    %86 = arith.truncf %85 : vector<2x16x16x4xf32> to vector<2x16x16x4xbf16>
    %c0_120 = arith.constant 0 : index
    %c1_121 = arith.constant 1 : index
    %c1_122 = arith.constant 1 : index
    %c0_123 = arith.constant 0 : index
    %87 = vector.load %arg12[%c0_120, %c1_121, %c1_122, %c0_123] : memref<2x18x18x4xf32, #tpu.memory_space<vmem>>, vector<2x16x16x4xf32>
    %88 = arith.truncf %87 : vector<2x16x16x4xf32> to vector<2x16x16x4xbf16>
    %c0_124 = arith.constant 0 : index
    %c1_125 = arith.constant 1 : index
    %c2_126 = arith.constant 2 : index
    %c0_127 = arith.constant 0 : index
    %89 = vector.load %arg12[%c0_124, %c1_125, %c2_126, %c0_127] : memref<2x18x18x4xf32, #tpu.memory_space<vmem>>, vector<2x16x16x4xf32>
    %90 = arith.truncf %89 : vector<2x16x16x4xf32> to vector<2x16x16x4xbf16>
    %c0_128 = arith.constant 0 : index
    %c2_129 = arith.constant 2 : index
    %c0_130 = arith.constant 0 : index
    %c0_131 = arith.constant 0 : index
    %91 = vector.load %arg12[%c0_128, %c2_129, %c0_130, %c0_131] : memref<2x18x18x4xf32, #tpu.memory_space<vmem>>, vector<2x16x16x4xf32>
    %92 = arith.truncf %91 : vector<2x16x16x4xf32> to vector<2x16x16x4xbf16>
    %c0_132 = arith.constant 0 : index
    %c2_133 = arith.constant 2 : index
    %c1_134 = arith.constant 1 : index
    %c0_135 = arith.constant 0 : index
    %93 = vector.load %arg12[%c0_132, %c2_133, %c1_134, %c0_135] : memref<2x18x18x4xf32, #tpu.memory_space<vmem>>, vector<2x16x16x4xf32>
    %94 = arith.truncf %93 : vector<2x16x16x4xf32> to vector<2x16x16x4xbf16>
    %c0_136 = arith.constant 0 : index
    %c2_137 = arith.constant 2 : index
    %c2_138 = arith.constant 2 : index
    %c0_139 = arith.constant 0 : index
    %95 = vector.load %arg12[%c0_136, %c2_137, %c2_138, %c0_139] : memref<2x18x18x4xf32, #tpu.memory_space<vmem>>, vector<2x16x16x4xf32>
    %96 = arith.truncf %95 : vector<2x16x16x4xf32> to vector<2x16x16x4xbf16>
    %97 = tpu.concatenate %80, %82, %84, %86, %88, %90, %92, %94, %96 in 3 : vector<2x16x16x4xbf16>, vector<2x16x16x4xbf16>, vector<2x16x16x4xbf16>, vector<2x16x16x4xbf16>, vector<2x16x16x4xbf16>, vector<2x16x16x4xbf16>, vector<2x16x16x4xbf16>, vector<2x16x16x4xbf16>, vector<2x16x16x4xbf16> -> vector<2x16x16x36xbf16>
    %98 = vector.shape_cast %97 : vector<2x16x16x36xbf16> to vector<512x36xbf16>
    %c0_140 = arith.constant 0 : index
    %c0_141 = arith.constant 0 : index
    %99 = vector.load %arg7[%c0_140, %c0_141] : memref<36x128xbf16, #tpu.memory_space<vmem>>, vector<36x128xbf16>
    %cst_142 = arith.constant dense<0.000000e+00> : vector<512x128xf32>
    %100 = tpu.matmul %98, %99, %cst_142 {dimension_numbers = #tpu.dot_dimension_numbers<[1], [0], [0], [1], [0, 0, 1, 1], [], []>} : vector<512x36xbf16>, vector<36x128xbf16>, vector<512x128xf32> -> vector<512x128xf32>
    %c0_143 = arith.constant 0 : index
    %c0_144 = arith.constant 0 : index
    %101 = vector.load %arg8[%c0_143, %c0_144] : memref<1x128xf32, #tpu.memory_space<vmem>>, vector<1x128xf32>
    %102 = vector.broadcast %101 : vector<1x128xf32> to vector<512x128xf32>
    %103 = arith.addf %100, %102 : vector<512x128xf32>
    %c0_145 = arith.constant 0 : index
    %c0_146 = arith.constant 0 : index
    %104 = vector.load %arg9[%c0_145, %c0_146] : memref<1x128xf32, #tpu.memory_space<vmem>>, vector<1x128xf32>
    %c0_147 = arith.constant 0 : index
    %c0_148 = arith.constant 0 : index
    %105 = vector.load %arg10[%c0_147, %c0_148] : memref<1x128xf32, #tpu.memory_space<vmem>>, vector<1x128xf32>
    %cst_149 = arith.constant dense<0.000000e+00> : vector<128xf32>
    %106 = vector.multi_reduction <add>, %103, %cst_149 [0] : vector<512x128xf32> to vector<128xf32>
    %107 = vector.shape_cast %106 : vector<128xf32> to vector<1x128xf32>
    %cst_150 = arith.constant 5.120000e+02 : f32
    %108 = vector.broadcast %cst_150 : f32 to vector<1x128xf32>
    %109 = arith.divf %107, %108 : vector<1x128xf32>
    %110 = vector.broadcast %109 : vector<1x128xf32> to vector<512x128xf32>
    %111 = arith.subf %103, %110 : vector<512x128xf32>
    %112 = arith.mulf %111, %111 : vector<512x128xf32>
    %cst_151 = arith.constant dense<0.000000e+00> : vector<128xf32>
    %113 = vector.multi_reduction <add>, %112, %cst_151 [0] : vector<512x128xf32> to vector<128xf32>
    %114 = vector.shape_cast %113 : vector<128xf32> to vector<1x128xf32>
    %cst_152 = arith.constant 5.120000e+02 : f32
    %115 = vector.broadcast %cst_152 : f32 to vector<1x128xf32>
    %116 = arith.divf %114, %115 : vector<1x128xf32>
    %117 = vector.broadcast %109 : vector<1x128xf32> to vector<512x128xf32>
    %118 = arith.subf %103, %117 : vector<512x128xf32>
    %cst_153 = arith.constant 9.99999974E-6 : f32
    %119 = vector.broadcast %cst_153 : f32 to vector<1x128xf32>
    %120 = arith.addf %116, %119 : vector<1x128xf32>
    %121 = math.rsqrt %120 : vector<1x128xf32>
    %122 = vector.broadcast %121 : vector<1x128xf32> to vector<512x128xf32>
    %123 = arith.mulf %118, %122 : vector<512x128xf32>
    %124 = vector.broadcast %104 : vector<1x128xf32> to vector<512x128xf32>
    %125 = arith.mulf %123, %124 : vector<512x128xf32>
    %126 = vector.broadcast %105 : vector<1x128xf32> to vector<512x128xf32>
    %127 = arith.addf %125, %126 : vector<512x128xf32>
    %cst_154 = arith.constant 0.000000e+00 : f32
    %128 = vector.broadcast %cst_154 : f32 to vector<512x128xf32>
    %129 = arith.maximumf %127, %128 : vector<512x128xf32>
    %130 = vector.shape_cast %129 : vector<512x128xf32> to vector<2x16x16x128xf32>
    %c0_155 = arith.constant 0 : index
    %c0_156 = arith.constant 0 : index
    %c0_157 = arith.constant 0 : index
    %c0_158 = arith.constant 0 : index
    %131 = vector.load %arg11[%c0_155, %c0_156, %c0_157, %c0_158] : memref<2x16x16x128xf32, #tpu.memory_space<vmem>>, vector<2x16x16x128xf32>
    tpu.vector_store %arg11[%c0_155, %c0_156, %c0_157, %c0_158], %130 {strides = array<i32>} : memref<2x16x16x128xf32, #tpu.memory_space<vmem>>, vector<2x16x16x128xf32>,
    return
  }
  func.func @transform_0(%arg0: i32) -> (i32, i32, i32, i32) {
    %c0_i32 = arith.constant 0 : i32
    %c0_i32_0 = arith.constant 0 : i32
    %c0_i32_1 = arith.constant 0 : i32
    %c0_i32_2 = arith.constant 0 : i32
    %c0_i32_3 = arith.constant 0 : i32
    return %c0_i32, %c0_i32_0, %c0_i32_1, %c0_i32_2 : i32, i32, i32, i32
  }
  func.func @transform_1(%arg0: i32) -> (i32, i32, i32, i32) {
    %c0_i32 = arith.constant 0 : i32
    %c0_i32_0 = arith.constant 0 : i32
    %c0_i32_1 = arith.constant 0 : i32
    %c0_i32_2 = arith.constant 0 : i32
    %c0_i32_3 = arith.constant 0 : i32
    return %c0_i32, %c0_i32_0, %c0_i32_1, %c0_i32_2 : i32, i32, i32, i32
  }
  func.func @transform_2(%arg0: i32) -> (i32, i32) {
    %c0_i32 = arith.constant 0 : i32
    %c0_i32_0 = arith.constant 0 : i32
    %c0_i32_1 = arith.constant 0 : i32
    return %c0_i32, %c0_i32_0 : i32, i32
  }
  func.func @transform_3(%arg0: i32) -> (i32, i32) {
    %c0_i32 = arith.constant 0 : i32
    %c0_i32_0 = arith.constant 0 : i32
    %c0_i32_1 = arith.constant 0 : i32
    return %c0_i32, %c0_i32_0 : i32, i32
  }
  func.func @transform_4(%arg0: i32) -> (i32, i32) {
    %c0_i32 = arith.constant 0 : i32
    %c0_i32_0 = arith.constant 0 : i32
    %c0_i32_1 = arith.constant 0 : i32
    return %c0_i32, %c0_i32_0 : i32, i32
  }
  func.func @transform_5(%arg0: i32) -> (i32, i32) {
    %c0_i32 = arith.constant 0 : i32
    %c0_i32_0 = arith.constant 0 : i32
    %c0_i32_1 = arith.constant 0 : i32
    return %c0_i32, %c0_i32_0 : i32, i32
  }
  func.func @transform_6(%arg0: i32) -> (i32, i32) {
    %c0_i32 = arith.constant 0 : i32
    %c0_i32_0 = arith.constant 0 : i32
    %c0_i32_1 = arith.constant 0 : i32
    return %c0_i32, %c0_i32_0 : i32, i32
  }
  func.func @transform_7(%arg0: i32) -> (i32, i32) {
    %c0_i32 = arith.constant 0 : i32
    %c0_i32_0 = arith.constant 0 : i32
    %c0_i32_1 = arith.constant 0 : i32
    return %c0_i32, %c0_i32_0 : i32, i32
  }
  func.func @transform_8(%arg0: i32) -> (i32, i32) {
    %c0_i32 = arith.constant 0 : i32
    %c0_i32_0 = arith.constant 0 : i32
    %c0_i32_1 = arith.constant 0 : i32
    return %c0_i32, %c0_i32_0 : i32, i32
  }
  func.func @transform_9(%arg0: i32) -> (i32, i32) {
    %c0_i32 = arith.constant 0 : i32
    %c0_i32_0 = arith.constant 0 : i32
    %c0_i32_1 = arith.constant 0 : i32
    return %c0_i32, %c0_i32_0 : i32, i32
  }
  func.func @transform_10(%arg0: i32) -> (i32, i32, i32, i32) {
    %c0_i32 = arith.constant 0 : i32
    %c0_i32_0 = arith.constant 0 : i32
    %c0_i32_1 = arith.constant 0 : i32
    %c0_i32_2 = arith.constant 0 : i32
    %c0_i32_3 = arith.constant 0 : i32
    return %c0_i32, %c0_i32_0, %c0_i32_1, %c0_i32_2 : i32, i32, i32, i32
  }
}

</mosaic_0001>

<llo_original>
// kernel: up_forward.2
$region0: #{up_forward.2}
  #allocation0 [shape = 'u32[]', space=smem, size = 0x4, offset = 0x4, fixed_abs, tag = 'smem constant byte address 0x4 - core index']
  #allocation1 [shape = 'u32[72,128]{1,0:T(1,128)}', space=vmem, size = 0x9000, scoped, tag = 'internal scratch']
  %s0 = inlined_call_operand.vmem [shape: f32[8,18,8], index: 0, kind: input, shape index: {}, may-alias: {0,1}]
  %s1 = inlined_call_operand.vmem [shape: f32[8,18,8], index: 1, kind: input, shape index: {}, may-alias: {0,1}]
  %s2 = inlined_call_operand.vmem [shape: f32[8,8,8], index: 2, kind: input, shape index: {}]
  %s3 = inlined_call_operand.vmem [shape: f32[8,18,18], index: 3, kind: output, shape index: {}]
  %s4 = sld [smem:[#allocation0]]
  $region22: #{up_forward.2} parent=0
    _
  %s6 = ssub.s32 1, %s4
  %s7 = scalar_select 0, %s6, %s4
  // Predicated region
  $region2: #{up_forward.2} parent=0 // pred_check
    _
  $region3: #{up_forward.2} parent=0 // pred_check_branch
    %9 = sbr.rel (0) target = $region5
  $region4: #{up_forward.2} parent=0 // pred_region
    _
  $region5: #{up_forward.2} parent=0 // pred_fallthru
    _
  // Predicated region
  $region6: #{up_forward.2} parent=0 // pred_check
    _
  $region7: #{up_forward.2} parent=0 // pred_check_branch
    %11 = sbr.rel (0) target = $region9
  $region8: #{up_forward.2} parent=0 // pred_region
    _
  $region9: #{up_forward.2} parent=0 // pred_fallthru
    _
  // Predicated region
  $region10: #{up_forward.2} parent=0 // pred_check
    _
  $region11: #{up_forward.2} parent=0 // pred_check_branch
    %13 = sbr.rel (0) target = $region13
  $region12: #{up_forward.2} parent=0 // pred_region
    _
  $region13: #{up_forward.2} parent=0 // pred_fallthru
    _
  %v14 = vld [vmem:[%s0] sm:$0xff]
  %v15 = vld [vmem:[%s0 + $0x8] sm:$0xff]
  %v16 = vld [vmem:[%s0 + $0x10] sm:$0x3]
  %v17 = vld [vmem:[%s0 + $0x18] sm:$0xff]
  %v18 = vld [vmem:[%s0 + $0x20] sm:$0xff]
  %v19 = vld [vmem:[%s0 + $0x28] sm:$0x3]
  %v20 = vld [vmem:[%s0 + $0x30] sm:$0xff]
  %v21 = vld [vmem:[%s0 + $0x38] sm:$0xff]
  %v22 = vld [vmem:[%s0 + $0x40] sm:$0x3]
  %v23 = vld [vmem:[%s0 + $0x48] sm:$0xff]
  %v24 = vld [vmem:[%s0 + $0x50] sm:$0xff]
  %v25 = vld [vmem:[%s0 + $0x58] sm:$0x3]
  %v26 = vld [vmem:[%s0 + $0x60] sm:$0xff]
  %v27 = vld [vmem:[%s0 + $0x68] sm:$0xff]
  %v28 = vld [vmem:[%s0 + $0x70] sm:$0x3]
  %v29 = vld [vmem:[%s0 + $0x78] sm:$0xff]
  %v30 = vld [vmem:[%s0 + $0x80] sm:$0xff]
  %v31 = vld [vmem:[%s0 + $0x88] sm:$0x3]
  %v32 = vld [vmem:[%s0 + $0x90] sm:$0xff]
  %v33 = vld [vmem:[%s0 + $0x98] sm:$0xff]
  %v34 = vld [vmem:[%s0 + $0xa0] sm:$0x3]
  %v35 = vld [vmem:[%s0 + $0xa8] sm:$0xff]
  %v36 = vld [vmem:[%s0 + $0xb0] sm:$0xff]
  %v37 = vld [vmem:[%s0 + $0xb8] sm:$0x3]
  %v38 = vld [vmem:[%s2] sm:$0xff]
  %v39 = vld [vmem:[%s2 + $0x8] sm:$0xff]
  %v40 = vld [vmem:[%s2 + $0x10] sm:$0xff]
  %v41 = vld [vmem:[%s2 + $0x18] sm:$0xff]
  %v42 = vld [vmem:[%s2 + $0x20] sm:$0xff]
  %v43 = vld [vmem:[%s2 + $0x28] sm:$0xff]
  %v44 = vld [vmem:[%s2 + $0x30] sm:$0xff]
  %v45 = vld [vmem:[%s2 + $0x38] sm:$0xff]
  %vm46 = vcmask 64512
  %v48 = vsel %vm46, %v14, 0
  %v51 = vsel %vm46, %v15, 0
  %v54 = vsel %vm46, %v16, 0
  %56 = vmatpush.msra.mxu0 0.0
  %57 = vmatpush.msra.mxu0 0.0
  %58 = vmatpush.msra.mxu0 0.0
  %59 = vmatpush.msra.mxu0 0.0
  %60 = vmatpush.msra.mxu0 0.0
  %61 = vmatpush.msra.mxu0 0.0
  %62 = vmatpush.msra.mxu0 0.0
  %63 = vmatpush.msra.mxu0 0.0
  %64 = vmatpush.msra.mxu0 0.0
  %65 = vmatpush.msra.mxu0 0.0
  %66 = vmatpush.msra.mxu0 0.0
  %67 = vmatpush.msra.mxu0 0.0
  %68 = vmatpush.msra.mxu0 0.0
  %69 = vmatpush.msra.mxu0 0.0
  %70 = vmatpush.msra.mxu0 0.0
  %71 = vmatpush.msra.mxu0 %v38
  %72 = vmatmul.f32.gmra.mxu0 %v48
  %v73 = vpop.f32.mrf.mxu0
  %v74 = vadd.f32 0.0, %v73
  %75 = vmatmul.f32.gmra.mxu0 %v51
  %v76 = vpop.f32.mrf.mxu0
  %v77 = vadd.f32 0.0, %v76
  %78 = vmatmul.f32.gmra.mxu0 %v54
  %v79 = vpop.f32.mrf.mxu0
  %v80 = vadd.f32 0.0, %v79
  %81 = vdwg.mxu0
  %v83 = vsel %vm46, %v17, 0
  %v86 = vsel %vm46, %v18, 0
  %v89 = vsel %vm46, %v19, 0
  %91 = vmatpush.msra.mxu0 0.0
  %92 = vmatpush.msra.mxu0 0.0
  %93 = vmatpush.msra.mxu0 0.0
  %94 = vmatpush.msra.mxu0 0.0
  %95 = vmatpush.msra.mxu0 0.0
  %96 = vmatpush.msra.mxu0 0.0
  %97 = vmatpush.msra.mxu0 0.0
  %98 = vmatpush.msra.mxu0 0.0
  %99 = vmatpush.msra.mxu0 0.0
  %100 = vmatpush.msra.mxu0 0.0
  %101 = vmatpush.msra.mxu0 0.0
  %102 = vmatpush.msra.mxu0 0.0
  %103 = vmatpush.msra.mxu0 0.0
  %104 = vmatpush.msra.mxu0 0.0
  %105 = vmatpush.msra.mxu0 0.0
  %106 = vmatpush.msra.mxu0 %v39
  %107 = vmatmul.f32.gmra.mxu0 %v83
  %v108 = vpop.f32.mrf.mxu0
  %v109 = vadd.f32 0.0, %v108
  %110 = vmatmul.f32.gmra.mxu0 %v86
  %v111 = vpop.f32.mrf.mxu0
  %v112 = vadd.f32 0.0, %v111
  %113 = vmatmul.f32.gmra.mxu0 %v89
  %v114 = vpop.f32.mrf.mxu0
  %v115 = vadd.f32 0.0, %v114
  %116 = vdwg.mxu0
  %v118 = vsel %vm46, %v20, 0
  %v121 = vsel %vm46, %v21, 0
  %v124 = vsel %vm46, %v22, 0
  %126 = vmatpush.msra.mxu0 0.0
  %127 = vmatpush.msra.mxu0 0.0
  %128 = vmatpush.msra.mxu0 0.0
  %129 = vmatpush.msra.mxu0 0.0
  %130 = vmatpush.msra.mxu0 0.0
  %131 = vmatpush.msra.mxu0 0.0
  %132 = vmatpush.msra.mxu0 0.0
  %133 = vmatpush.msra.mxu0 0.0
  %134 = vmatpush.msra.mxu0 0.0
  %135 = vmatpush.msra.mxu0 0.0
  %136 = vmatpush.msra.mxu0 0.0
  %137 = vmatpush.msra.mxu0 0.0
  %138 = vmatpush.msra.mxu0 0.0
  %139 = vmatpush.msra.mxu0 0.0
  %140 = vmatpush.msra.mxu0 0.0
  %141 = vmatpush.msra.mxu0 %v40
  %142 = vmatmul.f32.gmra.mxu0 %v118
  %v143 = vpop.f32.mrf.mxu0
  %v144 = vadd.f32 0.0, %v143
  %145 = vmatmul.f32.gmra.mxu0 %v121
  %v146 = vpop.f32.mrf.mxu0
  %v147 = vadd.f32 0.0, %v146
  %148 = vmatmul.f32.gmra.mxu0 %v124
  %v149 = vpop.f32.mrf.mxu0
  %v150 = vadd.f32 0.0, %v149
  %151 = vdwg.mxu0
  %v153 = vsel %vm46, %v23, 0
  %v156 = vsel %vm46, %v24, 0
  %v159 = vsel %vm46, %v25, 0
  %161 = vmatpush.msra.mxu0 0.0
  %162 = vmatpush.msra.mxu0 0.0
  %163 = vmatpush.msra.mxu0 0.0
  %164 = vmatpush.msra.mxu0 0.0
  %165 = vmatpush.msra.mxu0 0.0
  %166 = vmatpush.msra.mxu0 0.0
  %167 = vmatpush.msra.mxu0 0.0
  %168 = vmatpush.msra.mxu0 0.0
  %169 = vmatpush.msra.mxu0 0.0
  %170 = vmatpush.msra.mxu0 0.0
  %171 = vmatpush.msra.mxu0 0.0
  %172 = vmatpush.msra.mxu0 0.0
  %173 = vmatpush.msra.mxu0 0.0
  %174 = vmatpush.msra.mxu0 0.0
  %175 = vmatpush.msra.mxu0 0.0
  %176 = vmatpush.msra.mxu0 %v41
  %177 = vmatmul.f32.gmra.mxu0 %v153
  %v178 = vpop.f32.mrf.mxu0
  %v179 = vadd.f32 0.0, %v178
  %180 = vmatmul.f32.gmra.mxu0 %v156
  %v181 = vpop.f32.mrf.mxu0
  %v182 = vadd.f32 0.0, %v181
  %183 = vmatmul.f32.gmra.mxu0 %v159
  %v184 = vpop.f32.mrf.mxu0
  %v185 = vadd.f32 0.0, %v184
  %186 = vdwg.mxu0
  %v188 = vsel %vm46, %v26, 0
  %v191 = vsel %vm46, %v27, 0
  %v194 = vsel %vm46, %v28, 0
  %196 = vmatpush.msra.mxu0 0.0
  %197 = vmatpush.msra.mxu0 0.0
  %198 = vmatpush.msra.mxu0 0.0
  %199 = vmatpush.msra.mxu0 0.0
  %200 = vmatpush.msra.mxu0 0.0
  %201 = vmatpush.msra.mxu0 0.0
  %202 = vmatpush.msra.mxu0 0.0
  %203 = vmatpush.msra.mxu0 0.0
  %204 = vmatpush.msra.mxu0 0.0
  %205 = vmatpush.msra.mxu0 0.0
  %206 = vmatpush.msra.mxu0 0.0
  %207 = vmatpush.msra.mxu0 0.0
  %208 = vmatpush.msra.mxu0 0.0
  %209 = vmatpush.msra.mxu0 0.0
  %210 = vmatpush.msra.mxu0 0.0
  %211 = vmatpush.msra.mxu0 %v42
  %212 = vmatmul.f32.gmra.mxu0 %v188
  %v213 = vpop.f32.mrf.mxu0
  %v214 = vadd.f32 0.0, %v213
  %215 = vmatmul.f32.gmra.mxu0 %v191
  %v216 = vpop.f32.mrf.mxu0
  %v217 = vadd.f32 0.0, %v216
  %218 = vmatmul.f32.gmra.mxu0 %v194
  %v219 = vpop.f32.mrf.mxu0
  %v220 = vadd.f32 0.0, %v219
  %221 = vdwg.mxu0
  %v223 = vsel %vm46, %v29, 0
  %v226 = vsel %vm46, %v30, 0
  %v229 = vsel %vm46, %v31, 0
  %231 = vmatpush.msra.mxu0 0.0
  %232 = vmatpush.msra.mxu0 0.0
  %233 = vmatpush.msra.mxu0 0.0
  %234 = vmatpush.msra.mxu0 0.0
  %235 = vmatpush.msra.mxu0 0.0
  %236 = vmatpush.msra.mxu0 0.0
  %237 = vmatpush.msra.mxu0 0.0
  %238 = vmatpush.msra.mxu0 0.0
  %239 = vmatpush.msra.mxu0 0.0
  %240 = vmatpush.msra.mxu0 0.0
  %241 = vmatpush.msra.mxu0 0.0
  %242 = vmatpush.msra.mxu0 0.0
  %243 = vmatpush.msra.mxu0 0.0
  %244 = vmatpush.msra.mxu0 0.0
  %245 = vmatpush.msra.mxu0 0.0
  %246 = vmatpush.msra.mxu0 %v43
  %247 = vmatmul.f32.gmra.mxu0 %v223
  %v248 = vpop.f32.mrf.mxu0
  %v249 = vadd.f32 0.0, %v248
  %250 = vmatmul.f32.gmra.mxu0 %v226
  %v251 = vpop.f32.mrf.mxu0
  %v252 = vadd.f32 0.0, %v251
  %253 = vmatmul.f32.gmra.mxu0 %v229
  %v254 = vpop.f32.mrf.mxu0
  %v255 = vadd.f32 0.0, %v254
  %256 = vdwg.mxu0
  %v258 = vsel %vm46, %v32, 0
  %v261 = vsel %vm46, %v33, 0
  %v264 = vsel %vm46, %v34, 0
  %266 = vmatpush.msra.mxu0 0.0
  %267 = vmatpush.msra.mxu0 0.0
  %268 = vmatpush.msra.mxu0 0.0
  %269 = vmatpush.msra.mxu0 0.0
  %270 = vmatpush.msra.mxu0 0.0
  %271 = vmatpush.msra.mxu0 0.0
  %272 = vmatpush.msra.mxu0 0.0
  %273 = vmatpush.msra.mxu0 0.0
  %274 = vmatpush.msra.mxu0 0.0
  %275 = vmatpush.msra.mxu0 0.0
  %276 = vmatpush.msra.mxu0 0.0
  %277 = vmatpush.msra.mxu0 0.0
  %278 = vmatpush.msra.mxu0 0.0
  %279 = vmatpush.msra.mxu0 0.0
  %280 = vmatpush.msra.mxu0 0.0
  %281 = vmatpush.msra.mxu0 %v44
  %282 = vmatmul.f32.gmra.mxu0 %v258
  %v283 = vpop.f32.mrf.mxu0
  %v284 = vadd.f32 0.0, %v283
  %285 = vmatmul.f32.gmra.mxu0 %v261
  %v286 = vpop.f32.mrf.mxu0
  %v287 = vadd.f32 0.0, %v286
  %288 = vmatmul.f32.gmra.mxu0 %v264
  %v289 = vpop.f32.mrf.mxu0
  %v290 = vadd.f32 0.0, %v289
  %291 = vdwg.mxu0
  %v293 = vsel %vm46, %v35, 0
  %v296 = vsel %vm46, %v36, 0
  %v299 = vsel %vm46, %v37, 0
  %301 = vmatpush.msra.mxu0 0.0
  %302 = vmatpush.msra.mxu0 0.0
  %303 = vmatpush.msra.mxu0 0.0
  %304 = vmatpush.msra.mxu0 0.0
  %305 = vmatpush.msra.mxu0 0.0
  %306 = vmatpush.msra.mxu0 0.0
  %307 = vmatpush.msra.mxu0 0.0
  %308 = vmatpush.msra.mxu0 0.0
  %309 = vmatpush.msra.mxu0 0.0
  %310 = vmatpush.msra.mxu0 0.0
  %311 = vmatpush.msra.mxu0 0.0
  %312 = vmatpush.msra.mxu0 0.0
  %313 = vmatpush.msra.mxu0 0.0
  %314 = vmatpush.msra.mxu0 0.0
  %315 = vmatpush.msra.mxu0 0.0
  %316 = vmatpush.msra.mxu0 %v45
  %317 = vmatmul.f32.gmra.mxu0 %v293
  %v318 = vpop.f32.mrf.mxu0
  %v319 = vadd.f32 0.0, %v318
  %320 = vmatmul.f32.gmra.mxu0 %v296
  %v321 = vpop.f32.mrf.mxu0
  %v322 = vadd.f32 0.0, %v321
  %323 = vmatmul.f32.gmra.mxu0 %v299
  %v324 = vpop.f32.mrf.mxu0
  %v325 = vadd.f32 0.0, %v324
  %326 = vdwg.mxu0
  %v327 = vld [vmem:[%s1] sm:$0xff]
  %v328 = vld [vmem:[%s1 + $0x8] sm:$0xff]
  %v329 = vld [vmem:[%s1 + $0x10] sm:$0x3]
  %v330 = vld [vmem:[%s1 + $0x18] sm:$0xff]
  %v331 = vld [vmem:[%s1 + $0x20] sm:$0xff]
  %v332 = vld [vmem:[%s1 + $0x28] sm:$0x3]
  %v333 = vld [vmem:[%s1 + $0x30] sm:$0xff]
  %v334 = vld [vmem:[%s1 + $0x38] sm:$0xff]
  %v335 = vld [vmem:[%s1 + $0x40] sm:$0x3]
  %v336 = vld [vmem:[%s1 + $0x48] sm:$0xff]
  %v337 = vld [vmem:[%s1 + $0x50] sm:$0xff]
  %v338 = vld [vmem:[%s1 + $0x58] sm:$0x3]
  %v339 = vld [vmem:[%s1 + $0x60] sm:$0xff]
  %v340 = vld [vmem:[%s1 + $0x68] sm:$0xff]
  %v341 = vld [vmem:[%s1 + $0x70] sm:$0x3]
  %v342 = vld [vmem:[%s1 + $0x78] sm:$0xff]
  %v343 = vld [vmem:[%s1 + $0x80] sm:$0xff]
  %v344 = vld [vmem:[%s1 + $0x88] sm:$0x3]
  %v345 = vld [vmem:[%s1 + $0x90] sm:$0xff]
  %v346 = vld [vmem:[%s1 + $0x98] sm:$0xff]
  %v347 = vld [vmem:[%s1 + $0xa0] sm:$0x3]
  %v348 = vld [vmem:[%s1 + $0xa8] sm:$0xff]
  %v349 = vld [vmem:[%s1 + $0xb0] sm:$0xff]
  %v350 = vld [vmem:[%s1 + $0xb8] sm:$0x3]
  %v352 = vsel %vm46, %v74, 0
  %v355 = vsel %vm46, %v77, 0
  %v358 = vsel %vm46, %v80, 0
  %v361 = vsel %vm46, %v327, 0
  %v364 = vsel %vm46, %v328, 0
  %v367 = vsel %vm46, %v329, 0
  %369 = vmatpush.xpose.msra.mxu0 0.0
  %370 = vmatpush.xpose.msra.mxu0 0.0
  %371 = vmatpush.xpose.msra.mxu0 0.0
  %372 = vmatpush.xpose.msra.mxu0 0.0
  %373 = vmatpush.xpose.msra.mxu0 0.0
  %374 = vmatpush.xpose.msra.mxu0 0.0
  %375 = vmatpush.xpose.msra.mxu0 0.0
  %376 = vmatpush.xpose.msra.mxu0 0.0
  %377 = vmatpush.xpose.msra.mxu0 0.0
  %378 = vmatpush.xpose.msra.mxu0 0.0
  %379 = vmatpush.xpose.msra.mxu0 0.0
  %380 = vmatpush.xpose.msra.mxu0 0.0
  %381 = vmatpush.xpose.msra.mxu0 0.0
  %382 = vmatpush.xpose.msra.mxu0 %v367
  %383 = vmatpush.xpose.msra.mxu0 %v364
  %384 = vmatpush.xpose.msra.mxu0 %v361
  %385 = vmatmul.f32.gmra.mxu0 %v352
  %v386 = vpop.f32.mrf.mxu0
  %v387 = vadd.f32 0.0, %v386
  %388 = vmatmul.f32.gmra.mxu0 %v355
  %v389 = vpop.f32.mrf.mxu0
  %v390 = vadd.f32 0.0, %v389
  %391 = vmatmul.f32.gmra.mxu0 %v358
  %v392 = vpop.f32.mrf.mxu0
  %v393 = vadd.f32 0.0, %v392
  %394 = vdwg.mxu0
  %v396 = vsel %vm46, %v109, 0
  %v399 = vsel %vm46, %v112, 0
  %v402 = vsel %vm46, %v115, 0
  %v405 = vsel %vm46, %v330, 0
  %v408 = vsel %vm46, %v331, 0
  %v411 = vsel %vm46, %v332, 0
  %413 = vmatpush.xpose.msra.mxu0 0.0
  %414 = vmatpush.xpose.msra.mxu0 0.0
  %415 = vmatpush.xpose.msra.mxu0 0.0
  %416 = vmatpush.xpose.msra.mxu0 0.0
  %417 = vmatpush.xpose.msra.mxu0 0.0
  %418 = vmatpush.xpose.msra.mxu0 0.0
  %419 = vmatpush.xpose.msra.mxu0 0.0
  %420 = vmatpush.xpose.msra.mxu0 0.0
  %421 = vmatpush.xpose.msra.mxu0 0.0
  %422 = vmatpush.xpose.msra.mxu0 0.0
  %423 = vmatpush.xpose.msra.mxu0 0.0
  %424 = vmatpush.xpose.msra.mxu0 0.0
  %425 = vmatpush.xpose.msra.mxu0 0.0
  %426 = vmatpush.xpose.msra.mxu0 %v411
  %427 = vmatpush.xpose.msra.mxu0 %v408
  %428 = vmatpush.xpose.msra.mxu0 %v405
  %429 = vmatmul.f32.gmra.mxu0 %v396
  %v430 = vpop.f32.mrf.mxu0
  %v431 = vadd.f32 0.0, %v430
  %432 = vmatmul.f32.gmra.mxu0 %v399
  %v433 = vpop.f32.mrf.mxu0
  %v434 = vadd.f32 0.0, %v433
  %435 = vmatmul.f32.gmra.mxu0 %v402
  %v436 = vpop.f32.mrf.mxu0
  %v437 = vadd.f32 0.0, %v436
  %438 = vdwg.mxu0
  %v440 = vsel %vm46, %v144, 0
  %v443 = vsel %vm46, %v147, 0
  %v446 = vsel %vm46, %v150, 0
  %v449 = vsel %vm46, %v333, 0
  %v452 = vsel %vm46, %v334, 0
  %v455 = vsel %vm46, %v335, 0
  %457 = vmatpush.xpose.msra.mxu0 0.0
  %458 = vmatpush.xpose.msra.mxu0 0.0
  %459 = vmatpush.xpose.msra.mxu0 0.0
  %460 = vmatpush.xpose.msra.mxu0 0.0
  %461 = vmatpush.xpose.msra.mxu0 0.0
  %462 = vmatpush.xpose.msra.mxu0 0.0
  %463 = vmatpush.xpose.msra.mxu0 0.0
  %464 = vmatpush.xpose.msra.mxu0 0.0
  %465 = vmatpush.xpose.msra.mxu0 0.0
  %466 = vmatpush.xpose.msra.mxu0 0.0
  %467 = vmatpush.xpose.msra.mxu0 0.0
  %468 = vmatpush.xpose.msra.mxu0 0.0
  %469 = vmatpush.xpose.msra.mxu0 0.0
  %470 = vmatpush.xpose.msra.mxu0 %v455
  %471 = vmatpush.xpose.msra.mxu0 %v452
  %472 = vmatpush.xpose.msra.mxu0 %v449
  %473 = vmatmul.f32.gmra.mxu0 %v440
  %v474 = vpop.f32.mrf.mxu0
  %v475 = vadd.f32 0.0, %v474
  %476 = vmatmul.f32.gmra.mxu0 %v443
  %v477 = vpop.f32.mrf.mxu0
  %v478 = vadd.f32 0.0, %v477
  %479 = vmatmul.f32.gmra.mxu0 %v446
  %v480 = vpop.f32.mrf.mxu0
  %v481 = vadd.f32 0.0, %v480
  %482 = vdwg.mxu0
  %v484 = vsel %vm46, %v179, 0
  %v487 = vsel %vm46, %v182, 0
  %v490 = vsel %vm46, %v185, 0
  %v493 = vsel %vm46, %v336, 0
  %v496 = vsel %vm46, %v337, 0
  %v499 = vsel %vm46, %v338, 0
  %501 = vmatpush.xpose.msra.mxu0 0.0
  %502 = vmatpush.xpose.msra.mxu0 0.0
  %503 = vmatpush.xpose.msra.mxu0 0.0
  %504 = vmatpush.xpose.msra.mxu0 0.0
  %505 = vmatpush.xpose.msra.mxu0 0.0
  %506 = vmatpush.xpose.msra.mxu0 0.0
  %507 = vmatpush.xpose.msra.mxu0 0.0
  %508 = vmatpush.xpose.msra.mxu0 0.0
  %509 = vmatpush.xpose.msra.mxu0 0.0
  %510 = vmatpush.xpose.msra.mxu0 0.0
  %511 = vmatpush.xpose.msra.mxu0 0.0
  %512 = vmatpush.xpose.msra.mxu0 0.0
  %513 = vmatpush.xpose.msra.mxu0 0.0
  %514 = vmatpush.xpose.msra.mxu0 %v499
  %515 = vmatpush.xpose.msra.mxu0 %v496
  %516 = vmatpush.xpose.msra.mxu0 %v493
  %517 = vmatmul.f32.gmra.mxu0 %v484
  %v518 = vpop.f32.mrf.mxu0
  %v519 = vadd.f32 0.0, %v518
  %520 = vmatmul.f32.gmra.mxu0 %v487
  %v521 = vpop.f32.mrf.mxu0
  %v522 = vadd.f32 0.0, %v521
  %523 = vmatmul.f32.gmra.mxu0 %v490
  %v524 = vpop.f32.mrf.mxu0
  %v525 = vadd.f32 0.0, %v524
  %526 = vdwg.mxu0
  %v528 = vsel %vm46, %v214, 0
  %v531 = vsel %vm46, %v217, 0
  %v534 = vsel %vm46, %v220, 0
  %v537 = vsel %vm46, %v339, 0
  %v540 = vsel %vm46, %v340, 0
  %v543 = vsel %vm46, %v341, 0
  %545 = vmatpush.xpose.msra.mxu0 0.0
  %546 = vmatpush.xpose.msra.mxu0 0.0
  %547 = vmatpush.xpose.msra.mxu0 0.0
  %548 = vmatpush.xpose.msra.mxu0 0.0
  %549 = vmatpush.xpose.msra.mxu0 0.0
  %550 = vmatpush.xpose.msra.mxu0 0.0
  %551 = vmatpush.xpose.msra.mxu0 0.0
  %552 = vmatpush.xpose.msra.mxu0 0.0
  %553 = vmatpush.xpose.msra.mxu0 0.0
  %554 = vmatpush.xpose.msra.mxu0 0.0
  %555 = vmatpush.xpose.msra.mxu0 0.0
  %556 = vmatpush.xpose.msra.mxu0 0.0
  %557 = vmatpush.xpose.msra.mxu0 0.0
  %558 = vmatpush.xpose.msra.mxu0 %v543
  %559 = vmatpush.xpose.msra.mxu0 %v540
  %560 = vmatpush.xpose.msra.mxu0 %v537
  %561 = vmatmul.f32.gmra.mxu0 %v528
  %v562 = vpop.f32.mrf.mxu0
  %v563 = vadd.f32 0.0, %v562
  %564 = vmatmul.f32.gmra.mxu0 %v531
  %v565 = vpop.f32.mrf.mxu0
  %v566 = vadd.f32 0.0, %v565
  %567 = vmatmul.f32.gmra.mxu0 %v534
  %v568 = vpop.f32.mrf.mxu0
  %v569 = vadd.f32 0.0, %v568
  %570 = vdwg.mxu0
  %v572 = vsel %vm46, %v249, 0
  %v575 = vsel %vm46, %v252, 0
  %v578 = vsel %vm46, %v255, 0
  %v581 = vsel %vm46, %v342, 0
  %v584 = vsel %vm46, %v343, 0
  %v587 = vsel %vm46, %v344, 0
  %589 = vmatpush.xpose.msra.mxu0 0.0
  %590 = vmatpush.xpose.msra.mxu0 0.0
  %591 = vmatpush.xpose.msra.mxu0 0.0
  %592 = vmatpush.xpose.msra.mxu0 0.0
  %593 = vmatpush.xpose.msra.mxu0 0.0
  %594 = vmatpush.xpose.msra.mxu0 0.0
  %595 = vmatpush.xpose.msra.mxu0 0.0
  %596 = vmatpush.xpose.msra.mxu0 0.0
  %597 = vmatpush.xpose.msra.mxu0 0.0
  %598 = vmatpush.xpose.msra.mxu0 0.0
  %599 = vmatpush.xpose.msra.mxu0 0.0
  %600 = vmatpush.xpose.msra.mxu0 0.0
  %601 = vmatpush.xpose.msra.mxu0 0.0
  %602 = vmatpush.xpose.msra.mxu0 %v587
  %603 = vmatpush.xpose.msra.mxu0 %v584
  %604 = vmatpush.xpose.msra.mxu0 %v581
  %605 = vmatmul.f32.gmra.mxu0 %v572
  %v606 = vpop.f32.mrf.mxu0
  %v607 = vadd.f32 0.0, %v606
  %608 = vmatmul.f32.gmra.mxu0 %v575
  %v609 = vpop.f32.mrf.mxu0
  %v610 = vadd.f32 0.0, %v609
  %611 = vmatmul.f32.gmra.mxu0 %v578
  %v612 = vpop.f32.mrf.mxu0
  %v613 = vadd.f32 0.0, %v612
  %614 = vdwg.mxu0
  %v616 = vsel %vm46, %v284, 0
  %v619 = vsel %vm46, %v287, 0
  %v622 = vsel %vm46, %v290, 0
  %v625 = vsel %vm46, %v345, 0
  %v628 = vsel %vm46, %v346, 0
  %v631 = vsel %vm46, %v347, 0
  %633 = vmatpush.xpose.msra.mxu0 0.0
  %634 = vmatpush.xpose.msra.mxu0 0.0
  %635 = vmatpush.xpose.msra.mxu0 0.0
  %636 = vmatpush.xpose.msra.mxu0 0.0
  %637 = vmatpush.xpose.msra.mxu0 0.0
  %638 = vmatpush.xpose.msra.mxu0 0.0
  %639 = vmatpush.xpose.msra.mxu0 0.0
  %640 = vmatpush.xpose.msra.mxu0 0.0
  %641 = vmatpush.xpose.msra.mxu0 0.0
  %642 = vmatpush.xpose.msra.mxu0 0.0
  %643 = vmatpush.xpose.msra.mxu0 0.0
  %644 = vmatpush.xpose.msra.mxu0 0.0
  %645 = vmatpush.xpose.msra.mxu0 0.0
  %646 = vmatpush.xpose.msra.mxu0 %v631
  %647 = vmatpush.xpose.msra.mxu0 %v628
  %648 = vmatpush.xpose.msra.mxu0 %v625
  %649 = vmatmul.f32.gmra.mxu0 %v616
  %v650 = vpop.f32.mrf.mxu0
  %v651 = vadd.f32 0.0, %v650
  %652 = vmatmul.f32.gmra.mxu0 %v619
  %v653 = vpop.f32.mrf.mxu0
  %v654 = vadd.f32 0.0, %v653
  %655 = vmatmul.f32.gmra.mxu0 %v622
  %v656 = vpop.f32.mrf.mxu0
  %v657 = vadd.f32 0.0, %v656
  %658 = vdwg.mxu0
  %v660 = vsel %vm46, %v319, 0
  %v663 = vsel %vm46, %v322, 0
  %v666 = vsel %vm46, %v325, 0
  %v669 = vsel %vm46, %v348, 0
  %v672 = vsel %vm46, %v349, 0
  %v675 = vsel %vm46, %v350, 0
  %677 = vmatpush.xpose.msra.mxu0 0.0
  %678 = vmatpush.xpose.msra.mxu0 0.0
  %679 = vmatpush.xpose.msra.mxu0 0.0
  %680 = vmatpush.xpose.msra.mxu0 0.0
  %681 = vmatpush.xpose.msra.mxu0 0.0
  %682 = vmatpush.xpose.msra.mxu0 0.0
  %683 = vmatpush.xpose.msra.mxu0 0.0
  %684 = vmatpush.xpose.msra.mxu0 0.0
  %685 = vmatpush.xpose.msra.mxu0 0.0
  %686 = vmatpush.xpose.msra.mxu0 0.0
  %687 = vmatpush.xpose.msra.mxu0 0.0
  %688 = vmatpush.xpose.msra.mxu0 0.0
  %689 = vmatpush.xpose.msra.mxu0 0.0
  %690 = vmatpush.xpose.msra.mxu0 %v675
  %691 = vmatpush.xpose.msra.mxu0 %v672
  %692 = vmatpush.xpose.msra.mxu0 %v669
  %693 = vmatmul.f32.gmra.mxu0 %v660
  %v694 = vpop.f32.mrf.mxu0
  %v695 = vadd.f32 0.0, %v694
  %696 = vmatmul.f32.gmra.mxu0 %v663
  %v697 = vpop.f32.mrf.mxu0
  %v698 = vadd.f32 0.0, %v697
  %699 = vmatmul.f32.gmra.mxu0 %v666
  %v700 = vpop.f32.mrf.mxu0
  %v701 = vadd.f32 0.0, %v700
  %702 = vdwg.mxu0
  %vm703 = vcmask 146432
  %704 = vst.msk [vmem:[%s3] sm:$0xff] %vm703, %v387
  %705 = vst.msk [vmem:[%s3 + $0x8] sm:$0xff] %vm703, %v390
  %vm706 = vcmask 140288
  %707 = vst.msk [vmem:[%s3 + $0x10] sm:$0x3] %vm706, %v393
  %708 = vst.msk [vmem:[%s3 + $0x18] sm:$0xff] %vm703, %v431
  %709 = vst.msk [vmem:[%s3 + $0x20] sm:$0xff] %vm703, %v434
  %710 = vst.msk [vmem:[%s3 + $0x28] sm:$0x3] %vm706, %v437
  %711 = vst.msk [vmem:[%s3 + $0x30] sm:$0xff] %vm703, %v475
  %712 = vst.msk [vmem:[%s3 + $0x38] sm:$0xff] %vm703, %v478
  %713 = vst.msk [vmem:[%s3 + $0x40] sm:$0x3] %vm706, %v481
  %714 = vst.msk [vmem:[%s3 + $0x48] sm:$0xff] %vm703, %v519
  %715 = vst.msk [vmem:[%s3 + $0x50] sm:$0xff] %vm703, %v522
  %716 = vst.msk [vmem:[%s3 + $0x58] sm:$0x3] %vm706, %v525
  %717 = vst.msk [vmem:[%s3 + $0x60] sm:$0xff] %vm703, %v563
  %718 = vst.msk [vmem:[%s3 + $0x68] sm:$0xff] %vm703, %v566
  %719 = vst.msk [vmem:[%s3 + $0x70] sm:$0x3] %vm706, %v569
  %720 = vst.msk [vmem:[%s3 + $0x78] sm:$0xff] %vm703, %v607
  %721 = vst.msk [vmem:[%s3 + $0x80] sm:$0xff] %vm703, %v610
  %722 = vst.msk [vmem:[%s3 + $0x88] sm:$0x3] %vm706, %v613
  %723 = vst.msk [vmem:[%s3 + $0x90] sm:$0xff] %vm703, %v651
  %724 = vst.msk [vmem:[%s3 + $0x98] sm:$0xff] %vm703, %v654
  %725 = vst.msk [vmem:[%s3 + $0xa0] sm:$0x3] %vm706, %v657
  %726 = vst.msk [vmem:[%s3 + $0xa8] sm:$0xff] %vm703, %v695
  %727 = vst.msk [vmem:[%s3 + $0xb0] sm:$0xff] %vm703, %v698
  %728 = vst.msk [vmem:[%s3 + $0xb8] sm:$0x3] %vm706, %v701
  // Predicated region
  $region14: #{up_forward.2} parent=0 // pred_check
    _
  $region15: #{up_forward.2} parent=0 // pred_check_branch
    %730 = sbr.rel (0) target = $region17
  $region16: #{up_forward.2} parent=0 // pred_region
    _
  $region17: #{up_forward.2} parent=0 // pred_fallthru
    _
  // Predicated region
  $region18: #{up_forward.2} parent=0 // pred_check
    _
  $region19: #{up_forward.2} parent=0 // pred_check_branch
    %732 = sbr.rel (0) target = $region21
  $region20: #{up_forward.2} parent=0 // pred_region
    _
  $region21: #{up_forward.2} parent=0 // pred_fallthru
    _

// kernel: up_forward.3
$region0: #{up_forward.3}
  #allocation0 [shape = 'u32[]', space=smem, size = 0x4, offset = 0x4, fixed_abs, tag = 'smem constant byte address 0x4 - core index']
  #allocation1 [shape = 'u32[72,128]{1,0:T(1,128)}', space=vmem, size = 0x9000, scoped, tag = 'internal scratch']
  #allocation2 [shape = 'f32[2,18,18,4]{3,2,1,0:T(8,128)}', space=vmem, size = 0x6c000, scoped, tag = 'scratch operand']
  %s0 = inlined_call_operand.vmem [shape: f32[2,18,18,4], index: 0, kind: input, shape index: {}]
  %s1 = inlined_call_operand.vmem [shape: f32[2,18,18,4], index: 1, kind: input, shape index: {}]
  %s2 = inlined_call_operand.vmem [shape: bf16[72,4], index: 2, kind: input, shape index: {}]
  %s3 = inlined_call_operand.vmem [shape: f32[1,4], index: 3, kind: input, shape index: {}]
  %s4 = inlined_call_operand.vmem [shape: f32[1,4], index: 4, kind: input, shape index: {}]
  %s5 = inlined_call_operand.vmem [shape: f32[1,4], index: 5, kind: input, shape index: {}]
  %s6 = inlined_call_operand.vmem [shape: bf16[36,128], index: 6, kind: input, shape index: {}]
  %s7 = inlined_call_operand.vmem [shape: f32[1,128], index: 7, kind: input, shape index: {}]
  %s8 = inlined_call_operand.vmem [shape: f32[1,128], index: 8, kind: input, shape index: {}]
  %s9 = inlined_call_operand.vmem [shape: f32[1,128], index: 9, kind: input, shape index: {}]
  %s10 = inlined_call_operand.vmem [shape: f32[2,16,16,128], index: 10, kind: output, shape index: {}]
  %s11 = sld [smem:[#allocation0]]
  $region50: #{up_forward.3} parent=0
    _
  %s13 = ssub.s32 1, %s11
  %s14 = scalar_select 0, %s13, %s11
  // Predicated region
  $region2: #{up_forward.3} parent=0 // pred_check
    _
  $region3: #{up_forward.3} parent=0 // pred_check_branch
    %16 = sbr.rel (0) target = $region5
  $region4: #{up_forward.3} parent=0 // pred_region
    _
  $region5: #{up_forward.3} parent=0 // pred_fallthru
    _
  // Predicated region
  $region6: #{up_forward.3} parent=0 // pred_check
    _
  $region7: #{up_forward.3} parent=0 // pred_check_branch
    %18 = sbr.rel (0) target = $region9
  $region8: #{up_forward.3} parent=0 // pred_region
    _
  $region9: #{up_forward.3} parent=0 // pred_fallthru
    _
  // Predicated region
  $region10: #{up_forward.3} parent=0 // pred_check
    _
  $region11: #{up_forward.3} parent=0 // pred_check_branch
    %20 = sbr.rel (0) target = $region13
  $region12: #{up_forward.3} parent=0 // pred_region
    _
  $region13: #{up_forward.3} parent=0 // pred_fallthru
    _
  // Predicated region
  $region14: #{up_forward.3} parent=0 // pred_check
    _
  $region15: #{up_forward.3} parent=0 // pred_check_branch
    %22 = sbr.rel (0) target = $region17
  $region16: #{up_forward.3} parent=0 // pred_region
    _
  $region17: #{up_forward.3} parent=0 // pred_fallthru
    _
  // Predicated region
  $region18: #{up_forward.3} parent=0 // pred_check
    _
  $region19: #{up_forward.3} parent=0 // pred_check_branch
    %24 = sbr.rel (0) target = $region21
  $region20: #{up_forward.3} parent=0 // pred_region
    _
  $region21: #{up_forward.3} parent=0 // pred_fallthru
    _
  // Predicated region
  $region22: #{up_forward.3} parent=0 // pred_check
    _
  $region23: #{up_forward.3} parent=0 // pred_check_branch
    %26 = sbr.rel (0) target = $region25
  $region24: #{up_forward.3} parent=0 // pred_region
    _
  $region25: #{up_forward.3} parent=0 // pred_fallthru
    _
  // Predicated region
  $region26: #{up_forward.3} parent=0 // pred_check
    _
  $region27: #{up_forward.3} parent=0 // pred_check_branch
    %28 = sbr.rel (0) target = $region29
  $region28: #{up_forward.3} parent=0 // pred_region
    _
  $region29: #{up_forward.3} parent=0 // pred_fallthru
    _
  // Predicated region
  $region30: #{up_forward.3} parent=0 // pred_check
    _
  $region31: #{up_forward.3} parent=0 // pred_check_branch
    %30 = sbr.rel (0) target = $region33
  $region32: #{up_forward.3} parent=0 // pred_region
    _
  $region33: #{up_forward.3} parent=0 // pred_fallthru
    _
  // Predicated region
  $region34: #{up_forward.3} parent=0 // pred_check
    _
  $region35: #{up_forward.3} parent=0 // pred_check_branch
    %32 = sbr.rel (0) target = $region37
  $region36: #{up_forward.3} parent=0 // pred_region
    _
  $region37: #{up_forward.3} parent=0 // pred_fallthru
    _
  // Predicated region
  $region38: #{up_forward.3} parent=0 // pred_check
    _
  $region39: #{up_forward.3} parent=0 // pred_check_branch
    %34 = sbr.rel (0) target = $region41
  $region40: #{up_forward.3} parent=0 // pred_region
    _
  $region41: #{up_forward.3} parent=0 // pred_fallthru
    _
  %v36 = vld [vmem:[%s0] sm:$0xff]
  %v37 = vld [vmem:[%s0 + $0x8] sm:$0xff]
  %v38 = vld [vmem:[%s0 + $0x18] sm:$0xff]
  %v39 = vld [vmem:[%s0 + $0x20] sm:$0xff]
  %v40 = vld [vmem:[%s0 + $0x30] sm:$0xff]
  %v41 = vld [vmem:[%s0 + $0x38] sm:$0xff]
  %v42 = vld [vmem:[%s0 + $0x48] sm:$0xff]
  %v43 = vld [vmem:[%s0 + $0x50] sm:$0xff]
  %v44 = vld [vmem:[%s0 + $0x60] sm:$0xff]
  %v45 = vld [vmem:[%s0 + $0x68] sm:$0xff]
  %v46 = vld [vmem:[%s0 + $0x78] sm:$0xff]
  %v47 = vld [vmem:[%s0 + $0x80] sm:$0xff]
  %v48 = vld [vmem:[%s0 + $0x90] sm:$0xff]
  %v49 = vld [vmem:[%s0 + $0x98] sm:$0xff]
  %v50 = vld [vmem:[%s0 + $0xa8] sm:$0xff]
  %v51 = vld [vmem:[%s0 + $0xb0] sm:$0xff]
  %v52 = vld [vmem:[%s0 + $0xc0] sm:$0xff]
  %v53 = vld [vmem:[%s0 + $0xc8] sm:$0xff]
  %v54 = vld [vmem:[%s0 + $0xd8] sm:$0xff]
  %v55 = vld [vmem:[%s0 + $0xe0] sm:$0xff]
  %v56 = vld [vmem:[%s0 + $0xf0] sm:$0xff]
  %v57 = vld [vmem:[%s0 + $0xf8] sm:$0xff]
  %v58 = vld [vmem:[%s0 + $0x108] sm:$0xff]
  %v59 = vld [vmem:[%s0 + $0x110] sm:$0xff]
  %v60 = vld [vmem:[%s0 + $0x120] sm:$0xff]
  %v61 = vld [vmem:[%s0 + $0x128] sm:$0xff]
  %v62 = vld [vmem:[%s0 + $0x138] sm:$0xff]
  %v63 = vld [vmem:[%s0 + $0x140] sm:$0xff]
  %v64 = vld [vmem:[%s0 + $0x150] sm:$0xff]
  %v65 = vld [vmem:[%s0 + $0x158] sm:$0xff]
  %v66 = vld [vmem:[%s0 + $0x168] sm:$0xff]
  %v67 = vld [vmem:[%s0 + $0x170] sm:$0xff]
  %v68 = vld [vmem:[%s0 + $0x1b0] sm:$0xff]
  %v69 = vld [vmem:[%s0 + $0x1b8] sm:$0xff]
  %v70 = vld [vmem:[%s0 + $0x1c8] sm:$0xff]
  %v71 = vld [vmem:[%s0 + $0x1d0] sm:$0xff]
  %v72 = vld [vmem:[%s0 + $0x1e0] sm:$0xff]
  %v73 = vld [vmem:[%s0 + $0x1e8] sm:$0xff]
  %v74 = vld [vmem:[%s0 + $0x1f8] sm:$0xff]
  %v75 = vld [vmem:[%s0 + $0x200] sm:$0xff]
  %v76 = vld [vmem:[%s0 + $0x210] sm:$0xff]
  %v77 = vld [vmem:[%s0 + $0x218] sm:$0xff]
  %v78 = vld [vmem:[%s0 + $0x228] sm:$0xff]
  %v79 = vld [vmem:[%s0 + $0x230] sm:$0xff]
  %v80 = vld [vmem:[%s0 + $0x240] sm:$0xff]
  %v81 = vld [vmem:[%s0 + $0x248] sm:$0xff]
  %v82 = vld [vmem:[%s0 + $0x258] sm:$0xff]
  %v83 = vld [vmem:[%s0 + $0x260] sm:$0xff]
  %v84 = vld [vmem:[%s0 + $0x270] sm:$0xff]
  %v85 = vld [vmem:[%s0 + $0x278] sm:$0xff]
  %v86 = vld [vmem:[%s0 + $0x288] sm:$0xff]
  %v87 = vld [vmem:[%s0 + $0x290] sm:$0xff]
  %v88 = vld [vmem:[%s0 + $0x2a0] sm:$0xff]
  %v89 = vld [vmem:[%s0 + $0x2a8] sm:$0xff]
  %v90 = vld [vmem:[%s0 + $0x2b8] sm:$0xff]
  %v91 = vld [vmem:[%s0 + $0x2c0] sm:$0xff]
  %v92 = vld [vmem:[%s0 + $0x2d0] sm:$0xff]
  %v93 = vld [vmem:[%s0 + $0x2d8] sm:$0xff]
  %v94 = vld [vmem:[%s0 + $0x2e8] sm:$0xff]
  %v95 = vld [vmem:[%s0 + $0x2f0] sm:$0xff]
  %v96 = vld [vmem:[%s0 + $0x300] sm:$0xff]
  %v97 = vld [vmem:[%s0 + $0x308] sm:$0xff]
  %v98 = vld [vmem:[%s0 + $0x318] sm:$0xff]
  %v99 = vld [vmem:[%s0 + $0x320] sm:$0xff]
  %v100 = vpack.c.bf16 %v36, %v36
  %v101 = vpack.c.bf16 %v37, %v37
  %v102 = vpack.c.bf16 %v38, %v38
  %v103 = vpack.c.bf16 %v39, %v39
  %v104 = vpack.c.bf16 %v40, %v40
  %v105 = vpack.c.bf16 %v41, %v41
  %v106 = vpack.c.bf16 %v42, %v42
  %v107 = vpack.c.bf16 %v43, %v43
  %v108 = vpack.c.bf16 %v44, %v44
  %v109 = vpack.c.bf16 %v45, %v45
  %v110 = vpack.c.bf16 %v46, %v46
  %v111 = vpack.c.bf16 %v47, %v47
  %v112 = vpack.c.bf16 %v48, %v48
  %v113 = vpack.c.bf16 %v49, %v49
  %v114 = vpack.c.bf16 %v50, %v50
  %v115 = vpack.c.bf16 %v51, %v51
  %v116 = vpack.c.bf16 %v52, %v52
  %v117 = vpack.c.bf16 %v53, %v53
  %v118 = vpack.c.bf16 %v54, %v54
  %v119 = vpack.c.bf16 %v55, %v55
  %v120 = vpack.c.bf16 %v56, %v56
  %v121 = vpack.c.bf16 %v57, %v57
  %v122 = vpack.c.bf16 %v58, %v58
  %v123 = vpack.c.bf16 %v59, %v59
  %v124 = vpack.c.bf16 %v60, %v60
  %v125 = vpack.c.bf16 %v61, %v61
  %v126 = vpack.c.bf16 %v62, %v62
  %v127 = vpack.c.bf16 %v63, %v63
  %v128 = vpack.c.bf16 %v64, %v64
  %v129 = vpack.c.bf16 %v65, %v65
  %v130 = vpack.c.bf16 %v66, %v66
  %v131 = vpack.c.bf16 %v67, %v67
  %v132 = vpack.c.bf16 %v68, %v68
  %v133 = vpack.c.bf16 %v69, %v69
  %v134 = vpack.c.bf16 %v70, %v70
  %v135 = vpack.c.bf16 %v71, %v71
  %v136 = vpack.c.bf16 %v72, %v72
  %v137 = vpack.c.bf16 %v73, %v73
  %v138 = vpack.c.bf16 %v74, %v74
  %v139 = vpack.c.bf16 %v75, %v75
  %v140 = vpack.c.bf16 %v76, %v76
  %v141 = vpack.c.bf16 %v77, %v77
  %v142 = vpack.c.bf16 %v78, %v78
  %v143 = vpack.c.bf16 %v79, %v79
  %v144 = vpack.c.bf16 %v80, %v80
  %v145 = vpack.c.bf16 %v81, %v81
  %v146 = vpack.c.bf16 %v82, %v82
  %v147 = vpack.c.bf16 %v83, %v83
  %v148 = vpack.c.bf16 %v84, %v84
  %v149 = vpack.c.bf16 %v85, %v85
  %v150 = vpack.c.bf16 %v86, %v86
  %v151 = vpack.c.bf16 %v87, %v87
  %v152 = vpack.c.bf16 %v88, %v88
  %v153 = vpack.c.bf16 %v89, %v89
  %v154 = vpack.c.bf16 %v90, %v90
  %v155 = vpack.c.bf16 %v91, %v91
  %v156 = vpack.c.bf16 %v92, %v92
  %v157 = vpack.c.bf16 %v93, %v93
  %v158 = vpack.c.bf16 %v94, %v94
  %v159 = vpack.c.bf16 %v95, %v95
  %v160 = vpack.c.bf16 %v96, %v96
  %v161 = vpack.c.bf16 %v97, %v97
  %v162 = vpack.c.bf16 %v98, %v98
  %v163 = vpack.c.bf16 %v99, %v99
  %v164 = vld [vmem:[%s1] sm:$0xff]
  %v165 = vld [vmem:[%s1 + $0x8] sm:$0xff]
  %v166 = vld [vmem:[%s1 + $0x18] sm:$0xff]
  %v167 = vld [vmem:[%s1 + $0x20] sm:$0xff]
  %v168 = vld [vmem:[%s1 + $0x30] sm:$0xff]
  %v169 = vld [vmem:[%s1 + $0x38] sm:$0xff]
  %v170 = vld [vmem:[%s1 + $0x48] sm:$0xff]
  %v171 = vld [vmem:[%s1 + $0x50] sm:$0xff]
  %v172 = vld [vmem:[%s1 + $0x60] sm:$0xff]
  %v173 = vld [vmem:[%s1 + $0x68] sm:$0xff]
  %v174 = vld [vmem:[%s1 + $0x78] sm:$0xff]
  %v175 = vld [vmem:[%s1 + $0x80] sm:$0xff]
  %v176 = vld [vmem:[%s1 + $0x90] sm:$0xff]
  %v177 = vld [vmem:[%s1 + $0x98] sm:$0xff]
  %v178 = vld [vmem:[%s1 + $0xa8] sm:$0xff]
  %v179 = vld [vmem:[%s1 + $0xb0] sm:$0xff]
  %v180 = vld [vmem:[%s1 + $0xc0] sm:$0xff]
  %v181 = vld [vmem:[%s1 + $0xc8] sm:$0xff]
  %v182 = vld [vmem:[%s1 + $0xd8] sm:$0xff]
  %v183 = vld [vmem:[%s1 + $0xe0] sm:$0xff]
  %v184 = vld [vmem:[%s1 + $0xf0] sm:$0xff]
  %v185 = vld [vmem:[%s1 + $0xf8] sm:$0xff]
  %v186 = vld [vmem:[%s1 + $0x108] sm:$0xff]
  %v187 = vld [vmem:[%s1 + $0x110] sm:$0xff]
  %v188 = vld [vmem:[%s1 + $0x120] sm:$0xff]
  %v189 = vld [vmem:[%s1 + $0x128] sm:$0xff]
  %v190 = vld [vmem:[%s1 + $0x138] sm:$0xff]
  %v191 = vld [vmem:[%s1 + $0x140] sm:$0xff]
  %v192 = vld [vmem:[%s1 + $0x150] sm:$0xff]
  %v193 = vld [vmem:[%s1 + $0x158] sm:$0xff]
  %v194 = vld [vmem:[%s1 + $0x168] sm:$0xff]
  %v195 = vld [vmem:[%s1 + $0x170] sm:$0xff]
  %v196 = vld [vmem:[%s1 + $0x1b0] sm:$0xff]
  %v197 = vld [vmem:[%s1 + $0x1b8] sm:$0xff]
  %v198 = vld [vmem:[%s1 + $0x1c8] sm:$0xff]
  %v199 = vld [vmem:[%s1 + $0x1d0] sm:$0xff]
  %v200 = vld [vmem:[%s1 + $0x1e0] sm:$0xff]
  %v201 = vld [vmem:[%s1 + $0x1e8] sm:$0xff]
  %v202 = vld [vmem:[%s1 + $0x1f8] sm:$0xff]
  %v203 = vld [vmem:[%s1 + $0x200] sm:$0xff]
  %v204 = vld [vmem:[%s1 + $0x210] sm:$0xff]
  %v205 = vld [vmem:[%s1 + $0x218] sm:$0xff]
  %v206 = vld [vmem:[%s1 + $0x228] sm:$0xff]
  %v207 = vld [vmem:[%s1 + $0x230] sm:$0xff]
  %v208 = vld [vmem:[%s1 + $0x240] sm:$0xff]
  %v209 = vld [vmem:[%s1 + $0x248] sm:$0xff]
  %v210 = vld [vmem:[%s1 + $0x258] sm:$0xff]
  %v211 = vld [vmem:[%s1 + $0x260] sm:$0xff]
  %v212 = vld [vmem:[%s1 + $0x270] sm:$0xff]
  %v213 = vld [vmem:[%s1 + $0x278] sm:$0xff]
  %v214 = vld [vmem:[%s1 + $0x288] sm:$0xff]
  %v215 = vld [vmem:[%s1 + $0x290] sm:$0xff]
  %v216 = vld [vmem:[%s1 + $0x2a0] sm:$0xff]
  %v217 = vld [vmem:[%s1 + $0x2a8] sm:$0xff]
  %v218 = vld [vmem:[%s1 + $0x2b8] sm:$0xff]
  %v219 = vld [vmem:[%s1 + $0x2c0] sm:$0xff]
  %v220 = vld [vmem:[%s1 + $0x2d0] sm:$0xff]
  %v221 = vld [vmem:[%s1 + $0x2d8] sm:$0xff]
  %v222 = vld [vmem:[%s1 + $0x2e8] sm:$0xff]
  %v223 = vld [vmem:[%s1 + $0x2f0] sm:$0xff]
  %v224 = vld [vmem:[%s1 + $0x300] sm:$0xff]
  %v225 = vld [vmem:[%s1 + $0x308] sm:$0xff]
  %v226 = vld [vmem:[%s1 + $0x318] sm:$0xff]
  %v227 = vld [vmem:[%s1 + $0x320] sm:$0xff]
  %v228 = vpack.c.bf16 %v164, %v164
  %v229 = vpack.c.bf16 %v165, %v165
  %v230 = vpack.c.bf16 %v166, %v166
  %v231 = vpack.c.bf16 %v167, %v167
  %v232 = vpack.c.bf16 %v168, %v168
  %v233 = vpack.c.bf16 %v169, %v169
  %v234 = vpack.c.bf16 %v170, %v170
  %v235 = vpack.c.bf16 %v171, %v171
  %v236 = vpack.c.bf16 %v172, %v172
  %v237 = vpack.c.bf16 %v173, %v173
  %v238 = vpack.c.bf16 %v174, %v174
  %v239 = vpack.c.bf16 %v175, %v175
  %v240 = vpack.c.bf16 %v176, %v176
  %v241 = vpack.c.bf16 %v177, %v177
  %v242 = vpack.c.bf16 %v178, %v178
  %v243 = vpack.c.bf16 %v179, %v179
  %v244 = vpack.c.bf16 %v180, %v180
  %v245 = vpack.c.bf16 %v181, %v181
  %v246 = vpack.c.bf16 %v182, %v182
  %v247 = vpack.c.bf16 %v183, %v183
  %v248 = vpack.c.bf16 %v184, %v184
  %v249 = vpack.c.bf16 %v185, %v185
  %v250 = vpack.c.bf16 %v186, %v186
  %v251 = vpack.c.bf16 %v187, %v187
  %v252 = vpack.c.bf16 %v188, %v188
  %v253 = vpack.c.bf16 %v189, %v189
  %v254 = vpack.c.bf16 %v190, %v190
  %v255 = vpack.c.bf16 %v191, %v191
  %v256 = vpack.c.bf16 %v192, %v192
  %v257 = vpack.c.bf16 %v193, %v193
  %v258 = vpack.c.bf16 %v194, %v194
  %v259 = vpack.c.bf16 %v195, %v195
  %v260 = vpack.c.bf16 %v196, %v196
  %v261 = vpack.c.bf16 %v197, %v197
  %v262 = vpack.c.bf16 %v198, %v198
  %v263 = vpack.c.bf16 %v199, %v199
  %v264 = vpack.c.bf16 %v200, %v200
  %v265 = vpack.c.bf16 %v201, %v201
  %v266 = vpack.c.bf16 %v202, %v202
  %v267 = vpack.c.bf16 %v203, %v203
  %v268 = vpack.c.bf16 %v204, %v204
  %v269 = vpack.c.bf16 %v205, %v205
  %v270 = vpack.c.bf16 %v206, %v206
  %v271 = vpack.c.bf16 %v207, %v207
  %v272 = vpack.c.bf16 %v208, %v208
  %v273 = vpack.c.bf16 %v209, %v209
  %v274 = vpack.c.bf16 %v210, %v210
  %v275 = vpack.c.bf16 %v211, %v211
  %v276 = vpack.c.bf16 %v212, %v212
  %v277 = vpack.c.bf16 %v213, %v213
  %v278 = vpack.c.bf16 %v214, %v214
  %v279 = vpack.c.bf16 %v215, %v215
  %v280 = vpack.c.bf16 %v216, %v216
  %v281 = vpack.c.bf16 %v217, %v217
  %v282 = vpack.c.bf16 %v218, %v218
  %v283 = vpack.c.bf16 %v219, %v219
  %v284 = vpack.c.bf16 %v220, %v220
  %v285 = vpack.c.bf16 %v221, %v221
  %v286 = vpack.c.bf16 %v222, %v222
  %v287 = vpack.c.bf16 %v223, %v223
  %v288 = vpack.c.bf16 %v224, %v224
  %v289 = vpack.c.bf16 %v225, %v225
  %v290 = vpack.c.bf16 %v226, %v226
  %v291 = vpack.c.bf16 %v227, %v227
  %v292 = vld [vmem:[%s0 + $0x1] sm:$0xff]
  %v293 = vld [vmem:[%s0 + $0x9] sm:$0xff]
  %v294 = vld [vmem:[%s0 + $0x19] sm:$0xff]
  %v295 = vld [vmem:[%s0 + $0x21] sm:$0xff]
  %v296 = vld [vmem:[%s0 + $0x31] sm:$0xff]
  %v297 = vld [vmem:[%s0 + $0x39] sm:$0xff]
  %v298 = vld [vmem:[%s0 + $0x49] sm:$0xff]
  %v299 = vld [vmem:[%s0 + $0x51] sm:$0xff]
  %v300 = vld [vmem:[%s0 + $0x61] sm:$0xff]
  %v301 = vld [vmem:[%s0 + $0x69] sm:$0xff]
  %v302 = vld [vmem:[%s0 + $0x79] sm:$0xff]
  %v303 = vld [vmem:[%s0 + $0x81] sm:$0xff]
  %v304 = vld [vmem:[%s0 + $0x91] sm:$0xff]
  %v305 = vld [vmem:[%s0 + $0x99] sm:$0xff]
  %v306 = vld [vmem:[%s0 + $0xa9] sm:$0xff]
  %v307 = vld [vmem:[%s0 + $0xb1] sm:$0xff]
  %v308 = vld [vmem:[%s0 + $0xc1] sm:$0xff]
  %v309 = vld [vmem:[%s0 + $0xc9] sm:$0xff]
  %v310 = vld [vmem:[%s0 + $0xd9] sm:$0xff]
  %v311 = vld [vmem:[%s0 + $0xe1] sm:$0xff]
  %v312 = vld [vmem:[%s0 + $0xf1] sm:$0xff]
  %v313 = vld [vmem:[%s0 + $0xf9] sm:$0xff]
  %v314 = vld [vmem:[%s0 + $0x109] sm:$0xff]
  %v315 = vld [vmem:[%s0 + $0x111] sm:$0xff]
  %v316 = vld [vmem:[%s0 + $0x121] sm:$0xff]
  %v317 = vld [vmem:[%s0 + $0x129] sm:$0xff]
  %v318 = vld [vmem:[%s0 + $0x139] sm:$0xff]
  %v319 = vld [vmem:[%s0 + $0x141] sm:$0xff]
  %v320 = vld [vmem:[%s0 + $0x151] sm:$0xff]
  %v321 = vld [vmem:[%s0 + $0x159] sm:$0xff]
  %v322 = vld [vmem:[%s0 + $0x169] sm:$0xff]
  %v323 = vld [vmem:[%s0 + $0x171] sm:$0xff]
  %v324 = vld [vmem:[%s0 + $0x1b1] sm:$0xff]
  %v325 = vld [vmem:[%s0 + $0x1b9] sm:$0xff]
  %v326 = vld [vmem:[%s0 + $0x1c9] sm:$0xff]
  %v327 = vld [vmem:[%s0 + $0x1d1] sm:$0xff]
  %v328 = vld [vmem:[%s0 + $0x1e1] sm:$0xff]
  %v329 = vld [vmem:[%s0 + $0x1e9] sm:$0xff]
  %v330 = vld [vmem:[%s0 + $0x1f9] sm:$0xff]
  %v331 = vld [vmem:[%s0 + $0x201] sm:$0xff]
  %v332 = vld [vmem:[%s0 + $0x211] sm:$0xff]
  %v333 = vld [vmem:[%s0 + $0x219] sm:$0xff]
  %v334 = vld [vmem:[%s0 + $0x229] sm:$0xff]
  %v335 = vld [vmem:[%s0 + $0x231] sm:$0xff]
  %v336 = vld [vmem:[%s0 + $0x241] sm:$0xff]
  %v337 = vld [vmem:[%s0 + $0x249] sm:$0xff]
  %v338 = vld [vmem:[%s0 + $0x259] sm:$0xff]
  %v339 = vld [vmem:[%s0 + $0x261] sm:$0xff]
  %v340 = vld [vmem:[%s0 + $0x271] sm:$0xff]
  %v341 = vld [vmem:[%s0 + $0x279] sm:$0xff]
  %v342 = vld [vmem:[%s0 + $0x289] sm:$0xff]
  %v343 = vld [vmem:[%s0 + $0x291] sm:$0xff]
  %v344 = vld [vmem:[%s0 + $0x2a1] sm:$0xff]
  %v345 = vld [vmem:[%s0 + $0x2a9] sm:$0xff]
  %v346 = vld [vmem:[%s0 + $0x2b9] sm:$0xff]
  %v347 = vld [vmem:[%s0 + $0x2c1] sm:$0xff]
  %v348 = vld [vmem:[%s0 + $0x2d1] sm:$0xff]
  %v349 = vld [vmem:[%s0 + $0x2d9] sm:$0xff]
  %v350 = vld [vmem:[%s0 + $0x2e9] sm:$0xff]
  %v351 = vld [vmem:[%s0 + $0x2f1] sm:$0xff]
  %v352 = vld [vmem:[%s0 + $0x301] sm:$0xff]
  %v353 = vld [vmem:[%s0 + $0x309] sm:$0xff]
  %v354 = vld [vmem:[%s0 + $0x319] sm:$0xff]
  %v355 = vld [vmem:[%s0 + $0x321] sm:$0xff]
  %v356 = vpack.c.bf16 %v292, %v292
  %v357 = vpack.c.bf16 %v293, %v293
  %v358 = vpack.c.bf16 %v294, %v294
  %v359 = vpack.c.bf16 %v295, %v295
  %v360 = vpack.c.bf16 %v296, %v296
  %v361 = vpack.c.bf16 %v297, %v297
  %v362 = vpack.c.bf16 %v298, %v298
  %v363 = vpack.c.bf16 %v299, %v299
  %v364 = vpack.c.bf16 %v300, %v300
  %v365 = vpack.c.bf16 %v301, %v301
  %v366 = vpack.c.bf16 %v302, %v302
  %v367 = vpack.c.bf16 %v303, %v303
  %v368 = vpack.c.bf16 %v304, %v304
  %v369 = vpack.c.bf16 %v305, %v305
  %v370 = vpack.c.bf16 %v306, %v306
  %v371 = vpack.c.bf16 %v307, %v307
  %v372 = vpack.c.bf16 %v308, %v308
  %v373 = vpack.c.bf16 %v309, %v309
  %v374 = vpack.c.bf16 %v310, %v310
  %v375 = vpack.c.bf16 %v311, %v311
  %v376 = vpack.c.bf16 %v312, %v312
  %v377 = vpack.c.bf16 %v313, %v313
  %v378 = vpack.c.bf16 %v314, %v314
  %v379 = vpack.c.bf16 %v315, %v315
  %v380 = vpack.c.bf16 %v316, %v316
  %v381 = vpack.c.bf16 %v317, %v317
  %v382 = vpack.c.bf16 %v318, %v318
  %v383 = vpack.c.bf16 %v319, %v319
  %v384 = vpack.c.bf16 %v320, %v320
  %v385 = vpack.c.bf16 %v321, %v321
  %v386 = vpack.c.bf16 %v322, %v322
  %v387 = vpack.c.bf16 %v323, %v323
  %v388 = vpack.c.bf16 %v324, %v324
  %v389 = vpack.c.bf16 %v325, %v325
  %v390 = vpack.c.bf16 %v326, %v326
  %v391 = vpack.c.bf16 %v327, %v327
  %v392 = vpack.c.bf16 %v328, %v328
  %v393 = vpack.c.bf16 %v329, %v329
  %v394 = vpack.c.bf16 %v330, %v330
  %v395 = vpack.c.bf16 %v331, %v331
  %v396 = vpack.c.bf16 %v332, %v332
  %v397 = vpack.c.bf16 %v333, %v333
  %v398 = vpack.c.bf16 %v334, %v334
  %v399 = vpack.c.bf16 %v335, %v335
  %v400 = vpack.c.bf16 %v336, %v336
  %v401 = vpack.c.bf16 %v337, %v337
  %v402 = vpack.c.bf16 %v338, %v338
  %v403 = vpack.c.bf16 %v339, %v339
  %v404 = vpack.c.bf16 %v340, %v340
  %v405 = vpack.c.bf16 %v341, %v341
  %v406 = vpack.c.bf16 %v342, %v342
  %v407 = vpack.c.bf16 %v343, %v343
  %v408 = vpack.c.bf16 %v344, %v344
  %v409 = vpack.c.bf16 %v345, %v345
  %v410 = vpack.c.bf16 %v346, %v346
  %v411 = vpack.c.bf16 %v347, %v347
  %v412 = vpack.c.bf16 %v348, %v348
  %v413 = vpack.c.bf16 %v349, %v349
  %v414 = vpack.c.bf16 %v350, %v350
  %v415 = vpack.c.bf16 %v351, %v351
  %v416 = vpack.c.bf16 %v352, %v352
  %v417 = vpack.c.bf16 %v353, %v353
  %v418 = vpack.c.bf16 %v354, %v354
  %v419 = vpack.c.bf16 %v355, %v355
  %v420 = vld [vmem:[%s1 + $0x1] sm:$0xff]
  %v421 = vld [vmem:[%s1 + $0x9] sm:$0xff]
  %v422 = vld [vmem:[%s1 + $0x19] sm:$0xff]
  %v423 = vld [vmem:[%s1 + $0x21] sm:$0xff]
  %v424 = vld [vmem:[%s1 + $0x31] sm:$0xff]
  %v425 = vld [vmem:[%s1 + $0x39] sm:$0xff]
  %v426 = vld [vmem:[%s1 + $0x49] sm:$0xff]
  %v427 = vld [vmem:[%s1 + $0x51] sm:$0xff]
  %v428 = vld [vmem:[%s1 + $0x61] sm:$0xff]
  %v429 = vld [vmem:[%s1 + $0x69] sm:$0xff]
  %v430 = vld [vmem:[%s1 + $0x79] sm:$0xff]
  %v431 = vld [vmem:[%s1 + $0x81] sm:$0xff]
  %v432 = vld [vmem:[%s1 + $0x91] sm:$0xff]
  %v433 = vld [vmem:[%s1 + $0x99] sm:$0xff]
  %v434 = vld [vmem:[%s1 + $0xa9] sm:$0xff]
  %v435 = vld [vmem:[%s1 + $0xb1] sm:$0xff]
  %v436 = vld [vmem:[%s1 + $0xc1] sm:$0xff]
  %v437 = vld [vmem:[%s1 + $0xc9] sm:$0xff]
  %v438 = vld [vmem:[%s1 + $0xd9] sm:$0xff]
  %v439 = vld [vmem:[%s1 + $0xe1] sm:$0xff]
  %v440 = vld [vmem:[%s1 + $0xf1] sm:$0xff]
  %v441 = vld [vmem:[%s1 + $0xf9] sm:$0xff]
  %v442 = vld [vmem:[%s1 + $0x109] sm:$0xff]
  %v443 = vld [vmem:[%s1 + $0x111] sm:$0xff]
  %v444 = vld [vmem:[%s1 + $0x121] sm:$0xff]
  %v445 = vld [vmem:[%s1 + $0x129] sm:$0xff]
  %v446 = vld [vmem:[%s1 + $0x139] sm:$0xff]
  %v447 = vld [vmem:[%s1 + $0x141] sm:$0xff]
  %v448 = vld [vmem:[%s1 + $0x151] sm:$0xff]
  %v449 = vld [vmem:[%s1 + $0x159] sm:$0xff]
  %v450 = vld [vmem:[%s1 + $0x169] sm:$0xff]
  %v451 = vld [vmem:[%s1 + $0x171] sm:$0xff]
  %v452 = vld [vmem:[%s1 + $0x1b1] sm:$0xff]
  %v453 = vld [vmem:[%s1 + $0x1b9] sm:$0xff]
  %v454 = vld [vmem:[%s1 + $0x1c9] sm:$0xff]
  %v455 = vld [vmem:[%s1 + $0x1d1] sm:$0xff]
  %v456 = vld [vmem:[%s1 + $0x1e1] sm:$0xff]
  %v457 = vld [vmem:[%s1 + $0x1e9] sm:$0xff]
  %v458 = vld [vmem:[%s1 + $0x1f9] sm:$0xff]
  %v459 = vld [vmem:[%s1 + $0x201] sm:$0xff]
  %v460 = vld [vmem:[%s1 + $0x211] sm:$0xff]
  %v461 = vld [vmem:[%s1 + $0x219] sm:$0xff]
  %v462 = vld [vmem:[%s1 + $0x229] sm:$0xff]
  %v463 = vld [vmem:[%s1 + $0x231] sm:$0xff]
  %v464 = vld [vmem:[%s1 + $0x241] sm:$0xff]
  %v465 = vld [vmem:[%s1 + $0x249] sm:$0xff]
  %v466 = vld [vmem:[%s1 + $0x259] sm:$0xff]
  %v467 = vld [vmem:[%s1 + $0x261] sm:$0xff]
  %v468 = vld [vmem:[%s1 + $0x271] sm:$0xff]
  %v469 = vld [vmem:[%s1 + $0x279] sm:$0xff]
  %v470 = vld [vmem:[%s1 + $0x289] sm:$0xff]
  %v471 = vld [vmem:[%s1 + $0x291] sm:$0xff]
  %v472 = vld [vmem:[%s1 + $0x2a1] sm:$0xff]
  %v473 = vld [vmem:[%s1 + $0x2a9] sm:$0xff]
  %v474 = vld [vmem:[%s1 + $0x2b9] sm:$0xff]
  %v475 = vld [vmem:[%s1 + $0x2c1] sm:$0xff]
  %v476 = vld [vmem:[%s1 + $0x2d1] sm:$0xff]
  %v477 = vld [vmem:[%s1 + $0x2d9] sm:$0xff]
  %v478 = vld [vmem:[%s1 + $0x2e9] sm:$0xff]
  %v479 = vld [vmem:[%s1 + $0x2f1] sm:$0xff]
  %v480 = vld [vmem:[%s1 + $0x301] sm:$0xff]
  %v481 = vld [vmem:[%s1 + $0x309] sm:$0xff]
  %v482 = vld [vmem:[%s1 + $0x319] sm:$0xff]
  %v483 = vld [vmem:[%s1 + $0x321] sm:$0xff]
  %v484 = vpack.c.bf16 %v420, %v420
  %v485 = vpack.c.bf16 %v421, %v421
  %v486 = vpack.c.bf16 %v422, %v422
  %v487 = vpack.c.bf16 %v423, %v423
  %v488 = vpack.c.bf16 %v424, %v424
  %v489 = vpack.c.bf16 %v425, %v425
  %v490 = vpack.c.bf16 %v426, %v426
  %v491 = vpack.c.bf16 %v427, %v427
  %v492 = vpack.c.bf16 %v428, %v428
  %v493 = vpack.c.bf16 %v429, %v429
  %v494 = vpack.c.bf16 %v430, %v430
  %v495 = vpack.c.bf16 %v431, %v431
  %v496 = vpack.c.bf16 %v432, %v432
  %v497 = vpack.c.bf16 %v433, %v433
  %v498 = vpack.c.bf16 %v434, %v434
  %v499 = vpack.c.bf16 %v435, %v435
  %v500 = vpack.c.bf16 %v436, %v436
  %v501 = vpack.c.bf16 %v437, %v437
  %v502 = vpack.c.bf16 %v438, %v438
  %v503 = vpack.c.bf16 %v439, %v439
  %v504 = vpack.c.bf16 %v440, %v440
  %v505 = vpack.c.bf16 %v441, %v441
  %v506 = vpack.c.bf16 %v442, %v442
  %v507 = vpack.c.bf16 %v443, %v443
  %v508 = vpack.c.bf16 %v444, %v444
  %v509 = vpack.c.bf16 %v445, %v445
  %v510 = vpack.c.bf16 %v446, %v446
  %v511 = vpack.c.bf16 %v447, %v447
  %v512 = vpack.c.bf16 %v448, %v448
  %v513 = vpack.c.bf16 %v449, %v449
  %v514 = vpack.c.bf16 %v450, %v450
  %v515 = vpack.c.bf16 %v451, %v451
  %v516 = vpack.c.bf16 %v452, %v452
  %v517 = vpack.c.bf16 %v453, %v453
  %v518 = vpack.c.bf16 %v454, %v454
  %v519 = vpack.c.bf16 %v455, %v455
  %v520 = vpack.c.bf16 %v456, %v456
  %v521 = vpack.c.bf16 %v457, %v457
  %v522 = vpack.c.bf16 %v458, %v458
  %v523 = vpack.c.bf16 %v459, %v459
  %v524 = vpack.c.bf16 %v460, %v460
  %v525 = vpack.c.bf16 %v461, %v461
  %v526 = vpack.c.bf16 %v462, %v462
  %v527 = vpack.c.bf16 %v463, %v463
  %v528 = vpack.c.bf16 %v464, %v464
  %v529 = vpack.c.bf16 %v465, %v465
  %v530 = vpack.c.bf16 %v466, %v466
  %v531 = vpack.c.bf16 %v467, %v467
  %v532 = vpack.c.bf16 %v468, %v468
  %v533 = vpack.c.bf16 %v469, %v469
  %v534 = vpack.c.bf16 %v470, %v470
  %v535 = vpack.c.bf16 %v471, %v471
  %v536 = vpack.c.bf16 %v472, %v472
  %v537 = vpack.c.bf16 %v473, %v473
  %v538 = vpack.c.bf16 %v474, %v474
  %v539 = vpack.c.bf16 %v475, %v475
  %v540 = vpack.c.bf16 %v476, %v476
  %v541 = vpack.c.bf16 %v477, %v477
  %v542 = vpack.c.bf16 %v478, %v478
  %v543 = vpack.c.bf16 %v479, %v479
  %v544 = vpack.c.bf16 %v480, %v480
  %v545 = vpack.c.bf16 %v481, %v481
  %v546 = vpack.c.bf16 %v482, %v482
  %v547 = vpack.c.bf16 %v483, %v483
  %v548 = vld [vmem:[%s0 + $0x2] sm:$0xff]
  %v549 = vld [vmem:[%s0 + $0xa] sm:$0xff]
  %v550 = vld [vmem:[%s0 + $0x1a] sm:$0xff]
  %v551 = vld [vmem:[%s0 + $0x22] sm:$0xff]
  %v552 = vld [vmem:[%s0 + $0x32] sm:$0xff]
  %v553 = vld [vmem:[%s0 + $0x3a] sm:$0xff]
  %v554 = vld [vmem:[%s0 + $0x4a] sm:$0xff]
  %v555 = vld [vmem:[%s0 + $0x52] sm:$0xff]
  %v556 = vld [vmem:[%s0 + $0x62] sm:$0xff]
  %v557 = vld [vmem:[%s0 + $0x6a] sm:$0xff]
  %v558 = vld [vmem:[%s0 + $0x7a] sm:$0xff]
  %v559 = vld [vmem:[%s0 + $0x82] sm:$0xff]
  %v560 = vld [vmem:[%s0 + $0x92] sm:$0xff]
  %v561 = vld [vmem:[%s0 + $0x9a] sm:$0xff]
  %v562 = vld [vmem:[%s0 + $0xaa] sm:$0xff]
  %v563 = vld [vmem:[%s0 + $0xb2] sm:$0xff]
  %v564 = vld [vmem:[%s0 + $0xc2] sm:$0xff]
  %v565 = vld [vmem:[%s0 + $0xca] sm:$0xff]
  %v566 = vld [vmem:[%s0 + $0xda] sm:$0xff]
  %v567 = vld [vmem:[%s0 + $0xe2] sm:$0xff]
  %v568 = vld [vmem:[%s0 + $0xf2] sm:$0xff]
  %v569 = vld [vmem:[%s0 + $0xfa] sm:$0xff]
  %v570 = vld [vmem:[%s0 + $0x10a] sm:$0xff]
  %v571 = vld [vmem:[%s0 + $0x112] sm:$0xff]
  %v572 = vld [vmem:[%s0 + $0x122] sm:$0xff]
  %v573 = vld [vmem:[%s0 + $0x12a] sm:$0xff]
  %v574 = vld [vmem:[%s0 + $0x13a] sm:$0xff]
  %v575 = vld [vmem:[%s0 + $0x142] sm:$0xff]
  %v576 = vld [vmem:[%s0 + $0x152] sm:$0xff]
  %v577 = vld [vmem:[%s0 + $0x15a] sm:$0xff]
  %v578 = vld [vmem:[%s0 + $0x16a] sm:$0xff]
  %v579 = vld [vmem:[%s0 + $0x172] sm:$0xff]
  %v580 = vld [vmem:[%s0 + $0x1b2] sm:$0xff]
  %v581 = vld [vmem:[%s0 + $0x1ba] sm:$0xff]
  %v582 = vld [vmem:[%s0 + $0x1ca] sm:$0xff]
  %v583 = vld [vmem:[%s0 + $0x1d2] sm:$0xff]
  %v584 = vld [vmem:[%s0 + $0x1e2] sm:$0xff]
  %v585 = vld [vmem:[%s0 + $0x1ea] sm:$0xff]
  %v586 = vld [vmem:[%s0 + $0x1fa] sm:$0xff]
  %v587 = vld [vmem:[%s0 + $0x202] sm:$0xff]
  %v588 = vld [vmem:[%s0 + $0x212] sm:$0xff]
  %v589 = vld [vmem:[%s0 + $0x21a] sm:$0xff]
  %v590 = vld [vmem:[%s0 + $0x22a] sm:$0xff]
  %v591 = vld [vmem:[%s0 + $0x232] sm:$0xff]
  %v592 = vld [vmem:[%s0 + $0x242] sm:$0xff]
  %v593 = vld [vmem:[%s0 + $0x24a] sm:$0xff]
  %v594 = vld [vmem:[%s0 + $0x25a] sm:$0xff]
  %v595 = vld [vmem:[%s0 + $0x262] sm:$0xff]
  %v596 = vld [vmem:[%s0 + $0x272] sm:$0xff]
  %v597 = vld [vmem:[%s0 + $0x27a] sm:$0xff]
  %v598 = vld [vmem:[%s0 + $0x28a] sm:$0xff]
  %v599 = vld [vmem:[%s0 + $0x292] sm:$0xff]
  %v600 = vld [vmem:[%s0 + $0x2a2] sm:$0xff]
  %v601 = vld [vmem:[%s0 + $0x2aa] sm:$0xff]
  %v602 = vld [vmem:[%s0 + $0x2ba] sm:$0xff]
  %v603 = vld [vmem:[%s0 + $0x2c2] sm:$0xff]
  %v604 = vld [vmem:[%s0 + $0x2d2] sm:$0xff]
  %v605 = vld [vmem:[%s0 + $0x2da] sm:$0xff]
  %v606 = vld [vmem:[%s0 + $0x2ea] sm:$0xff]
  %v607 = vld [vmem:[%s0 + $0x2f2] sm:$0xff]
  %v608 = vld [vmem:[%s0 + $0x302] sm:$0xff]
  %v609 = vld [vmem:[%s0 + $0x30a] sm:$0xff]
  %v610 = vld [vmem:[%s0 + $0x31a] sm:$0xff]
  %v611 = vld [vmem:[%s0 + $0x322] sm:$0xff]
  %v612 = vpack.c.bf16 %v548, %v548
  %v613 = vpack.c.bf16 %v549, %v549
  %v614 = vpack.c.bf16 %v550, %v550
  %v615 = vpack.c.bf16 %v551, %v551
  %v616 = vpack.c.bf16 %v552, %v552
  %v617 = vpack.c.bf16 %v553, %v553
  %v618 = vpack.c.bf16 %v554, %v554
  %v619 = vpack.c.bf16 %v555, %v555
  %v620 = vpack.c.bf16 %v556, %v556
  %v621 = vpack.c.bf16 %v557, %v557
  %v622 = vpack.c.bf16 %v558, %v558
  %v623 = vpack.c.bf16 %v559, %v559
  %v624 = vpack.c.bf16 %v560, %v560
  %v625 = vpack.c.bf16 %v561, %v561
  %v626 = vpack.c.bf16 %v562, %v562
  %v627 = vpack.c.bf16 %v563, %v563
  %v628 = vpack.c.bf16 %v564, %v564
  %v629 = vpack.c.bf16 %v565, %v565
  %v630 = vpack.c.bf16 %v566, %v566
  %v631 = vpack.c.bf16 %v567, %v567
  %v632 = vpack.c.bf16 %v568, %v568
  %v633 = vpack.c.bf16 %v569, %v569
  %v634 = vpack.c.bf16 %v570, %v570
  %v635 = vpack.c.bf16 %v571, %v571
  %v636 = vpack.c.bf16 %v572, %v572
  %v637 = vpack.c.bf16 %v573, %v573
  %v638 = vpack.c.bf16 %v574, %v574
  %v639 = vpack.c.bf16 %v575, %v575
  %v640 = vpack.c.bf16 %v576, %v576
  %v641 = vpack.c.bf16 %v577, %v577
  %v642 = vpack.c.bf16 %v578, %v578
  %v643 = vpack.c.bf16 %v579, %v579
  %v644 = vpack.c.bf16 %v580, %v580
  %v645 = vpack.c.bf16 %v581, %v581
  %v646 = vpack.c.bf16 %v582, %v582
  %v647 = vpack.c.bf16 %v583, %v583
  %v648 = vpack.c.bf16 %v584, %v584
  %v649 = vpack.c.bf16 %v585, %v585
  %v650 = vpack.c.bf16 %v586, %v586
  %v651 = vpack.c.bf16 %v587, %v587
  %v652 = vpack.c.bf16 %v588, %v588
  %v653 = vpack.c.bf16 %v589, %v589
  %v654 = vpack.c.bf16 %v590, %v590
  %v655 = vpack.c.bf16 %v591, %v591
  %v656 = vpack.c.bf16 %v592, %v592
  %v657 = vpack.c.bf16 %v593, %v593
  %v658 = vpack.c.bf16 %v594, %v594
  %v659 = vpack.c.bf16 %v595, %v595
  %v660 = vpack.c.bf16 %v596, %v596
  %v661 = vpack.c.bf16 %v597, %v597
  %v662 = vpack.c.bf16 %v598, %v598
  %v663 = vpack.c.bf16 %v599, %v599
  %v664 = vpack.c.bf16 %v600, %v600
  %v665 = vpack.c.bf16 %v601, %v601
  %v666 = vpack.c.bf16 %v602, %v602
  %v667 = vpack.c.bf16 %v603, %v603
  %v668 = vpack.c.bf16 %v604, %v604
  %v669 = vpack.c.bf16 %v605, %v605
  %v670 = vpack.c.bf16 %v606, %v606
  %v671 = vpack.c.bf16 %v607, %v607
  %v672 = vpack.c.bf16 %v608, %v608
  %v673 = vpack.c.bf16 %v609, %v609
  %v674 = vpack.c.bf16 %v610, %v610
  %v675 = vpack.c.bf16 %v611, %v611
  %v676 = vld [vmem:[%s1 + $0x2] sm:$0xff]
  %v677 = vld [vmem:[%s1 + $0xa] sm:$0xff]
  %v678 = vld [vmem:[%s1 + $0x1a] sm:$0xff]
  %v679 = vld [vmem:[%s1 + $0x22] sm:$0xff]
  %v680 = vld [vmem:[%s1 + $0x32] sm:$0xff]
  %v681 = vld [vmem:[%s1 + $0x3a] sm:$0xff]
  %v682 = vld [vmem:[%s1 + $0x4a] sm:$0xff]
  %v683 = vld [vmem:[%s1 + $0x52] sm:$0xff]
  %v684 = vld [vmem:[%s1 + $0x62] sm:$0xff]
  %v685 = vld [vmem:[%s1 + $0x6a] sm:$0xff]
  %v686 = vld [vmem:[%s1 + $0x7a] sm:$0xff]
  %v687 = vld [vmem:[%s1 + $0x82] sm:$0xff]
  %v688 = vld [vmem:[%s1 + $0x92] sm:$0xff]
  %v689 = vld [vmem:[%s1 + $0x9a] sm:$0xff]
  %v690 = vld [vmem:[%s1 + $0xaa] sm:$0xff]
  %v691 = vld [vmem:[%s1 + $0xb2] sm:$0xff]
  %v692 = vld [vmem:[%s1 + $0xc2] sm:$0xff]
  %v693 = vld [vmem:[%s1 + $0xca] sm:$0xff]
  %v694 = vld [vmem:[%s1 + $0xda] sm:$0xff]
  %v695 = vld [vmem:[%s1 + $0xe2] sm:$0xff]
  %v696 = vld [vmem:[%s1 + $0xf2] sm:$0xff]
  %v697 = vld [vmem:[%s1 + $0xfa] sm:$0xff]
  %v698 = vld [vmem:[%s1 + $0x10a] sm:$0xff]
  %v699 = vld [vmem:[%s1 + $0x112] sm:$0xff]
  %v700 = vld [vmem:[%s1 + $0x122] sm:$0xff]
  %v701 = vld [vmem:[%s1 + $0x12a] sm:$0xff]
  %v702 = vld [vmem:[%s1 + $0x13a] sm:$0xff]
  %v703 = vld [vmem:[%s1 + $0x142] sm:$0xff]
  %v704 = vld [vmem:[%s1 + $0x152] sm:$0xff]
  %v705 = vld [vmem:[%s1 + $0x15a] sm:$0xff]
  %v706 = vld [vmem:[%s1 + $0x16a] sm:$0xff]
  %v707 = vld [vmem:[%s1 + $0x172] sm:$0xff]
  %v708 = vld [vmem:[%s1 + $0x1b2] sm:$0xff]
  %v709 = vld [vmem:[%s1 + $0x1ba] sm:$0xff]
  %v710 = vld [vmem:[%s1 + $0x1ca] sm:$0xff]
  %v711 = vld [vmem:[%s1 + $0x1d2] sm:$0xff]
  %v712 = vld [vmem:[%s1 + $0x1e2] sm:$0xff]
  %v713 = vld [vmem:[%s1 + $0x1ea] sm:$0xff]
  %v714 = vld [vmem:[%s1 + $0x1fa] sm:$0xff]
  %v715 = vld [vmem:[%s1 + $0x202] sm:$0xff]
  %v716 = vld [vmem:[%s1 + $0x212] sm:$0xff]
  %v717 = vld [vmem:[%s1 + $0x21a] sm:$0xff]
  %v718 = vld [vmem:[%s1 + $0x22a] sm:$0xff]
  %v719 = vld [vmem:[%s1 + $0x232] sm:$0xff]
  %v720 = vld [vmem:[%s1 + $0x242] sm:$0xff]
  %v721 = vld [vmem:[%s1 + $0x24a] sm:$0xff]
  %v722 = vld [vmem:[%s1 + $0x25a] sm:$0xff]
  %v723 = vld [vmem:[%s1 + $0x262] sm:$0xff]
  %v724 = vld [vmem:[%s1 + $0x272] sm:$0xff]
  %v725 = vld [vmem:[%s1 + $0x27a] sm:$0xff]
  %v726 = vld [vmem:[%s1 + $0x28a] sm:$0xff]
  %v727 = vld [vmem:[%s1 + $0x292] sm:$0xff]
  %v728 = vld [vmem:[%s1 + $0x2a2] sm:$0xff]
  %v729 = vld [vmem:[%s1 + $0x2aa] sm:$0xff]
  %v730 = vld [vmem:[%s1 + $0x2ba] sm:$0xff]
  %v731 = vld [vmem:[%s1 + $0x2c2] sm:$0xff]
  %v732 = vld [vmem:[%s1 + $0x2d2] sm:$0xff]
  %v733 = vld [vmem:[%s1 + $0x2da] sm:$0xff]
  %v734 = vld [vmem:[%s1 + $0x2ea] sm:$0xff]
  %v735 = vld [vmem:[%s1 + $0x2f2] sm:$0xff]
  %v736 = vld [vmem:[%s1 + $0x302] sm:$0xff]
  %v737 = vld [vmem:[%s1 + $0x30a] sm:$0xff]
  %v738 = vld [vmem:[%s1 + $0x31a] sm:$0xff]
  %v739 = vld [vmem:[%s1 + $0x322] sm:$0xff]
  %v740 = vpack.c.bf16 %v676, %v676
  %v741 = vpack.c.bf16 %v677, %v677
  %v742 = vpack.c.bf16 %v678, %v678
  %v743 = vpack.c.bf16 %v679, %v679
  %v744 = vpack.c.bf16 %v680, %v680
  %v745 = vpack.c.bf16 %v681, %v681
  %v746 = vpack.c.bf16 %v682, %v682
  %v747 = vpack.c.bf16 %v683, %v683
  %v748 = vpack.c.bf16 %v684, %v684
  %v749 = vpack.c.bf16 %v685, %v685
  %v750 = vpack.c.bf16 %v686, %v686
  %v751 = vpack.c.bf16 %v687, %v687
  %v752 = vpack.c.bf16 %v688, %v688
  %v753 = vpack.c.bf16 %v689, %v689
  %v754 = vpack.c.bf16 %v690, %v690
  %v755 = vpack.c.bf16 %v691, %v691
  %v756 = vpack.c.bf16 %v692, %v692
  %v757 = vpack.c.bf16 %v693, %v693
  %v758 = vpack.c.bf16 %v694, %v694
  %v759 = vpack.c.bf16 %v695, %v695
  %v760 = vpack.c.bf16 %v696, %v696
  %v761 = vpack.c.bf16 %v697, %v697
  %v762 = vpack.c.bf16 %v698, %v698
  %v763 = vpack.c.bf16 %v699, %v699
  %v764 = vpack.c.bf16 %v700, %v700
  %v765 = vpack.c.bf16 %v701, %v701
  %v766 = vpack.c.bf16 %v702, %v702
  %v767 = vpack.c.bf16 %v703, %v703
  %v768 = vpack.c.bf16 %v704, %v704
  %v769 = vpack.c.bf16 %v705, %v705
  %v770 = vpack.c.bf16 %v706, %v706
  %v771 = vpack.c.bf16 %v707, %v707
  %v772 = vpack.c.bf16 %v708, %v708
  %v773 = vpack.c.bf16 %v709, %v709
  %v774 = vpack.c.bf16 %v710, %v710
  %v775 = vpack.c.bf16 %v711, %v711
  %v776 = vpack.c.bf16 %v712, %v712
  %v777 = vpack.c.bf16 %v713, %v713
  %v778 = vpack.c.bf16 %v714, %v714
  %v779 = vpack.c.bf16 %v715, %v715
  %v780 = vpack.c.bf16 %v716, %v716
  %v781 = vpack.c.bf16 %v717, %v717
  %v782 = vpack.c.bf16 %v718, %v718
  %v783 = vpack.c.bf16 %v719, %v719
  %v784 = vpack.c.bf16 %v720, %v720
  %v785 = vpack.c.bf16 %v721, %v721
  %v786 = vpack.c.bf16 %v722, %v722
  %v787 = vpack.c.bf16 %v723, %v723
  %v788 = vpack.c.bf16 %v724, %v724
  %v789 = vpack.c.bf16 %v725, %v725
  %v790 = vpack.c.bf16 %v726, %v726
  %v791 = vpack.c.bf16 %v727, %v727
  %v792 = vpack.c.bf16 %v728, %v728
  %v793 = vpack.c.bf16 %v729, %v729
  %v794 = vpack.c.bf16 %v730, %v730
  %v795 = vpack.c.bf16 %v731, %v731
  %v796 = vpack.c.bf16 %v732, %v732
  %v797 = vpack.c.bf16 %v733, %v733
  %v798 = vpack.c.bf16 %v734, %v734
  %v799 = vpack.c.bf16 %v735, %v735
  %v800 = vpack.c.bf16 %v736, %v736
  %v801 = vpack.c.bf16 %v737, %v737
  %v802 = vpack.c.bf16 %v738, %v738
  %v803 = vpack.c.bf16 %v739, %v739
  %s804 = scalar_lea.vmem %s0, 24
  %v805 = vld [vmem:[%s804] sm:$0xff]
  %v806 = vld [vmem:[%s804 + $0x8] sm:$0xff]
  %v807 = vld [vmem:[%s804 + $0x18] sm:$0xff]
  %v808 = vld [vmem:[%s804 + $0x20] sm:$0xff]
  %v809 = vld [vmem:[%s804 + $0x30] sm:$0xff]
  %v810 = vld [vmem:[%s804 + $0x38] sm:$0xff]
  %v811 = vld [vmem:[%s804 + $0x48] sm:$0xff]
  %v812 = vld [vmem:[%s804 + $0x50] sm:$0xff]
  %v813 = vld [vmem:[%s804 + $0x60] sm:$0xff]
  %v814 = vld [vmem:[%s804 + $0x68] sm:$0xff]
  %v815 = vld [vmem:[%s804 + $0x78] sm:$0xff]
  %v816 = vld [vmem:[%s804 + $0x80] sm:$0xff]
  %v817 = vld [vmem:[%s804 + $0x90] sm:$0xff]
  %v818 = vld [vmem:[%s804 + $0x98] sm:$0xff]
  %v819 = vld [vmem:[%s804 + $0xa8] sm:$0xff]
  %v820 = vld [vmem:[%s804 + $0xb0] sm:$0xff]
  %v821 = vld [vmem:[%s804 + $0xc0] sm:$0xff]
  %v822 = vld [vmem:[%s804 + $0xc8] sm:$0xff]
  %v823 = vld [vmem:[%s804 + $0xd8] sm:$0xff]
  %v824 = vld [vmem:[%s804 + $0xe0] sm:$0xff]
  %v825 = vld [vmem:[%s804 + $0xf0] sm:$0xff]
  %v826 = vld [vmem:[%s804 + $0xf8] sm:$0xff]
  %v827 = vld [vmem:[%s804 + $0x108] sm:$0xff]
  %v828 = vld [vmem:[%s804 + $0x110] sm:$0xff]
  %v829 = vld [vmem:[%s804 + $0x120] sm:$0xff]
  %v830 = vld [vmem:[%s804 + $0x128] sm:$0xff]
  %v831 = vld [vmem:[%s804 + $0x138] sm:$0xff]
  %v832 = vld [vmem:[%s804 + $0x140] sm:$0xff]
  %v833 = vld [vmem:[%s804 + $0x150] sm:$0xff]
  %v834 = vld [vmem:[%s804 + $0x158] sm:$0xff]
  %v835 = vld [vmem:[%s804 + $0x168] sm:$0xff]
  %v836 = vld [vmem:[%s804 + $0x170] sm:$0xff]
  %v837 = vld [vmem:[%s804 + $0x1b0] sm:$0xff]
  %v838 = vld [vmem:[%s804 + $0x1b8] sm:$0xff]
  %v839 = vld [vmem:[%s804 + $0x1c8] sm:$0xff]
  %v840 = vld [vmem:[%s804 + $0x1d0] sm:$0xff]
  %v841 = vld [vmem:[%s804 + $0x1e0] sm:$0xff]
  %v842 = vld [vmem:[%s804 + $0x1e8] sm:$0xff]
  %v843 = vld [vmem:[%s804 + $0x1f8] sm:$0xff]
  %v844 = vld [vmem:[%s804 + $0x200] sm:$0xff]
  %v845 = vld [vmem:[%s804 + $0x210] sm:$0xff]
  %v846 = vld [vmem:[%s804 + $0x218] sm:$0xff]
  %v847 = vld [vmem:[%s804 + $0x228] sm:$0xff]
  %v848 = vld [vmem:[%s804 + $0x230] sm:$0xff]
  %v849 = vld [vmem:[%s804 + $0x240] sm:$0xff]
  %v850 = vld [vmem:[%s804 + $0x248] sm:$0xff]
  %v851 = vld [vmem:[%s804 + $0x258] sm:$0xff]
  %v852 = vld [vmem:[%s804 + $0x260] sm:$0xff]
  %v853 = vld [vmem:[%s804 + $0x270] sm:$0xff]
  %v854 = vld [vmem:[%s804 + $0x278] sm:$0xff]
  %v855 = vld [vmem:[%s804 + $0x288] sm:$0xff]
  %v856 = vld [vmem:[%s804 + $0x290] sm:$0xff]
  %v857 = vld [vmem:[%s804 + $0x2a0] sm:$0xff]
  %v858 = vld [vmem:[%s804 + $0x2a8] sm:$0xff]
  %v859 = vld [vmem:[%s804 + $0x2b8] sm:$0xff]
  %v860 = vld [vmem:[%s804 + $0x2c0] sm:$0xff]
  %v861 = vld [vmem:[%s804 + $0x2d0] sm:$0xff]
  %v862 = vld [vmem:[%s804 + $0x2d8] sm:$0xff]
  %v863 = vld [vmem:[%s804 + $0x2e8] sm:$0xff]
  %v864 = vld [vmem:[%s804 + $0x2f0] sm:$0xff]
  %v865 = vld [vmem:[%s804 + $0x300] sm:$0xff]
  %v866 = vld [vmem:[%s804 + $0x308] sm:$0xff]
  %v867 = vld [vmem:[%s804 + $0x318] sm:$0xff]
  %v868 = vld [vmem:[%s804 + $0x320] sm:$0xff]
  %v869 = vpack.c.bf16 %v805, %v805
  %v870 = vpack.c.bf16 %v806, %v806
  %v871 = vpack.c.bf16 %v807, %v807
  %v872 = vpack.c.bf16 %v808, %v808
  %v873 = vpack.c.bf16 %v809, %v809
  %v874 = vpack.c.bf16 %v810, %v810
  %v875 = vpack.c.bf16 %v811, %v811
  %v876 = vpack.c.bf16 %v812, %v812
  %v877 = vpack.c.bf16 %v813, %v813
  %v878 = vpack.c.bf16 %v814, %v814
  %v879 = vpack.c.bf16 %v815, %v815
  %v880 = vpack.c.bf16 %v816, %v816
  %v881 = vpack.c.bf16 %v817, %v817
  %v882 = vpack.c.bf16 %v818, %v818
  %v883 = vpack.c.bf16 %v819, %v819
  %v884 = vpack.c.bf16 %v820, %v820
  %v885 = vpack.c.bf16 %v821, %v821
  %v886 = vpack.c.bf16 %v822, %v822
  %v887 = vpack.c.bf16 %v823, %v823
  %v888 = vpack.c.bf16 %v824, %v824
  %v889 = vpack.c.bf16 %v825, %v825
  %v890 = vpack.c.bf16 %v826, %v826
  %v891 = vpack.c.bf16 %v827, %v827
  %v892 = vpack.c.bf16 %v828, %v828
  %v893 = vpack.c.bf16 %v829, %v829
  %v894 = vpack.c.bf16 %v830, %v830
  %v895 = vpack.c.bf16 %v831, %v831
  %v896 = vpack.c.bf16 %v832, %v832
  %v897 = vpack.c.bf16 %v833, %v833
  %v898 = vpack.c.bf16 %v834, %v834
  %v899 = vpack.c.bf16 %v835, %v835
  %v900 = vpack.c.bf16 %v836, %v836
  %v901 = vpack.c.bf16 %v837, %v837
  %v902 = vpack.c.bf16 %v838, %v838
  %v903 = vpack.c.bf16 %v839, %v839
  %v904 = vpack.c.bf16 %v840, %v840
  %v905 = vpack.c.bf16 %v841, %v841
  %v906 = vpack.c.bf16 %v842, %v842
  %v907 = vpack.c.bf16 %v843, %v843
  %v908 = vpack.c.bf16 %v844, %v844
  %v909 = vpack.c.bf16 %v845, %v845
  %v910 = vpack.c.bf16 %v846, %v846
  %v911 = vpack.c.bf16 %v847, %v847
  %v912 = vpack.c.bf16 %v848, %v848
  %v913 = vpack.c.bf16 %v849, %v849
  %v914 = vpack.c.bf16 %v850, %v850
  %v915 = vpack.c.bf16 %v851, %v851
  %v916 = vpack.c.bf16 %v852, %v852
  %v917 = vpack.c.bf16 %v853, %v853
  %v918 = vpack.c.bf16 %v854, %v854
  %v919 = vpack.c.bf16 %v855, %v855
  %v920 = vpack.c.bf16 %v856, %v856
  %v921 = vpack.c.bf16 %v857, %v857
  %v922 = vpack.c.bf16 %v858, %v858
  %v923 = vpack.c.bf16 %v859, %v859
  %v924 = vpack.c.bf16 %v860, %v860
  %v925 = vpack.c.bf16 %v861, %v861
  %v926 = vpack.c.bf16 %v862, %v862
  %v927 = vpack.c.bf16 %v863, %v863
  %v928 = vpack.c.bf16 %v864, %v864
  %v929 = vpack.c.bf16 %v865, %v865
  %v930 = vpack.c.bf16 %v866, %v866
  %v931 = vpack.c.bf16 %v867, %v867
  %v932 = vpack.c.bf16 %v868, %v868
  %s933 = scalar_lea.vmem %s1, 24
  %v934 = vld [vmem:[%s933] sm:$0xff]
  %v935 = vld [vmem:[%s933 + $0x8] sm:$0xff]
  %v936 = vld [vmem:[%s933 + $0x18] sm:$0xff]
  %v937 = vld [vmem:[%s933 + $0x20] sm:$0xff]
  %v938 = vld [vmem:[%s933 + $0x30] sm:$0xff]
  %v939 = vld [vmem:[%s933 + $0x38] sm:$0xff]
  %v940 = vld [vmem:[%s933 + $0x48] sm:$0xff]
  %v941 = vld [vmem:[%s933 + $0x50] sm:$0xff]
  %v942 = vld [vmem:[%s933 + $0x60] sm:$0xff]
  %v943 = vld [vmem:[%s933 + $0x68] sm:$0xff]
  %v944 = vld [vmem:[%s933 + $0x78] sm:$0xff]
  %v945 = vld [vmem:[%s933 + $0x80] sm:$0xff]
  %v946 = vld [vmem:[%s933 + $0x90] sm:$0xff]
  %v947 = vld [vmem:[%s933 + $0x98] sm:$0xff]
  %v948 = vld [vmem:[%s933 + $0xa8] sm:$0xff]
  %v949 = vld [vmem:[%s933 + $0xb0] sm:$0xff]
  %v950 = vld [vmem:[%s933 + $0xc0] sm:$0xff]
  %v951 = vld [vmem:[%s933 + $0xc8] sm:$0xff]
  %v952 = vld [vmem:[%s933 + $0xd8] sm:$0xff]
  %v953 = vld [vmem:[%s933 + $0xe0] sm:$0xff]
  %v954 = vld [vmem:[%s933 + $0xf0] sm:$0xff]
  %v955 = vld [vmem:[%s933 + $0xf8] sm:$0xff]
  %v956 = vld [vmem:[%s933 + $0x108] sm:$0xff]
  %v957 = vld [vmem:[%s933 + $0x110] sm:$0xff]
  %v958 = vld [vmem:[%s933 + $0x120] sm:$0xff]
  %v959 = vld [vmem:[%s933 + $0x128] sm:$0xff]
  %v960 = vld [vmem:[%s933 + $0x138] sm:$0xff]
  %v961 = vld [vmem:[%s933 + $0x140] sm:$0xff]
  %v962 = vld [vmem:[%s933 + $0x150] sm:$0xff]
  %v963 = vld [vmem:[%s933 + $0x158] sm:$0xff]
  %v964 = vld [vmem:[%s933 + $0x168] sm:$0xff]
  %v965 = vld [vmem:[%s933 + $0x170] sm:$0xff]
  %v966 = vld [vmem:[%s933 + $0x1b0] sm:$0xff]
  %v967 = vld [vmem:[%s933 + $0x1b8] sm:$0xff]
  %v968 = vld [vmem:[%s933 + $0x1c8] sm:$0xff]
  %v969 = vld [vmem:[%s933 + $0x1d0] sm:$0xff]
  %v970 = vld [vmem:[%s933 + $0x1e0] sm:$0xff]
  %v971 = vld [vmem:[%s933 + $0x1e8] sm:$0xff]
  %v972 = vld [vmem:[%s933 + $0x1f8] sm:$0xff]
  %v973 = vld [vmem:[%s933 + $0x200] sm:$0xff]
  %v974 = vld [vmem:[%s933 + $0x210] sm:$0xff]
  %v975 = vld [vmem:[%s933 + $0x218] sm:$0xff]
  %v976 = vld [vmem:[%s933 + $0x228] sm:$0xff]
  %v977 = vld [vmem:[%s933 + $0x230] sm:$0xff]
  %v978 = vld [vmem:[%s933 + $0x240] sm:$0xff]
  %v979 = vld [vmem:[%s933 + $0x248] sm:$0xff]
  %v980 = vld [vmem:[%s933 + $0x258] sm:$0xff]
  %v981 = vld [vmem:[%s933 + $0x260] sm:$0xff]
  %v982 = vld [vmem:[%s933 + $0x270] sm:$0xff]
  %v983 = vld [vmem:[%s933 + $0x278] sm:$0xff]
  %v984 = vld [vmem:[%s933 + $0x288] sm:$0xff]
  %v985 = vld [vmem:[%s933 + $0x290] sm:$0xff]
  %v986 = vld [vmem:[%s933 + $0x2a0] sm:$0xff]
  %v987 = vld [vmem:[%s933 + $0x2a8] sm:$0xff]
  %v988 = vld [vmem:[%s933 + $0x2b8] sm:$0xff]
  %v989 = vld [vmem:[%s933 + $0x2c0] sm:$0xff]
  %v990 = vld [vmem:[%s933 + $0x2d0] sm:$0xff]
  %v991 = vld [vmem:[%s933 + $0x2d8] sm:$0xff]
  %v992 = vld [vmem:[%s933 + $0x2e8] sm:$0xff]
  %v993 = vld [vmem:[%s933 + $0x2f0] sm:$0xff]
  %v994 = vld [vmem:[%s933 + $0x300] sm:$0xff]
  %v995 = vld [vmem:[%s933 + $0x308] sm:$0xff]
  %v996 = vld [vmem:[%s933 + $0x318] sm:$0xff]
  %v997 = vld [vmem:[%s933 + $0x320] sm:$0xff]
  %v998 = vpack.c.bf16 %v934, %v934
  %v999 = vpack.c.bf16 %v935, %v935
  %v1000 = vpack.c.bf16 %v936, %v936
  %v1001 = vpack.c.bf16 %v937, %v937
  %v1002 = vpack.c.bf16 %v938, %v938
  %v1003 = vpack.c.bf16 %v939, %v939
  %v1004 = vpack.c.bf16 %v940, %v940
  %v1005 = vpack.c.bf16 %v941, %v941
  %v1006 = vpack.c.bf16 %v942, %v942
  %v1007 = vpack.c.bf16 %v943, %v943
  %v1008 = vpack.c.bf16 %v944, %v944
  %v1009 = vpack.c.bf16 %v945, %v945
  %v1010 = vpack.c.bf16 %v946, %v946
  %v1011 = vpack.c.bf16 %v947, %v947
  %v1012 = vpack.c.bf16 %v948, %v948
  %v1013 = vpack.c.bf16 %v949, %v949
  %v1014 = vpack.c.bf16 %v950, %v950
  %v1015 = vpack.c.bf16 %v951, %v951
  %v1016 = vpack.c.bf16 %v952, %v952
  %v1017 = vpack.c.bf16 %v953, %v953
  %v1018 = vpack.c.bf16 %v954, %v954
  %v1019 = vpack.c.bf16 %v955, %v955
  %v1020 = vpack.c.bf16 %v956, %v956
  %v1021 = vpack.c.bf16 %v957, %v957
  %v1022 = vpack.c.bf16 %v958, %v958
  %v1023 = vpack.c.bf16 %v959, %v959
  %v1024 = vpack.c.bf16 %v960, %v960
  %v1025 = vpack.c.bf16 %v961, %v961
  %v1026 = vpack.c.bf16 %v962, %v962
  %v1027 = vpack.c.bf16 %v963, %v963
  %v1028 = vpack.c.bf16 %v964, %v964
  %v1029 = vpack.c.bf16 %v965, %v965
  %v1030 = vpack.c.bf16 %v966, %v966
  %v1031 = vpack.c.bf16 %v967, %v967
  %v1032 = vpack.c.bf16 %v968, %v968
  %v1033 = vpack.c.bf16 %v969, %v969
  %v1034 = vpack.c.bf16 %v970, %v970
  %v1035 = vpack.c.bf16 %v971, %v971
  %v1036 = vpack.c.bf16 %v972, %v972
  %v1037 = vpack.c.bf16 %v973, %v973
  %v1038 = vpack.c.bf16 %v974, %v974
  %v1039 = vpack.c.bf16 %v975, %v975
  %v1040 = vpack.c.bf16 %v976, %v976
  %v1041 = vpack.c.bf16 %v977, %v977
  %v1042 = vpack.c.bf16 %v978, %v978
  %v1043 = vpack.c.bf16 %v979, %v979
  %v1044 = vpack.c.bf16 %v980, %v980
  %v1045 = vpack.c.bf16 %v981, %v981
  %v1046 = vpack.c.bf16 %v982, %v982
  %v1047 = vpack.c.bf16 %v983, %v983
  %v1048 = vpack.c.bf16 %v984, %v984
  %v1049 = vpack.c.bf16 %v985, %v985
  %v1050 = vpack.c.bf16 %v986, %v986
  %v1051 = vpack.c.bf16 %v987, %v987
  %v1052 = vpack.c.bf16 %v988, %v988
  %v1053 = vpack.c.bf16 %v989, %v989
  %v1054 = vpack.c.bf16 %v990, %v990
  %v1055 = vpack.c.bf16 %v991, %v991
  %v1056 = vpack.c.bf16 %v992, %v992
  %v1057 = vpack.c.bf16 %v993, %v993
  %v1058 = vpack.c.bf16 %v994, %v994
  %v1059 = vpack.c.bf16 %v995, %v995
  %v1060 = vpack.c.bf16 %v996, %v996
  %v1061 = vpack.c.bf16 %v997, %v997
  %v1062 = vld [vmem:[%s804 + $0x1] sm:$0xff]
  %v1063 = vld [vmem:[%s804 + $0x9] sm:$0xff]
  %v1064 = vld [vmem:[%s804 + $0x19] sm:$0xff]
  %v1065 = vld [vmem:[%s804 + $0x21] sm:$0xff]
  %v1066 = vld [vmem:[%s804 + $0x31] sm:$0xff]
  %v1067 = vld [vmem:[%s804 + $0x39] sm:$0xff]
  %v1068 = vld [vmem:[%s804 + $0x49] sm:$0xff]
  %v1069 = vld [vmem:[%s804 + $0x51] sm:$0xff]
  %v1070 = vld [vmem:[%s804 + $0x61] sm:$0xff]
  %v1071 = vld [vmem:[%s804 + $0x69] sm:$0xff]
  %v1072 = vld [vmem:[%s804 + $0x79] sm:$0xff]
  %v1073 = vld [vmem:[%s804 + $0x81] sm:$0xff]
  %v1074 = vld [vmem:[%s804 + $0x91] sm:$0xff]
  %v1075 = vld [vmem:[%s804 + $0x99] sm:$0xff]
  %v1076 = vld [vmem:[%s804 + $0xa9] sm:$0xff]
  %v1077 = vld [vmem:[%s804 + $0xb1] sm:$0xff]
  %v1078 = vld [vmem:[%s804 + $0xc1] sm:$0xff]
  %v1079 = vld [vmem:[%s804 + $0xc9] sm:$0xff]
  %v1080 = vld [vmem:[%s804 + $0xd9] sm:$0xff]
  %v1081 = vld [vmem:[%s804 + $0xe1] sm:$0xff]
  %v1082 = vld [vmem:[%s804 + $0xf1] sm:$0xff]
  %v1083 = vld [vmem:[%s804 + $0xf9] sm:$0xff]
  %v1084 = vld [vmem:[%s804 + $0x109] sm:$0xff]
  %v1085 = vld [vmem:[%s804 + $0x111] sm:$0xff]
  %v1086 = vld [vmem:[%s804 + $0x121] sm:$0xff]
  %v1087 = vld [vmem:[%s804 + $0x129] sm:$0xff]
  %v1088 = vld [vmem:[%s804 + $0x139] sm:$0xff]
  %v1089 = vld [vmem:[%s804 + $0x141] sm:$0xff]
  %v1090 = vld [vmem:[%s804 + $0x151] sm:$0xff]
  %v1091 = vld [vmem:[%s804 + $0x159] sm:$0xff]
  %v1092 = vld [vmem:[%s804 + $0x169] sm:$0xff]
  %v1093 = vld [vmem:[%s804 + $0x171] sm:$0xff]
  %v1094 = vld [vmem:[%s804 + $0x1b1] sm:$0xff]
  %v1095 = vld [vmem:[%s804 + $0x1b9] sm:$0xff]
  %v1096 = vld [vmem:[%s804 + $0x1c9] sm:$0xff]
  %v1097 = vld [vmem:[%s804 + $0x1d1] sm:$0xff]
  %v1098 = vld [vmem:[%s804 + $0x1e1] sm:$0xff]
  %v1099 = vld [vmem:[%s804 + $0x1e9] sm:$0xff]
  %v1100 = vld [vmem:[%s804 + $0x1f9] sm:$0xff]
  %v1101 = vld [vmem:[%s804 + $0x201] sm:$0xff]
  %v1102 = vld [vmem:[%s804 + $0x211] sm:$0xff]
  %v1103 = vld [vmem:[%s804 + $0x219] sm:$0xff]
  %v1104 = vld [vmem:[%s804 + $0x229] sm:$0xff]
  %v1105 = vld [vmem:[%s804 + $0x231] sm:$0xff]
  %v1106 = vld [vmem:[%s804 + $0x241] sm:$0xff]
  %v1107 = vld [vmem:[%s804 + $0x249] sm:$0xff]
  %v1108 = vld [vmem:[%s804 + $0x259] sm:$0xff]
  %v1109 = vld [vmem:[%s804 + $0x261] sm:$0xff]
  %v1110 = vld [vmem:[%s804 + $0x271] sm:$0xff]
  %v1111 = vld [vmem:[%s804 + $0x279] sm:$0xff]
  %v1112 = vld [vmem:[%s804 + $0x289] sm:$0xff]
  %v1113 = vld [vmem:[%s804 + $0x291] sm:$0xff]
  %v1114 = vld [vmem:[%s804 + $0x2a1] sm:$0xff]
  %v1115 = vld [vmem:[%s804 + $0x2a9] sm:$0xff]
  %v1116 = vld [vmem:[%s804 + $0x2b9] sm:$0xff]
  %v1117 = vld [vmem:[%s804 + $0x2c1] sm:$0xff]
  %v1118 = vld [vmem:[%s804 + $0x2d1] sm:$0xff]
  %v1119 = vld [vmem:[%s804 + $0x2d9] sm:$0xff]
  %v1120 = vld [vmem:[%s804 + $0x2e9] sm:$0xff]
  %v1121 = vld [vmem:[%s804 + $0x2f1] sm:$0xff]
  %v1122 = vld [vmem:[%s804 + $0x301] sm:$0xff]
  %v1123 = vld [vmem:[%s804 + $0x309] sm:$0xff]
  %v1124 = vld [vmem:[%s804 + $0x319] sm:$0xff]
  %v1125 = vld [vmem:[%s804 + $0x321] sm:$0xff]
  %v1126 = vpack.c.bf16 %v1062, %v1062
  %v1127 = vpack.c.bf16 %v1063, %v1063
  %v1128 = vpack.c.bf16 %v1064, %v1064
  %v1129 = vpack.c.bf16 %v1065, %v1065
  %v1130 = vpack.c.bf16 %v1066, %v1066
  %v1131 = vpack.c.bf16 %v1067, %v1067
  %v1132 = vpack.c.bf16 %v1068, %v1068
  %v1133 = vpack.c.bf16 %v1069, %v1069
  %v1134 = vpack.c.bf16 %v1070, %v1070
  %v1135 = vpack.c.bf16 %v1071, %v1071
  %v1136 = vpack.c.bf16 %v1072, %v1072
  %v1137 = vpack.c.bf16 %v1073, %v1073
  %v1138 = vpack.c.bf16 %v1074, %v1074
  %v1139 = vpack.c.bf16 %v1075, %v1075
  %v1140 = vpack.c.bf16 %v1076, %v1076
  %v1141 = vpack.c.bf16 %v1077, %v1077
  %v1142 = vpack.c.bf16 %v1078, %v1078
  %v1143 = vpack.c.bf16 %v1079, %v1079
  %v1144 = vpack.c.bf16 %v1080, %v1080
  %v1145 = vpack.c.bf16 %v1081, %v1081
  %v1146 = vpack.c.bf16 %v1082, %v1082
  %v1147 = vpack.c.bf16 %v1083, %v1083
  %v1148 = vpack.c.bf16 %v1084, %v1084
  %v1149 = vpack.c.bf16 %v1085, %v1085
  %v1150 = vpack.c.bf16 %v1086, %v1086
  %v1151 = vpack.c.bf16 %v1087, %v1087
  %v1152 = vpack.c.bf16 %v1088, %v1088
  %v1153 = vpack.c.bf16 %v1089, %v1089
  %v1154 = vpack.c.bf16 %v1090, %v1090
  %v1155 = vpack.c.bf16 %v1091, %v1091
  %v1156 = vpack.c.bf16 %v1092, %v1092
  %v1157 = vpack.c.bf16 %v1093, %v1093
  %v1158 = vpack.c.bf16 %v1094, %v1094
  %v1159 = vpack.c.bf16 %v1095, %v1095
  %v1160 = vpack.c.bf16 %v1096, %v1096
  %v1161 = vpack.c.bf16 %v1097, %v1097
  %v1162 = vpack.c.bf16 %v1098, %v1098
  %v1163 = vpack.c.bf16 %v1099, %v1099
  %v1164 = vpack.c.bf16 %v1100, %v1100
  %v1165 = vpack.c.bf16 %v1101, %v1101
  %v1166 = vpack.c.bf16 %v1102, %v1102
  %v1167 = vpack.c.bf16 %v1103, %v1103
  %v1168 = vpack.c.bf16 %v1104, %v1104
  %v1169 = vpack.c.bf16 %v1105, %v1105
  %v1170 = vpack.c.bf16 %v1106, %v1106
  %v1171 = vpack.c.bf16 %v1107, %v1107
  %v1172 = vpack.c.bf16 %v1108, %v1108
  %v1173 = vpack.c.bf16 %v1109, %v1109
  %v1174 = vpack.c.bf16 %v1110, %v1110
  %v1175 = vpack.c.bf16 %v1111, %v1111
  %v1176 = vpack.c.bf16 %v1112, %v1112
  %v1177 = vpack.c.bf16 %v1113, %v1113
  %v1178 = vpack.c.bf16 %v1114, %v1114
  %v1179 = vpack.c.bf16 %v1115, %v1115
  %v1180 = vpack.c.bf16 %v1116, %v1116
  %v1181 = vpack.c.bf16 %v1117, %v1117
  %v1182 = vpack.c.bf16 %v1118, %v1118
  %v1183 = vpack.c.bf16 %v1119, %v1119
  %v1184 = vpack.c.bf16 %v1120, %v1120
  %v1185 = vpack.c.bf16 %v1121, %v1121
  %v1186 = vpack.c.bf16 %v1122, %v1122
  %v1187 = vpack.c.bf16 %v1123, %v1123
  %v1188 = vpack.c.bf16 %v1124, %v1124
  %v1189 = vpack.c.bf16 %v1125, %v1125
  %v1190 = vld [vmem:[%s933 + $0x1] sm:$0xff]
  %v1191 = vld [vmem:[%s933 + $0x9] sm:$0xff]
  %v1192 = vld [vmem:[%s933 + $0x19] sm:$0xff]
  %v1193 = vld [vmem:[%s933 + $0x21] sm:$0xff]
  %v1194 = vld [vmem:[%s933 + $0x31] sm:$0xff]
  %v1195 = vld [vmem:[%s933 + $0x39] sm:$0xff]
  %v1196 = vld [vmem:[%s933 + $0x49] sm:$0xff]
  %v1197 = vld [vmem:[%s933 + $0x51] sm:$0xff]
  %v1198 = vld [vmem:[%s933 + $0x61] sm:$0xff]
  %v1199 = vld [vmem:[%s933 + $0x69] sm:$0xff]
  %v1200 = vld [vmem:[%s933 + $0x79] sm:$0xff]
  %v1201 = vld [vmem:[%s933 + $0x81] sm:$0xff]
  %v1202 = vld [vmem:[%s933 + $0x91] sm:$0xff]
  %v1203 = vld [vmem:[%s933 + $0x99] sm:$0xff]
  %v1204 = vld [vmem:[%s933 + $0xa9] sm:$0xff]
  %v1205 = vld [vmem:[%s933 + $0xb1] sm:$0xff]
  %v1206 = vld [vmem:[%s933 + $0xc1] sm:$0xff]
  %v1207 = vld [vmem:[%s933 + $0xc9] sm:$0xff]
  %v1208 = vld [vmem:[%s933 + $0xd9] sm:$0xff]
  %v1209 = vld [vmem:[%s933 + $0xe1] sm:$0xff]
  %v1210 = vld [vmem:[%s933 + $0xf1] sm:$0xff]
  %v1211 = vld [vmem:[%s933 + $0xf9] sm:$0xff]
  %v1212 = vld [vmem:[%s933 + $0x109] sm:$0xff]
  %v1213 = vld [vmem:[%s933 + $0x111] sm:$0xff]
  %v1214 = vld [vmem:[%s933 + $0x121] sm:$0xff]
  %v1215 = vld [vmem:[%s933 + $0x129] sm:$0xff]
  %v1216 = vld [vmem:[%s933 + $0x139] sm:$0xff]
  %v1217 = vld [vmem:[%s933 + $0x141] sm:$0xff]
  %v1218 = vld [vmem:[%s933 + $0x151] sm:$0xff]
  %v1219 = vld [vmem:[%s933 + $0x159] sm:$0xff]
  %v1220 = vld [vmem:[%s933 + $0x169] sm:$0xff]
  %v1221 = vld [vmem:[%s933 + $0x171] sm:$0xff]
  %v1222 = vld [vmem:[%s933 + $0x1b1] sm:$0xff]
  %v1223 = vld [vmem:[%s933 + $0x1b9] sm:$0xff]
  %v1224 = vld [vmem:[%s933 + $0x1c9] sm:$0xff]
  %v1225 = vld [vmem:[%s933 + $0x1d1] sm:$0xff]
  %v1226 = vld [vmem:[%s933 + $0x1e1] sm:$0xff]
  %v1227 = vld [vmem:[%s933 + $0x1e9] sm:$0xff]
  %v1228 = vld [vmem:[%s933 + $0x1f9] sm:$0xff]
  %v1229 = vld [vmem:[%s933 + $0x201] sm:$0xff]
  %v1230 = vld [vmem:[%s933 + $0x211] sm:$0xff]
  %v1231 = vld [vmem:[%s933 + $0x219] sm:$0xff]
  %v1232 = vld [vmem:[%s933 + $0x229] sm:$0xff]
  %v1233 = vld [vmem:[%s933 + $0x231] sm:$0xff]
  %v1234 = vld [vmem:[%s933 + $0x241] sm:$0xff]
  %v1235 = vld [vmem:[%s933 + $0x249] sm:$0xff]
  %v1236 = vld [vmem:[%s933 + $0x259] sm:$0xff]
  %v1237 = vld [vmem:[%s933 + $0x261] sm:$0xff]
  %v1238 = vld [vmem:[%s933 + $0x271] sm:$0xff]
  %v1239 = vld [vmem:[%s933 + $0x279] sm:$0xff]
  %v1240 = vld [vmem:[%s933 + $0x289] sm:$0xff]
  %v1241 = vld [vmem:[%s933 + $0x291] sm:$0xff]
  %v1242 = vld [vmem:[%s933 + $0x2a1] sm:$0xff]
  %v1243 = vld [vmem:[%s933 + $0x2a9] sm:$0xff]
  %v1244 = vld [vmem:[%s933 + $0x2b9] sm:$0xff]
  %v1245 = vld [vmem:[%s933 + $0x2c1] sm:$0xff]
  %v1246 = vld [vmem:[%s933 + $0x2d1] sm:$0xff]
  %v1247 = vld [vmem:[%s933 + $0x2d9] sm:$0xff]
  %v1248 = vld [vmem:[%s933 + $0x2e9] sm:$0xff]
  %v1249 = vld [vmem:[%s933 + $0x2f1] sm:$0xff]
  %v1250 = vld [vmem:[%s933 + $0x301] sm:$0xff]
  %v1251 = vld [vmem:[%s933 + $0x309] sm:$0xff]
  %v1252 = vld [vmem:[%s933 + $0x319] sm:$0xff]
  %v1253 = vld [vmem:[%s933 + $0x321] sm:$0xff]
  %v1254 = vpack.c.bf16 %v1190, %v1190
  %v1255 = vpack.c.bf16 %v1191, %v1191
  %v1256 = vpack.c.bf16 %v1192, %v1192
  %v1257 = vpack.c.bf16 %v1193, %v1193
  %v1258 = vpack.c.bf16 %v1194, %v1194
  %v1259 = vpack.c.bf16 %v1195, %v1195
  %v1260 = vpack.c.bf16 %v1196, %v1196
  %v1261 = vpack.c.bf16 %v1197, %v1197
  %v1262 = vpack.c.bf16 %v1198, %v1198
  %v1263 = vpack.c.bf16 %v1199, %v1199
  %v1264 = vpack.c.bf16 %v1200, %v1200
  %v1265 = vpack.c.bf16 %v1201, %v1201
  %v1266 = vpack.c.bf16 %v1202, %v1202
  %v1267 = vpack.c.bf16 %v1203, %v1203
  %v1268 = vpack.c.bf16 %v1204, %v1204
  %v1269 = vpack.c.bf16 %v1205, %v1205
  %v1270 = vpack.c.bf16 %v1206, %v1206
  %v1271 = vpack.c.bf16 %v1207, %v1207
  %v1272 = vpack.c.bf16 %v1208, %v1208
  %v1273 = vpack.c.bf16 %v1209, %v1209
  %v1274 = vpack.c.bf16 %v1210, %v1210
  %v1275 = vpack.c.bf16 %v1211, %v1211
  %v1276 = vpack.c.bf16 %v1212, %v1212
  %v1277 = vpack.c.bf16 %v1213, %v1213
  %v1278 = vpack.c.bf16 %v1214, %v1214
  %v1279 = vpack.c.bf16 %v1215, %v1215
  %v1280 = vpack.c.bf16 %v1216, %v1216
  %v1281 = vpack.c.bf16 %v1217, %v1217
  %v1282 = vpack.c.bf16 %v1218, %v1218
  %v1283 = vpack.c.bf16 %v1219, %v1219
  %v1284 = vpack.c.bf16 %v1220, %v1220
  %v1285 = vpack.c.bf16 %v1221, %v1221
  %v1286 = vpack.c.bf16 %v1222, %v1222
  %v1287 = vpack.c.bf16 %v1223, %v1223
  %v1288 = vpack.c.bf16 %v1224, %v1224
  %v1289 = vpack.c.bf16 %v1225, %v1225
  %v1290 = vpack.c.bf16 %v1226, %v1226
  %v1291 = vpack.c.bf16 %v1227, %v1227
  %v1292 = vpack.c.bf16 %v1228, %v1228
  %v1293 = vpack.c.bf16 %v1229, %v1229
  %v1294 = vpack.c.bf16 %v1230, %v1230
  %v1295 = vpack.c.bf16 %v1231, %v1231
  %v1296 = vpack.c.bf16 %v1232, %v1232
  %v1297 = vpack.c.bf16 %v1233, %v1233
  %v1298 = vpack.c.bf16 %v1234, %v1234
  %v1299 = vpack.c.bf16 %v1235, %v1235
  %v1300 = vpack.c.bf16 %v1236, %v1236
  %v1301 = vpack.c.bf16 %v1237, %v1237
  %v1302 = vpack.c.bf16 %v1238, %v1238
  %v1303 = vpack.c.bf16 %v1239, %v1239
  %v1304 = vpack.c.bf16 %v1240, %v1240
  %v1305 = vpack.c.bf16 %v1241, %v1241
  %v1306 = vpack.c.bf16 %v1242, %v1242
  %v1307 = vpack.c.bf16 %v1243, %v1243
  %v1308 = vpack.c.bf16 %v1244, %v1244
  %v1309 = vpack.c.bf16 %v1245, %v1245
  %v1310 = vpack.c.bf16 %v1246, %v1246
  %v1311 = vpack.c.bf16 %v1247, %v1247
  %v1312 = vpack.c.bf16 %v1248, %v1248
  %v1313 = vpack.c.bf16 %v1249, %v1249
  %v1314 = vpack.c.bf16 %v1250, %v1250
  %v1315 = vpack.c.bf16 %v1251, %v1251
  %v1316 = vpack.c.bf16 %v1252, %v1252
  %v1317 = vpack.c.bf16 %v1253, %v1253
  %v1318 = vld [vmem:[%s804 + $0x2] sm:$0xff]
  %v1319 = vld [vmem:[%s804 + $0xa] sm:$0xff]
  %v1320 = vld [vmem:[%s804 + $0x1a] sm:$0xff]
  %v1321 = vld [vmem:[%s804 + $0x22] sm:$0xff]
  %v1322 = vld [vmem:[%s804 + $0x32] sm:$0xff]
  %v1323 = vld [vmem:[%s804 + $0x3a] sm:$0xff]
  %v1324 = vld [vmem:[%s804 + $0x4a] sm:$0xff]
  %v1325 = vld [vmem:[%s804 + $0x52] sm:$0xff]
  %v1326 = vld [vmem:[%s804 + $0x62] sm:$0xff]
  %v1327 = vld [vmem:[%s804 + $0x6a] sm:$0xff]
  %v1328 = vld [vmem:[%s804 + $0x7a] sm:$0xff]
  %v1329 = vld [vmem:[%s804 + $0x82] sm:$0xff]
  %v1330 = vld [vmem:[%s804 + $0x92] sm:$0xff]
  %v1331 = vld [vmem:[%s804 + $0x9a] sm:$0xff]
  %v1332 = vld [vmem:[%s804 + $0xaa] sm:$0xff]
  %v1333 = vld [vmem:[%s804 + $0xb2] sm:$0xff]
  %v1334 = vld [vmem:[%s804 + $0xc2] sm:$0xff]
  %v1335 = vld [vmem:[%s804 + $0xca] sm:$0xff]
  %v1336 = vld [vmem:[%s804 + $0xda] sm:$0xff]
  %v1337 = vld [vmem:[%s804 + $0xe2] sm:$0xff]
  %v1338 = vld [vmem:[%s804 + $0xf2] sm:$0xff]
  %v1339 = vld [vmem:[%s804 + $0xfa] sm:$0xff]
  %v1340 = vld [vmem:[%s804 + $0x10a] sm:$0xff]
  %v1341 = vld [vmem:[%s804 + $0x112] sm:$0xff]
  %v1342 = vld [vmem:[%s804 + $0x122] sm:$0xff]
  %v1343 = vld [vmem:[%s804 + $0x12a] sm:$0xff]
  %v1344 = vld [vmem:[%s804 + $0x13a] sm:$0xff]
  %v1345 = vld [vmem:[%s804 + $0x142] sm:$0xff]
  %v1346 = vld [vmem:[%s804 + $0x152] sm:$0xff]
  %v1347 = vld [vmem:[%s804 + $0x15a] sm:$0xff]
  %v1348 = vld [vmem:[%s804 + $0x16a] sm:$0xff]
  %v1349 = vld [vmem:[%s804 + $0x172] sm:$0xff]
  %v1350 = vld [vmem:[%s804 + $0x1b2] sm:$0xff]
  %v1351 = vld [vmem:[%s804 + $0x1ba] sm:$0xff]
  %v1352 = vld [vmem:[%s804 + $0x1ca] sm:$0xff]
  %v1353 = vld [vmem:[%s804 + $0x1d2] sm:$0xff]
  %v1354 = vld [vmem:[%s804 + $0x1e2] sm:$0xff]
  %v1355 = vld [vmem:[%s804 + $0x1ea] sm:$0xff]
  %v1356 = vld [vmem:[%s804 + $0x1fa] sm:$0xff]
  %v1357 = vld [vmem:[%s804 + $0x202] sm:$0xff]
  %v1358 = vld [vmem:[%s804 + $0x212] sm:$0xff]
  %v1359 = vld [vmem:[%s804 + $0x21a] sm:$0xff]
  %v1360 = vld [vmem:[%s804 + $0x22a] sm:$0xff]
  %v1361 = vld [vmem:[%s804 + $0x232] sm:$0xff]
  %v1362 = vld [vmem:[%s804 + $0x242] sm:$0xff]
  %v1363 = vld [vmem:[%s804 + $0x24a] sm:$0xff]
  %v1364 = vld [vmem:[%s804 + $0x25a] sm:$0xff]
  %v1365 = vld [vmem:[%s804 + $0x262] sm:$0xff]
  %v1366 = vld [vmem:[%s804 + $0x272] sm:$0xff]
  %v1367 = vld [vmem:[%s804 + $0x27a] sm:$0xff]
  %v1368 = vld [vmem:[%s804 + $0x28a] sm:$0xff]
  %v1369 = vld [vmem:[%s804 + $0x292] sm:$0xff]
  %v1370 = vld [vmem:[%s804 + $0x2a2] sm:$0xff]
  %v1371 = vld [vmem:[%s804 + $0x2aa] sm:$0xff]
  %v1372 = vld [vmem:[%s804 + $0x2ba] sm:$0xff]
  %v1373 = vld [vmem:[%s804 + $0x2c2] sm:$0xff]
  %v1374 = vld [vmem:[%s804 + $0x2d2] sm:$0xff]
  %v1375 = vld [vmem:[%s804 + $0x2da] sm:$0xff]
  %v1376 = vld [vmem:[%s804 + $0x2ea] sm:$0xff]
  %v1377 = vld [vmem:[%s804 + $0x2f2] sm:$0xff]
  %v1378 = vld [vmem:[%s804 + $0x302] sm:$0xff]
  %v1379 = vld [vmem:[%s804 + $0x30a] sm:$0xff]
  %v1380 = vld [vmem:[%s804 + $0x31a] sm:$0xff]
  %v1381 = vld [vmem:[%s804 + $0x322] sm:$0xff]
  %v1382 = vpack.c.bf16 %v1318, %v1318
  %v1383 = vpack.c.bf16 %v1319, %v1319
  %v1384 = vpack.c.bf16 %v1320, %v1320
  %v1385 = vpack.c.bf16 %v1321, %v1321
  %v1386 = vpack.c.bf16 %v1322, %v1322
  %v1387 = vpack.c.bf16 %v1323, %v1323
  %v1388 = vpack.c.bf16 %v1324, %v1324
  %v1389 = vpack.c.bf16 %v1325, %v1325
  %v1390 = vpack.c.bf16 %v1326, %v1326
  %v1391 = vpack.c.bf16 %v1327, %v1327
  %v1392 = vpack.c.bf16 %v1328, %v1328
  %v1393 = vpack.c.bf16 %v1329, %v1329
  %v1394 = vpack.c.bf16 %v1330, %v1330
  %v1395 = vpack.c.bf16 %v1331, %v1331
  %v1396 = vpack.c.bf16 %v1332, %v1332
  %v1397 = vpack.c.bf16 %v1333, %v1333
  %v1398 = vpack.c.bf16 %v1334, %v1334
  %v1399 = vpack.c.bf16 %v1335, %v1335
  %v1400 = vpack.c.bf16 %v1336, %v1336
  %v1401 = vpack.c.bf16 %v1337, %v1337
  %v1402 = vpack.c.bf16 %v1338, %v1338
  %v1403 = vpack.c.bf16 %v1339, %v1339
  %v1404 = vpack.c.bf16 %v1340, %v1340
  %v1405 = vpack.c.bf16 %v1341, %v1341
  %v1406 = vpack.c.bf16 %v1342, %v1342
  %v1407 = vpack.c.bf16 %v1343, %v1343
  %v1408 = vpack.c.bf16 %v1344, %v1344
  %v1409 = vpack.c.bf16 %v1345, %v1345
  %v1410 = vpack.c.bf16 %v1346, %v1346
  %v1411 = vpack.c.bf16 %v1347, %v1347
  %v1412 = vpack.c.bf16 %v1348, %v1348
  %v1413 = vpack.c.bf16 %v1349, %v1349
  %v1414 = vpack.c.bf16 %v1350, %v1350
  %v1415 = vpack.c.bf16 %v1351, %v1351
  %v1416 = vpack.c.bf16 %v1352, %v1352
  %v1417 = vpack.c.bf16 %v1353, %v1353
  %v1418 = vpack.c.bf16 %v1354, %v1354
  %v1419 = vpack.c.bf16 %v1355, %v1355
  %v1420 = vpack.c.bf16 %v1356, %v1356
  %v1421 = vpack.c.bf16 %v1357, %v1357
  %v1422 = vpack.c.bf16 %v1358, %v1358
  %v1423 = vpack.c.bf16 %v1359, %v1359
  %v1424 = vpack.c.bf16 %v1360, %v1360
  %v1425 = vpack.c.bf16 %v1361, %v1361
  %v1426 = vpack.c.bf16 %v1362, %v1362
  %v1427 = vpack.c.bf16 %v1363, %v1363
  %v1428 = vpack.c.bf16 %v1364, %v1364
  %v1429 = vpack.c.bf16 %v1365, %v1365
  %v1430 = vpack.c.bf16 %v1366, %v1366
  %v1431 = vpack.c.bf16 %v1367, %v1367
  %v1432 = vpack.c.bf16 %v1368, %v1368
  %v1433 = vpack.c.bf16 %v1369, %v1369
  %v1434 = vpack.c.bf16 %v1370, %v1370
  %v1435 = vpack.c.bf16 %v1371, %v1371
  %v1436 = vpack.c.bf16 %v1372, %v1372
  %v1437 = vpack.c.bf16 %v1373, %v1373
  %v1438 = vpack.c.bf16 %v1374, %v1374
  %v1439 = vpack.c.bf16 %v1375, %v1375
  %v1440 = vpack.c.bf16 %v1376, %v1376
  %v1441 = vpack.c.bf16 %v1377, %v1377
  %v1442 = vpack.c.bf16 %v1378, %v1378
  %v1443 = vpack.c.bf16 %v1379, %v1379
  %v1444 = vpack.c.bf16 %v1380, %v1380
  %v1445 = vpack.c.bf16 %v1381, %v1381
  %v1446 = vld [vmem:[%s933 + $0x2] sm:$0xff]
  %v1447 = vld [vmem:[%s933 + $0xa] sm:$0xff]
  %v1448 = vld [vmem:[%s933 + $0x1a] sm:$0xff]
  %v1449 = vld [vmem:[%s933 + $0x22] sm:$0xff]
  %v1450 = vld [vmem:[%s933 + $0x32] sm:$0xff]
  %v1451 = vld [vmem:[%s933 + $0x3a] sm:$0xff]
  %v1452 = vld [vmem:[%s933 + $0x4a] sm:$0xff]
  %v1453 = vld [vmem:[%s933 + $0x52] sm:$0xff]
  %v1454 = vld [vmem:[%s933 + $0x62] sm:$0xff]
  %v1455 = vld [vmem:[%s933 + $0x6a] sm:$0xff]
  %v1456 = vld [vmem:[%s933 + $0x7a] sm:$0xff]
  %v1457 = vld [vmem:[%s933 + $0x82] sm:$0xff]
  %v1458 = vld [vmem:[%s933 + $0x92] sm:$0xff]
  %v1459 = vld [vmem:[%s933 + $0x9a] sm:$0xff]
  %v1460 = vld [vmem:[%s933 + $0xaa] sm:$0xff]
  %v1461 = vld [vmem:[%s933 + $0xb2] sm:$0xff]
  %v1462 = vld [vmem:[%s933 + $0xc2] sm:$0xff]
  %v1463 = vld [vmem:[%s933 + $0xca] sm:$0xff]
  %v1464 = vld [vmem:[%s933 + $0xda] sm:$0xff]
  %v1465 = vld [vmem:[%s933 + $0xe2] sm:$0xff]
  %v1466 = vld [vmem:[%s933 + $0xf2] sm:$0xff]
  %v1467 = vld [vmem:[%s933 + $0xfa] sm:$0xff]
  %v1468 = vld [vmem:[%s933 + $0x10a] sm:$0xff]
  %v1469 = vld [vmem:[%s933 + $0x112] sm:$0xff]
  %v1470 = vld [vmem:[%s933 + $0x122] sm:$0xff]
  %v1471 = vld [vmem:[%s933 + $0x12a] sm:$0xff]
  %v1472 = vld [vmem:[%s933 + $0x13a] sm:$0xff]
  %v1473 = vld [vmem:[%s933 + $0x142] sm:$0xff]
  %v1474 = vld [vmem:[%s933 + $0x152] sm:$0xff]
  %v1475 = vld [vmem:[%s933 + $0x15a] sm:$0xff]
  %v1476 = vld [vmem:[%s933 + $0x16a] sm:$0xff]
  %v1477 = vld [vmem:[%s933 + $0x172] sm:$0xff]
  %v1478 = vld [vmem:[%s933 + $0x1b2] sm:$0xff]
  %v1479 = vld [vmem:[%s933 + $0x1ba] sm:$0xff]
  %v1480 = vld [vmem:[%s933 + $0x1ca] sm:$0xff]
  %v1481 = vld [vmem:[%s933 + $0x1d2] sm:$0xff]
  %v1482 = vld [vmem:[%s933 + $0x1e2] sm:$0xff]
  %v1483 = vld [vmem:[%s933 + $0x1ea] sm:$0xff]
  %v1484 = vld [vmem:[%s933 + $0x1fa] sm:$0xff]
  %v1485 = vld [vmem:[%s933 + $0x202] sm:$0xff]
  %v1486 = vld [vmem:[%s933 + $0x212] sm:$0xff]
  %v1487 = vld [vmem:[%s933 + $0x21a] sm:$0xff]
  %v1488 = vld [vmem:[%s933 + $0x22a] sm:$0xff]
  %v1489 = vld [vmem:[%s933 + $0x232] sm:$0xff]
  %v1490 = vld [vmem:[%s933 + $0x242] sm:$0xff]
  %v1491 = vld [vmem:[%s933 + $0x24a] sm:$0xff]
  %v1492 = vld [vmem:[%s933 + $0x25a] sm:$0xff]
  %v1493 = vld [vmem:[%s933 + $0x262] sm:$0xff]
  %v1494 = vld [vmem:[%s933 + $0x272] sm:$0xff]
  %v1495 = vld [vmem:[%s933 + $0x27a] sm:$0xff]
  %v1496 = vld [vmem:[%s933 + $0x28a] sm:$0xff]
  %v1497 = vld [vmem:[%s933 + $0x292] sm:$0xff]
  %v1498 = vld [vmem:[%s933 + $0x2a2] sm:$0xff]
  %v1499 = vld [vmem:[%s933 + $0x2aa] sm:$0xff]
  %v1500 = vld [vmem:[%s933 + $0x2ba] sm:$0xff]
  %v1501 = vld [vmem:[%s933 + $0x2c2] sm:$0xff]
  %v1502 = vld [vmem:[%s933 + $0x2d2] sm:$0xff]
  %v1503 = vld [vmem:[%s933 + $0x2da] sm:$0xff]
  %v1504 = vld [vmem:[%s933 + $0x2ea] sm:$0xff]
  %v1505 = vld [vmem:[%s933 + $0x2f2] sm:$0xff]
  %v1506 = vld [vmem:[%s933 + $0x302] sm:$0xff]
  %v1507 = vld [vmem:[%s933 + $0x30a] sm:$0xff]
  %v1508 = vld [vmem:[%s933 + $0x31a] sm:$0xff]
  %v1509 = vld [vmem:[%s933 + $0x322] sm:$0xff]
  %v1510 = vpack.c.bf16 %v1446, %v1446
  %v1511 = vpack.c.bf16 %v1447, %v1447
  %v1512 = vpack.c.bf16 %v1448, %v1448
  %v1513 = vpack.c.bf16 %v1449, %v1449
  %v1514 = vpack.c.bf16 %v1450, %v1450
  %v1515 = vpack.c.bf16 %v1451, %v1451
  %v1516 = vpack.c.bf16 %v1452, %v1452
  %v1517 = vpack.c.bf16 %v1453, %v1453
  %v1518 = vpack.c.bf16 %v1454, %v1454
  %v1519 = vpack.c.bf16 %v1455, %v1455
  %v1520 = vpack.c.bf16 %v1456, %v1456
  %v1521 = vpack.c.bf16 %v1457, %v1457
  %v1522 = vpack.c.bf16 %v1458, %v1458
  %v1523 = vpack.c.bf16 %v1459, %v1459
  %v1524 = vpack.c.bf16 %v1460, %v1460
  %v1525 = vpack.c.bf16 %v1461, %v1461
  %v1526 = vpack.c.bf16 %v1462, %v1462
  %v1527 = vpack.c.bf16 %v1463, %v1463
  %v1528 = vpack.c.bf16 %v1464, %v1464
  %v1529 = vpack.c.bf16 %v1465, %v1465
  %v1530 = vpack.c.bf16 %v1466, %v1466
  %v1531 = vpack.c.bf16 %v1467, %v1467
  %v1532 = vpack.c.bf16 %v1468, %v1468
  %v1533 = vpack.c.bf16 %v1469, %v1469
  %v1534 = vpack.c.bf16 %v1470, %v1470
  %v1535 = vpack.c.bf16 %v1471, %v1471
  %v1536 = vpack.c.bf16 %v1472, %v1472
  %v1537 = vpack.c.bf16 %v1473, %v1473
  %v1538 = vpack.c.bf16 %v1474, %v1474
  %v1539 = vpack.c.bf16 %v1475, %v1475
  %v1540 = vpack.c.bf16 %v1476, %v1476
  %v1541 = vpack.c.bf16 %v1477, %v1477
  %v1542 = vpack.c.bf16 %v1478, %v1478
  %v1543 = vpack.c.bf16 %v1479, %v1479
  %v1544 = vpack.c.bf16 %v1480, %v1480
  %v1545 = vpack.c.bf16 %v1481, %v1481
  %v1546 = vpack.c.bf16 %v1482, %v1482
  %v1547 = vpack.c.bf16 %v1483, %v1483
  %v1548 = vpack.c.bf16 %v1484, %v1484
  %v1549 = vpack.c.bf16 %v1485, %v1485
  %v1550 = vpack.c.bf16 %v1486, %v1486
  %v1551 = vpack.c.bf16 %v1487, %v1487
  %v1552 = vpack.c.bf16 %v1488, %v1488
  %v1553 = vpack.c.bf16 %v1489, %v1489
  %v1554 = vpack.c.bf16 %v1490, %v1490
  %v1555 = vpack.c.bf16 %v1491, %v1491
  %v1556 = vpack.c.bf16 %v1492, %v1492
  %v1557 = vpack.c.bf16 %v1493, %v1493
  %v1558 = vpack.c.bf16 %v1494, %v1494
  %v1559 = vpack.c.bf16 %v1495, %v1495
  %v1560 = vpack.c.bf16 %v1496, %v1496
  %v1561 = vpack.c.bf16 %v1497, %v1497
  %v1562 = vpack.c.bf16 %v1498, %v1498
  %v1563 = vpack.c.bf16 %v1499, %v1499
  %v1564 = vpack.c.bf16 %v1500, %v1500
  %v1565 = vpack.c.bf16 %v1501, %v1501
  %v1566 = vpack.c.bf16 %v1502, %v1502
  %v1567 = vpack.c.bf16 %v1503, %v1503
  %v1568 = vpack.c.bf16 %v1504, %v1504
  %v1569 = vpack.c.bf16 %v1505, %v1505
  %v1570 = vpack.c.bf16 %v1506, %v1506
  %v1571 = vpack.c.bf16 %v1507, %v1507
  %v1572 = vpack.c.bf16 %v1508, %v1508
  %v1573 = vpack.c.bf16 %v1509, %v1509
  %s1574 = scalar_lea.vmem %s0, 48
  %v1575 = vld [vmem:[%s1574] sm:$0xff]
  %v1576 = vld [vmem:[%s1574 + $0x8] sm:$0xff]
  %v1577 = vld [vmem:[%s1574 + $0x18] sm:$0xff]
  %v1578 = vld [vmem:[%s1574 + $0x20] sm:$0xff]
  %v1579 = vld [vmem:[%s1574 + $0x30] sm:$0xff]
  %v1580 = vld [vmem:[%s1574 + $0x38] sm:$0xff]
  %v1581 = vld [vmem:[%s1574 + $0x48] sm:$0xff]
  %v1582 = vld [vmem:[%s1574 + $0x50] sm:$0xff]
  %v1583 = vld [vmem:[%s1574 + $0x60] sm:$0xff]
  %v1584 = vld [vmem:[%s1574 + $0x68] sm:$0xff]
  %v1585 = vld [vmem:[%s1574 + $0x78] sm:$0xff]
  %v1586 = vld [vmem:[%s1574 + $0x80] sm:$0xff]
  %v1587 = vld [vmem:[%s1574 + $0x90] sm:$0xff]
  %v1588 = vld [vmem:[%s1574 + $0x98] sm:$0xff]
  %v1589 = vld [vmem:[%s1574 + $0xa8] sm:$0xff]
  %v1590 = vld [vmem:[%s1574 + $0xb0] sm:$0xff]
  %v1591 = vld [vmem:[%s1574 + $0xc0] sm:$0xff]
  %v1592 = vld [vmem:[%s1574 + $0xc8] sm:$0xff]
  %v1593 = vld [vmem:[%s1574 + $0xd8] sm:$0xff]
  %v1594 = vld [vmem:[%s1574 + $0xe0] sm:$0xff]
  %v1595 = vld [vmem:[%s1574 + $0xf0] sm:$0xff]
  %v1596 = vld [vmem:[%s1574 + $0xf8] sm:$0xff]
  %v1597 = vld [vmem:[%s1574 + $0x108] sm:$0xff]
  %v1598 = vld [vmem:[%s1574 + $0x110] sm:$0xff]
  %v1599 = vld [vmem:[%s1574 + $0x120] sm:$0xff]
  %v1600 = vld [vmem:[%s1574 + $0x128] sm:$0xff]
  %v1601 = vld [vmem:[%s1574 + $0x138] sm:$0xff]
  %v1602 = vld [vmem:[%s1574 + $0x140] sm:$0xff]
  %v1603 = vld [vmem:[%s1574 + $0x150] sm:$0xff]
  %v1604 = vld [vmem:[%s1574 + $0x158] sm:$0xff]
  %v1605 = vld [vmem:[%s1574 + $0x168] sm:$0xff]
  %v1606 = vld [vmem:[%s1574 + $0x170] sm:$0xff]
  %v1607 = vld [vmem:[%s1574 + $0x1b0] sm:$0xff]
  %v1608 = vld [vmem:[%s1574 + $0x1b8] sm:$0xff]
  %v1609 = vld [vmem:[%s1574 + $0x1c8] sm:$0xff]
  %v1610 = vld [vmem:[%s1574 + $0x1d0] sm:$0xff]
  %v1611 = vld [vmem:[%s1574 + $0x1e0] sm:$0xff]
  %v1612 = vld [vmem:[%s1574 + $0x1e8] sm:$0xff]
  %v1613 = vld [vmem:[%s1574 + $0x1f8] sm:$0xff]
  %v1614 = vld [vmem:[%s1574 + $0x200] sm:$0xff]
  %v1615 = vld [vmem:[%s1574 + $0x210] sm:$0xff]
  %v1616 = vld [vmem:[%s1574 + $0x218] sm:$0xff]
  %v1617 = vld [vmem:[%s1574 + $0x228] sm:$0xff]
  %v1618 = vld [vmem:[%s1574 + $0x230] sm:$0xff]
  %v1619 = vld [vmem:[%s1574 + $0x240] sm:$0xff]
  %v1620 = vld [vmem:[%s1574 + $0x248] sm:$0xff]
  %v1621 = vld [vmem:[%s1574 + $0x258] sm:$0xff]
  %v1622 = vld [vmem:[%s1574 + $0x260] sm:$0xff]
  %v1623 = vld [vmem:[%s1574 + $0x270] sm:$0xff]
  %v1624 = vld [vmem:[%s1574 + $0x278] sm:$0xff]
  %v1625 = vld [vmem:[%s1574 + $0x288] sm:$0xff]
  %v1626 = vld [vmem:[%s1574 + $0x290] sm:$0xff]
  %v1627 = vld [vmem:[%s1574 + $0x2a0] sm:$0xff]
  %v1628 = vld [vmem:[%s1574 + $0x2a8] sm:$0xff]
  %v1629 = vld [vmem:[%s1574 + $0x2b8] sm:$0xff]
  %v1630 = vld [vmem:[%s1574 + $0x2c0] sm:$0xff]
  %v1631 = vld [vmem:[%s1574 + $0x2d0] sm:$0xff]
  %v1632 = vld [vmem:[%s1574 + $0x2d8] sm:$0xff]
  %v1633 = vld [vmem:[%s1574 + $0x2e8] sm:$0xff]
  %v1634 = vld [vmem:[%s1574 + $0x2f0] sm:$0xff]
  %v1635 = vld [vmem:[%s1574 + $0x300] sm:$0xff]
  %v1636 = vld [vmem:[%s1574 + $0x308] sm:$0xff]
  %v1637 = vld [vmem:[%s1574 + $0x318] sm:$0xff]
  %v1638 = vld [vmem:[%s1574 + $0x320] sm:$0xff]
  %v1639 = vpack.c.bf16 %v1575, %v1575
  %v1640 = vpack.c.bf16 %v1576, %v1576
  %v1641 = vpack.c.bf16 %v1577, %v1577
  %v1642 = vpack.c.bf16 %v1578, %v1578
  %v1643 = vpack.c.bf16 %v1579, %v1579
  %v1644 = vpack.c.bf16 %v1580, %v1580
  %v1645 = vpack.c.bf16 %v1581, %v1581
  %v1646 = vpack.c.bf16 %v1582, %v1582
  %v1647 = vpack.c.bf16 %v1583, %v1583
  %v1648 = vpack.c.bf16 %v1584, %v1584
  %v1649 = vpack.c.bf16 %v1585, %v1585
  %v1650 = vpack.c.bf16 %v1586, %v1586
  %v1651 = vpack.c.bf16 %v1587, %v1587
  %v1652 = vpack.c.bf16 %v1588, %v1588
  %v1653 = vpack.c.bf16 %v1589, %v1589
  %v1654 = vpack.c.bf16 %v1590, %v1590
  %v1655 = vpack.c.bf16 %v1591, %v1591
  %v1656 = vpack.c.bf16 %v1592, %v1592
  %v1657 = vpack.c.bf16 %v1593, %v1593
  %v1658 = vpack.c.bf16 %v1594, %v1594
  %v1659 = vpack.c.bf16 %v1595, %v1595
  %v1660 = vpack.c.bf16 %v1596, %v1596
  %v1661 = vpack.c.bf16 %v1597, %v1597
  %v1662 = vpack.c.bf16 %v1598, %v1598
  %v1663 = vpack.c.bf16 %v1599, %v1599
  %v1664 = vpack.c.bf16 %v1600, %v1600
  %v1665 = vpack.c.bf16 %v1601, %v1601
  %v1666 = vpack.c.bf16 %v1602, %v1602
  %v1667 = vpack.c.bf16 %v1603, %v1603
  %v1668 = vpack.c.bf16 %v1604, %v1604
  %v1669 = vpack.c.bf16 %v1605, %v1605
  %v1670 = vpack.c.bf16 %v1606, %v1606
  %v1671 = vpack.c.bf16 %v1607, %v1607
  %v1672 = vpack.c.bf16 %v1608, %v1608
  %v1673 = vpack.c.bf16 %v1609, %v1609
  %v1674 = vpack.c.bf16 %v1610, %v1610
  %v1675 = vpack.c.bf16 %v1611, %v1611
  %v1676 = vpack.c.bf16 %v1612, %v1612
  %v1677 = vpack.c.bf16 %v1613, %v1613
  %v1678 = vpack.c.bf16 %v1614, %v1614
  %v1679 = vpack.c.bf16 %v1615, %v1615
  %v1680 = vpack.c.bf16 %v1616, %v1616
  %v1681 = vpack.c.bf16 %v1617, %v1617
  %v1682 = vpack.c.bf16 %v1618, %v1618
  %v1683 = vpack.c.bf16 %v1619, %v1619
  %v1684 = vpack.c.bf16 %v1620, %v1620
  %v1685 = vpack.c.bf16 %v1621, %v1621
  %v1686 = vpack.c.bf16 %v1622, %v1622
  %v1687 = vpack.c.bf16 %v1623, %v1623
  %v1688 = vpack.c.bf16 %v1624, %v1624
  %v1689 = vpack.c.bf16 %v1625, %v1625
  %v1690 = vpack.c.bf16 %v1626, %v1626
  %v1691 = vpack.c.bf16 %v1627, %v1627
  %v1692 = vpack.c.bf16 %v1628, %v1628
  %v1693 = vpack.c.bf16 %v1629, %v1629
  %v1694 = vpack.c.bf16 %v1630, %v1630
  %v1695 = vpack.c.bf16 %v1631, %v1631
  %v1696 = vpack.c.bf16 %v1632, %v1632
  %v1697 = vpack.c.bf16 %v1633, %v1633
  %v1698 = vpack.c.bf16 %v1634, %v1634
  %v1699 = vpack.c.bf16 %v1635, %v1635
  %v1700 = vpack.c.bf16 %v1636, %v1636
  %v1701 = vpack.c.bf16 %v1637, %v1637
  %v1702 = vpack.c.bf16 %v1638, %v1638
  %s1703 = scalar_lea.vmem %s1, 48
  %v1704 = vld [vmem:[%s1703] sm:$0xff]
  %v1705 = vld [vmem:[%s1703 + $0x8] sm:$0xff]
  %v1706 = vld [vmem:[%s1703 + $0x18] sm:$0xff]
  %v1707 = vld [vmem:[%s1703 + $0x20] sm:$0xff]
  %v1708 = vld [vmem:[%s1703 + $0x30] sm:$0xff]
  %v1709 = vld [vmem:[%s1703 + $0x38] sm:$0xff]
  %v1710 = vld [vmem:[%s1703 + $0x48] sm:$0xff]
  %v1711 = vld [vmem:[%s1703 + $0x50] sm:$0xff]
  %v1712 = vld [vmem:[%s1703 + $0x60] sm:$0xff]
  %v1713 = vld [vmem:[%s1703 + $0x68] sm:$0xff]
  %v1714 = vld [vmem:[%s1703 + $0x78] sm:$0xff]
  %v1715 = vld [vmem:[%s1703 + $0x80] sm:$0xff]
  %v1716 = vld [vmem:[%s1703 + $0x90] sm:$0xff]
  %v1717 = vld [vmem:[%s1703 + $0x98] sm:$0xff]
  %v1718 = vld [vmem:[%s1703 + $0xa8] sm:$0xff]
  %v1719 = vld [vmem:[%s1703 + $0xb0] sm:$0xff]
  %v1720 = vld [vmem:[%s1703 + $0xc0] sm:$0xff]
  %v1721 = vld [vmem:[%s1703 + $0xc8] sm:$0xff]
  %v1722 = vld [vmem:[%s1703 + $0xd8] sm:$0xff]
  %v1723 = vld [vmem:[%s1703 + $0xe0] sm:$0xff]
  %v1724 = vld [vmem:[%s1703 + $0xf0] sm:$0xff]
  %v1725 = vld [vmem:[%s1703 + $0xf8] sm:$0xff]
  %v1726 = vld [vmem:[%s1703 + $0x108] sm:$0xff]
  %v1727 = vld [vmem:[%s1703 + $0x110] sm:$0xff]
  %v1728 = vld [vmem:[%s1703 + $0x120] sm:$0xff]
  %v1729 = vld [vmem:[%s1703 + $0x128] sm:$0xff]
  %v1730 = vld [vmem:[%s1703 + $0x138] sm:$0xff]
  %v1731 = vld [vmem:[%s1703 + $0x140] sm:$0xff]
  %v1732 = vld [vmem:[%s1703 + $0x150] sm:$0xff]
  %v1733 = vld [vmem:[%s1703 + $0x158] sm:$0xff]
  %v1734 = vld [vmem:[%s1703 + $0x168] sm:$0xff]
  %v1735 = vld [vmem:[%s1703 + $0x170] sm:$0xff]
  %v1736 = vld [vmem:[%s1703 + $0x1b0] sm:$0xff]
  %v1737 = vld [vmem:[%s1703 + $0x1b8] sm:$0xff]
  %v1738 = vld [vmem:[%s1703 + $0x1c8] sm:$0xff]
  %v1739 = vld [vmem:[%s1703 + $0x1d0] sm:$0xff]
  %v1740 = vld [vmem:[%s1703 + $0x1e0] sm:$0xff]
  %v1741 = vld [vmem:[%s1703 + $0x1e8] sm:$0xff]
  %v1742 = vld [vmem:[%s1703 + $0x1f8] sm:$0xff]
  %v1743 = vld [vmem:[%s1703 + $0x200] sm:$0xff]
  %v1744 = vld [vmem:[%s1703 + $0x210] sm:$0xff]
  %v1745 = vld [vmem:[%s1703 + $0x218] sm:$0xff]
  %v1746 = vld [vmem:[%s1703 + $0x228] sm:$0xff]
  %v1747 = vld [vmem:[%s1703 + $0x230] sm:$0xff]
  %v1748 = vld [vmem:[%s1703 + $0x240] sm:$0xff]
  %v1749 = vld [vmem:[%s1703 + $0x248] sm:$0xff]
  %v1750 = vld [vmem:[%s1703 + $0x258] sm:$0xff]
  %v1751 = vld [vmem:[%s1703 + $0x260] sm:$0xff]
  %v1752 = vld [vmem:[%s1703 + $0x270] sm:$0xff]
  %v1753 = vld [vmem:[%s1703 + $0x278] sm:$0xff]
  %v1754 = vld [vmem:[%s1703 + $0x288] sm:$0xff]
  %v1755 = vld [vmem:[%s1703 + $0x290] sm:$0xff]
  %v1756 = vld [vmem:[%s1703 + $0x2a0] sm:$0xff]
  %v1757 = vld [vmem:[%s1703 + $0x2a8] sm:$0xff]
  %v1758 = vld [vmem:[%s1703 + $0x2b8] sm:$0xff]
  %v1759 = vld [vmem:[%s1703 + $0x2c0] sm:$0xff]
  %v1760 = vld [vmem:[%s1703 + $0x2d0] sm:$0xff]
  %v1761 = vld [vmem:[%s1703 + $0x2d8] sm:$0xff]
  %v1762 = vld [vmem:[%s1703 + $0x2e8] sm:$0xff]
  %v1763 = vld [vmem:[%s1703 + $0x2f0] sm:$0xff]
  %v1764 = vld [vmem:[%s1703 + $0x300] sm:$0xff]
  %v1765 = vld [vmem:[%s1703 + $0x308] sm:$0xff]
  %v1766 = vld [vmem:[%s1703 + $0x318] sm:$0xff]
  %v1767 = vld [vmem:[%s1703 + $0x320] sm:$0xff]
  %v1768 = vpack.c.bf16 %v1704, %v1704
  %v1769 = vpack.c.bf16 %v1705, %v1705
  %v1770 = vpack.c.bf16 %v1706, %v1706
  %v1771 = vpack.c.bf16 %v1707, %v1707
  %v1772 = vpack.c.bf16 %v1708, %v1708
  %v1773 = vpack.c.bf16 %v1709, %v1709
  %v1774 = vpack.c.bf16 %v1710, %v1710
  %v1775 = vpack.c.bf16 %v1711, %v1711
  %v1776 = vpack.c.bf16 %v1712, %v1712
  %v1777 = vpack.c.bf16 %v1713, %v1713
  %v1778 = vpack.c.bf16 %v1714, %v1714
  %v1779 = vpack.c.bf16 %v1715, %v1715
  %v1780 = vpack.c.bf16 %v1716, %v1716
  %v1781 = vpack.c.bf16 %v1717, %v1717
  %v1782 = vpack.c.bf16 %v1718, %v1718
  %v1783 = vpack.c.bf16 %v1719, %v1719
  %v1784 = vpack.c.bf16 %v1720, %v1720
  %v1785 = vpack.c.bf16 %v1721, %v1721
  %v1786 = vpack.c.bf16 %v1722, %v1722
  %v1787 = vpack.c.bf16 %v1723, %v1723
  %v1788 = vpack.c.bf16 %v1724, %v1724
  %v1789 = vpack.c.bf16 %v1725, %v1725
  %v1790 = vpack.c.bf16 %v1726, %v1726
  %v1791 = vpack.c.bf16 %v1727, %v1727
  %v1792 = vpack.c.bf16 %v1728, %v1728
  %v1793 = vpack.c.bf16 %v1729, %v1729
  %v1794 = vpack.c.bf16 %v1730, %v1730
  %v1795 = vpack.c.bf16 %v1731, %v1731
  %v1796 = vpack.c.bf16 %v1732, %v1732
  %v1797 = vpack.c.bf16 %v1733, %v1733
  %v1798 = vpack.c.bf16 %v1734, %v1734
  %v1799 = vpack.c.bf16 %v1735, %v1735
  %v1800 = vpack.c.bf16 %v1736, %v1736
  %v1801 = vpack.c.bf16 %v1737, %v1737
  %v1802 = vpack.c.bf16 %v1738, %v1738
  %v1803 = vpack.c.bf16 %v1739, %v1739
  %v1804 = vpack.c.bf16 %v1740, %v1740
  %v1805 = vpack.c.bf16 %v1741, %v1741
  %v1806 = vpack.c.bf16 %v1742, %v1742
  %v1807 = vpack.c.bf16 %v1743, %v1743
  %v1808 = vpack.c.bf16 %v1744, %v1744
  %v1809 = vpack.c.bf16 %v1745, %v1745
  %v1810 = vpack.c.bf16 %v1746, %v1746
  %v1811 = vpack.c.bf16 %v1747, %v1747
  %v1812 = vpack.c.bf16 %v1748, %v1748
  %v1813 = vpack.c.bf16 %v1749, %v1749
  %v1814 = vpack.c.bf16 %v1750, %v1750
  %v1815 = vpack.c.bf16 %v1751, %v1751
  %v1816 = vpack.c.bf16 %v1752, %v1752
  %v1817 = vpack.c.bf16 %v1753, %v1753
  %v1818 = vpack.c.bf16 %v1754, %v1754
  %v1819 = vpack.c.bf16 %v1755, %v1755
  %v1820 = vpack.c.bf16 %v1756, %v1756
  %v1821 = vpack.c.bf16 %v1757, %v1757
  %v1822 = vpack.c.bf16 %v1758, %v1758
  %v1823 = vpack.c.bf16 %v1759, %v1759
  %v1824 = vpack.c.bf16 %v1760, %v1760
  %v1825 = vpack.c.bf16 %v1761, %v1761
  %v1826 = vpack.c.bf16 %v1762, %v1762
  %v1827 = vpack.c.bf16 %v1763, %v1763
  %v1828 = vpack.c.bf16 %v1764, %v1764
  %v1829 = vpack.c.bf16 %v1765, %v1765
  %v1830 = vpack.c.bf16 %v1766, %v1766
  %v1831 = vpack.c.bf16 %v1767, %v1767
  %v1832 = vld [vmem:[%s1574 + $0x1] sm:$0xff]
  %v1833 = vld [vmem:[%s1574 + $0x9] sm:$0xff]
  %v1834 = vld [vmem:[%s1574 + $0x19] sm:$0xff]
  %v1835 = vld [vmem:[%s1574 + $0x21] sm:$0xff]
  %v1836 = vld [vmem:[%s1574 + $0x31] sm:$0xff]
  %v1837 = vld [vmem:[%s1574 + $0x39] sm:$0xff]
  %v1838 = vld [vmem:[%s1574 + $0x49] sm:$0xff]
  %v1839 = vld [vmem:[%s1574 + $0x51] sm:$0xff]
  %v1840 = vld [vmem:[%s1574 + $0x61] sm:$0xff]
  %v1841 = vld [vmem:[%s1574 + $0x69] sm:$0xff]
  %v1842 = vld [vmem:[%s1574 + $0x79] sm:$0xff]
  %v1843 = vld [vmem:[%s1574 + $0x81] sm:$0xff]
  %v1844 = vld [vmem:[%s1574 + $0x91] sm:$0xff]
  %v1845 = vld [vmem:[%s1574 + $0x99] sm:$0xff]
  %v1846 = vld [vmem:[%s1574 + $0xa9] sm:$0xff]
  %v1847 = vld [vmem:[%s1574 + $0xb1] sm:$0xff]
  %v1848 = vld [vmem:[%s1574 + $0xc1] sm:$0xff]
  %v1849 = vld [vmem:[%s1574 + $0xc9] sm:$0xff]
  %v1850 = vld [vmem:[%s1574 + $0xd9] sm:$0xff]
  %v1851 = vld [vmem:[%s1574 + $0xe1] sm:$0xff]
  %v1852 = vld [vmem:[%s1574 + $0xf1] sm:$0xff]
  %v1853 = vld [vmem:[%s1574 + $0xf9] sm:$0xff]
  %v1854 = vld [vmem:[%s1574 + $0x109] sm:$0xff]
  %v1855 = vld [vmem:[%s1574 + $0x111] sm:$0xff]
  %v1856 = vld [vmem:[%s1574 + $0x121] sm:$0xff]
  %v1857 = vld [vmem:[%s1574 + $0x129] sm:$0xff]
  %v1858 = vld [vmem:[%s1574 + $0x139] sm:$0xff]
  %v1859 = vld [vmem:[%s1574 + $0x141] sm:$0xff]
  %v1860 = vld [vmem:[%s1574 + $0x151] sm:$0xff]
  %v1861 = vld [vmem:[%s1574 + $0x159] sm:$0xff]
  %v1862 = vld [vmem:[%s1574 + $0x169] sm:$0xff]
  %v1863 = vld [vmem:[%s1574 + $0x171] sm:$0xff]
  %v1864 = vld [vmem:[%s1574 + $0x1b1] sm:$0xff]
  %v1865 = vld [vmem:[%s1574 + $0x1b9] sm:$0xff]
  %v1866 = vld [vmem:[%s1574 + $0x1c9] sm:$0xff]
  %v1867 = vld [vmem:[%s1574 + $0x1d1] sm:$0xff]
  %v1868 = vld [vmem:[%s1574 + $0x1e1] sm:$0xff]
  %v1869 = vld [vmem:[%s1574 + $0x1e9] sm:$0xff]
  %v1870 = vld [vmem:[%s1574 + $0x1f9] sm:$0xff]
  %v1871 = vld [vmem:[%s1574 + $0x201] sm:$0xff]
  %v1872 = vld [vmem:[%s1574 + $0x211] sm:$0xff]
  %v1873 = vld [vmem:[%s1574 + $0x219] sm:$0xff]
  %v1874 = vld [vmem:[%s1574 + $0x229] sm:$0xff]
  %v1875 = vld [vmem:[%s1574 + $0x231] sm:$0xff]
  %v1876 = vld [vmem:[%s1574 + $0x241] sm:$0xff]
  %v1877 = vld [vmem:[%s1574 + $0x249] sm:$0xff]
  %v1878 = vld [vmem:[%s1574 + $0x259] sm:$0xff]
  %v1879 = vld [vmem:[%s1574 + $0x261] sm:$0xff]
  %v1880 = vld [vmem:[%s1574 + $0x271] sm:$0xff]
  %v1881 = vld [vmem:[%s1574 + $0x279] sm:$0xff]
  %v1882 = vld [vmem:[%s1574 + $0x289] sm:$0xff]
  %v1883 = vld [vmem:[%s1574 + $0x291] sm:$0xff]
  %v1884 = vld [vmem:[%s1574 + $0x2a1] sm:$0xff]
  %v1885 = vld [vmem:[%s1574 + $0x2a9] sm:$0xff]
  %v1886 = vld [vmem:[%s1574 + $0x2b9] sm:$0xff]
  %v1887 = vld [vmem:[%s1574 + $0x2c1] sm:$0xff]
  %v1888 = vld [vmem:[%s1574 + $0x2d1] sm:$0xff]
  %v1889 = vld [vmem:[%s1574 + $0x2d9] sm:$0xff]
  %v1890 = vld [vmem:[%s1574 + $0x2e9] sm:$0xff]
  %v1891 = vld [vmem:[%s1574 + $0x2f1] sm:$0xff]
  %v1892 = vld [vmem:[%s1574 + $0x301] sm:$0xff]
  %v1893 = vld [vmem:[%s1574 + $0x309] sm:$0xff]
  %v1894 = vld [vmem:[%s1574 + $0x319] sm:$0xff]
  %v1895 = vld [vmem:[%s1574 + $0x321] sm:$0xff]
  %v1896 = vpack.c.bf16 %v1832, %v1832
  %v1897 = vpack.c.bf16 %v1833, %v1833
  %v1898 = vpack.c.bf16 %v1834, %v1834
  %v1899 = vpack.c.bf16 %v1835, %v1835
  %v1900 = vpack.c.bf16 %v1836, %v1836
  %v1901 = vpack.c.bf16 %v1837, %v1837
  %v1902 = vpack.c.bf16 %v1838, %v1838
  %v1903 = vpack.c.bf16 %v1839, %v1839
  %v1904 = vpack.c.bf16 %v1840, %v1840
  %v1905 = vpack.c.bf16 %v1841, %v1841
  %v1906 = vpack.c.bf16 %v1842, %v1842
  %v1907 = vpack.c.bf16 %v1843, %v1843
  %v1908 = vpack.c.bf16 %v1844, %v1844
  %v1909 = vpack.c.bf16 %v1845, %v1845
  %v1910 = vpack.c.bf16 %v1846, %v1846
  %v1911 = vpack.c.bf16 %v1847, %v1847
  %v1912 = vpack.c.bf16 %v1848, %v1848
  %v1913 = vpack.c.bf16 %v1849, %v1849
  %v1914 = vpack.c.bf16 %v1850, %v1850
  %v1915 = vpack.c.bf16 %v1851, %v1851
  %v1916 = vpack.c.bf16 %v1852, %v1852
  %v1917 = vpack.c.bf16 %v1853, %v1853
  %v1918 = vpack.c.bf16 %v1854, %v1854
  %v1919 = vpack.c.bf16 %v1855, %v1855
  %v1920 = vpack.c.bf16 %v1856, %v1856
  %v1921 = vpack.c.bf16 %v1857, %v1857
  %v1922 = vpack.c.bf16 %v1858, %v1858
  %v1923 = vpack.c.bf16 %v1859, %v1859
  %v1924 = vpack.c.bf16 %v1860, %v1860
  %v1925 = vpack.c.bf16 %v1861, %v1861
  %v1926 = vpack.c.bf16 %v1862, %v1862
  %v1927 = vpack.c.bf16 %v1863, %v1863
  %v1928 = vpack.c.bf16 %v1864, %v1864
  %v1929 = vpack.c.bf16 %v1865, %v1865
  %v1930 = vpack.c.bf16 %v1866, %v1866
  %v1931 = vpack.c.bf16 %v1867, %v1867
  %v1932 = vpack.c.bf16 %v1868, %v1868
  %v1933 = vpack.c.bf16 %v1869, %v1869
  %v1934 = vpack.c.bf16 %v1870, %v1870
  %v1935 = vpack.c.bf16 %v1871, %v1871
  %v1936 = vpack.c.bf16 %v1872, %v1872
  %v1937 = vpack.c.bf16 %v1873, %v1873
  %v1938 = vpack.c.bf16 %v1874, %v1874
  %v1939 = vpack.c.bf16 %v1875, %v1875
  %v1940 = vpack.c.bf16 %v1876, %v1876
  %v1941 = vpack.c.bf16 %v1877, %v1877
  %v1942 = vpack.c.bf16 %v1878, %v1878
  %v1943 = vpack.c.bf16 %v1879, %v1879
  %v1944 = vpack.c.bf16 %v1880, %v1880
  %v1945 = vpack.c.bf16 %v1881, %v1881
  %v1946 = vpack.c.bf16 %v1882, %v1882
  %v1947 = vpack.c.bf16 %v1883, %v1883
  %v1948 = vpack.c.bf16 %v1884, %v1884
  %v1949 = vpack.c.bf16 %v1885, %v1885
  %v1950 = vpack.c.bf16 %v1886, %v1886
  %v1951 = vpack.c.bf16 %v1887, %v1887
  %v1952 = vpack.c.bf16 %v1888, %v1888
  %v1953 = vpack.c.bf16 %v1889, %v1889
  %v1954 = vpack.c.bf16 %v1890, %v1890
  %v1955 = vpack.c.bf16 %v1891, %v1891
  %v1956 = vpack.c.bf16 %v1892, %v1892
  %v1957 = vpack.c.bf16 %v1893, %v1893
  %v1958 = vpack.c.bf16 %v1894, %v1894
  %v1959 = vpack.c.bf16 %v1895, %v1895
  %v1960 = vld [vmem:[%s1703 + $0x1] sm:$0xff]
  %v1961 = vld [vmem:[%s1703 + $0x9] sm:$0xff]
  %v1962 = vld [vmem:[%s1703 + $0x19] sm:$0xff]
  %v1963 = vld [vmem:[%s1703 + $0x21] sm:$0xff]
  %v1964 = vld [vmem:[%s1703 + $0x31] sm:$0xff]
  %v1965 = vld [vmem:[%s1703 + $0x39] sm:$0xff]
  %v1966 = vld [vmem:[%s1703 + $0x49] sm:$0xff]
  %v1967 = vld [vmem:[%s1703 + $0x51] sm:$0xff]
  %v1968 = vld [vmem:[%s1703 + $0x61] sm:$0xff]
  %v1969 = vld [vmem:[%s1703 + $0x69] sm:$0xff]
  %v1970 = vld [vmem:[%s1703 + $0x79] sm:$0xff]
  %v1971 = vld [vmem:[%s1703 + $0x81] sm:$0xff]
  %v1972 = vld [vmem:[%s1703 + $0x91] sm:$0xff]
  %v1973 = vld [vmem:[%s1703 + $0x99] sm:$0xff]
  %v1974 = vld [vmem:[%s1703 + $0xa9] sm:$0xff]
  %v1975 = vld [vmem:[%s1703 + $0xb1] sm:$0xff]
  %v1976 = vld [vmem:[%s1703 + $0xc1] sm:$0xff]
  %v1977 = vld [vmem:[%s1703 + $0xc9] sm:$0xff]
  %v1978 = vld [vmem:[%s1703 + $0xd9] sm:$0xff]
  %v1979 = vld [vmem:[%s1703 + $0xe1] sm:$0xff]
  %v1980 = vld [vmem:[%s1703 + $0xf1] sm:$0xff]
  %v1981 = vld [vmem:[%s1703 + $0xf9] sm:$0xff]
  %v1982 = vld [vmem:[%s1703 + $0x109] sm:$0xff]
  %v1983 = vld [vmem:[%s1703 + $0x111] sm:$0xff]
  %v1984 = vld [vmem:[%s1703 + $0x121] sm:$0xff]
  %v1985 = vld [vmem:[%s1703 + $0x129] sm:$0xff]
  %v1986 = vld [vmem:[%s1703 + $0x139] sm:$0xff]
  %v1987 = vld [vmem:[%s1703 + $0x141] sm:$0xff]
  %v1988 = vld [vmem:[%s1703 + $0x151] sm:$0xff]
  %v1989 = vld [vmem:[%s1703 + $0x159] sm:$0xff]
  %v1990 = vld [vmem:[%s1703 + $0x169] sm:$0xff]
  %v1991 = vld [vmem:[%s1703 + $0x171] sm:$0xff]
  %v1992 = vld [vmem:[%s1703 + $0x1b1] sm:$0xff]
  %v1993 = vld [vmem:[%s1703 + $0x1b9] sm:$0xff]
  %v1994 = vld [vmem:[%s1703 + $0x1c9] sm:$0xff]
  %v1995 = vld [vmem:[%s1703 + $0x1d1] sm:$0xff]
  %v1996 = vld [vmem:[%s1703 + $0x1e1] sm:$0xff]
  %v1997 = vld [vmem:[%s1703 + $0x1e9] sm:$0xff]
  %v1998 = vld [vmem:[%s1703 + $0x1f9] sm:$0xff]
  %v1999 = vld [vmem:[%s1703 + $0x201] sm:$0xff]
  %v2000 = vld [vmem:[%s1703 + $0x211] sm:$0xff]
  %v2001 = vld [vmem:[%s1703 + $0x219] sm:$0xff]
  %v2002 = vld [vmem:[%s1703 + $0x229] sm:$0xff]
  %v2003 = vld [vmem:[%s1703 + $0x231] sm:$0xff]
  %v2004 = vld [vmem:[%s1703 + $0x241] sm:$0xff]
  %v2005 = vld [vmem:[%s1703 + $0x249] sm:$0xff]
  %v2006 = vld [vmem:[%s1703 + $0x259] sm:$0xff]
  %v2007 = vld [vmem:[%s1703 + $0x261] sm:$0xff]
  %v2008 = vld [vmem:[%s1703 + $0x271] sm:$0xff]
  %v2009 = vld [vmem:[%s1703 + $0x279] sm:$0xff]
  %v2010 = vld [vmem:[%s1703 + $0x289] sm:$0xff]
  %v2011 = vld [vmem:[%s1703 + $0x291] sm:$0xff]
  %v2012 = vld [vmem:[%s1703 + $0x2a1] sm:$0xff]
  %v2013 = vld [vmem:[%s1703 + $0x2a9] sm:$0xff]
  %v2014 = vld [vmem:[%s1703 + $0x2b9] sm:$0xff]
  %v2015 = vld [vmem:[%s1703 + $0x2c1] sm:$0xff]
  %v2016 = vld [vmem:[%s1703 + $0x2d1] sm:$0xff]
  %v2017 = vld [vmem:[%s1703 + $0x2d9] sm:$0xff]
  %v2018 = vld [vmem:[%s1703 + $0x2e9] sm:$0xff]
  %v2019 = vld [vmem:[%s1703 + $0x2f1] sm:$0xff]
  %v2020 = vld [vmem:[%s1703 + $0x301] sm:$0xff]
  %v2021 = vld [vmem:[%s1703 + $0x309] sm:$0xff]
  %v2022 = vld [vmem:[%s1703 + $0x319] sm:$0xff]
  %v2023 = vld [vmem:[%s1703 + $0x321] sm:$0xff]
  %v2024 = vpack.c.bf16 %v1960, %v1960
  %v2025 = vpack.c.bf16 %v1961, %v1961
  %v2026 = vpack.c.bf16 %v1962, %v1962
  %v2027 = vpack.c.bf16 %v1963, %v1963
  %v2028 = vpack.c.bf16 %v1964, %v1964
  %v2029 = vpack.c.bf16 %v1965, %v1965
  %v2030 = vpack.c.bf16 %v1966, %v1966
  %v2031 = vpack.c.bf16 %v1967, %v1967
  %v2032 = vpack.c.bf16 %v1968, %v1968
  %v2033 = vpack.c.bf16 %v1969, %v1969
  %v2034 = vpack.c.bf16 %v1970, %v1970
  %v2035 = vpack.c.bf16 %v1971, %v1971
  %v2036 = vpack.c.bf16 %v1972, %v1972
  %v2037 = vpack.c.bf16 %v1973, %v1973
  %v2038 = vpack.c.bf16 %v1974, %v1974
  %v2039 = vpack.c.bf16 %v1975, %v1975
  %v2040 = vpack.c.bf16 %v1976, %v1976
  %v2041 = vpack.c.bf16 %v1977, %v1977
  %v2042 = vpack.c.bf16 %v1978, %v1978
  %v2043 = vpack.c.bf16 %v1979, %v1979
  %v2044 = vpack.c.bf16 %v1980, %v1980
  %v2045 = vpack.c.bf16 %v1981, %v1981
  %v2046 = vpack.c.bf16 %v1982, %v1982
  %v2047 = vpack.c.bf16 %v1983, %v1983
  %v2048 = vpack.c.bf16 %v1984, %v1984
  %v2049 = vpack.c.bf16 %v1985, %v1985
  %v2050 = vpack.c.bf16 %v1986, %v1986
  %v2051 = vpack.c.bf16 %v1987, %v1987
  %v2052 = vpack.c.bf16 %v1988, %v1988
  %v2053 = vpack.c.bf16 %v1989, %v1989
  %v2054 = vpack.c.bf16 %v1990, %v1990
  %v2055 = vpack.c.bf16 %v1991, %v1991
  %v2056 = vpack.c.bf16 %v1992, %v1992
  %v2057 = vpack.c.bf16 %v1993, %v1993
  %v2058 = vpack.c.bf16 %v1994, %v1994
  %v2059 = vpack.c.bf16 %v1995, %v1995
  %v2060 = vpack.c.bf16 %v1996, %v1996
  %v2061 = vpack.c.bf16 %v1997, %v1997
  %v2062 = vpack.c.bf16 %v1998, %v1998
  %v2063 = vpack.c.bf16 %v1999, %v1999
  %v2064 = vpack.c.bf16 %v2000, %v2000
  %v2065 = vpack.c.bf16 %v2001, %v2001
  %v2066 = vpack.c.bf16 %v2002, %v2002
  %v2067 = vpack.c.bf16 %v2003, %v2003
  %v2068 = vpack.c.bf16 %v2004, %v2004
  %v2069 = vpack.c.bf16 %v2005, %v2005
  %v2070 = vpack.c.bf16 %v2006, %v2006
  %v2071 = vpack.c.bf16 %v2007, %v2007
  %v2072 = vpack.c.bf16 %v2008, %v2008
  %v2073 = vpack.c.bf16 %v2009, %v2009
  %v2074 = vpack.c.bf16 %v2010, %v2010
  %v2075 = vpack.c.bf16 %v2011, %v2011
  %v2076 = vpack.c.bf16 %v2012, %v2012
  %v2077 = vpack.c.bf16 %v2013, %v2013
  %v2078 = vpack.c.bf16 %v2014, %v2014
  %v2079 = vpack.c.bf16 %v2015, %v2015
  %v2080 = vpack.c.bf16 %v2016, %v2016
  %v2081 = vpack.c.bf16 %v2017, %v2017
  %v2082 = vpack.c.bf16 %v2018, %v2018
  %v2083 = vpack.c.bf16 %v2019, %v2019
  %v2084 = vpack.c.bf16 %v2020, %v2020
  %v2085 = vpack.c.bf16 %v2021, %v2021
  %v2086 = vpack.c.bf16 %v2022, %v2022
  %v2087 = vpack.c.bf16 %v2023, %v2023
  %v2088 = vld [vmem:[%s1574 + $0x2] sm:$0xff]
  %v2089 = vld [vmem:[%s1574 + $0xa] sm:$0xff]
  %v2090 = vld [vmem:[%s1574 + $0x1a] sm:$0xff]
  %v2091 = vld [vmem:[%s1574 + $0x22] sm:$0xff]
  %v2092 = vld [vmem:[%s1574 + $0x32] sm:$0xff]
  %v2093 = vld [vmem:[%s1574 + $0x3a] sm:$0xff]
  %v2094 = vld [vmem:[%s1574 + $0x4a] sm:$0xff]
  %v2095 = vld [vmem:[%s1574 + $0x52] sm:$0xff]
  %v2096 = vld [vmem:[%s1574 + $0x62] sm:$0xff]
  %v2097 = vld [vmem:[%s1574 + $0x6a] sm:$0xff]
  %v2098 = vld [vmem:[%s1574 + $0x7a] sm:$0xff]
  %v2099 = vld [vmem:[%s1574 + $0x82] sm:$0xff]
  %v2100 = vld [vmem:[%s1574 + $0x92] sm:$0xff]
  %v2101 = vld [vmem:[%s1574 + $0x9a] sm:$0xff]
  %v2102 = vld [vmem:[%s1574 + $0xaa] sm:$0xff]
  %v2103 = vld [vmem:[%s1574 + $0xb2] sm:$0xff]
  %v2104 = vld [vmem:[%s1574 + $0xc2] sm:$0xff]
  %v2105 = vld [vmem:[%s1574 + $0xca] sm:$0xff]
  %v2106 = vld [vmem:[%s1574 + $0xda] sm:$0xff]
  %v2107 = vld [vmem:[%s1574 + $0xe2] sm:$0xff]
  %v2108 = vld [vmem:[%s1574 + $0xf2] sm:$0xff]
  %v2109 = vld [vmem:[%s1574 + $0xfa] sm:$0xff]
  %v2110 = vld [vmem:[%s1574 + $0x10a] sm:$0xff]
  %v2111 = vld [vmem:[%s1574 + $0x112] sm:$0xff]
  %v2112 = vld [vmem:[%s1574 + $0x122] sm:$0xff]
  %v2113 = vld [vmem:[%s1574 + $0x12a] sm:$0xff]
  %v2114 = vld [vmem:[%s1574 + $0x13a] sm:$0xff]
  %v2115 = vld [vmem:[%s1574 + $0x142] sm:$0xff]
  %v2116 = vld [vmem:[%s1574 + $0x152] sm:$0xff]
  %v2117 = vld [vmem:[%s1574 + $0x15a] sm:$0xff]
  %v2118 = vld [vmem:[%s1574 + $0x16a] sm:$0xff]
  %v2119 = vld [vmem:[%s1574 + $0x172] sm:$0xff]
  %v2120 = vld [vmem:[%s1574 + $0x1b2] sm:$0xff]
  %v2121 = vld [vmem:[%s1574 + $0x1ba] sm:$0xff]
  %v2122 = vld [vmem:[%s1574 + $0x1ca] sm:$0xff]
  %v2123 = vld [vmem:[%s1574 + $0x1d2] sm:$0xff]
  %v2124 = vld [vmem:[%s1574 + $0x1e2] sm:$0xff]
  %v2125 = vld [vmem:[%s1574 + $0x1ea] sm:$0xff]
  %v2126 = vld [vmem:[%s1574 + $0x1fa] sm:$0xff]
  %v2127 = vld [vmem:[%s1574 + $0x202] sm:$0xff]
  %v2128 = vld [vmem:[%s1574 + $0x212] sm:$0xff]
  %v2129 = vld [vmem:[%s1574 + $0x21a] sm:$0xff]
  %v2130 = vld [vmem:[%s1574 + $0x22a] sm:$0xff]
  %v2131 = vld [vmem:[%s1574 + $0x232] sm:$0xff]
  %v2132 = vld [vmem:[%s1574 + $0x242] sm:$0xff]
  %v2133 = vld [vmem:[%s1574 + $0x24a] sm:$0xff]
  %v2134 = vld [vmem:[%s1574 + $0x25a] sm:$0xff]
  %v2135 = vld [vmem:[%s1574 + $0x262] sm:$0xff]
  %v2136 = vld [vmem:[%s1574 + $0x272] sm:$0xff]
  %v2137 = vld [vmem:[%s1574 + $0x27a] sm:$0xff]
  %v2138 = vld [vmem:[%s1574 + $0x28a] sm:$0xff]
  %v2139 = vld [vmem:[%s1574 + $0x292] sm:$0xff]
  %v2140 = vld [vmem:[%s1574 + $0x2a2] sm:$0xff]
  %v2141 = vld [vmem:[%s1574 + $0x2aa] sm:$0xff]
  %v2142 = vld [vmem:[%s1574 + $0x2ba] sm:$0xff]
  %v2143 = vld [vmem:[%s1574 + $0x2c2] sm:$0xff]
  %v2144 = vld [vmem:[%s1574 + $0x2d2] sm:$0xff]
  %v2145 = vld [vmem:[%s1574 + $0x2da] sm:$0xff]
  %v2146 = vld [vmem:[%s1574 + $0x2ea] sm:$0xff]
  %v2147 = vld [vmem:[%s1574 + $0x2f2] sm:$0xff]
  %v2148 = vld [vmem:[%s1574 + $0x302] sm:$0xff]
  %v2149 = vld [vmem:[%s1574 + $0x30a] sm:$0xff]
  %v2150 = vld [vmem:[%s1574 + $0x31a] sm:$0xff]
  %v2151 = vld [vmem:[%s1574 + $0x322] sm:$0xff]
  %v2152 = vpack.c.bf16 %v2088, %v2088
  %v2153 = vpack.c.bf16 %v2089, %v2089
  %v2154 = vpack.c.bf16 %v2090, %v2090
  %v2155 = vpack.c.bf16 %v2091, %v2091
  %v2156 = vpack.c.bf16 %v2092, %v2092
  %v2157 = vpack.c.bf16 %v2093, %v2093
  %v2158 = vpack.c.bf16 %v2094, %v2094
  %v2159 = vpack.c.bf16 %v2095, %v2095
  %v2160 = vpack.c.bf16 %v2096, %v2096
  %v2161 = vpack.c.bf16 %v2097, %v2097
  %v2162 = vpack.c.bf16 %v2098, %v2098
  %v2163 = vpack.c.bf16 %v2099, %v2099
  %v2164 = vpack.c.bf16 %v2100, %v2100
  %v2165 = vpack.c.bf16 %v2101, %v2101
  %v2166 = vpack.c.bf16 %v2102, %v2102
  %v2167 = vpack.c.bf16 %v2103, %v2103
  %v2168 = vpack.c.bf16 %v2104, %v2104
  %v2169 = vpack.c.bf16 %v2105, %v2105
  %v2170 = vpack.c.bf16 %v2106, %v2106
  %v2171 = vpack.c.bf16 %v2107, %v2107
  %v2172 = vpack.c.bf16 %v2108, %v2108
  %v2173 = vpack.c.bf16 %v2109, %v2109
  %v2174 = vpack.c.bf16 %v2110, %v2110
  %v2175 = vpack.c.bf16 %v2111, %v2111
  %v2176 = vpack.c.bf16 %v2112, %v2112
  %v2177 = vpack.c.bf16 %v2113, %v2113
  %v2178 = vpack.c.bf16 %v2114, %v2114
  %v2179 = vpack.c.bf16 %v2115, %v2115
  %v2180 = vpack.c.bf16 %v2116, %v2116
  %v2181 = vpack.c.bf16 %v2117, %v2117
  %v2182 = vpack.c.bf16 %v2118, %v2118
  %v2183 = vpack.c.bf16 %v2119, %v2119
  %v2184 = vpack.c.bf16 %v2120, %v2120
  %v2185 = vpack.c.bf16 %v2121, %v2121
  %v2186 = vpack.c.bf16 %v2122, %v2122
  %v2187 = vpack.c.bf16 %v2123, %v2123
  %v2188 = vpack.c.bf16 %v2124, %v2124
  %v2189 = vpack.c.bf16 %v2125, %v2125
  %v2190 = vpack.c.bf16 %v2126, %v2126
  %v2191 = vpack.c.bf16 %v2127, %v2127
  %v2192 = vpack.c.bf16 %v2128, %v2128
  %v2193 = vpack.c.bf16 %v2129, %v2129
  %v2194 = vpack.c.bf16 %v2130, %v2130
  %v2195 = vpack.c.bf16 %v2131, %v2131
  %v2196 = vpack.c.bf16 %v2132, %v2132
  %v2197 = vpack.c.bf16 %v2133, %v2133
  %v2198 = vpack.c.bf16 %v2134, %v2134
  %v2199 = vpack.c.bf16 %v2135, %v2135
  %v2200 = vpack.c.bf16 %v2136, %v2136
  %v2201 = vpack.c.bf16 %v2137, %v2137
  %v2202 = vpack.c.bf16 %v2138, %v2138
  %v2203 = vpack.c.bf16 %v2139, %v2139
  %v2204 = vpack.c.bf16 %v2140, %v2140
  %v2205 = vpack.c.bf16 %v2141, %v2141
  %v2206 = vpack.c.bf16 %v2142, %v2142
  %v2207 = vpack.c.bf16 %v2143, %v2143
  %v2208 = vpack.c.bf16 %v2144, %v2144
  %v2209 = vpack.c.bf16 %v2145, %v2145
  %v2210 = vpack.c.bf16 %v2146, %v2146
  %v2211 = vpack.c.bf16 %v2147, %v2147
  %v2212 = vpack.c.bf16 %v2148, %v2148
  %v2213 = vpack.c.bf16 %v2149, %v2149
  %v2214 = vpack.c.bf16 %v2150, %v2150
  %v2215 = vpack.c.bf16 %v2151, %v2151
  %v2216 = vld [vmem:[%s1703 + $0x2] sm:$0xff]
  %v2217 = vld [vmem:[%s1703 + $0xa] sm:$0xff]
  %v2218 = vld [vmem:[%s1703 + $0x1a] sm:$0xff]
  %v2219 = vld [vmem:[%s1703 + $0x22] sm:$0xff]
  %v2220 = vld [vmem:[%s1703 + $0x32] sm:$0xff]
  %v2221 = vld [vmem:[%s1703 + $0x3a] sm:$0xff]
  %v2222 = vld [vmem:[%s1703 + $0x4a] sm:$0xff]
  %v2223 = vld [vmem:[%s1703 + $0x52] sm:$0xff]
  %v2224 = vld [vmem:[%s1703 + $0x62] sm:$0xff]
  %v2225 = vld [vmem:[%s1703 + $0x6a] sm:$0xff]
  %v2226 = vld [vmem:[%s1703 + $0x7a] sm:$0xff]
  %v2227 = vld [vmem:[%s1703 + $0x82] sm:$0xff]
  %v2228 = vld [vmem:[%s1703 + $0x92] sm:$0xff]
  %v2229 = vld [vmem:[%s1703 + $0x9a] sm:$0xff]
  %v2230 = vld [vmem:[%s1703 + $0xaa] sm:$0xff]
  %v2231 = vld [vmem:[%s1703 + $0xb2] sm:$0xff]
  %v2232 = vld [vmem:[%s1703 + $0xc2] sm:$0xff]
  %v2233 = vld [vmem:[%s1703 + $0xca] sm:$0xff]
  %v2234 = vld [vmem:[%s1703 + $0xda] sm:$0xff]
  %v2235 = vld [vmem:[%s1703 + $0xe2] sm:$0xff]
  %v2236 = vld [vmem:[%s1703 + $0xf2] sm:$0xff]
  %v2237 = vld [vmem:[%s1703 + $0xfa] sm:$0xff]
  %v2238 = vld [vmem:[%s1703 + $0x10a] sm:$0xff]
  %v2239 = vld [vmem:[%s1703 + $0x112] sm:$0xff]
  %v2240 = vld [vmem:[%s1703 + $0x122] sm:$0xff]
  %v2241 = vld [vmem:[%s1703 + $0x12a] sm:$0xff]
  %v2242 = vld [vmem:[%s1703 + $0x13a] sm:$0xff]
  %v2243 = vld [vmem:[%s1703 + $0x142] sm:$0xff]
  %v2244 = vld [vmem:[%s1703 + $0x152] sm:$0xff]
  %v2245 = vld [vmem:[%s1703 + $0x15a] sm:$0xff]
  %v2246 = vld [vmem:[%s1703 + $0x16a] sm:$0xff]
  %v2247 = vld [vmem:[%s1703 + $0x172] sm:$0xff]
  %v2248 = vld [vmem:[%s1703 + $0x1b2] sm:$0xff]
  %v2249 = vld [vmem:[%s1703 + $0x1ba] sm:$0xff]
  %v2250 = vld [vmem:[%s1703 + $0x1ca] sm:$0xff]
  %v2251 = vld [vmem:[%s1703 + $0x1d2] sm:$0xff]
  %v2252 = vld [vmem:[%s1703 + $0x1e2] sm:$0xff]
  %v2253 = vld [vmem:[%s1703 + $0x1ea] sm:$0xff]
  %v2254 = vld [vmem:[%s1703 + $0x1fa] sm:$0xff]
  %v2255 = vld [vmem:[%s1703 + $0x202] sm:$0xff]
  %v2256 = vld [vmem:[%s1703 + $0x212] sm:$0xff]
  %v2257 = vld [vmem:[%s1703 + $0x21a] sm:$0xff]
  %v2258 = vld [vmem:[%s1703 + $0x22a] sm:$0xff]
  %v2259 = vld [vmem:[%s1703 + $0x232] sm:$0xff]
  %v2260 = vld [vmem:[%s1703 + $0x242] sm:$0xff]
  %v2261 = vld [vmem:[%s1703 + $0x24a] sm:$0xff]
  %v2262 = vld [vmem:[%s1703 + $0x25a] sm:$0xff]
  %v2263 = vld [vmem:[%s1703 + $0x262] sm:$0xff]
  %v2264 = vld [vmem:[%s1703 + $0x272] sm:$0xff]
  %v2265 = vld [vmem:[%s1703 + $0x27a] sm:$0xff]
  %v2266 = vld [vmem:[%s1703 + $0x28a] sm:$0xff]
  %v2267 = vld [vmem:[%s1703 + $0x292] sm:$0xff]
  %v2268 = vld [vmem:[%s1703 + $0x2a2] sm:$0xff]
  %v2269 = vld [vmem:[%s1703 + $0x2aa] sm:$0xff]
  %v2270 = vld [vmem:[%s1703 + $0x2ba] sm:$0xff]
  %v2271 = vld [vmem:[%s1703 + $0x2c2] sm:$0xff]
  %v2272 = vld [vmem:[%s1703 + $0x2d2] sm:$0xff]
  %v2273 = vld [vmem:[%s1703 + $0x2da] sm:$0xff]
  %v2274 = vld [vmem:[%s1703 + $0x2ea] sm:$0xff]
  %v2275 = vld [vmem:[%s1703 + $0x2f2] sm:$0xff]
  %v2276 = vld [vmem:[%s1703 + $0x302] sm:$0xff]
  %v2277 = vld [vmem:[%s1703 + $0x30a] sm:$0xff]
  %v2278 = vld [vmem:[%s1703 + $0x31a] sm:$0xff]
  %v2279 = vld [vmem:[%s1703 + $0x322] sm:$0xff]
  %v2280 = vpack.c.bf16 %v2216, %v2216
  %v2281 = vpack.c.bf16 %v2217, %v2217
  %v2282 = vpack.c.bf16 %v2218, %v2218
  %v2283 = vpack.c.bf16 %v2219, %v2219
  %v2284 = vpack.c.bf16 %v2220, %v2220
  %v2285 = vpack.c.bf16 %v2221, %v2221
  %v2286 = vpack.c.bf16 %v2222, %v2222
  %v2287 = vpack.c.bf16 %v2223, %v2223
  %v2288 = vpack.c.bf16 %v2224, %v2224
  %v2289 = vpack.c.bf16 %v2225, %v2225
  %v2290 = vpack.c.bf16 %v2226, %v2226
  %v2291 = vpack.c.bf16 %v2227, %v2227
  %v2292 = vpack.c.bf16 %v2228, %v2228
  %v2293 = vpack.c.bf16 %v2229, %v2229
  %v2294 = vpack.c.bf16 %v2230, %v2230
  %v2295 = vpack.c.bf16 %v2231, %v2231
  %v2296 = vpack.c.bf16 %v2232, %v2232
  %v2297 = vpack.c.bf16 %v2233, %v2233
  %v2298 = vpack.c.bf16 %v2234, %v2234
  %v2299 = vpack.c.bf16 %v2235, %v2235
  %v2300 = vpack.c.bf16 %v2236, %v2236
  %v2301 = vpack.c.bf16 %v2237, %v2237
  %v2302 = vpack.c.bf16 %v2238, %v2238
  %v2303 = vpack.c.bf16 %v2239, %v2239
  %v2304 = vpack.c.bf16 %v2240, %v2240
  %v2305 = vpack.c.bf16 %v2241, %v2241
  %v2306 = vpack.c.bf16 %v2242, %v2242
  %v2307 = vpack.c.bf16 %v2243, %v2243
  %v2308 = vpack.c.bf16 %v2244, %v2244
  %v2309 = vpack.c.bf16 %v2245, %v2245
  %v2310 = vpack.c.bf16 %v2246, %v2246
  %v2311 = vpack.c.bf16 %v2247, %v2247
  %v2312 = vpack.c.bf16 %v2248, %v2248
  %v2313 = vpack.c.bf16 %v2249, %v2249
  %v2314 = vpack.c.bf16 %v2250, %v2250
  %v2315 = vpack.c.bf16 %v2251, %v2251
  %v2316 = vpack.c.bf16 %v2252, %v2252
  %v2317 = vpack.c.bf16 %v2253, %v2253
  %v2318 = vpack.c.bf16 %v2254, %v2254
  %v2319 = vpack.c.bf16 %v2255, %v2255
  %v2320 = vpack.c.bf16 %v2256, %v2256
  %v2321 = vpack.c.bf16 %v2257, %v2257
  %v2322 = vpack.c.bf16 %v2258, %v2258
  %v2323 = vpack.c.bf16 %v2259, %v2259
  %v2324 = vpack.c.bf16 %v2260, %v2260
  %v2325 = vpack.c.bf16 %v2261, %v2261
  %v2326 = vpack.c.bf16 %v2262, %v2262
  %v2327 = vpack.c.bf16 %v2263, %v2263
  %v2328 = vpack.c.bf16 %v2264, %v2264
  %v2329 = vpack.c.bf16 %v2265, %v2265
  %v2330 = vpack.c.bf16 %v2266, %v2266
  %v2331 = vpack.c.bf16 %v2267, %v2267
  %v2332 = vpack.c.bf16 %v2268, %v2268
  %v2333 = vpack.c.bf16 %v2269, %v2269
  %v2334 = vpack.c.bf16 %v2270, %v2270
  %v2335 = vpack.c.bf16 %v2271, %v2271
  %v2336 = vpack.c.bf16 %v2272, %v2272
  %v2337 = vpack.c.bf16 %v2273, %v2273
  %v2338 = vpack.c.bf16 %v2274, %v2274
  %v2339 = vpack.c.bf16 %v2275, %v2275
  %v2340 = vpack.c.bf16 %v2276, %v2276
  %v2341 = vpack.c.bf16 %v2277, %v2277
  %v2342 = vpack.c.bf16 %v2278, %v2278
  %v2343 = vpack.c.bf16 %v2279, %v2279
  %v2408 = vunpack.c.l.b16 %v100
  %v2409 = vunpack.c.l.b16 %v101
  %v2410 = vunpack.c.l.b16 %v102
  %v2411 = vunpack.c.l.b16 %v103
  %v2412 = vunpack.c.l.b16 %v104
  %v2413 = vunpack.c.l.b16 %v105
  %v2414 = vunpack.c.l.b16 %v106
  %v2415 = vunpack.c.l.b16 %v107
  %v2416 = vunpack.c.l.b16 %v108
  %v2417 = vunpack.c.l.b16 %v109
  %v2418 = vunpack.c.l.b16 %v110
  %v2419 = vunpack.c.l.b16 %v111
  %v2420 = vunpack.c.l.b16 %v112
  %v2421 = vunpack.c.l.b16 %v113
  %v2422 = vunpack.c.l.b16 %v114
  %v2423 = vunpack.c.l.b16 %v115
  %v2424 = vunpack.c.l.b16 %v116
  %v2425 = vunpack.c.l.b16 %v117
  %v2426 = vunpack.c.l.b16 %v118
  %v2427 = vunpack.c.l.b16 %v119
  %v2428 = vunpack.c.l.b16 %v120
  %v2429 = vunpack.c.l.b16 %v121
  %v2430 = vunpack.c.l.b16 %v122
  %v2431 = vunpack.c.l.b16 %v123
  %v2432 = vunpack.c.l.b16 %v124
  %v2433 = vunpack.c.l.b16 %v125
  %v2434 = vunpack.c.l.b16 %v126
  %v2435 = vunpack.c.l.b16 %v127
  %v2436 = vunpack.c.l.b16 %v128
  %v2437 = vunpack.c.l.b16 %v129
  %v2438 = vunpack.c.l.b16 %v130
  %v2439 = vunpack.c.l.b16 %v131
  %v2440 = vunpack.c.l.b16 %v132
  %v2441 = vunpack.c.l.b16 %v133
  %v2442 = vunpack.c.l.b16 %v134
  %v2443 = vunpack.c.l.b16 %v135
  %v2444 = vunpack.c.l.b16 %v136
  %v2445 = vunpack.c.l.b16 %v137
  %v2446 = vunpack.c.l.b16 %v138
  %v2447 = vunpack.c.l.b16 %v139
  %v2448 = vunpack.c.l.b16 %v140
  %v2449 = vunpack.c.l.b16 %v141
  %v2450 = vunpack.c.l.b16 %v142
  %v2451 = vunpack.c.l.b16 %v143
  %v2452 = vunpack.c.l.b16 %v144
  %v2453 = vunpack.c.l.b16 %v145
  %v2454 = vunpack.c.l.b16 %v146
  %v2455 = vunpack.c.l.b16 %v147
  %v2456 = vunpack.c.l.b16 %v148
  %v2457 = vunpack.c.l.b16 %v149
  %v2458 = vunpack.c.l.b16 %v150
  %v2459 = vunpack.c.l.b16 %v151
  %v2460 = vunpack.c.l.b16 %v152
  %v2461 = vunpack.c.l.b16 %v153
  %v2462 = vunpack.c.l.b16 %v154
  %v2463 = vunpack.c.l.b16 %v155
  %v2464 = vunpack.c.l.b16 %v156
  %v2465 = vunpack.c.l.b16 %v157
  %v2466 = vunpack.c.l.b16 %v158
  %v2467 = vunpack.c.l.b16 %v159
  %v2468 = vunpack.c.l.b16 %v160
  %v2469 = vunpack.c.l.b16 %v161
  %v2470 = vunpack.c.l.b16 %v162
  %v2471 = vunpack.c.l.b16 %v163
  %v2472 = vpack.c.b16 %v2409, %v2408
  %v2473 = vpack.c.b16 %v2411, %v2410
  %v2474 = vpack.c.b16 %v2413, %v2412
  %v2475 = vpack.c.b16 %v2415, %v2414
  %v2476 = vpack.c.b16 %v2417, %v2416
  %v2477 = vpack.c.b16 %v2419, %v2418
  %v2478 = vpack.c.b16 %v2421, %v2420
  %v2479 = vpack.c.b16 %v2423, %v2422
  %v2480 = vpack.c.b16 %v2425, %v2424
  %v2481 = vpack.c.b16 %v2427, %v2426
  %v2482 = vpack.c.b16 %v2429, %v2428
  %v2483 = vpack.c.b16 %v2431, %v2430
  %v2484 = vpack.c.b16 %v2433, %v2432
  %v2485 = vpack.c.b16 %v2435, %v2434
  %v2486 = vpack.c.b16 %v2437, %v2436
  %v2487 = vpack.c.b16 %v2439, %v2438
  %v2488 = vpack.c.b16 %v2441, %v2440
  %v2489 = vpack.c.b16 %v2443, %v2442
  %v2490 = vpack.c.b16 %v2445, %v2444
  %v2491 = vpack.c.b16 %v2447, %v2446
  %v2492 = vpack.c.b16 %v2449, %v2448
  %v2493 = vpack.c.b16 %v2451, %v2450
  %v2494 = vpack.c.b16 %v2453, %v2452
  %v2495 = vpack.c.b16 %v2455, %v2454
  %v2496 = vpack.c.b16 %v2457, %v2456
  %v2497 = vpack.c.b16 %v2459, %v2458
  %v2498 = vpack.c.b16 %v2461, %v2460
  %v2499 = vpack.c.b16 %v2463, %v2462
  %v2500 = vpack.c.b16 %v2465, %v2464
  %v2501 = vpack.c.b16 %v2467, %v2466
  %v2502 = vpack.c.b16 %v2469, %v2468
  %v2503 = vpack.c.b16 %v2471, %v2470
  %v2568 = vunpack.c.l.b16 %v228
  %v2569 = vunpack.c.l.b16 %v229
  %v2570 = vunpack.c.l.b16 %v230
  %v2571 = vunpack.c.l.b16 %v231
  %v2572 = vunpack.c.l.b16 %v232
  %v2573 = vunpack.c.l.b16 %v233
  %v2574 = vunpack.c.l.b16 %v234
  %v2575 = vunpack.c.l.b16 %v235
  %v2576 = vunpack.c.l.b16 %v236
  %v2577 = vunpack.c.l.b16 %v237
  %v2578 = vunpack.c.l.b16 %v238
  %v2579 = vunpack.c.l.b16 %v239
  %v2580 = vunpack.c.l.b16 %v240
  %v2581 = vunpack.c.l.b16 %v241
  %v2582 = vunpack.c.l.b16 %v242
  %v2583 = vunpack.c.l.b16 %v243
  %v2584 = vunpack.c.l.b16 %v244
  %v2585 = vunpack.c.l.b16 %v245
  %v2586 = vunpack.c.l.b16 %v246
  %v2587 = vunpack.c.l.b16 %v247
  %v2588 = vunpack.c.l.b16 %v248
  %v2589 = vunpack.c.l.b16 %v249
  %v2590 = vunpack.c.l.b16 %v250
  %v2591 = vunpack.c.l.b16 %v251
  %v2592 = vunpack.c.l.b16 %v252
  %v2593 = vunpack.c.l.b16 %v253
  %v2594 = vunpack.c.l.b16 %v254
  %v2595 = vunpack.c.l.b16 %v255
  %v2596 = vunpack.c.l.b16 %v256
  %v2597 = vunpack.c.l.b16 %v257
  %v2598 = vunpack.c.l.b16 %v258
  %v2599 = vunpack.c.l.b16 %v259
  %v2600 = vunpack.c.l.b16 %v260
  %v2601 = vunpack.c.l.b16 %v261
  %v2602 = vunpack.c.l.b16 %v262
  %v2603 = vunpack.c.l.b16 %v263
  %v2604 = vunpack.c.l.b16 %v264
  %v2605 = vunpack.c.l.b16 %v265
  %v2606 = vunpack.c.l.b16 %v266
  %v2607 = vunpack.c.l.b16 %v267
  %v2608 = vunpack.c.l.b16 %v268
  %v2609 = vunpack.c.l.b16 %v269
  %v2610 = vunpack.c.l.b16 %v270
  %v2611 = vunpack.c.l.b16 %v271
  %v2612 = vunpack.c.l.b16 %v272
  %v2613 = vunpack.c.l.b16 %v273
  %v2614 = vunpack.c.l.b16 %v274
  %v2615 = vunpack.c.l.b16 %v275
  %v2616 = vunpack.c.l.b16 %v276
  %v2617 = vunpack.c.l.b16 %v277
  %v2618 = vunpack.c.l.b16 %v278
  %v2619 = vunpack.c.l.b16 %v279
  %v2620 = vunpack.c.l.b16 %v280
  %v2621 = vunpack.c.l.b16 %v281
  %v2622 = vunpack.c.l.b16 %v282
  %v2623 = vunpack.c.l.b16 %v283
  %v2624 = vunpack.c.l.b16 %v284
  %v2625 = vunpack.c.l.b16 %v285
  %v2626 = vunpack.c.l.b16 %v286
  %v2627 = vunpack.c.l.b16 %v287
  %v2628 = vunpack.c.l.b16 %v288
  %v2629 = vunpack.c.l.b16 %v289
  %v2630 = vunpack.c.l.b16 %v290
  %v2631 = vunpack.c.l.b16 %v291
  %v2632 = vpack.c.b16 %v2569, %v2568
  %v2633 = vpack.c.b16 %v2571, %v2570
  %v2634 = vpack.c.b16 %v2573, %v2572
  %v2635 = vpack.c.b16 %v2575, %v2574
  %v2636 = vpack.c.b16 %v2577, %v2576
  %v2637 = vpack.c.b16 %v2579, %v2578
  %v2638 = vpack.c.b16 %v2581, %v2580
  %v2639 = vpack.c.b16 %v2583, %v2582
  %v2640 = vpack.c.b16 %v2585, %v2584
  %v2641 = vpack.c.b16 %v2587, %v2586
  %v2642 = vpack.c.b16 %v2589, %v2588
  %v2643 = vpack.c.b16 %v2591, %v2590
  %v2644 = vpack.c.b16 %v2593, %v2592
  %v2645 = vpack.c.b16 %v2595, %v2594
  %v2646 = vpack.c.b16 %v2597, %v2596
  %v2647 = vpack.c.b16 %v2599, %v2598
  %v2648 = vpack.c.b16 %v2601, %v2600
  %v2649 = vpack.c.b16 %v2603, %v2602
  %v2650 = vpack.c.b16 %v2605, %v2604
  %v2651 = vpack.c.b16 %v2607, %v2606
  %v2652 = vpack.c.b16 %v2609, %v2608
  %v2653 = vpack.c.b16 %v2611, %v2610
  %v2654 = vpack.c.b16 %v2613, %v2612
  %v2655 = vpack.c.b16 %v2615, %v2614
  %v2656 = vpack.c.b16 %v2617, %v2616
  %v2657 = vpack.c.b16 %v2619, %v2618
  %v2658 = vpack.c.b16 %v2621, %v2620
  %v2659 = vpack.c.b16 %v2623, %v2622
  %v2660 = vpack.c.b16 %v2625, %v2624
  %v2661 = vpack.c.b16 %v2627, %v2626
  %v2662 = vpack.c.b16 %v2629, %v2628
  %v2663 = vpack.c.b16 %v2631, %v2630
  %2664 = vrot.lane.b32.xlu0 %v2632, 4
  %v2665 = vpop.permute.xlu0 %2664
  %2666 = vrot.lane.b32.xlu0 %v2633, 4
  %v2667 = vpop.permute.xlu0 %2666
  %2668 = vrot.lane.b32.xlu0 %v2634, 4
  %v2669 = vpop.permute.xlu0 %2668
  %2670 = vrot.lane.b32.xlu0 %v2635, 4
  %v2671 = vpop.permute.xlu0 %2670
  %2672 = vrot.lane.b32.xlu0 %v2636, 4
  %v2673 = vpop.permute.xlu0 %2672
  %2674 = vrot.lane.b32.xlu0 %v2637, 4
  %v2675 = vpop.permute.xlu0 %2674
  %2676 = vrot.lane.b32.xlu0 %v2638, 4
  %v2677 = vpop.permute.xlu0 %2676
  %2678 = vrot.lane.b32.xlu0 %v2639, 4
  %v2679 = vpop.permute.xlu0 %2678
  %2680 = vrot.lane.b32.xlu0 %v2640, 4
  %v2681 = vpop.permute.xlu0 %2680
  %2682 = vrot.lane.b32.xlu0 %v2641, 4
  %v2683 = vpop.permute.xlu0 %2682
  %2684 = vrot.lane.b32.xlu0 %v2642, 4
  %v2685 = vpop.permute.xlu0 %2684
  %2686 = vrot.lane.b32.xlu0 %v2643, 4
  %v2687 = vpop.permute.xlu0 %2686
  %2688 = vrot.lane.b32.xlu0 %v2644, 4
  %v2689 = vpop.permute.xlu0 %2688
  %2690 = vrot.lane.b32.xlu0 %v2645, 4
  %v2691 = vpop.permute.xlu0 %2690
  %2692 = vrot.lane.b32.xlu0 %v2646, 4
  %v2693 = vpop.permute.xlu0 %2692
  %2694 = vrot.lane.b32.xlu0 %v2647, 4
  %v2695 = vpop.permute.xlu0 %2694
  %2696 = vrot.lane.b32.xlu0 %v2648, 4
  %v2697 = vpop.permute.xlu0 %2696
  %2698 = vrot.lane.b32.xlu0 %v2649, 4
  %v2699 = vpop.permute.xlu0 %2698
  %2700 = vrot.lane.b32.xlu0 %v2650, 4
  %v2701 = vpop.permute.xlu0 %2700
  %2702 = vrot.lane.b32.xlu0 %v2651, 4
  %v2703 = vpop.permute.xlu0 %2702
  %2704 = vrot.lane.b32.xlu0 %v2652, 4
  %v2705 = vpop.permute.xlu0 %2704
  %2706 = vrot.lane.b32.xlu0 %v2653, 4
  %v2707 = vpop.permute.xlu0 %2706
  %2708 = vrot.lane.b32.xlu0 %v2654, 4
  %v2709 = vpop.permute.xlu0 %2708
  %2710 = vrot.lane.b32.xlu0 %v2655, 4
  %v2711 = vpop.permute.xlu0 %2710
  %2712 = vrot.lane.b32.xlu0 %v2656, 4
  %v2713 = vpop.permute.xlu0 %2712
  %2714 = vrot.lane.b32.xlu0 %v2657, 4
  %v2715 = vpop.permute.xlu0 %2714
  %2716 = vrot.lane.b32.xlu0 %v2658, 4
  %v2717 = vpop.permute.xlu0 %2716
  %2718 = vrot.lane.b32.xlu0 %v2659, 4
  %v2719 = vpop.permute.xlu0 %2718
  %2720 = vrot.lane.b32.xlu0 %v2660, 4
  %v2721 = vpop.permute.xlu0 %2720
  %2722 = vrot.lane.b32.xlu0 %v2661, 4
  %v2723 = vpop.permute.xlu0 %2722
  %2724 = vrot.lane.b32.xlu0 %v2662, 4
  %v2725 = vpop.permute.xlu0 %2724
  %2726 = vrot.lane.b32.xlu0 %v2663, 4
  %v2727 = vpop.permute.xlu0 %2726
  %v2792 = vunpack.c.l.b16 %v356
  %v2793 = vunpack.c.l.b16 %v357
  %v2794 = vunpack.c.l.b16 %v358
  %v2795 = vunpack.c.l.b16 %v359
  %v2796 = vunpack.c.l.b16 %v360
  %v2797 = vunpack.c.l.b16 %v361
  %v2798 = vunpack.c.l.b16 %v362
  %v2799 = vunpack.c.l.b16 %v363
  %v2800 = vunpack.c.l.b16 %v364
  %v2801 = vunpack.c.l.b16 %v365
  %v2802 = vunpack.c.l.b16 %v366
  %v2803 = vunpack.c.l.b16 %v367
  %v2804 = vunpack.c.l.b16 %v368
  %v2805 = vunpack.c.l.b16 %v369
  %v2806 = vunpack.c.l.b16 %v370
  %v2807 = vunpack.c.l.b16 %v371
  %v2808 = vunpack.c.l.b16 %v372
  %v2809 = vunpack.c.l.b16 %v373
  %v2810 = vunpack.c.l.b16 %v374
  %v2811 = vunpack.c.l.b16 %v375
  %v2812 = vunpack.c.l.b16 %v376
  %v2813 = vunpack.c.l.b16 %v377
  %v2814 = vunpack.c.l.b16 %v378
  %v2815 = vunpack.c.l.b16 %v379
  %v2816 = vunpack.c.l.b16 %v380
  %v2817 = vunpack.c.l.b16 %v381
  %v2818 = vunpack.c.l.b16 %v382
  %v2819 = vunpack.c.l.b16 %v383
  %v2820 = vunpack.c.l.b16 %v384
  %v2821 = vunpack.c.l.b16 %v385
  %v2822 = vunpack.c.l.b16 %v386
  %v2823 = vunpack.c.l.b16 %v387
  %v2824 = vunpack.c.l.b16 %v388
  %v2825 = vunpack.c.l.b16 %v389
  %v2826 = vunpack.c.l.b16 %v390
  %v2827 = vunpack.c.l.b16 %v391
  %v2828 = vunpack.c.l.b16 %v392
  %v2829 = vunpack.c.l.b16 %v393
  %v2830 = vunpack.c.l.b16 %v394
  %v2831 = vunpack.c.l.b16 %v395
  %v2832 = vunpack.c.l.b16 %v396
  %v2833 = vunpack.c.l.b16 %v397
  %v2834 = vunpack.c.l.b16 %v398
  %v2835 = vunpack.c.l.b16 %v399
  %v2836 = vunpack.c.l.b16 %v400
  %v2837 = vunpack.c.l.b16 %v401
  %v2838 = vunpack.c.l.b16 %v402
  %v2839 = vunpack.c.l.b16 %v403
  %v2840 = vunpack.c.l.b16 %v404
  %v2841 = vunpack.c.l.b16 %v405
  %v2842 = vunpack.c.l.b16 %v406
  %v2843 = vunpack.c.l.b16 %v407
  %v2844 = vunpack.c.l.b16 %v408
  %v2845 = vunpack.c.l.b16 %v409
  %v2846 = vunpack.c.l.b16 %v410
  %v2847 = vunpack.c.l.b16 %v411
  %v2848 = vunpack.c.l.b16 %v412
  %v2849 = vunpack.c.l.b16 %v413
  %v2850 = vunpack.c.l.b16 %v414
  %v2851 = vunpack.c.l.b16 %v415
  %v2852 = vunpack.c.l.b16 %v416
  %v2853 = vunpack.c.l.b16 %v417
  %v2854 = vunpack.c.l.b16 %v418
  %v2855 = vunpack.c.l.b16 %v419
  %v2856 = vpack.c.b16 %v2793, %v2792
  %v2857 = vpack.c.b16 %v2795, %v2794
  %v2858 = vpack.c.b16 %v2797, %v2796
  %v2859 = vpack.c.b16 %v2799, %v2798
  %v2860 = vpack.c.b16 %v2801, %v2800
  %v2861 = vpack.c.b16 %v2803, %v2802
  %v2862 = vpack.c.b16 %v2805, %v2804
  %v2863 = vpack.c.b16 %v2807, %v2806
  %v2864 = vpack.c.b16 %v2809, %v2808
  %v2865 = vpack.c.b16 %v2811, %v2810
  %v2866 = vpack.c.b16 %v2813, %v2812
  %v2867 = vpack.c.b16 %v2815, %v2814
  %v2868 = vpack.c.b16 %v2817, %v2816
  %v2869 = vpack.c.b16 %v2819, %v2818
  %v2870 = vpack.c.b16 %v2821, %v2820
  %v2871 = vpack.c.b16 %v2823, %v2822
  %v2872 = vpack.c.b16 %v2825, %v2824
  %v2873 = vpack.c.b16 %v2827, %v2826
  %v2874 = vpack.c.b16 %v2829, %v2828
  %v2875 = vpack.c.b16 %v2831, %v2830
  %v2876 = vpack.c.b16 %v2833, %v2832
  %v2877 = vpack.c.b16 %v2835, %v2834
  %v2878 = vpack.c.b16 %v2837, %v2836
  %v2879 = vpack.c.b16 %v2839, %v2838
  %v2880 = vpack.c.b16 %v2841, %v2840
  %v2881 = vpack.c.b16 %v2843, %v2842
  %v2882 = vpack.c.b16 %v2845, %v2844
  %v2883 = vpack.c.b16 %v2847, %v2846
  %v2884 = vpack.c.b16 %v2849, %v2848
  %v2885 = vpack.c.b16 %v2851, %v2850
  %v2886 = vpack.c.b16 %v2853, %v2852
  %v2887 = vpack.c.b16 %v2855, %v2854
  %2888 = vrot.lane.b32.xlu0 %v2856, 8
  %v2889 = vpop.permute.xlu0 %2888
  %2890 = vrot.lane.b32.xlu0 %v2857, 8
  %v2891 = vpop.permute.xlu0 %2890
  %2892 = vrot.lane.b32.xlu0 %v2858, 8
  %v2893 = vpop.permute.xlu0 %2892
  %2894 = vrot.lane.b32.xlu0 %v2859, 8
  %v2895 = vpop.permute.xlu0 %2894
  %2896 = vrot.lane.b32.xlu0 %v2860, 8
  %v2897 = vpop.permute.xlu0 %2896
  %2898 = vrot.lane.b32.xlu0 %v2861, 8
  %v2899 = vpop.permute.xlu0 %2898
  %2900 = vrot.lane.b32.xlu0 %v2862, 8
  %v2901 = vpop.permute.xlu0 %2900
  %2902 = vrot.lane.b32.xlu0 %v2863, 8
  %v2903 = vpop.permute.xlu0 %2902
  %2904 = vrot.lane.b32.xlu0 %v2864, 8
  %v2905 = vpop.permute.xlu0 %2904
  %2906 = vrot.lane.b32.xlu0 %v2865, 8
  %v2907 = vpop.permute.xlu0 %2906
  %2908 = vrot.lane.b32.xlu0 %v2866, 8
  %v2909 = vpop.permute.xlu0 %2908
  %2910 = vrot.lane.b32.xlu0 %v2867, 8
  %v2911 = vpop.permute.xlu0 %2910
  %2912 = vrot.lane.b32.xlu0 %v2868, 8
  %v2913 = vpop.permute.xlu0 %2912
  %2914 = vrot.lane.b32.xlu0 %v2869, 8
  %v2915 = vpop.permute.xlu0 %2914
  %2916 = vrot.lane.b32.xlu0 %v2870, 8
  %v2917 = vpop.permute.xlu0 %2916
  %2918 = vrot.lane.b32.xlu0 %v2871, 8
  %v2919 = vpop.permute.xlu0 %2918
  %2920 = vrot.lane.b32.xlu0 %v2872, 8
  %v2921 = vpop.permute.xlu0 %2920
  %2922 = vrot.lane.b32.xlu0 %v2873, 8
  %v2923 = vpop.permute.xlu0 %2922
  %2924 = vrot.lane.b32.xlu0 %v2874, 8
  %v2925 = vpop.permute.xlu0 %2924
  %2926 = vrot.lane.b32.xlu0 %v2875, 8
  %v2927 = vpop.permute.xlu0 %2926
  %2928 = vrot.lane.b32.xlu0 %v2876, 8
  %v2929 = vpop.permute.xlu0 %2928
  %2930 = vrot.lane.b32.xlu0 %v2877, 8
  %v2931 = vpop.permute.xlu0 %2930
  %2932 = vrot.lane.b32.xlu0 %v2878, 8
  %v2933 = vpop.permute.xlu0 %2932
  %2934 = vrot.lane.b32.xlu0 %v2879, 8
  %v2935 = vpop.permute.xlu0 %2934
  %2936 = vrot.lane.b32.xlu0 %v2880, 8
  %v2937 = vpop.permute.xlu0 %2936
  %2938 = vrot.lane.b32.xlu0 %v2881, 8
  %v2939 = vpop.permute.xlu0 %2938
  %2940 = vrot.lane.b32.xlu0 %v2882, 8
  %v2941 = vpop.permute.xlu0 %2940
  %2942 = vrot.lane.b32.xlu0 %v2883, 8
  %v2943 = vpop.permute.xlu0 %2942
  %2944 = vrot.lane.b32.xlu0 %v2884, 8
  %v2945 = vpop.permute.xlu0 %2944
  %2946 = vrot.lane.b32.xlu0 %v2885, 8
  %v2947 = vpop.permute.xlu0 %2946
  %2948 = vrot.lane.b32.xlu0 %v2886, 8
  %v2949 = vpop.permute.xlu0 %2948
  %2950 = vrot.lane.b32.xlu0 %v2887, 8
  %v2951 = vpop.permute.xlu0 %2950
  %v3016 = vunpack.c.l.b16 %v484
  %v3017 = vunpack.c.l.b16 %v485
  %v3018 = vunpack.c.l.b16 %v486
  %v3019 = vunpack.c.l.b16 %v487
  %v3020 = vunpack.c.l.b16 %v488
  %v3021 = vunpack.c.l.b16 %v489
  %v3022 = vunpack.c.l.b16 %v490
  %v3023 = vunpack.c.l.b16 %v491
  %v3024 = vunpack.c.l.b16 %v492
  %v3025 = vunpack.c.l.b16 %v493
  %v3026 = vunpack.c.l.b16 %v494
  %v3027 = vunpack.c.l.b16 %v495
  %v3028 = vunpack.c.l.b16 %v496
  %v3029 = vunpack.c.l.b16 %v497
  %v3030 = vunpack.c.l.b16 %v498
  %v3031 = vunpack.c.l.b16 %v499
  %v3032 = vunpack.c.l.b16 %v500
  %v3033 = vunpack.c.l.b16 %v501
  %v3034 = vunpack.c.l.b16 %v502
  %v3035 = vunpack.c.l.b16 %v503
  %v3036 = vunpack.c.l.b16 %v504
  %v3037 = vunpack.c.l.b16 %v505
  %v3038 = vunpack.c.l.b16 %v506
  %v3039 = vunpack.c.l.b16 %v507
  %v3040 = vunpack.c.l.b16 %v508
  %v3041 = vunpack.c.l.b16 %v509
  %v3042 = vunpack.c.l.b16 %v510
  %v3043 = vunpack.c.l.b16 %v511
  %v3044 = vunpack.c.l.b16 %v512
  %v3045 = vunpack.c.l.b16 %v513
  %v3046 = vunpack.c.l.b16 %v514
  %v3047 = vunpack.c.l.b16 %v515
  %v3048 = vunpack.c.l.b16 %v516
  %v3049 = vunpack.c.l.b16 %v517
  %v3050 = vunpack.c.l.b16 %v518
  %v3051 = vunpack.c.l.b16 %v519
  %v3052 = vunpack.c.l.b16 %v520
  %v3053 = vunpack.c.l.b16 %v521
  %v3054 = vunpack.c.l.b16 %v522
  %v3055 = vunpack.c.l.b16 %v523
  %v3056 = vunpack.c.l.b16 %v524
  %v3057 = vunpack.c.l.b16 %v525
  %v3058 = vunpack.c.l.b16 %v526
  %v3059 = vunpack.c.l.b16 %v527
  %v3060 = vunpack.c.l.b16 %v528
  %v3061 = vunpack.c.l.b16 %v529
  %v3062 = vunpack.c.l.b16 %v530
  %v3063 = vunpack.c.l.b16 %v531
  %v3064 = vunpack.c.l.b16 %v532
  %v3065 = vunpack.c.l.b16 %v533
  %v3066 = vunpack.c.l.b16 %v534
  %v3067 = vunpack.c.l.b16 %v535
  %v3068 = vunpack.c.l.b16 %v536
  %v3069 = vunpack.c.l.b16 %v537
  %v3070 = vunpack.c.l.b16 %v538
  %v3071 = vunpack.c.l.b16 %v539
  %v3072 = vunpack.c.l.b16 %v540
  %v3073 = vunpack.c.l.b16 %v541
  %v3074 = vunpack.c.l.b16 %v542
  %v3075 = vunpack.c.l.b16 %v543
  %v3076 = vunpack.c.l.b16 %v544
  %v3077 = vunpack.c.l.b16 %v545
  %v3078 = vunpack.c.l.b16 %v546
  %v3079 = vunpack.c.l.b16 %v547
  %v3080 = vpack.c.b16 %v3017, %v3016
  %v3081 = vpack.c.b16 %v3019, %v3018
  %v3082 = vpack.c.b16 %v3021, %v3020
  %v3083 = vpack.c.b16 %v3023, %v3022
  %v3084 = vpack.c.b16 %v3025, %v3024
  %v3085 = vpack.c.b16 %v3027, %v3026
  %v3086 = vpack.c.b16 %v3029, %v3028
  %v3087 = vpack.c.b16 %v3031, %v3030
  %v3088 = vpack.c.b16 %v3033, %v3032
  %v3089 = vpack.c.b16 %v3035, %v3034
  %v3090 = vpack.c.b16 %v3037, %v3036
  %v3091 = vpack.c.b16 %v3039, %v3038
  %v3092 = vpack.c.b16 %v3041, %v3040
  %v3093 = vpack.c.b16 %v3043, %v3042
  %v3094 = vpack.c.b16 %v3045, %v3044
  %v3095 = vpack.c.b16 %v3047, %v3046
  %v3096 = vpack.c.b16 %v3049, %v3048
  %v3097 = vpack.c.b16 %v3051, %v3050
  %v3098 = vpack.c.b16 %v3053, %v3052
  %v3099 = vpack.c.b16 %v3055, %v3054
  %v3100 = vpack.c.b16 %v3057, %v3056
  %v3101 = vpack.c.b16 %v3059, %v3058
  %v3102 = vpack.c.b16 %v3061, %v3060
  %v3103 = vpack.c.b16 %v3063, %v3062
  %v3104 = vpack.c.b16 %v3065, %v3064
  %v3105 = vpack.c.b16 %v3067, %v3066
  %v3106 = vpack.c.b16 %v3069, %v3068
  %v3107 = vpack.c.b16 %v3071, %v3070
  %v3108 = vpack.c.b16 %v3073, %v3072
  %v3109 = vpack.c.b16 %v3075, %v3074
  %v3110 = vpack.c.b16 %v3077, %v3076
  %v3111 = vpack.c.b16 %v3079, %v3078
  %3112 = vrot.lane.b32.xlu0 %v3080, 12
  %v3113 = vpop.permute.xlu0 %3112
  %3114 = vrot.lane.b32.xlu0 %v3081, 12
  %v3115 = vpop.permute.xlu0 %3114
  %3116 = vrot.lane.b32.xlu0 %v3082, 12
  %v3117 = vpop.permute.xlu0 %3116
  %3118 = vrot.lane.b32.xlu0 %v3083, 12
  %v3119 = vpop.permute.xlu0 %3118
  %3120 = vrot.lane.b32.xlu0 %v3084, 12
  %v3121 = vpop.permute.xlu0 %3120
  %3122 = vrot.lane.b32.xlu0 %v3085, 12
  %v3123 = vpop.permute.xlu0 %3122
  %3124 = vrot.lane.b32.xlu0 %v3086, 12
  %v3125 = vpop.permute.xlu0 %3124
  %3126 = vrot.lane.b32.xlu0 %v3087, 12
  %v3127 = vpop.permute.xlu0 %3126
  %3128 = vrot.lane.b32.xlu0 %v3088, 12
  %v3129 = vpop.permute.xlu0 %3128
  %3130 = vrot.lane.b32.xlu0 %v3089, 12
  %v3131 = vpop.permute.xlu0 %3130
  %3132 = vrot.lane.b32.xlu0 %v3090, 12
  %v3133 = vpop.permute.xlu0 %3132
  %3134 = vrot.lane.b32.xlu0 %v3091, 12
  %v3135 = vpop.permute.xlu0 %3134
  %3136 = vrot.lane.b32.xlu0 %v3092, 12
  %v3137 = vpop.permute.xlu0 %3136
  %3138 = vrot.lane.b32.xlu0 %v3093, 12
  %v3139 = vpop.permute.xlu0 %3138
  %3140 = vrot.lane.b32.xlu0 %v3094, 12
  %v3141 = vpop.permute.xlu0 %3140
  %3142 = vrot.lane.b32.xlu0 %v3095, 12
  %v3143 = vpop.permute.xlu0 %3142
  %3144 = vrot.lane.b32.xlu0 %v3096, 12
  %v3145 = vpop.permute.xlu0 %3144
  %3146 = vrot.lane.b32.xlu0 %v3097, 12
  %v3147 = vpop.permute.xlu0 %3146
  %3148 = vrot.lane.b32.xlu0 %v3098, 12
  %v3149 = vpop.permute.xlu0 %3148
  %3150 = vrot.lane.b32.xlu0 %v3099, 12
  %v3151 = vpop.permute.xlu0 %3150
  %3152 = vrot.lane.b32.xlu0 %v3100, 12
  %v3153 = vpop.permute.xlu0 %3152
  %3154 = vrot.lane.b32.xlu0 %v3101, 12
  %v3155 = vpop.permute.xlu0 %3154
  %3156 = vrot.lane.b32.xlu0 %v3102, 12
  %v3157 = vpop.permute.xlu0 %3156
  %3158 = vrot.lane.b32.xlu0 %v3103, 12
  %v3159 = vpop.permute.xlu0 %3158
  %3160 = vrot.lane.b32.xlu0 %v3104, 12
  %v3161 = vpop.permute.xlu0 %3160
  %3162 = vrot.lane.b32.xlu0 %v3105, 12
  %v3163 = vpop.permute.xlu0 %3162
  %3164 = vrot.lane.b32.xlu0 %v3106, 12
  %v3165 = vpop.permute.xlu0 %3164
  %3166 = vrot.lane.b32.xlu0 %v3107, 12
  %v3167 = vpop.permute.xlu0 %3166
  %3168 = vrot.lane.b32.xlu0 %v3108, 12
  %v3169 = vpop.permute.xlu0 %3168
  %3170 = vrot.lane.b32.xlu0 %v3109, 12
  %v3171 = vpop.permute.xlu0 %3170
  %3172 = vrot.lane.b32.xlu0 %v3110, 12
  %v3173 = vpop.permute.xlu0 %3172
  %3174 = vrot.lane.b32.xlu0 %v3111, 12
  %v3175 = vpop.permute.xlu0 %3174
  %v3240 = vunpack.c.l.b16 %v612
  %v3241 = vunpack.c.l.b16 %v613
  %v3242 = vunpack.c.l.b16 %v614
  %v3243 = vunpack.c.l.b16 %v615
  %v3244 = vunpack.c.l.b16 %v616
  %v3245 = vunpack.c.l.b16 %v617
  %v3246 = vunpack.c.l.b16 %v618
  %v3247 = vunpack.c.l.b16 %v619
  %v3248 = vunpack.c.l.b16 %v620
  %v3249 = vunpack.c.l.b16 %v621
  %v3250 = vunpack.c.l.b16 %v622
  %v3251 = vunpack.c.l.b16 %v623
  %v3252 = vunpack.c.l.b16 %v624
  %v3253 = vunpack.c.l.b16 %v625
  %v3254 = vunpack.c.l.b16 %v626
  %v3255 = vunpack.c.l.b16 %v627
  %v3256 = vunpack.c.l.b16 %v628
  %v3257 = vunpack.c.l.b16 %v629
  %v3258 = vunpack.c.l.b16 %v630
  %v3259 = vunpack.c.l.b16 %v631
  %v3260 = vunpack.c.l.b16 %v632
  %v3261 = vunpack.c.l.b16 %v633
  %v3262 = vunpack.c.l.b16 %v634
  %v3263 = vunpack.c.l.b16 %v635
  %v3264 = vunpack.c.l.b16 %v636
  %v3265 = vunpack.c.l.b16 %v637
  %v3266 = vunpack.c.l.b16 %v638
  %v3267 = vunpack.c.l.b16 %v639
  %v3268 = vunpack.c.l.b16 %v640
  %v3269 = vunpack.c.l.b16 %v641
  %v3270 = vunpack.c.l.b16 %v642
  %v3271 = vunpack.c.l.b16 %v643
  %v3272 = vunpack.c.l.b16 %v644
  %v3273 = vunpack.c.l.b16 %v645
  %v3274 = vunpack.c.l.b16 %v646
  %v3275 = vunpack.c.l.b16 %v647
  %v3276 = vunpack.c.l.b16 %v648
  %v3277 = vunpack.c.l.b16 %v649
  %v3278 = vunpack.c.l.b16 %v650
  %v3279 = vunpack.c.l.b16 %v651
  %v3280 = vunpack.c.l.b16 %v652
  %v3281 = vunpack.c.l.b16 %v653
  %v3282 = vunpack.c.l.b16 %v654
  %v3283 = vunpack.c.l.b16 %v655
  %v3284 = vunpack.c.l.b16 %v656
  %v3285 = vunpack.c.l.b16 %v657
  %v3286 = vunpack.c.l.b16 %v658
  %v3287 = vunpack.c.l.b16 %v659
  %v3288 = vunpack.c.l.b16 %v660
  %v3289 = vunpack.c.l.b16 %v661
  %v3290 = vunpack.c.l.b16 %v662
  %v3291 = vunpack.c.l.b16 %v663
  %v3292 = vunpack.c.l.b16 %v664
  %v3293 = vunpack.c.l.b16 %v665
  %v3294 = vunpack.c.l.b16 %v666
  %v3295 = vunpack.c.l.b16 %v667
  %v3296 = vunpack.c.l.b16 %v668
  %v3297 = vunpack.c.l.b16 %v669
  %v3298 = vunpack.c.l.b16 %v670
  %v3299 = vunpack.c.l.b16 %v671
  %v3300 = vunpack.c.l.b16 %v672
  %v3301 = vunpack.c.l.b16 %v673
  %v3302 = vunpack.c.l.b16 %v674
  %v3303 = vunpack.c.l.b16 %v675
  %v3304 = vpack.c.b16 %v3241, %v3240
  %v3305 = vpack.c.b16 %v3243, %v3242
  %v3306 = vpack.c.b16 %v3245, %v3244
  %v3307 = vpack.c.b16 %v3247, %v3246
  %v3308 = vpack.c.b16 %v3249, %v3248
  %v3309 = vpack.c.b16 %v3251, %v3250
  %v3310 = vpack.c.b16 %v3253, %v3252
  %v3311 = vpack.c.b16 %v3255, %v3254
  %v3312 = vpack.c.b16 %v3257, %v3256
  %v3313 = vpack.c.b16 %v3259, %v3258
  %v3314 = vpack.c.b16 %v3261, %v3260
  %v3315 = vpack.c.b16 %v3263, %v3262
  %v3316 = vpack.c.b16 %v3265, %v3264
  %v3317 = vpack.c.b16 %v3267, %v3266
  %v3318 = vpack.c.b16 %v3269, %v3268
  %v3319 = vpack.c.b16 %v3271, %v3270
  %v3320 = vpack.c.b16 %v3273, %v3272
  %v3321 = vpack.c.b16 %v3275, %v3274
  %v3322 = vpack.c.b16 %v3277, %v3276
  %v3323 = vpack.c.b16 %v3279, %v3278
  %v3324 = vpack.c.b16 %v3281, %v3280
  %v3325 = vpack.c.b16 %v3283, %v3282
  %v3326 = vpack.c.b16 %v3285, %v3284
  %v3327 = vpack.c.b16 %v3287, %v3286
  %v3328 = vpack.c.b16 %v3289, %v3288
  %v3329 = vpack.c.b16 %v3291, %v3290
  %v3330 = vpack.c.b16 %v3293, %v3292
  %v3331 = vpack.c.b16 %v3295, %v3294
  %v3332 = vpack.c.b16 %v3297, %v3296
  %v3333 = vpack.c.b16 %v3299, %v3298
  %v3334 = vpack.c.b16 %v3301, %v3300
  %v3335 = vpack.c.b16 %v3303, %v3302
  %3336 = vrot.lane.b32.xlu0 %v3304, 16
  %v3337 = vpop.permute.xlu0 %3336
  %3338 = vrot.lane.b32.xlu0 %v3305, 16
  %v3339 = vpop.permute.xlu0 %3338
  %3340 = vrot.lane.b32.xlu0 %v3306, 16
  %v3341 = vpop.permute.xlu0 %3340
  %3342 = vrot.lane.b32.xlu0 %v3307, 16
  %v3343 = vpop.permute.xlu0 %3342
  %3344 = vrot.lane.b32.xlu0 %v3308, 16
  %v3345 = vpop.permute.xlu0 %3344
  %3346 = vrot.lane.b32.xlu0 %v3309, 16
  %v3347 = vpop.permute.xlu0 %3346
  %3348 = vrot.lane.b32.xlu0 %v3310, 16
  %v3349 = vpop.permute.xlu0 %3348
  %3350 = vrot.lane.b32.xlu0 %v3311, 16
  %v3351 = vpop.permute.xlu0 %3350
  %3352 = vrot.lane.b32.xlu0 %v3312, 16
  %v3353 = vpop.permute.xlu0 %3352
  %3354 = vrot.lane.b32.xlu0 %v3313, 16
  %v3355 = vpop.permute.xlu0 %3354
  %3356 = vrot.lane.b32.xlu0 %v3314, 16
  %v3357 = vpop.permute.xlu0 %3356
  %3358 = vrot.lane.b32.xlu0 %v3315, 16
  %v3359 = vpop.permute.xlu0 %3358
  %3360 = vrot.lane.b32.xlu0 %v3316, 16
  %v3361 = vpop.permute.xlu0 %3360
  %3362 = vrot.lane.b32.xlu0 %v3317, 16
  %v3363 = vpop.permute.xlu0 %3362
  %3364 = vrot.lane.b32.xlu0 %v3318, 16
  %v3365 = vpop.permute.xlu0 %3364
  %3366 = vrot.lane.b32.xlu0 %v3319, 16
  %v3367 = vpop.permute.xlu0 %3366
  %3368 = vrot.lane.b32.xlu0 %v3320, 16
  %v3369 = vpop.permute.xlu0 %3368
  %3370 = vrot.lane.b32.xlu0 %v3321, 16
  %v3371 = vpop.permute.xlu0 %3370
  %3372 = vrot.lane.b32.xlu0 %v3322, 16
  %v3373 = vpop.permute.xlu0 %3372
  %3374 = vrot.lane.b32.xlu0 %v3323, 16
  %v3375 = vpop.permute.xlu0 %3374
  %3376 = vrot.lane.b32.xlu0 %v3324, 16
  %v3377 = vpop.permute.xlu0 %3376
  %3378 = vrot.lane.b32.xlu0 %v3325, 16
  %v3379 = vpop.permute.xlu0 %3378
  %3380 = vrot.lane.b32.xlu0 %v3326, 16
  %v3381 = vpop.permute.xlu0 %3380
  %3382 = vrot.lane.b32.xlu0 %v3327, 16
  %v3383 = vpop.permute.xlu0 %3382
  %3384 = vrot.lane.b32.xlu0 %v3328, 16
  %v3385 = vpop.permute.xlu0 %3384
  %3386 = vrot.lane.b32.xlu0 %v3329, 16
  %v3387 = vpop.permute.xlu0 %3386
  %3388 = vrot.lane.b32.xlu0 %v3330, 16
  %v3389 = vpop.permute.xlu0 %3388
  %3390 = vrot.lane.b32.xlu0 %v3331, 16
  %v3391 = vpop.permute.xlu0 %3390
  %3392 = vrot.lane.b32.xlu0 %v3332, 16
  %v3393 = vpop.permute.xlu0 %3392
  %3394 = vrot.lane.b32.xlu0 %v3333, 16
  %v3395 = vpop.permute.xlu0 %3394
  %3396 = vrot.lane.b32.xlu0 %v3334, 16
  %v3397 = vpop.permute.xlu0 %3396
  %3398 = vrot.lane.b32.xlu0 %v3335, 16
  %v3399 = vpop.permute.xlu0 %3398
  %v3464 = vunpack.c.l.b16 %v740
  %v3465 = vunpack.c.l.b16 %v741
  %v3466 = vunpack.c.l.b16 %v742
  %v3467 = vunpack.c.l.b16 %v743
  %v3468 = vunpack.c.l.b16 %v744
  %v3469 = vunpack.c.l.b16 %v745
  %v3470 = vunpack.c.l.b16 %v746
  %v3471 = vunpack.c.l.b16 %v747
  %v3472 = vunpack.c.l.b16 %v748
  %v3473 = vunpack.c.l.b16 %v749
  %v3474 = vunpack.c.l.b16 %v750
  %v3475 = vunpack.c.l.b16 %v751
  %v3476 = vunpack.c.l.b16 %v752
  %v3477 = vunpack.c.l.b16 %v753
  %v3478 = vunpack.c.l.b16 %v754
  %v3479 = vunpack.c.l.b16 %v755
  %v3480 = vunpack.c.l.b16 %v756
  %v3481 = vunpack.c.l.b16 %v757
  %v3482 = vunpack.c.l.b16 %v758
  %v3483 = vunpack.c.l.b16 %v759
  %v3484 = vunpack.c.l.b16 %v760
  %v3485 = vunpack.c.l.b16 %v761
  %v3486 = vunpack.c.l.b16 %v762
  %v3487 = vunpack.c.l.b16 %v763
  %v3488 = vunpack.c.l.b16 %v764
  %v3489 = vunpack.c.l.b16 %v765
  %v3490 = vunpack.c.l.b16 %v766
  %v3491 = vunpack.c.l.b16 %v767
  %v3492 = vunpack.c.l.b16 %v768
  %v3493 = vunpack.c.l.b16 %v769
  %v3494 = vunpack.c.l.b16 %v770
  %v3495 = vunpack.c.l.b16 %v771
  %v3496 = vunpack.c.l.b16 %v772
  %v3497 = vunpack.c.l.b16 %v773
  %v3498 = vunpack.c.l.b16 %v774
  %v3499 = vunpack.c.l.b16 %v775
  %v3500 = vunpack.c.l.b16 %v776
  %v3501 = vunpack.c.l.b16 %v777
  %v3502 = vunpack.c.l.b16 %v778
  %v3503 = vunpack.c.l.b16 %v779
  %v3504 = vunpack.c.l.b16 %v780
  %v3505 = vunpack.c.l.b16 %v781
  %v3506 = vunpack.c.l.b16 %v782
  %v3507 = vunpack.c.l.b16 %v783
  %v3508 = vunpack.c.l.b16 %v784
  %v3509 = vunpack.c.l.b16 %v785
  %v3510 = vunpack.c.l.b16 %v786
  %v3511 = vunpack.c.l.b16 %v787
  %v3512 = vunpack.c.l.b16 %v788
  %v3513 = vunpack.c.l.b16 %v789
  %v3514 = vunpack.c.l.b16 %v790
  %v3515 = vunpack.c.l.b16 %v791
  %v3516 = vunpack.c.l.b16 %v792
  %v3517 = vunpack.c.l.b16 %v793
  %v3518 = vunpack.c.l.b16 %v794
  %v3519 = vunpack.c.l.b16 %v795
  %v3520 = vunpack.c.l.b16 %v796
  %v3521 = vunpack.c.l.b16 %v797
  %v3522 = vunpack.c.l.b16 %v798
  %v3523 = vunpack.c.l.b16 %v799
  %v3524 = vunpack.c.l.b16 %v800
  %v3525 = vunpack.c.l.b16 %v801
  %v3526 = vunpack.c.l.b16 %v802
  %v3527 = vunpack.c.l.b16 %v803
  %v3528 = vpack.c.b16 %v3465, %v3464
  %v3529 = vpack.c.b16 %v3467, %v3466
  %v3530 = vpack.c.b16 %v3469, %v3468
  %v3531 = vpack.c.b16 %v3471, %v3470
  %v3532 = vpack.c.b16 %v3473, %v3472
  %v3533 = vpack.c.b16 %v3475, %v3474
  %v3534 = vpack.c.b16 %v3477, %v3476
  %v3535 = vpack.c.b16 %v3479, %v3478
  %v3536 = vpack.c.b16 %v3481, %v3480
  %v3537 = vpack.c.b16 %v3483, %v3482
  %v3538 = vpack.c.b16 %v3485, %v3484
  %v3539 = vpack.c.b16 %v3487, %v3486
  %v3540 = vpack.c.b16 %v3489, %v3488
  %v3541 = vpack.c.b16 %v3491, %v3490
  %v3542 = vpack.c.b16 %v3493, %v3492
  %v3543 = vpack.c.b16 %v3495, %v3494
  %v3544 = vpack.c.b16 %v3497, %v3496
  %v3545 = vpack.c.b16 %v3499, %v3498
  %v3546 = vpack.c.b16 %v3501, %v3500
  %v3547 = vpack.c.b16 %v3503, %v3502
  %v3548 = vpack.c.b16 %v3505, %v3504
  %v3549 = vpack.c.b16 %v3507, %v3506
  %v3550 = vpack.c.b16 %v3509, %v3508
  %v3551 = vpack.c.b16 %v3511, %v3510
  %v3552 = vpack.c.b16 %v3513, %v3512
  %v3553 = vpack.c.b16 %v3515, %v3514
  %v3554 = vpack.c.b16 %v3517, %v3516
  %v3555 = vpack.c.b16 %v3519, %v3518
  %v3556 = vpack.c.b16 %v3521, %v3520
  %v3557 = vpack.c.b16 %v3523, %v3522
  %v3558 = vpack.c.b16 %v3525, %v3524
  %v3559 = vpack.c.b16 %v3527, %v3526
  %3560 = vrot.lane.b32.xlu0 %v3528, 20
  %v3561 = vpop.permute.xlu0 %3560
  %3562 = vrot.lane.b32.xlu0 %v3529, 20
  %v3563 = vpop.permute.xlu0 %3562
  %3564 = vrot.lane.b32.xlu0 %v3530, 20
  %v3565 = vpop.permute.xlu0 %3564
  %3566 = vrot.lane.b32.xlu0 %v3531, 20
  %v3567 = vpop.permute.xlu0 %3566
  %3568 = vrot.lane.b32.xlu0 %v3532, 20
  %v3569 = vpop.permute.xlu0 %3568
  %3570 = vrot.lane.b32.xlu0 %v3533, 20
  %v3571 = vpop.permute.xlu0 %3570
  %3572 = vrot.lane.b32.xlu0 %v3534, 20
  %v3573 = vpop.permute.xlu0 %3572
  %3574 = vrot.lane.b32.xlu0 %v3535, 20
  %v3575 = vpop.permute.xlu0 %3574
  %3576 = vrot.lane.b32.xlu0 %v3536, 20
  %v3577 = vpop.permute.xlu0 %3576
  %3578 = vrot.lane.b32.xlu0 %v3537, 20
  %v3579 = vpop.permute.xlu0 %3578
  %3580 = vrot.lane.b32.xlu0 %v3538, 20
  %v3581 = vpop.permute.xlu0 %3580
  %3582 = vrot.lane.b32.xlu0 %v3539, 20
  %v3583 = vpop.permute.xlu0 %3582
  %3584 = vrot.lane.b32.xlu0 %v3540, 20
  %v3585 = vpop.permute.xlu0 %3584
  %3586 = vrot.lane.b32.xlu0 %v3541, 20
  %v3587 = vpop.permute.xlu0 %3586
  %3588 = vrot.lane.b32.xlu0 %v3542, 20
  %v3589 = vpop.permute.xlu0 %3588
  %3590 = vrot.lane.b32.xlu0 %v3543, 20
  %v3591 = vpop.permute.xlu0 %3590
  %3592 = vrot.lane.b32.xlu0 %v3544, 20
  %v3593 = vpop.permute.xlu0 %3592
  %3594 = vrot.lane.b32.xlu0 %v3545, 20
  %v3595 = vpop.permute.xlu0 %3594
  %3596 = vrot.lane.b32.xlu0 %v3546, 20
  %v3597 = vpop.permute.xlu0 %3596
  %3598 = vrot.lane.b32.xlu0 %v3547, 20
  %v3599 = vpop.permute.xlu0 %3598
  %3600 = vrot.lane.b32.xlu0 %v3548, 20
  %v3601 = vpop.permute.xlu0 %3600
  %3602 = vrot.lane.b32.xlu0 %v3549, 20
  %v3603 = vpop.permute.xlu0 %3602
  %3604 = vrot.lane.b32.xlu0 %v3550, 20
  %v3605 = vpop.permute.xlu0 %3604
  %3606 = vrot.lane.b32.xlu0 %v3551, 20
  %v3607 = vpop.permute.xlu0 %3606
  %3608 = vrot.lane.b32.xlu0 %v3552, 20
  %v3609 = vpop.permute.xlu0 %3608
  %3610 = vrot.lane.b32.xlu0 %v3553, 20
  %v3611 = vpop.permute.xlu0 %3610
  %3612 = vrot.lane.b32.xlu0 %v3554, 20
  %v3613 = vpop.permute.xlu0 %3612
  %3614 = vrot.lane.b32.xlu0 %v3555, 20
  %v3615 = vpop.permute.xlu0 %3614
  %3616 = vrot.lane.b32.xlu0 %v3556, 20
  %v3617 = vpop.permute.xlu0 %3616
  %3618 = vrot.lane.b32.xlu0 %v3557, 20
  %v3619 = vpop.permute.xlu0 %3618
  %3620 = vrot.lane.b32.xlu0 %v3558, 20
  %v3621 = vpop.permute.xlu0 %3620
  %3622 = vrot.lane.b32.xlu0 %v3559, 20
  %v3623 = vpop.permute.xlu0 %3622
  %v3688 = vunpack.c.l.b16 %v869
  %v3689 = vunpack.c.l.b16 %v870
  %v3690 = vunpack.c.l.b16 %v871
  %v3691 = vunpack.c.l.b16 %v872
  %v3692 = vunpack.c.l.b16 %v873
  %v3693 = vunpack.c.l.b16 %v874
  %v3694 = vunpack.c.l.b16 %v875
  %v3695 = vunpack.c.l.b16 %v876
  %v3696 = vunpack.c.l.b16 %v877
  %v3697 = vunpack.c.l.b16 %v878
  %v3698 = vunpack.c.l.b16 %v879
  %v3699 = vunpack.c.l.b16 %v880
  %v3700 = vunpack.c.l.b16 %v881
  %v3701 = vunpack.c.l.b16 %v882
  %v3702 = vunpack.c.l.b16 %v883
  %v3703 = vunpack.c.l.b16 %v884
  %v3704 = vunpack.c.l.b16 %v885
  %v3705 = vunpack.c.l.b16 %v886
  %v3706 = vunpack.c.l.b16 %v887
  %v3707 = vunpack.c.l.b16 %v888
  %v3708 = vunpack.c.l.b16 %v889
  %v3709 = vunpack.c.l.b16 %v890
  %v3710 = vunpack.c.l.b16 %v891
  %v3711 = vunpack.c.l.b16 %v892
  %v3712 = vunpack.c.l.b16 %v893
  %v3713 = vunpack.c.l.b16 %v894
  %v3714 = vunpack.c.l.b16 %v895
  %v3715 = vunpack.c.l.b16 %v896
  %v3716 = vunpack.c.l.b16 %v897
  %v3717 = vunpack.c.l.b16 %v898
  %v3718 = vunpack.c.l.b16 %v899
  %v3719 = vunpack.c.l.b16 %v900
  %v3720 = vunpack.c.l.b16 %v901
  %v3721 = vunpack.c.l.b16 %v902
  %v3722 = vunpack.c.l.b16 %v903
  %v3723 = vunpack.c.l.b16 %v904
  %v3724 = vunpack.c.l.b16 %v905
  %v3725 = vunpack.c.l.b16 %v906
  %v3726 = vunpack.c.l.b16 %v907
  %v3727 = vunpack.c.l.b16 %v908
  %v3728 = vunpack.c.l.b16 %v909
  %v3729 = vunpack.c.l.b16 %v910
  %v3730 = vunpack.c.l.b16 %v911
  %v3731 = vunpack.c.l.b16 %v912
  %v3732 = vunpack.c.l.b16 %v913
  %v3733 = vunpack.c.l.b16 %v914
  %v3734 = vunpack.c.l.b16 %v915
  %v3735 = vunpack.c.l.b16 %v916
  %v3736 = vunpack.c.l.b16 %v917
  %v3737 = vunpack.c.l.b16 %v918
  %v3738 = vunpack.c.l.b16 %v919
  %v3739 = vunpack.c.l.b16 %v920
  %v3740 = vunpack.c.l.b16 %v921
  %v3741 = vunpack.c.l.b16 %v922
  %v3742 = vunpack.c.l.b16 %v923
  %v3743 = vunpack.c.l.b16 %v924
  %v3744 = vunpack.c.l.b16 %v925
  %v3745 = vunpack.c.l.b16 %v926
  %v3746 = vunpack.c.l.b16 %v927
  %v3747 = vunpack.c.l.b16 %v928
  %v3748 = vunpack.c.l.b16 %v929
  %v3749 = vunpack.c.l.b16 %v930
  %v3750 = vunpack.c.l.b16 %v931
  %v3751 = vunpack.c.l.b16 %v932
  %v3752 = vpack.c.b16 %v3689, %v3688
  %v3753 = vpack.c.b16 %v3691, %v3690
  %v3754 = vpack.c.b16 %v3693, %v3692
  %v3755 = vpack.c.b16 %v3695, %v3694
  %v3756 = vpack.c.b16 %v3697, %v3696
  %v3757 = vpack.c.b16 %v3699, %v3698
  %v3758 = vpack.c.b16 %v3701, %v3700
  %v3759 = vpack.c.b16 %v3703, %v3702
  %v3760 = vpack.c.b16 %v3705, %v3704
  %v3761 = vpack.c.b16 %v3707, %v3706
  %v3762 = vpack.c.b16 %v3709, %v3708
  %v3763 = vpack.c.b16 %v3711, %v3710
  %v3764 = vpack.c.b16 %v3713, %v3712
  %v3765 = vpack.c.b16 %v3715, %v3714
  %v3766 = vpack.c.b16 %v3717, %v3716
  %v3767 = vpack.c.b16 %v3719, %v3718
  %v3768 = vpack.c.b16 %v3721, %v3720
  %v3769 = vpack.c.b16 %v3723, %v3722
  %v3770 = vpack.c.b16 %v3725, %v3724
  %v3771 = vpack.c.b16 %v3727, %v3726
  %v3772 = vpack.c.b16 %v3729, %v3728
  %v3773 = vpack.c.b16 %v3731, %v3730
  %v3774 = vpack.c.b16 %v3733, %v3732
  %v3775 = vpack.c.b16 %v3735, %v3734
  %v3776 = vpack.c.b16 %v3737, %v3736
  %v3777 = vpack.c.b16 %v3739, %v3738
  %v3778 = vpack.c.b16 %v3741, %v3740
  %v3779 = vpack.c.b16 %v3743, %v3742
  %v3780 = vpack.c.b16 %v3745, %v3744
  %v3781 = vpack.c.b16 %v3747, %v3746
  %v3782 = vpack.c.b16 %v3749, %v3748
  %v3783 = vpack.c.b16 %v3751, %v3750
  %3784 = vrot.lane.b32.xlu0 %v3752, 24
  %v3785 = vpop.permute.xlu0 %3784
  %3786 = vrot.lane.b32.xlu0 %v3753, 24
  %v3787 = vpop.permute.xlu0 %3786
  %3788 = vrot.lane.b32.xlu0 %v3754, 24
  %v3789 = vpop.permute.xlu0 %3788
  %3790 = vrot.lane.b32.xlu0 %v3755, 24
  %v3791 = vpop.permute.xlu0 %3790
  %3792 = vrot.lane.b32.xlu0 %v3756, 24
  %v3793 = vpop.permute.xlu0 %3792
  %3794 = vrot.lane.b32.xlu0 %v3757, 24
  %v3795 = vpop.permute.xlu0 %3794
  %3796 = vrot.lane.b32.xlu0 %v3758, 24
  %v3797 = vpop.permute.xlu0 %3796
  %3798 = vrot.lane.b32.xlu0 %v3759, 24
  %v3799 = vpop.permute.xlu0 %3798
  %3800 = vrot.lane.b32.xlu0 %v3760, 24
  %v3801 = vpop.permute.xlu0 %3800
  %3802 = vrot.lane.b32.xlu0 %v3761, 24
  %v3803 = vpop.permute.xlu0 %3802
  %3804 = vrot.lane.b32.xlu0 %v3762, 24
  %v3805 = vpop.permute.xlu0 %3804
  %3806 = vrot.lane.b32.xlu0 %v3763, 24
  %v3807 = vpop.permute.xlu0 %3806
  %3808 = vrot.lane.b32.xlu0 %v3764, 24
  %v3809 = vpop.permute.xlu0 %3808
  %3810 = vrot.lane.b32.xlu0 %v3765, 24
  %v3811 = vpop.permute.xlu0 %3810
  %3812 = vrot.lane.b32.xlu0 %v3766, 24
  %v3813 = vpop.permute.xlu0 %3812
  %3814 = vrot.lane.b32.xlu0 %v3767, 24
  %v3815 = vpop.permute.xlu0 %3814
  %3816 = vrot.lane.b32.xlu0 %v3768, 24
  %v3817 = vpop.permute.xlu0 %3816
  %3818 = vrot.lane.b32.xlu0 %v3769, 24
  %v3819 = vpop.permute.xlu0 %3818
  %3820 = vrot.lane.b32.xlu0 %v3770, 24
  %v3821 = vpop.permute.xlu0 %3820
  %3822 = vrot.lane.b32.xlu0 %v3771, 24
  %v3823 = vpop.permute.xlu0 %3822
  %3824 = vrot.lane.b32.xlu0 %v3772, 24
  %v3825 = vpop.permute.xlu0 %3824
  %3826 = vrot.lane.b32.xlu0 %v3773, 24
  %v3827 = vpop.permute.xlu0 %3826
  %3828 = vrot.lane.b32.xlu0 %v3774, 24
  %v3829 = vpop.permute.xlu0 %3828
  %3830 = vrot.lane.b32.xlu0 %v3775, 24
  %v3831 = vpop.permute.xlu0 %3830
  %3832 = vrot.lane.b32.xlu0 %v3776, 24
  %v3833 = vpop.permute.xlu0 %3832
  %3834 = vrot.lane.b32.xlu0 %v3777, 24
  %v3835 = vpop.permute.xlu0 %3834
  %3836 = vrot.lane.b32.xlu0 %v3778, 24
  %v3837 = vpop.permute.xlu0 %3836
  %3838 = vrot.lane.b32.xlu0 %v3779, 24
  %v3839 = vpop.permute.xlu0 %3838
  %3840 = vrot.lane.b32.xlu0 %v3780, 24
  %v3841 = vpop.permute.xlu0 %3840
  %3842 = vrot.lane.b32.xlu0 %v3781, 24
  %v3843 = vpop.permute.xlu0 %3842
  %3844 = vrot.lane.b32.xlu0 %v3782, 24
  %v3845 = vpop.permute.xlu0 %3844
  %3846 = vrot.lane.b32.xlu0 %v3783, 24
  %v3847 = vpop.permute.xlu0 %3846
  %v3912 = vunpack.c.l.b16 %v998
  %v3913 = vunpack.c.l.b16 %v999
  %v3914 = vunpack.c.l.b16 %v1000
  %v3915 = vunpack.c.l.b16 %v1001
  %v3916 = vunpack.c.l.b16 %v1002
  %v3917 = vunpack.c.l.b16 %v1003
  %v3918 = vunpack.c.l.b16 %v1004
  %v3919 = vunpack.c.l.b16 %v1005
  %v3920 = vunpack.c.l.b16 %v1006
  %v3921 = vunpack.c.l.b16 %v1007
  %v3922 = vunpack.c.l.b16 %v1008
  %v3923 = vunpack.c.l.b16 %v1009
  %v3924 = vunpack.c.l.b16 %v1010
  %v3925 = vunpack.c.l.b16 %v1011
  %v3926 = vunpack.c.l.b16 %v1012
  %v3927 = vunpack.c.l.b16 %v1013
  %v3928 = vunpack.c.l.b16 %v1014
  %v3929 = vunpack.c.l.b16 %v1015
  %v3930 = vunpack.c.l.b16 %v1016
  %v3931 = vunpack.c.l.b16 %v1017
  %v3932 = vunpack.c.l.b16 %v1018
  %v3933 = vunpack.c.l.b16 %v1019
  %v3934 = vunpack.c.l.b16 %v1020
  %v3935 = vunpack.c.l.b16 %v1021
  %v3936 = vunpack.c.l.b16 %v1022
  %v3937 = vunpack.c.l.b16 %v1023
  %v3938 = vunpack.c.l.b16 %v1024
  %v3939 = vunpack.c.l.b16 %v1025
  %v3940 = vunpack.c.l.b16 %v1026
  %v3941 = vunpack.c.l.b16 %v1027
  %v3942 = vunpack.c.l.b16 %v1028
  %v3943 = vunpack.c.l.b16 %v1029
  %v3944 = vunpack.c.l.b16 %v1030
  %v3945 = vunpack.c.l.b16 %v1031
  %v3946 = vunpack.c.l.b16 %v1032
  %v3947 = vunpack.c.l.b16 %v1033
  %v3948 = vunpack.c.l.b16 %v1034
  %v3949 = vunpack.c.l.b16 %v1035
  %v3950 = vunpack.c.l.b16 %v1036
  %v3951 = vunpack.c.l.b16 %v1037
  %v3952 = vunpack.c.l.b16 %v1038
  %v3953 = vunpack.c.l.b16 %v1039
  %v3954 = vunpack.c.l.b16 %v1040
  %v3955 = vunpack.c.l.b16 %v1041
  %v3956 = vunpack.c.l.b16 %v1042
  %v3957 = vunpack.c.l.b16 %v1043
  %v3958 = vunpack.c.l.b16 %v1044
  %v3959 = vunpack.c.l.b16 %v1045
  %v3960 = vunpack.c.l.b16 %v1046
  %v3961 = vunpack.c.l.b16 %v1047
  %v3962 = vunpack.c.l.b16 %v1048
  %v3963 = vunpack.c.l.b16 %v1049
  %v3964 = vunpack.c.l.b16 %v1050
  %v3965 = vunpack.c.l.b16 %v1051
  %v3966 = vunpack.c.l.b16 %v1052
  %v3967 = vunpack.c.l.b16 %v1053
  %v3968 = vunpack.c.l.b16 %v1054
  %v3969 = vunpack.c.l.b16 %v1055
  %v3970 = vunpack.c.l.b16 %v1056
  %v3971 = vunpack.c.l.b16 %v1057
  %v3972 = vunpack.c.l.b16 %v1058
  %v3973 = vunpack.c.l.b16 %v1059
  %v3974 = vunpack.c.l.b16 %v1060
  %v3975 = vunpack.c.l.b16 %v1061
  %v3976 = vpack.c.b16 %v3913, %v3912
  %v3977 = vpack.c.b16 %v3915, %v3914
  %v3978 = vpack.c.b16 %v3917, %v3916
  %v3979 = vpack.c.b16 %v3919, %v3918
  %v3980 = vpack.c.b16 %v3921, %v3920
  %v3981 = vpack.c.b16 %v3923, %v3922
  %v3982 = vpack.c.b16 %v3925, %v3924
  %v3983 = vpack.c.b16 %v3927, %v3926
  %v3984 = vpack.c.b16 %v3929, %v3928
  %v3985 = vpack.c.b16 %v3931, %v3930
  %v3986 = vpack.c.b16 %v3933, %v3932
  %v3987 = vpack.c.b16 %v3935, %v3934
  %v3988 = vpack.c.b16 %v3937, %v3936
  %v3989 = vpack.c.b16 %v3939, %v3938
  %v3990 = vpack.c.b16 %v3941, %v3940
  %v3991 = vpack.c.b16 %v3943, %v3942
  %v3992 = vpack.c.b16 %v3945, %v3944
  %v3993 = vpack.c.b16 %v3947, %v3946
  %v3994 = vpack.c.b16 %v3949, %v3948
  %v3995 = vpack.c.b16 %v3951, %v3950
  %v3996 = vpack.c.b16 %v3953, %v3952
  %v3997 = vpack.c.b16 %v3955, %v3954
  %v3998 = vpack.c.b16 %v3957, %v3956
  %v3999 = vpack.c.b16 %v3959, %v3958
  %v4000 = vpack.c.b16 %v3961, %v3960
  %v4001 = vpack.c.b16 %v3963, %v3962
  %v4002 = vpack.c.b16 %v3965, %v3964
  %v4003 = vpack.c.b16 %v3967, %v3966
  %v4004 = vpack.c.b16 %v3969, %v3968
  %v4005 = vpack.c.b16 %v3971, %v3970
  %v4006 = vpack.c.b16 %v3973, %v3972
  %v4007 = vpack.c.b16 %v3975, %v3974
  %4008 = vrot.lane.b32.xlu0 %v3976, 28
  %v4009 = vpop.permute.xlu0 %4008
  %4010 = vrot.lane.b32.xlu0 %v3977, 28
  %v4011 = vpop.permute.xlu0 %4010
  %4012 = vrot.lane.b32.xlu0 %v3978, 28
  %v4013 = vpop.permute.xlu0 %4012
  %4014 = vrot.lane.b32.xlu0 %v3979, 28
  %v4015 = vpop.permute.xlu0 %4014
  %4016 = vrot.lane.b32.xlu0 %v3980, 28
  %v4017 = vpop.permute.xlu0 %4016
  %4018 = vrot.lane.b32.xlu0 %v3981, 28
  %v4019 = vpop.permute.xlu0 %4018
  %4020 = vrot.lane.b32.xlu0 %v3982, 28
  %v4021 = vpop.permute.xlu0 %4020
  %4022 = vrot.lane.b32.xlu0 %v3983, 28
  %v4023 = vpop.permute.xlu0 %4022
  %4024 = vrot.lane.b32.xlu0 %v3984, 28
  %v4025 = vpop.permute.xlu0 %4024
  %4026 = vrot.lane.b32.xlu0 %v3985, 28
  %v4027 = vpop.permute.xlu0 %4026
  %4028 = vrot.lane.b32.xlu0 %v3986, 28
  %v4029 = vpop.permute.xlu0 %4028
  %4030 = vrot.lane.b32.xlu0 %v3987, 28
  %v4031 = vpop.permute.xlu0 %4030
  %4032 = vrot.lane.b32.xlu0 %v3988, 28
  %v4033 = vpop.permute.xlu0 %4032
  %4034 = vrot.lane.b32.xlu0 %v3989, 28
  %v4035 = vpop.permute.xlu0 %4034
  %4036 = vrot.lane.b32.xlu0 %v3990, 28
  %v4037 = vpop.permute.xlu0 %4036
  %4038 = vrot.lane.b32.xlu0 %v3991, 28
  %v4039 = vpop.permute.xlu0 %4038
  %4040 = vrot.lane.b32.xlu0 %v3992, 28
  %v4041 = vpop.permute.xlu0 %4040
  %4042 = vrot.lane.b32.xlu0 %v3993, 28
  %v4043 = vpop.permute.xlu0 %4042
  %4044 = vrot.lane.b32.xlu0 %v3994, 28
  %v4045 = vpop.permute.xlu0 %4044
  %4046 = vrot.lane.b32.xlu0 %v3995, 28
  %v4047 = vpop.permute.xlu0 %4046
  %4048 = vrot.lane.b32.xlu0 %v3996, 28
  %v4049 = vpop.permute.xlu0 %4048
  %4050 = vrot.lane.b32.xlu0 %v3997, 28
  %v4051 = vpop.permute.xlu0 %4050
  %4052 = vrot.lane.b32.xlu0 %v3998, 28
  %v4053 = vpop.permute.xlu0 %4052
  %4054 = vrot.lane.b32.xlu0 %v3999, 28
  %v4055 = vpop.permute.xlu0 %4054
  %4056 = vrot.lane.b32.xlu0 %v4000, 28
  %v4057 = vpop.permute.xlu0 %4056
  %4058 = vrot.lane.b32.xlu0 %v4001, 28
  %v4059 = vpop.permute.xlu0 %4058
  %4060 = vrot.lane.b32.xlu0 %v4002, 28
  %v4061 = vpop.permute.xlu0 %4060
  %4062 = vrot.lane.b32.xlu0 %v4003, 28
  %v4063 = vpop.permute.xlu0 %4062
  %4064 = vrot.lane.b32.xlu0 %v4004, 28
  %v4065 = vpop.permute.xlu0 %4064
  %4066 = vrot.lane.b32.xlu0 %v4005, 28
  %v4067 = vpop.permute.xlu0 %4066
  %4068 = vrot.lane.b32.xlu0 %v4006, 28
  %v4069 = vpop.permute.xlu0 %4068
  %4070 = vrot.lane.b32.xlu0 %v4007, 28
  %v4071 = vpop.permute.xlu0 %4070
  %v4136 = vunpack.c.l.b16 %v1126
  %v4137 = vunpack.c.l.b16 %v1127
  %v4138 = vunpack.c.l.b16 %v1128
  %v4139 = vunpack.c.l.b16 %v1129
  %v4140 = vunpack.c.l.b16 %v1130
  %v4141 = vunpack.c.l.b16 %v1131
  %v4142 = vunpack.c.l.b16 %v1132
  %v4143 = vunpack.c.l.b16 %v1133
  %v4144 = vunpack.c.l.b16 %v1134
  %v4145 = vunpack.c.l.b16 %v1135
  %v4146 = vunpack.c.l.b16 %v1136
  %v4147 = vunpack.c.l.b16 %v1137
  %v4148 = vunpack.c.l.b16 %v1138
  %v4149 = vunpack.c.l.b16 %v1139
  %v4150 = vunpack.c.l.b16 %v1140
  %v4151 = vunpack.c.l.b16 %v1141
  %v4152 = vunpack.c.l.b16 %v1142
  %v4153 = vunpack.c.l.b16 %v1143
  %v4154 = vunpack.c.l.b16 %v1144
  %v4155 = vunpack.c.l.b16 %v1145
  %v4156 = vunpack.c.l.b16 %v1146
  %v4157 = vunpack.c.l.b16 %v1147
  %v4158 = vunpack.c.l.b16 %v1148
  %v4159 = vunpack.c.l.b16 %v1149
  %v4160 = vunpack.c.l.b16 %v1150
  %v4161 = vunpack.c.l.b16 %v1151
  %v4162 = vunpack.c.l.b16 %v1152
  %v4163 = vunpack.c.l.b16 %v1153
  %v4164 = vunpack.c.l.b16 %v1154
  %v4165 = vunpack.c.l.b16 %v1155
  %v4166 = vunpack.c.l.b16 %v1156
  %v4167 = vunpack.c.l.b16 %v1157
  %v4168 = vunpack.c.l.b16 %v1158
  %v4169 = vunpack.c.l.b16 %v1159
  %v4170 = vunpack.c.l.b16 %v1160
  %v4171 = vunpack.c.l.b16 %v1161
  %v4172 = vunpack.c.l.b16 %v1162
  %v4173 = vunpack.c.l.b16 %v1163
  %v4174 = vunpack.c.l.b16 %v1164
  %v4175 = vunpack.c.l.b16 %v1165
  %v4176 = vunpack.c.l.b16 %v1166
  %v4177 = vunpack.c.l.b16 %v1167
  %v4178 = vunpack.c.l.b16 %v1168
  %v4179 = vunpack.c.l.b16 %v1169
  %v4180 = vunpack.c.l.b16 %v1170
  %v4181 = vunpack.c.l.b16 %v1171
  %v4182 = vunpack.c.l.b16 %v1172
  %v4183 = vunpack.c.l.b16 %v1173
  %v4184 = vunpack.c.l.b16 %v1174
  %v4185 = vunpack.c.l.b16 %v1175
  %v4186 = vunpack.c.l.b16 %v1176
  %v4187 = vunpack.c.l.b16 %v1177
  %v4188 = vunpack.c.l.b16 %v1178
  %v4189 = vunpack.c.l.b16 %v1179
  %v4190 = vunpack.c.l.b16 %v1180
  %v4191 = vunpack.c.l.b16 %v1181
  %v4192 = vunpack.c.l.b16 %v1182
  %v4193 = vunpack.c.l.b16 %v1183
  %v4194 = vunpack.c.l.b16 %v1184
  %v4195 = vunpack.c.l.b16 %v1185
  %v4196 = vunpack.c.l.b16 %v1186
  %v4197 = vunpack.c.l.b16 %v1187
  %v4198 = vunpack.c.l.b16 %v1188
  %v4199 = vunpack.c.l.b16 %v1189
  %v4200 = vpack.c.b16 %v4137, %v4136
  %v4201 = vpack.c.b16 %v4139, %v4138
  %v4202 = vpack.c.b16 %v4141, %v4140
  %v4203 = vpack.c.b16 %v4143, %v4142
  %v4204 = vpack.c.b16 %v4145, %v4144
  %v4205 = vpack.c.b16 %v4147, %v4146
  %v4206 = vpack.c.b16 %v4149, %v4148
  %v4207 = vpack.c.b16 %v4151, %v4150
  %v4208 = vpack.c.b16 %v4153, %v4152
  %v4209 = vpack.c.b16 %v4155, %v4154
  %v4210 = vpack.c.b16 %v4157, %v4156
  %v4211 = vpack.c.b16 %v4159, %v4158
  %v4212 = vpack.c.b16 %v4161, %v4160
  %v4213 = vpack.c.b16 %v4163, %v4162
  %v4214 = vpack.c.b16 %v4165, %v4164
  %v4215 = vpack.c.b16 %v4167, %v4166
  %v4216 = vpack.c.b16 %v4169, %v4168
  %v4217 = vpack.c.b16 %v4171, %v4170
  %v4218 = vpack.c.b16 %v4173, %v4172
  %v4219 = vpack.c.b16 %v4175, %v4174
  %v4220 = vpack.c.b16 %v4177, %v4176
  %v4221 = vpack.c.b16 %v4179, %v4178
  %v4222 = vpack.c.b16 %v4181, %v4180
  %v4223 = vpack.c.b16 %v4183, %v4182
  %v4224 = vpack.c.b16 %v4185, %v4184
  %v4225 = vpack.c.b16 %v4187, %v4186
  %v4226 = vpack.c.b16 %v4189, %v4188
  %v4227 = vpack.c.b16 %v4191, %v4190
  %v4228 = vpack.c.b16 %v4193, %v4192
  %v4229 = vpack.c.b16 %v4195, %v4194
  %v4230 = vpack.c.b16 %v4197, %v4196
  %v4231 = vpack.c.b16 %v4199, %v4198
  %4232 = vrot.lane.b32.xlu0 %v4200, 32
  %v4233 = vpop.permute.xlu0 %4232
  %4234 = vrot.lane.b32.xlu0 %v4201, 32
  %v4235 = vpop.permute.xlu0 %4234
  %4236 = vrot.lane.b32.xlu0 %v4202, 32
  %v4237 = vpop.permute.xlu0 %4236
  %4238 = vrot.lane.b32.xlu0 %v4203, 32
  %v4239 = vpop.permute.xlu0 %4238
  %4240 = vrot.lane.b32.xlu0 %v4204, 32
  %v4241 = vpop.permute.xlu0 %4240
  %4242 = vrot.lane.b32.xlu0 %v4205, 32
  %v4243 = vpop.permute.xlu0 %4242
  %4244 = vrot.lane.b32.xlu0 %v4206, 32
  %v4245 = vpop.permute.xlu0 %4244
  %4246 = vrot.lane.b32.xlu0 %v4207, 32
  %v4247 = vpop.permute.xlu0 %4246
  %4248 = vrot.lane.b32.xlu0 %v4208, 32
  %v4249 = vpop.permute.xlu0 %4248
  %4250 = vrot.lane.b32.xlu0 %v4209, 32
  %v4251 = vpop.permute.xlu0 %4250
  %4252 = vrot.lane.b32.xlu0 %v4210, 32
  %v4253 = vpop.permute.xlu0 %4252
  %4254 = vrot.lane.b32.xlu0 %v4211, 32
  %v4255 = vpop.permute.xlu0 %4254
  %4256 = vrot.lane.b32.xlu0 %v4212, 32
  %v4257 = vpop.permute.xlu0 %4256
  %4258 = vrot.lane.b32.xlu0 %v4213, 32
  %v4259 = vpop.permute.xlu0 %4258
  %4260 = vrot.lane.b32.xlu0 %v4214, 32
  %v4261 = vpop.permute.xlu0 %4260
  %4262 = vrot.lane.b32.xlu0 %v4215, 32
  %v4263 = vpop.permute.xlu0 %4262
  %4264 = vrot.lane.b32.xlu0 %v4216, 32
  %v4265 = vpop.permute.xlu0 %4264
  %4266 = vrot.lane.b32.xlu0 %v4217, 32
  %v4267 = vpop.permute.xlu0 %4266
  %4268 = vrot.lane.b32.xlu0 %v4218, 32
  %v4269 = vpop.permute.xlu0 %4268
  %4270 = vrot.lane.b32.xlu0 %v4219, 32
  %v4271 = vpop.permute.xlu0 %4270
  %4272 = vrot.lane.b32.xlu0 %v4220, 32
  %v4273 = vpop.permute.xlu0 %4272
  %4274 = vrot.lane.b32.xlu0 %v4221, 32
  %v4275 = vpop.permute.xlu0 %4274
  %4276 = vrot.lane.b32.xlu0 %v4222, 32
  %v4277 = vpop.permute.xlu0 %4276
  %4278 = vrot.lane.b32.xlu0 %v4223, 32
  %v4279 = vpop.permute.xlu0 %4278
  %4280 = vrot.lane.b32.xlu0 %v4224, 32
  %v4281 = vpop.permute.xlu0 %4280
  %4282 = vrot.lane.b32.xlu0 %v4225, 32
  %v4283 = vpop.permute.xlu0 %4282
  %4284 = vrot.lane.b32.xlu0 %v4226, 32
  %v4285 = vpop.permute.xlu0 %4284
  %4286 = vrot.lane.b32.xlu0 %v4227, 32
  %v4287 = vpop.permute.xlu0 %4286
  %4288 = vrot.lane.b32.xlu0 %v4228, 32
  %v4289 = vpop.permute.xlu0 %4288
  %4290 = vrot.lane.b32.xlu0 %v4229, 32
  %v4291 = vpop.permute.xlu0 %4290
  %4292 = vrot.lane.b32.xlu0 %v4230, 32
  %v4293 = vpop.permute.xlu0 %4292
  %4294 = vrot.lane.b32.xlu0 %v4231, 32
  %v4295 = vpop.permute.xlu0 %4294
  %v4360 = vunpack.c.l.b16 %v1254
  %v4361 = vunpack.c.l.b16 %v1255
  %v4362 = vunpack.c.l.b16 %v1256
  %v4363 = vunpack.c.l.b16 %v1257
  %v4364 = vunpack.c.l.b16 %v1258
  %v4365 = vunpack.c.l.b16 %v1259
  %v4366 = vunpack.c.l.b16 %v1260
  %v4367 = vunpack.c.l.b16 %v1261
  %v4368 = vunpack.c.l.b16 %v1262
  %v4369 = vunpack.c.l.b16 %v1263
  %v4370 = vunpack.c.l.b16 %v1264
  %v4371 = vunpack.c.l.b16 %v1265
  %v4372 = vunpack.c.l.b16 %v1266
  %v4373 = vunpack.c.l.b16 %v1267
  %v4374 = vunpack.c.l.b16 %v1268
  %v4375 = vunpack.c.l.b16 %v1269
  %v4376 = vunpack.c.l.b16 %v1270
  %v4377 = vunpack.c.l.b16 %v1271
  %v4378 = vunpack.c.l.b16 %v1272
  %v4379 = vunpack.c.l.b16 %v1273
  %v4380 = vunpack.c.l.b16 %v1274
  %v4381 = vunpack.c.l.b16 %v1275
  %v4382 = vunpack.c.l.b16 %v1276
  %v4383 = vunpack.c.l.b16 %v1277
  %v4384 = vunpack.c.l.b16 %v1278
  %v4385 = vunpack.c.l.b16 %v1279
  %v4386 = vunpack.c.l.b16 %v1280
  %v4387 = vunpack.c.l.b16 %v1281
  %v4388 = vunpack.c.l.b16 %v1282
  %v4389 = vunpack.c.l.b16 %v1283
  %v4390 = vunpack.c.l.b16 %v1284
  %v4391 = vunpack.c.l.b16 %v1285
  %v4392 = vunpack.c.l.b16 %v1286
  %v4393 = vunpack.c.l.b16 %v1287
  %v4394 = vunpack.c.l.b16 %v1288
  %v4395 = vunpack.c.l.b16 %v1289
  %v4396 = vunpack.c.l.b16 %v1290
  %v4397 = vunpack.c.l.b16 %v1291
  %v4398 = vunpack.c.l.b16 %v1292
  %v4399 = vunpack.c.l.b16 %v1293
  %v4400 = vunpack.c.l.b16 %v1294
  %v4401 = vunpack.c.l.b16 %v1295
  %v4402 = vunpack.c.l.b16 %v1296
  %v4403 = vunpack.c.l.b16 %v1297
  %v4404 = vunpack.c.l.b16 %v1298
  %v4405 = vunpack.c.l.b16 %v1299
  %v4406 = vunpack.c.l.b16 %v1300
  %v4407 = vunpack.c.l.b16 %v1301
  %v4408 = vunpack.c.l.b16 %v1302
  %v4409 = vunpack.c.l.b16 %v1303
  %v4410 = vunpack.c.l.b16 %v1304
  %v4411 = vunpack.c.l.b16 %v1305
  %v4412 = vunpack.c.l.b16 %v1306
  %v4413 = vunpack.c.l.b16 %v1307
  %v4414 = vunpack.c.l.b16 %v1308
  %v4415 = vunpack.c.l.b16 %v1309
  %v4416 = vunpack.c.l.b16 %v1310
  %v4417 = vunpack.c.l.b16 %v1311
  %v4418 = vunpack.c.l.b16 %v1312
  %v4419 = vunpack.c.l.b16 %v1313
  %v4420 = vunpack.c.l.b16 %v1314
  %v4421 = vunpack.c.l.b16 %v1315
  %v4422 = vunpack.c.l.b16 %v1316
  %v4423 = vunpack.c.l.b16 %v1317
  %v4424 = vpack.c.b16 %v4361, %v4360
  %v4425 = vpack.c.b16 %v4363, %v4362
  %v4426 = vpack.c.b16 %v4365, %v4364
  %v4427 = vpack.c.b16 %v4367, %v4366
  %v4428 = vpack.c.b16 %v4369, %v4368
  %v4429 = vpack.c.b16 %v4371, %v4370
  %v4430 = vpack.c.b16 %v4373, %v4372
  %v4431 = vpack.c.b16 %v4375, %v4374
  %v4432 = vpack.c.b16 %v4377, %v4376
  %v4433 = vpack.c.b16 %v4379, %v4378
  %v4434 = vpack.c.b16 %v4381, %v4380
  %v4435 = vpack.c.b16 %v4383, %v4382
  %v4436 = vpack.c.b16 %v4385, %v4384
  %v4437 = vpack.c.b16 %v4387, %v4386
  %v4438 = vpack.c.b16 %v4389, %v4388
  %v4439 = vpack.c.b16 %v4391, %v4390
  %v4440 = vpack.c.b16 %v4393, %v4392
  %v4441 = vpack.c.b16 %v4395, %v4394
  %v4442 = vpack.c.b16 %v4397, %v4396
  %v4443 = vpack.c.b16 %v4399, %v4398
  %v4444 = vpack.c.b16 %v4401, %v4400
  %v4445 = vpack.c.b16 %v4403, %v4402
  %v4446 = vpack.c.b16 %v4405, %v4404
  %v4447 = vpack.c.b16 %v4407, %v4406
  %v4448 = vpack.c.b16 %v4409, %v4408
  %v4449 = vpack.c.b16 %v4411, %v4410
  %v4450 = vpack.c.b16 %v4413, %v4412
  %v4451 = vpack.c.b16 %v4415, %v4414
  %v4452 = vpack.c.b16 %v4417, %v4416
  %v4453 = vpack.c.b16 %v4419, %v4418
  %v4454 = vpack.c.b16 %v4421, %v4420
  %v4455 = vpack.c.b16 %v4423, %v4422
  %4456 = vrot.lane.b32.xlu0 %v4424, 36
  %v4457 = vpop.permute.xlu0 %4456
  %4458 = vrot.lane.b32.xlu0 %v4425, 36
  %v4459 = vpop.permute.xlu0 %4458
  %4460 = vrot.lane.b32.xlu0 %v4426, 36
  %v4461 = vpop.permute.xlu0 %4460
  %4462 = vrot.lane.b32.xlu0 %v4427, 36
  %v4463 = vpop.permute.xlu0 %4462
  %4464 = vrot.lane.b32.xlu0 %v4428, 36
  %v4465 = vpop.permute.xlu0 %4464
  %4466 = vrot.lane.b32.xlu0 %v4429, 36
  %v4467 = vpop.permute.xlu0 %4466
  %4468 = vrot.lane.b32.xlu0 %v4430, 36
  %v4469 = vpop.permute.xlu0 %4468
  %4470 = vrot.lane.b32.xlu0 %v4431, 36
  %v4471 = vpop.permute.xlu0 %4470
  %4472 = vrot.lane.b32.xlu0 %v4432, 36
  %v4473 = vpop.permute.xlu0 %4472
  %4474 = vrot.lane.b32.xlu0 %v4433, 36
  %v4475 = vpop.permute.xlu0 %4474
  %4476 = vrot.lane.b32.xlu0 %v4434, 36
  %v4477 = vpop.permute.xlu0 %4476
  %4478 = vrot.lane.b32.xlu0 %v4435, 36
  %v4479 = vpop.permute.xlu0 %4478
  %4480 = vrot.lane.b32.xlu0 %v4436, 36
  %v4481 = vpop.permute.xlu0 %4480
  %4482 = vrot.lane.b32.xlu0 %v4437, 36
  %v4483 = vpop.permute.xlu0 %4482
  %4484 = vrot.lane.b32.xlu0 %v4438, 36
  %v4485 = vpop.permute.xlu0 %4484
  %4486 = vrot.lane.b32.xlu0 %v4439, 36
  %v4487 = vpop.permute.xlu0 %4486
  %4488 = vrot.lane.b32.xlu0 %v4440, 36
  %v4489 = vpop.permute.xlu0 %4488
  %4490 = vrot.lane.b32.xlu0 %v4441, 36
  %v4491 = vpop.permute.xlu0 %4490
  %4492 = vrot.lane.b32.xlu0 %v4442, 36
  %v4493 = vpop.permute.xlu0 %4492
  %4494 = vrot.lane.b32.xlu0 %v4443, 36
  %v4495 = vpop.permute.xlu0 %4494
  %4496 = vrot.lane.b32.xlu0 %v4444, 36
  %v4497 = vpop.permute.xlu0 %4496
  %4498 = vrot.lane.b32.xlu0 %v4445, 36
  %v4499 = vpop.permute.xlu0 %4498
  %4500 = vrot.lane.b32.xlu0 %v4446, 36
  %v4501 = vpop.permute.xlu0 %4500
  %4502 = vrot.lane.b32.xlu0 %v4447, 36
  %v4503 = vpop.permute.xlu0 %4502
  %4504 = vrot.lane.b32.xlu0 %v4448, 36
  %v4505 = vpop.permute.xlu0 %4504
  %4506 = vrot.lane.b32.xlu0 %v4449, 36
  %v4507 = vpop.permute.xlu0 %4506
  %4508 = vrot.lane.b32.xlu0 %v4450, 36
  %v4509 = vpop.permute.xlu0 %4508
  %4510 = vrot.lane.b32.xlu0 %v4451, 36
  %v4511 = vpop.permute.xlu0 %4510
  %4512 = vrot.lane.b32.xlu0 %v4452, 36
  %v4513 = vpop.permute.xlu0 %4512
  %4514 = vrot.lane.b32.xlu0 %v4453, 36
  %v4515 = vpop.permute.xlu0 %4514
  %4516 = vrot.lane.b32.xlu0 %v4454, 36
  %v4517 = vpop.permute.xlu0 %4516
  %4518 = vrot.lane.b32.xlu0 %v4455, 36
  %v4519 = vpop.permute.xlu0 %4518
  %v4584 = vunpack.c.l.b16 %v1382
  %v4585 = vunpack.c.l.b16 %v1383
  %v4586 = vunpack.c.l.b16 %v1384
  %v4587 = vunpack.c.l.b16 %v1385
  %v4588 = vunpack.c.l.b16 %v1386
  %v4589 = vunpack.c.l.b16 %v1387
  %v4590 = vunpack.c.l.b16 %v1388
  %v4591 = vunpack.c.l.b16 %v1389
  %v4592 = vunpack.c.l.b16 %v1390
  %v4593 = vunpack.c.l.b16 %v1391
  %v4594 = vunpack.c.l.b16 %v1392
  %v4595 = vunpack.c.l.b16 %v1393
  %v4596 = vunpack.c.l.b16 %v1394
  %v4597 = vunpack.c.l.b16 %v1395
  %v4598 = vunpack.c.l.b16 %v1396
  %v4599 = vunpack.c.l.b16 %v1397
  %v4600 = vunpack.c.l.b16 %v1398
  %v4601 = vunpack.c.l.b16 %v1399
  %v4602 = vunpack.c.l.b16 %v1400
  %v4603 = vunpack.c.l.b16 %v1401
  %v4604 = vunpack.c.l.b16 %v1402
  %v4605 = vunpack.c.l.b16 %v1403
  %v4606 = vunpack.c.l.b16 %v1404
  %v4607 = vunpack.c.l.b16 %v1405
  %v4608 = vunpack.c.l.b16 %v1406
  %v4609 = vunpack.c.l.b16 %v1407
  %v4610 = vunpack.c.l.b16 %v1408
  %v4611 = vunpack.c.l.b16 %v1409
  %v4612 = vunpack.c.l.b16 %v1410
  %v4613 = vunpack.c.l.b16 %v1411
  %v4614 = vunpack.c.l.b16 %v1412
  %v4615 = vunpack.c.l.b16 %v1413
  %v4616 = vunpack.c.l.b16 %v1414
  %v4617 = vunpack.c.l.b16 %v1415
  %v4618 = vunpack.c.l.b16 %v1416
  %v4619 = vunpack.c.l.b16 %v1417
  %v4620 = vunpack.c.l.b16 %v1418
  %v4621 = vunpack.c.l.b16 %v1419
  %v4622 = vunpack.c.l.b16 %v1420
  %v4623 = vunpack.c.l.b16 %v1421
  %v4624 = vunpack.c.l.b16 %v1422
  %v4625 = vunpack.c.l.b16 %v1423
  %v4626 = vunpack.c.l.b16 %v1424
  %v4627 = vunpack.c.l.b16 %v1425
  %v4628 = vunpack.c.l.b16 %v1426
  %v4629 = vunpack.c.l.b16 %v1427
  %v4630 = vunpack.c.l.b16 %v1428
  %v4631 = vunpack.c.l.b16 %v1429
  %v4632 = vunpack.c.l.b16 %v1430
  %v4633 = vunpack.c.l.b16 %v1431
  %v4634 = vunpack.c.l.b16 %v1432
  %v4635 = vunpack.c.l.b16 %v1433
  %v4636 = vunpack.c.l.b16 %v1434
  %v4637 = vunpack.c.l.b16 %v1435
  %v4638 = vunpack.c.l.b16 %v1436
  %v4639 = vunpack.c.l.b16 %v1437
  %v4640 = vunpack.c.l.b16 %v1438
  %v4641 = vunpack.c.l.b16 %v1439
  %v4642 = vunpack.c.l.b16 %v1440
  %v4643 = vunpack.c.l.b16 %v1441
  %v4644 = vunpack.c.l.b16 %v1442
  %v4645 = vunpack.c.l.b16 %v1443
  %v4646 = vunpack.c.l.b16 %v1444
  %v4647 = vunpack.c.l.b16 %v1445
  %v4648 = vpack.c.b16 %v4585, %v4584
  %v4649 = vpack.c.b16 %v4587, %v4586
  %v4650 = vpack.c.b16 %v4589, %v4588
  %v4651 = vpack.c.b16 %v4591, %v4590
  %v4652 = vpack.c.b16 %v4593, %v4592
  %v4653 = vpack.c.b16 %v4595, %v4594
  %v4654 = vpack.c.b16 %v4597, %v4596
  %v4655 = vpack.c.b16 %v4599, %v4598
  %v4656 = vpack.c.b16 %v4601, %v4600
  %v4657 = vpack.c.b16 %v4603, %v4602
  %v4658 = vpack.c.b16 %v4605, %v4604
  %v4659 = vpack.c.b16 %v4607, %v4606
  %v4660 = vpack.c.b16 %v4609, %v4608
  %v4661 = vpack.c.b16 %v4611, %v4610
  %v4662 = vpack.c.b16 %v4613, %v4612
  %v4663 = vpack.c.b16 %v4615, %v4614
  %v4664 = vpack.c.b16 %v4617, %v4616
  %v4665 = vpack.c.b16 %v4619, %v4618
  %v4666 = vpack.c.b16 %v4621, %v4620
  %v4667 = vpack.c.b16 %v4623, %v4622
  %v4668 = vpack.c.b16 %v4625, %v4624
  %v4669 = vpack.c.b16 %v4627, %v4626
  %v4670 = vpack.c.b16 %v4629, %v4628
  %v4671 = vpack.c.b16 %v4631, %v4630
  %v4672 = vpack.c.b16 %v4633, %v4632
  %v4673 = vpack.c.b16 %v4635, %v4634
  %v4674 = vpack.c.b16 %v4637, %v4636
  %v4675 = vpack.c.b16 %v4639, %v4638
  %v4676 = vpack.c.b16 %v4641, %v4640
  %v4677 = vpack.c.b16 %v4643, %v4642
  %v4678 = vpack.c.b16 %v4645, %v4644
  %v4679 = vpack.c.b16 %v4647, %v4646
  %4680 = vrot.lane.b32.xlu0 %v4648, 40
  %v4681 = vpop.permute.xlu0 %4680
  %4682 = vrot.lane.b32.xlu0 %v4649, 40
  %v4683 = vpop.permute.xlu0 %4682
  %4684 = vrot.lane.b32.xlu0 %v4650, 40
  %v4685 = vpop.permute.xlu0 %4684
  %4686 = vrot.lane.b32.xlu0 %v4651, 40
  %v4687 = vpop.permute.xlu0 %4686
  %4688 = vrot.lane.b32.xlu0 %v4652, 40
  %v4689 = vpop.permute.xlu0 %4688
  %4690 = vrot.lane.b32.xlu0 %v4653, 40
  %v4691 = vpop.permute.xlu0 %4690
  %4692 = vrot.lane.b32.xlu0 %v4654, 40
  %v4693 = vpop.permute.xlu0 %4692
  %4694 = vrot.lane.b32.xlu0 %v4655, 40
  %v4695 = vpop.permute.xlu0 %4694
  %4696 = vrot.lane.b32.xlu0 %v4656, 40
  %v4697 = vpop.permute.xlu0 %4696
  %4698 = vrot.lane.b32.xlu0 %v4657, 40
  %v4699 = vpop.permute.xlu0 %4698
  %4700 = vrot.lane.b32.xlu0 %v4658, 40
  %v4701 = vpop.permute.xlu0 %4700
  %4702 = vrot.lane.b32.xlu0 %v4659, 40
  %v4703 = vpop.permute.xlu0 %4702
  %4704 = vrot.lane.b32.xlu0 %v4660, 40
  %v4705 = vpop.permute.xlu0 %4704
  %4706 = vrot.lane.b32.xlu0 %v4661, 40
  %v4707 = vpop.permute.xlu0 %4706
  %4708 = vrot.lane.b32.xlu0 %v4662, 40
  %v4709 = vpop.permute.xlu0 %4708
  %4710 = vrot.lane.b32.xlu0 %v4663, 40
  %v4711 = vpop.permute.xlu0 %4710
  %4712 = vrot.lane.b32.xlu0 %v4664, 40
  %v4713 = vpop.permute.xlu0 %4712
  %4714 = vrot.lane.b32.xlu0 %v4665, 40
  %v4715 = vpop.permute.xlu0 %4714
  %4716 = vrot.lane.b32.xlu0 %v4666, 40
  %v4717 = vpop.permute.xlu0 %4716
  %4718 = vrot.lane.b32.xlu0 %v4667, 40
  %v4719 = vpop.permute.xlu0 %4718
  %4720 = vrot.lane.b32.xlu0 %v4668, 40
  %v4721 = vpop.permute.xlu0 %4720
  %4722 = vrot.lane.b32.xlu0 %v4669, 40
  %v4723 = vpop.permute.xlu0 %4722
  %4724 = vrot.lane.b32.xlu0 %v4670, 40
  %v4725 = vpop.permute.xlu0 %4724
  %4726 = vrot.lane.b32.xlu0 %v4671, 40
  %v4727 = vpop.permute.xlu0 %4726
  %4728 = vrot.lane.b32.xlu0 %v4672, 40
  %v4729 = vpop.permute.xlu0 %4728
  %4730 = vrot.lane.b32.xlu0 %v4673, 40
  %v4731 = vpop.permute.xlu0 %4730
  %4732 = vrot.lane.b32.xlu0 %v4674, 40
  %v4733 = vpop.permute.xlu0 %4732
  %4734 = vrot.lane.b32.xlu0 %v4675, 40
  %v4735 = vpop.permute.xlu0 %4734
  %4736 = vrot.lane.b32.xlu0 %v4676, 40
  %v4737 = vpop.permute.xlu0 %4736
  %4738 = vrot.lane.b32.xlu0 %v4677, 40
  %v4739 = vpop.permute.xlu0 %4738
  %4740 = vrot.lane.b32.xlu0 %v4678, 40
  %v4741 = vpop.permute.xlu0 %4740
  %4742 = vrot.lane.b32.xlu0 %v4679, 40
  %v4743 = vpop.permute.xlu0 %4742
  %v4808 = vunpack.c.l.b16 %v1510
  %v4809 = vunpack.c.l.b16 %v1511
  %v4810 = vunpack.c.l.b16 %v1512
  %v4811 = vunpack.c.l.b16 %v1513
  %v4812 = vunpack.c.l.b16 %v1514
  %v4813 = vunpack.c.l.b16 %v1515
  %v4814 = vunpack.c.l.b16 %v1516
  %v4815 = vunpack.c.l.b16 %v1517
  %v4816 = vunpack.c.l.b16 %v1518
  %v4817 = vunpack.c.l.b16 %v1519
  %v4818 = vunpack.c.l.b16 %v1520
  %v4819 = vunpack.c.l.b16 %v1521
  %v4820 = vunpack.c.l.b16 %v1522
  %v4821 = vunpack.c.l.b16 %v1523
  %v4822 = vunpack.c.l.b16 %v1524
  %v4823 = vunpack.c.l.b16 %v1525
  %v4824 = vunpack.c.l.b16 %v1526
  %v4825 = vunpack.c.l.b16 %v1527
  %v4826 = vunpack.c.l.b16 %v1528
  %v4827 = vunpack.c.l.b16 %v1529
  %v4828 = vunpack.c.l.b16 %v1530
  %v4829 = vunpack.c.l.b16 %v1531
  %v4830 = vunpack.c.l.b16 %v1532
  %v4831 = vunpack.c.l.b16 %v1533
  %v4832 = vunpack.c.l.b16 %v1534
  %v4833 = vunpack.c.l.b16 %v1535
  %v4834 = vunpack.c.l.b16 %v1536
  %v4835 = vunpack.c.l.b16 %v1537
  %v4836 = vunpack.c.l.b16 %v1538
  %v4837 = vunpack.c.l.b16 %v1539
  %v4838 = vunpack.c.l.b16 %v1540
  %v4839 = vunpack.c.l.b16 %v1541
  %v4840 = vunpack.c.l.b16 %v1542
  %v4841 = vunpack.c.l.b16 %v1543
  %v4842 = vunpack.c.l.b16 %v1544
  %v4843 = vunpack.c.l.b16 %v1545
  %v4844 = vunpack.c.l.b16 %v1546
  %v4845 = vunpack.c.l.b16 %v1547
  %v4846 = vunpack.c.l.b16 %v1548
  %v4847 = vunpack.c.l.b16 %v1549
  %v4848 = vunpack.c.l.b16 %v1550
  %v4849 = vunpack.c.l.b16 %v1551
  %v4850 = vunpack.c.l.b16 %v1552
  %v4851 = vunpack.c.l.b16 %v1553
  %v4852 = vunpack.c.l.b16 %v1554
  %v4853 = vunpack.c.l.b16 %v1555
  %v4854 = vunpack.c.l.b16 %v1556
  %v4855 = vunpack.c.l.b16 %v1557
  %v4856 = vunpack.c.l.b16 %v1558
  %v4857 = vunpack.c.l.b16 %v1559
  %v4858 = vunpack.c.l.b16 %v1560
  %v4859 = vunpack.c.l.b16 %v1561
  %v4860 = vunpack.c.l.b16 %v1562
  %v4861 = vunpack.c.l.b16 %v1563
  %v4862 = vunpack.c.l.b16 %v1564
  %v4863 = vunpack.c.l.b16 %v1565
  %v4864 = vunpack.c.l.b16 %v1566
  %v4865 = vunpack.c.l.b16 %v1567
  %v4866 = vunpack.c.l.b16 %v1568
  %v4867 = vunpack.c.l.b16 %v1569
  %v4868 = vunpack.c.l.b16 %v1570
  %v4869 = vunpack.c.l.b16 %v1571
  %v4870 = vunpack.c.l.b16 %v1572
  %v4871 = vunpack.c.l.b16 %v1573
  %v4872 = vpack.c.b16 %v4809, %v4808
  %v4873 = vpack.c.b16 %v4811, %v4810
  %v4874 = vpack.c.b16 %v4813, %v4812
  %v4875 = vpack.c.b16 %v4815, %v4814
  %v4876 = vpack.c.b16 %v4817, %v4816
  %v4877 = vpack.c.b16 %v4819, %v4818
  %v4878 = vpack.c.b16 %v4821, %v4820
  %v4879 = vpack.c.b16 %v4823, %v4822
  %v4880 = vpack.c.b16 %v4825, %v4824
  %v4881 = vpack.c.b16 %v4827, %v4826
  %v4882 = vpack.c.b16 %v4829, %v4828
  %v4883 = vpack.c.b16 %v4831, %v4830
  %v4884 = vpack.c.b16 %v4833, %v4832
  %v4885 = vpack.c.b16 %v4835, %v4834
  %v4886 = vpack.c.b16 %v4837, %v4836
  %v4887 = vpack.c.b16 %v4839, %v4838
  %v4888 = vpack.c.b16 %v4841, %v4840
  %v4889 = vpack.c.b16 %v4843, %v4842
  %v4890 = vpack.c.b16 %v4845, %v4844
  %v4891 = vpack.c.b16 %v4847, %v4846
  %v4892 = vpack.c.b16 %v4849, %v4848
  %v4893 = vpack.c.b16 %v4851, %v4850
  %v4894 = vpack.c.b16 %v4853, %v4852
  %v4895 = vpack.c.b16 %v4855, %v4854
  %v4896 = vpack.c.b16 %v4857, %v4856
  %v4897 = vpack.c.b16 %v4859, %v4858
  %v4898 = vpack.c.b16 %v4861, %v4860
  %v4899 = vpack.c.b16 %v4863, %v4862
  %v4900 = vpack.c.b16 %v4865, %v4864
  %v4901 = vpack.c.b16 %v4867, %v4866
  %v4902 = vpack.c.b16 %v4869, %v4868
  %v4903 = vpack.c.b16 %v4871, %v4870
  %4904 = vrot.lane.b32.xlu0 %v4872, 44
  %v4905 = vpop.permute.xlu0 %4904
  %4906 = vrot.lane.b32.xlu0 %v4873, 44
  %v4907 = vpop.permute.xlu0 %4906
  %4908 = vrot.lane.b32.xlu0 %v4874, 44
  %v4909 = vpop.permute.xlu0 %4908
  %4910 = vrot.lane.b32.xlu0 %v4875, 44
  %v4911 = vpop.permute.xlu0 %4910
  %4912 = vrot.lane.b32.xlu0 %v4876, 44
  %v4913 = vpop.permute.xlu0 %4912
  %4914 = vrot.lane.b32.xlu0 %v4877, 44
  %v4915 = vpop.permute.xlu0 %4914
  %4916 = vrot.lane.b32.xlu0 %v4878, 44
  %v4917 = vpop.permute.xlu0 %4916
  %4918 = vrot.lane.b32.xlu0 %v4879, 44
  %v4919 = vpop.permute.xlu0 %4918
  %4920 = vrot.lane.b32.xlu0 %v4880, 44
  %v4921 = vpop.permute.xlu0 %4920
  %4922 = vrot.lane.b32.xlu0 %v4881, 44
  %v4923 = vpop.permute.xlu0 %4922
  %4924 = vrot.lane.b32.xlu0 %v4882, 44
  %v4925 = vpop.permute.xlu0 %4924
  %4926 = vrot.lane.b32.xlu0 %v4883, 44
  %v4927 = vpop.permute.xlu0 %4926
  %4928 = vrot.lane.b32.xlu0 %v4884, 44
  %v4929 = vpop.permute.xlu0 %4928
  %4930 = vrot.lane.b32.xlu0 %v4885, 44
  %v4931 = vpop.permute.xlu0 %4930
  %4932 = vrot.lane.b32.xlu0 %v4886, 44
  %v4933 = vpop.permute.xlu0 %4932
  %4934 = vrot.lane.b32.xlu0 %v4887, 44
  %v4935 = vpop.permute.xlu0 %4934
  %4936 = vrot.lane.b32.xlu0 %v4888, 44
  %v4937 = vpop.permute.xlu0 %4936
  %4938 = vrot.lane.b32.xlu0 %v4889, 44
  %v4939 = vpop.permute.xlu0 %4938
  %4940 = vrot.lane.b32.xlu0 %v4890, 44
  %v4941 = vpop.permute.xlu0 %4940
  %4942 = vrot.lane.b32.xlu0 %v4891, 44
  %v4943 = vpop.permute.xlu0 %4942
  %4944 = vrot.lane.b32.xlu0 %v4892, 44
  %v4945 = vpop.permute.xlu0 %4944
  %4946 = vrot.lane.b32.xlu0 %v4893, 44
  %v4947 = vpop.permute.xlu0 %4946
  %4948 = vrot.lane.b32.xlu0 %v4894, 44
  %v4949 = vpop.permute.xlu0 %4948
  %4950 = vrot.lane.b32.xlu0 %v4895, 44
  %v4951 = vpop.permute.xlu0 %4950
  %4952 = vrot.lane.b32.xlu0 %v4896, 44
  %v4953 = vpop.permute.xlu0 %4952
  %4954 = vrot.lane.b32.xlu0 %v4897, 44
  %v4955 = vpop.permute.xlu0 %4954
  %4956 = vrot.lane.b32.xlu0 %v4898, 44
  %v4957 = vpop.permute.xlu0 %4956
  %4958 = vrot.lane.b32.xlu0 %v4899, 44
  %v4959 = vpop.permute.xlu0 %4958
  %4960 = vrot.lane.b32.xlu0 %v4900, 44
  %v4961 = vpop.permute.xlu0 %4960
  %4962 = vrot.lane.b32.xlu0 %v4901, 44
  %v4963 = vpop.permute.xlu0 %4962
  %4964 = vrot.lane.b32.xlu0 %v4902, 44
  %v4965 = vpop.permute.xlu0 %4964
  %4966 = vrot.lane.b32.xlu0 %v4903, 44
  %v4967 = vpop.permute.xlu0 %4966
  %v5032 = vunpack.c.l.b16 %v1639
  %v5033 = vunpack.c.l.b16 %v1640
  %v5034 = vunpack.c.l.b16 %v1641
  %v5035 = vunpack.c.l.b16 %v1642
  %v5036 = vunpack.c.l.b16 %v1643
  %v5037 = vunpack.c.l.b16 %v1644
  %v5038 = vunpack.c.l.b16 %v1645
  %v5039 = vunpack.c.l.b16 %v1646
  %v5040 = vunpack.c.l.b16 %v1647
  %v5041 = vunpack.c.l.b16 %v1648
  %v5042 = vunpack.c.l.b16 %v1649
  %v5043 = vunpack.c.l.b16 %v1650
  %v5044 = vunpack.c.l.b16 %v1651
  %v5045 = vunpack.c.l.b16 %v1652
  %v5046 = vunpack.c.l.b16 %v1653
  %v5047 = vunpack.c.l.b16 %v1654
  %v5048 = vunpack.c.l.b16 %v1655
  %v5049 = vunpack.c.l.b16 %v1656
  %v5050 = vunpack.c.l.b16 %v1657
  %v5051 = vunpack.c.l.b16 %v1658
  %v5052 = vunpack.c.l.b16 %v1659
  %v5053 = vunpack.c.l.b16 %v1660
  %v5054 = vunpack.c.l.b16 %v1661
  %v5055 = vunpack.c.l.b16 %v1662
  %v5056 = vunpack.c.l.b16 %v1663
  %v5057 = vunpack.c.l.b16 %v1664
  %v5058 = vunpack.c.l.b16 %v1665
  %v5059 = vunpack.c.l.b16 %v1666
  %v5060 = vunpack.c.l.b16 %v1667
  %v5061 = vunpack.c.l.b16 %v1668
  %v5062 = vunpack.c.l.b16 %v1669
  %v5063 = vunpack.c.l.b16 %v1670
  %v5064 = vunpack.c.l.b16 %v1671
  %v5065 = vunpack.c.l.b16 %v1672
  %v5066 = vunpack.c.l.b16 %v1673
  %v5067 = vunpack.c.l.b16 %v1674
  %v5068 = vunpack.c.l.b16 %v1675
  %v5069 = vunpack.c.l.b16 %v1676
  %v5070 = vunpack.c.l.b16 %v1677
  %v5071 = vunpack.c.l.b16 %v1678
  %v5072 = vunpack.c.l.b16 %v1679
  %v5073 = vunpack.c.l.b16 %v1680
  %v5074 = vunpack.c.l.b16 %v1681
  %v5075 = vunpack.c.l.b16 %v1682
  %v5076 = vunpack.c.l.b16 %v1683
  %v5077 = vunpack.c.l.b16 %v1684
  %v5078 = vunpack.c.l.b16 %v1685
  %v5079 = vunpack.c.l.b16 %v1686
  %v5080 = vunpack.c.l.b16 %v1687
  %v5081 = vunpack.c.l.b16 %v1688
  %v5082 = vunpack.c.l.b16 %v1689
  %v5083 = vunpack.c.l.b16 %v1690
  %v5084 = vunpack.c.l.b16 %v1691
  %v5085 = vunpack.c.l.b16 %v1692
  %v5086 = vunpack.c.l.b16 %v1693
  %v5087 = vunpack.c.l.b16 %v1694
  %v5088 = vunpack.c.l.b16 %v1695
  %v5089 = vunpack.c.l.b16 %v1696
  %v5090 = vunpack.c.l.b16 %v1697
  %v5091 = vunpack.c.l.b16 %v1698
  %v5092 = vunpack.c.l.b16 %v1699
  %v5093 = vunpack.c.l.b16 %v1700
  %v5094 = vunpack.c.l.b16 %v1701
  %v5095 = vunpack.c.l.b16 %v1702
  %v5096 = vpack.c.b16 %v5033, %v5032
  %v5097 = vpack.c.b16 %v5035, %v5034
  %v5098 = vpack.c.b16 %v5037, %v5036
  %v5099 = vpack.c.b16 %v5039, %v5038
  %v5100 = vpack.c.b16 %v5041, %v5040
  %v5101 = vpack.c.b16 %v5043, %v5042
  %v5102 = vpack.c.b16 %v5045, %v5044
  %v5103 = vpack.c.b16 %v5047, %v5046
  %v5104 = vpack.c.b16 %v5049, %v5048
  %v5105 = vpack.c.b16 %v5051, %v5050
  %v5106 = vpack.c.b16 %v5053, %v5052
  %v5107 = vpack.c.b16 %v5055, %v5054
  %v5108 = vpack.c.b16 %v5057, %v5056
  %v5109 = vpack.c.b16 %v5059, %v5058
  %v5110 = vpack.c.b16 %v5061, %v5060
  %v5111 = vpack.c.b16 %v5063, %v5062
  %v5112 = vpack.c.b16 %v5065, %v5064
  %v5113 = vpack.c.b16 %v5067, %v5066
  %v5114 = vpack.c.b16 %v5069, %v5068
  %v5115 = vpack.c.b16 %v5071, %v5070
  %v5116 = vpack.c.b16 %v5073, %v5072
  %v5117 = vpack.c.b16 %v5075, %v5074
  %v5118 = vpack.c.b16 %v5077, %v5076
  %v5119 = vpack.c.b16 %v5079, %v5078
  %v5120 = vpack.c.b16 %v5081, %v5080
  %v5121 = vpack.c.b16 %v5083, %v5082
  %v5122 = vpack.c.b16 %v5085, %v5084
  %v5123 = vpack.c.b16 %v5087, %v5086
  %v5124 = vpack.c.b16 %v5089, %v5088
  %v5125 = vpack.c.b16 %v5091, %v5090
  %v5126 = vpack.c.b16 %v5093, %v5092
  %v5127 = vpack.c.b16 %v5095, %v5094
  %5128 = vrot.lane.b32.xlu0 %v5096, 48
  %v5129 = vpop.permute.xlu0 %5128
  %5130 = vrot.lane.b32.xlu0 %v5097, 48
  %v5131 = vpop.permute.xlu0 %5130
  %5132 = vrot.lane.b32.xlu0 %v5098, 48
  %v5133 = vpop.permute.xlu0 %5132
  %5134 = vrot.lane.b32.xlu0 %v5099, 48
  %v5135 = vpop.permute.xlu0 %5134
  %5136 = vrot.lane.b32.xlu0 %v5100, 48
  %v5137 = vpop.permute.xlu0 %5136
  %5138 = vrot.lane.b32.xlu0 %v5101, 48
  %v5139 = vpop.permute.xlu0 %5138
  %5140 = vrot.lane.b32.xlu0 %v5102, 48
  %v5141 = vpop.permute.xlu0 %5140
  %5142 = vrot.lane.b32.xlu0 %v5103, 48
  %v5143 = vpop.permute.xlu0 %5142
  %5144 = vrot.lane.b32.xlu0 %v5104, 48
  %v5145 = vpop.permute.xlu0 %5144
  %5146 = vrot.lane.b32.xlu0 %v5105, 48
  %v5147 = vpop.permute.xlu0 %5146
  %5148 = vrot.lane.b32.xlu0 %v5106, 48
  %v5149 = vpop.permute.xlu0 %5148
  %5150 = vrot.lane.b32.xlu0 %v5107, 48
  %v5151 = vpop.permute.xlu0 %5150
  %5152 = vrot.lane.b32.xlu0 %v5108, 48
  %v5153 = vpop.permute.xlu0 %5152
  %5154 = vrot.lane.b32.xlu0 %v5109, 48
  %v5155 = vpop.permute.xlu0 %5154
  %5156 = vrot.lane.b32.xlu0 %v5110, 48
  %v5157 = vpop.permute.xlu0 %5156
  %5158 = vrot.lane.b32.xlu0 %v5111, 48
  %v5159 = vpop.permute.xlu0 %5158
  %5160 = vrot.lane.b32.xlu0 %v5112, 48
  %v5161 = vpop.permute.xlu0 %5160
  %5162 = vrot.lane.b32.xlu0 %v5113, 48
  %v5163 = vpop.permute.xlu0 %5162
  %5164 = vrot.lane.b32.xlu0 %v5114, 48
  %v5165 = vpop.permute.xlu0 %5164
  %5166 = vrot.lane.b32.xlu0 %v5115, 48
  %v5167 = vpop.permute.xlu0 %5166
  %5168 = vrot.lane.b32.xlu0 %v5116, 48
  %v5169 = vpop.permute.xlu0 %5168
  %5170 = vrot.lane.b32.xlu0 %v5117, 48
  %v5171 = vpop.permute.xlu0 %5170
  %5172 = vrot.lane.b32.xlu0 %v5118, 48
  %v5173 = vpop.permute.xlu0 %5172
  %5174 = vrot.lane.b32.xlu0 %v5119, 48
  %v5175 = vpop.permute.xlu0 %5174
  %5176 = vrot.lane.b32.xlu0 %v5120, 48
  %v5177 = vpop.permute.xlu0 %5176
  %5178 = vrot.lane.b32.xlu0 %v5121, 48
  %v5179 = vpop.permute.xlu0 %5178
  %5180 = vrot.lane.b32.xlu0 %v5122, 48
  %v5181 = vpop.permute.xlu0 %5180
  %5182 = vrot.lane.b32.xlu0 %v5123, 48
  %v5183 = vpop.permute.xlu0 %5182
  %5184 = vrot.lane.b32.xlu0 %v5124, 48
  %v5185 = vpop.permute.xlu0 %5184
  %5186 = vrot.lane.b32.xlu0 %v5125, 48
  %v5187 = vpop.permute.xlu0 %5186
  %5188 = vrot.lane.b32.xlu0 %v5126, 48
  %v5189 = vpop.permute.xlu0 %5188
  %5190 = vrot.lane.b32.xlu0 %v5127, 48
  %v5191 = vpop.permute.xlu0 %5190
  %v5256 = vunpack.c.l.b16 %v1768
  %v5257 = vunpack.c.l.b16 %v1769
  %v5258 = vunpack.c.l.b16 %v1770
  %v5259 = vunpack.c.l.b16 %v1771
  %v5260 = vunpack.c.l.b16 %v1772
  %v5261 = vunpack.c.l.b16 %v1773
  %v5262 = vunpack.c.l.b16 %v1774
  %v5263 = vunpack.c.l.b16 %v1775
  %v5264 = vunpack.c.l.b16 %v1776
  %v5265 = vunpack.c.l.b16 %v1777
  %v5266 = vunpack.c.l.b16 %v1778
  %v5267 = vunpack.c.l.b16 %v1779
  %v5268 = vunpack.c.l.b16 %v1780
  %v5269 = vunpack.c.l.b16 %v1781
  %v5270 = vunpack.c.l.b16 %v1782
  %v5271 = vunpack.c.l.b16 %v1783
  %v5272 = vunpack.c.l.b16 %v1784
  %v5273 = vunpack.c.l.b16 %v1785
  %v5274 = vunpack.c.l.b16 %v1786
  %v5275 = vunpack.c.l.b16 %v1787
  %v5276 = vunpack.c.l.b16 %v1788
  %v5277 = vunpack.c.l.b16 %v1789
  %v5278 = vunpack.c.l.b16 %v1790
  %v5279 = vunpack.c.l.b16 %v1791
  %v5280 = vunpack.c.l.b16 %v1792
  %v5281 = vunpack.c.l.b16 %v1793
  %v5282 = vunpack.c.l.b16 %v1794
  %v5283 = vunpack.c.l.b16 %v1795
  %v5284 = vunpack.c.l.b16 %v1796
  %v5285 = vunpack.c.l.b16 %v1797
  %v5286 = vunpack.c.l.b16 %v1798
  %v5287 = vunpack.c.l.b16 %v1799
  %v5288 = vunpack.c.l.b16 %v1800
  %v5289 = vunpack.c.l.b16 %v1801
  %v5290 = vunpack.c.l.b16 %v1802
  %v5291 = vunpack.c.l.b16 %v1803
  %v5292 = vunpack.c.l.b16 %v1804
  %v5293 = vunpack.c.l.b16 %v1805
  %v5294 = vunpack.c.l.b16 %v1806
  %v5295 = vunpack.c.l.b16 %v1807
  %v5296 = vunpack.c.l.b16 %v1808
  %v5297 = vunpack.c.l.b16 %v1809
  %v5298 = vunpack.c.l.b16 %v1810
  %v5299 = vunpack.c.l.b16 %v1811
  %v5300 = vunpack.c.l.b16 %v1812
  %v5301 = vunpack.c.l.b16 %v1813
  %v5302 = vunpack.c.l.b16 %v1814
  %v5303 = vunpack.c.l.b16 %v1815
  %v5304 = vunpack.c.l.b16 %v1816
  %v5305 = vunpack.c.l.b16 %v1817
  %v5306 = vunpack.c.l.b16 %v1818
  %v5307 = vunpack.c.l.b16 %v1819
  %v5308 = vunpack.c.l.b16 %v1820
  %v5309 = vunpack.c.l.b16 %v1821
  %v5310 = vunpack.c.l.b16 %v1822
  %v5311 = vunpack.c.l.b16 %v1823
  %v5312 = vunpack.c.l.b16 %v1824
  %v5313 = vunpack.c.l.b16 %v1825
  %v5314 = vunpack.c.l.b16 %v1826
  %v5315 = vunpack.c.l.b16 %v1827
  %v5316 = vunpack.c.l.b16 %v1828
  %v5317 = vunpack.c.l.b16 %v1829
  %v5318 = vunpack.c.l.b16 %v1830
  %v5319 = vunpack.c.l.b16 %v1831
  %v5320 = vpack.c.b16 %v5257, %v5256
  %v5321 = vpack.c.b16 %v5259, %v5258
  %v5322 = vpack.c.b16 %v5261, %v5260
  %v5323 = vpack.c.b16 %v5263, %v5262
  %v5324 = vpack.c.b16 %v5265, %v5264
  %v5325 = vpack.c.b16 %v5267, %v5266
  %v5326 = vpack.c.b16 %v5269, %v5268
  %v5327 = vpack.c.b16 %v5271, %v5270
  %v5328 = vpack.c.b16 %v5273, %v5272
  %v5329 = vpack.c.b16 %v5275, %v5274
  %v5330 = vpack.c.b16 %v5277, %v5276
  %v5331 = vpack.c.b16 %v5279, %v5278
  %v5332 = vpack.c.b16 %v5281, %v5280
  %v5333 = vpack.c.b16 %v5283, %v5282
  %v5334 = vpack.c.b16 %v5285, %v5284
  %v5335 = vpack.c.b16 %v5287, %v5286
  %v5336 = vpack.c.b16 %v5289, %v5288
  %v5337 = vpack.c.b16 %v5291, %v5290
  %v5338 = vpack.c.b16 %v5293, %v5292
  %v5339 = vpack.c.b16 %v5295, %v5294
  %v5340 = vpack.c.b16 %v5297, %v5296
  %v5341 = vpack.c.b16 %v5299, %v5298
  %v5342 = vpack.c.b16 %v5301, %v5300
  %v5343 = vpack.c.b16 %v5303, %v5302
  %v5344 = vpack.c.b16 %v5305, %v5304
  %v5345 = vpack.c.b16 %v5307, %v5306
  %v5346 = vpack.c.b16 %v5309, %v5308
  %v5347 = vpack.c.b16 %v5311, %v5310
  %v5348 = vpack.c.b16 %v5313, %v5312
  %v5349 = vpack.c.b16 %v5315, %v5314
  %v5350 = vpack.c.b16 %v5317, %v5316
  %v5351 = vpack.c.b16 %v5319, %v5318
  %5352 = vrot.lane.b32.xlu0 %v5320, 52
  %v5353 = vpop.permute.xlu0 %5352
  %5354 = vrot.lane.b32.xlu0 %v5321, 52
  %v5355 = vpop.permute.xlu0 %5354
  %5356 = vrot.lane.b32.xlu0 %v5322, 52
  %v5357 = vpop.permute.xlu0 %5356
  %5358 = vrot.lane.b32.xlu0 %v5323, 52
  %v5359 = vpop.permute.xlu0 %5358
  %5360 = vrot.lane.b32.xlu0 %v5324, 52
  %v5361 = vpop.permute.xlu0 %5360
  %5362 = vrot.lane.b32.xlu0 %v5325, 52
  %v5363 = vpop.permute.xlu0 %5362
  %5364 = vrot.lane.b32.xlu0 %v5326, 52
  %v5365 = vpop.permute.xlu0 %5364
  %5366 = vrot.lane.b32.xlu0 %v5327, 52
  %v5367 = vpop.permute.xlu0 %5366
  %5368 = vrot.lane.b32.xlu0 %v5328, 52
  %v5369 = vpop.permute.xlu0 %5368
  %5370 = vrot.lane.b32.xlu0 %v5329, 52
  %v5371 = vpop.permute.xlu0 %5370
  %5372 = vrot.lane.b32.xlu0 %v5330, 52
  %v5373 = vpop.permute.xlu0 %5372
  %5374 = vrot.lane.b32.xlu0 %v5331, 52
  %v5375 = vpop.permute.xlu0 %5374
  %5376 = vrot.lane.b32.xlu0 %v5332, 52
  %v5377 = vpop.permute.xlu0 %5376
  %5378 = vrot.lane.b32.xlu0 %v5333, 52
  %v5379 = vpop.permute.xlu0 %5378
  %5380 = vrot.lane.b32.xlu0 %v5334, 52
  %v5381 = vpop.permute.xlu0 %5380
  %5382 = vrot.lane.b32.xlu0 %v5335, 52
  %v5383 = vpop.permute.xlu0 %5382
  %5384 = vrot.lane.b32.xlu0 %v5336, 52
  %v5385 = vpop.permute.xlu0 %5384
  %5386 = vrot.lane.b32.xlu0 %v5337, 52
  %v5387 = vpop.permute.xlu0 %5386
  %5388 = vrot.lane.b32.xlu0 %v5338, 52
  %v5389 = vpop.permute.xlu0 %5388
  %5390 = vrot.lane.b32.xlu0 %v5339, 52
  %v5391 = vpop.permute.xlu0 %5390
  %5392 = vrot.lane.b32.xlu0 %v5340, 52
  %v5393 = vpop.permute.xlu0 %5392
  %5394 = vrot.lane.b32.xlu0 %v5341, 52
  %v5395 = vpop.permute.xlu0 %5394
  %5396 = vrot.lane.b32.xlu0 %v5342, 52
  %v5397 = vpop.permute.xlu0 %5396
  %5398 = vrot.lane.b32.xlu0 %v5343, 52
  %v5399 = vpop.permute.xlu0 %5398
  %5400 = vrot.lane.b32.xlu0 %v5344, 52
  %v5401 = vpop.permute.xlu0 %5400
  %5402 = vrot.lane.b32.xlu0 %v5345, 52
  %v5403 = vpop.permute.xlu0 %5402
  %5404 = vrot.lane.b32.xlu0 %v5346, 52
  %v5405 = vpop.permute.xlu0 %5404
  %5406 = vrot.lane.b32.xlu0 %v5347, 52
  %v5407 = vpop.permute.xlu0 %5406
  %5408 = vrot.lane.b32.xlu0 %v5348, 52
  %v5409 = vpop.permute.xlu0 %5408
  %5410 = vrot.lane.b32.xlu0 %v5349, 52
  %v5411 = vpop.permute.xlu0 %5410
  %5412 = vrot.lane.b32.xlu0 %v5350, 52
  %v5413 = vpop.permute.xlu0 %5412
  %5414 = vrot.lane.b32.xlu0 %v5351, 52
  %v5415 = vpop.permute.xlu0 %5414
  %v5480 = vunpack.c.l.b16 %v1896
  %v5481 = vunpack.c.l.b16 %v1897
  %v5482 = vunpack.c.l.b16 %v1898
  %v5483 = vunpack.c.l.b16 %v1899
  %v5484 = vunpack.c.l.b16 %v1900
  %v5485 = vunpack.c.l.b16 %v1901
  %v5486 = vunpack.c.l.b16 %v1902
  %v5487 = vunpack.c.l.b16 %v1903
  %v5488 = vunpack.c.l.b16 %v1904
  %v5489 = vunpack.c.l.b16 %v1905
  %v5490 = vunpack.c.l.b16 %v1906
  %v5491 = vunpack.c.l.b16 %v1907
  %v5492 = vunpack.c.l.b16 %v1908
  %v5493 = vunpack.c.l.b16 %v1909
  %v5494 = vunpack.c.l.b16 %v1910
  %v5495 = vunpack.c.l.b16 %v1911
  %v5496 = vunpack.c.l.b16 %v1912
  %v5497 = vunpack.c.l.b16 %v1913
  %v5498 = vunpack.c.l.b16 %v1914
  %v5499 = vunpack.c.l.b16 %v1915
  %v5500 = vunpack.c.l.b16 %v1916
  %v5501 = vunpack.c.l.b16 %v1917
  %v5502 = vunpack.c.l.b16 %v1918
  %v5503 = vunpack.c.l.b16 %v1919
  %v5504 = vunpack.c.l.b16 %v1920
  %v5505 = vunpack.c.l.b16 %v1921
  %v5506 = vunpack.c.l.b16 %v1922
  %v5507 = vunpack.c.l.b16 %v1923
  %v5508 = vunpack.c.l.b16 %v1924
  %v5509 = vunpack.c.l.b16 %v1925
  %v5510 = vunpack.c.l.b16 %v1926
  %v5511 = vunpack.c.l.b16 %v1927
  %v5512 = vunpack.c.l.b16 %v1928
  %v5513 = vunpack.c.l.b16 %v1929
  %v5514 = vunpack.c.l.b16 %v1930
  %v5515 = vunpack.c.l.b16 %v1931
  %v5516 = vunpack.c.l.b16 %v1932
  %v5517 = vunpack.c.l.b16 %v1933
  %v5518 = vunpack.c.l.b16 %v1934
  %v5519 = vunpack.c.l.b16 %v1935
  %v5520 = vunpack.c.l.b16 %v1936
  %v5521 = vunpack.c.l.b16 %v1937
  %v5522 = vunpack.c.l.b16 %v1938
  %v5523 = vunpack.c.l.b16 %v1939
  %v5524 = vunpack.c.l.b16 %v1940
  %v5525 = vunpack.c.l.b16 %v1941
  %v5526 = vunpack.c.l.b16 %v1942
  %v5527 = vunpack.c.l.b16 %v1943
  %v5528 = vunpack.c.l.b16 %v1944
  %v5529 = vunpack.c.l.b16 %v1945
  %v5530 = vunpack.c.l.b16 %v1946
  %v5531 = vunpack.c.l.b16 %v1947
  %v5532 = vunpack.c.l.b16 %v1948
  %v5533 = vunpack.c.l.b16 %v1949
  %v5534 = vunpack.c.l.b16 %v1950
  %v5535 = vunpack.c.l.b16 %v1951
  %v5536 = vunpack.c.l.b16 %v1952
  %v5537 = vunpack.c.l.b16 %v1953
  %v5538 = vunpack.c.l.b16 %v1954
  %v5539 = vunpack.c.l.b16 %v1955
  %v5540 = vunpack.c.l.b16 %v1956
  %v5541 = vunpack.c.l.b16 %v1957
  %v5542 = vunpack.c.l.b16 %v1958
  %v5543 = vunpack.c.l.b16 %v1959
  %v5544 = vpack.c.b16 %v5481, %v5480
  %v5545 = vpack.c.b16 %v5483, %v5482
  %v5546 = vpack.c.b16 %v5485, %v5484
  %v5547 = vpack.c.b16 %v5487, %v5486
  %v5548 = vpack.c.b16 %v5489, %v5488
  %v5549 = vpack.c.b16 %v5491, %v5490
  %v5550 = vpack.c.b16 %v5493, %v5492
  %v5551 = vpack.c.b16 %v5495, %v5494
  %v5552 = vpack.c.b16 %v5497, %v5496
  %v5553 = vpack.c.b16 %v5499, %v5498
  %v5554 = vpack.c.b16 %v5501, %v5500
  %v5555 = vpack.c.b16 %v5503, %v5502
  %v5556 = vpack.c.b16 %v5505, %v5504
  %v5557 = vpack.c.b16 %v5507, %v5506
  %v5558 = vpack.c.b16 %v5509, %v5508
  %v5559 = vpack.c.b16 %v5511, %v5510
  %v5560 = vpack.c.b16 %v5513, %v5512
  %v5561 = vpack.c.b16 %v5515, %v5514
  %v5562 = vpack.c.b16 %v5517, %v5516
  %v5563 = vpack.c.b16 %v5519, %v5518
  %v5564 = vpack.c.b16 %v5521, %v5520
  %v5565 = vpack.c.b16 %v5523, %v5522
  %v5566 = vpack.c.b16 %v5525, %v5524
  %v5567 = vpack.c.b16 %v5527, %v5526
  %v5568 = vpack.c.b16 %v5529, %v5528
  %v5569 = vpack.c.b16 %v5531, %v5530
  %v5570 = vpack.c.b16 %v5533, %v5532
  %v5571 = vpack.c.b16 %v5535, %v5534
  %v5572 = vpack.c.b16 %v5537, %v5536
  %v5573 = vpack.c.b16 %v5539, %v5538
  %v5574 = vpack.c.b16 %v5541, %v5540
  %v5575 = vpack.c.b16 %v5543, %v5542
  %5576 = vrot.lane.b32.xlu0 %v5544, 56
  %v5577 = vpop.permute.xlu0 %5576
  %5578 = vrot.lane.b32.xlu0 %v5545, 56
  %v5579 = vpop.permute.xlu0 %5578
  %5580 = vrot.lane.b32.xlu0 %v5546, 56
  %v5581 = vpop.permute.xlu0 %5580
  %5582 = vrot.lane.b32.xlu0 %v5547, 56
  %v5583 = vpop.permute.xlu0 %5582
  %5584 = vrot.lane.b32.xlu0 %v5548, 56
  %v5585 = vpop.permute.xlu0 %5584
  %5586 = vrot.lane.b32.xlu0 %v5549, 56
  %v5587 = vpop.permute.xlu0 %5586
  %5588 = vrot.lane.b32.xlu0 %v5550, 56
  %v5589 = vpop.permute.xlu0 %5588
  %5590 = vrot.lane.b32.xlu0 %v5551, 56
  %v5591 = vpop.permute.xlu0 %5590
  %5592 = vrot.lane.b32.xlu0 %v5552, 56
  %v5593 = vpop.permute.xlu0 %5592
  %5594 = vrot.lane.b32.xlu0 %v5553, 56
  %v5595 = vpop.permute.xlu0 %5594
  %5596 = vrot.lane.b32.xlu0 %v5554, 56
  %v5597 = vpop.permute.xlu0 %5596
  %5598 = vrot.lane.b32.xlu0 %v5555, 56
  %v5599 = vpop.permute.xlu0 %5598
  %5600 = vrot.lane.b32.xlu0 %v5556, 56
  %v5601 = vpop.permute.xlu0 %5600
  %5602 = vrot.lane.b32.xlu0 %v5557, 56
  %v5603 = vpop.permute.xlu0 %5602
  %5604 = vrot.lane.b32.xlu0 %v5558, 56
  %v5605 = vpop.permute.xlu0 %5604
  %5606 = vrot.lane.b32.xlu0 %v5559, 56
  %v5607 = vpop.permute.xlu0 %5606
  %5608 = vrot.lane.b32.xlu0 %v5560, 56
  %v5609 = vpop.permute.xlu0 %5608
  %5610 = vrot.lane.b32.xlu0 %v5561, 56
  %v5611 = vpop.permute.xlu0 %5610
  %5612 = vrot.lane.b32.xlu0 %v5562, 56
  %v5613 = vpop.permute.xlu0 %5612
  %5614 = vrot.lane.b32.xlu0 %v5563, 56
  %v5615 = vpop.permute.xlu0 %5614
  %5616 = vrot.lane.b32.xlu0 %v5564, 56
  %v5617 = vpop.permute.xlu0 %5616
  %5618 = vrot.lane.b32.xlu0 %v5565, 56
  %v5619 = vpop.permute.xlu0 %5618
  %5620 = vrot.lane.b32.xlu0 %v5566, 56
  %v5621 = vpop.permute.xlu0 %5620
  %5622 = vrot.lane.b32.xlu0 %v5567, 56
  %v5623 = vpop.permute.xlu0 %5622
  %5624 = vrot.lane.b32.xlu0 %v5568, 56
  %v5625 = vpop.permute.xlu0 %5624
  %5626 = vrot.lane.b32.xlu0 %v5569, 56
  %v5627 = vpop.permute.xlu0 %5626
  %5628 = vrot.lane.b32.xlu0 %v5570, 56
  %v5629 = vpop.permute.xlu0 %5628
  %5630 = vrot.lane.b32.xlu0 %v5571, 56
  %v5631 = vpop.permute.xlu0 %5630
  %5632 = vrot.lane.b32.xlu0 %v5572, 56
  %v5633 = vpop.permute.xlu0 %5632
  %5634 = vrot.lane.b32.xlu0 %v5573, 56
  %v5635 = vpop.permute.xlu0 %5634
  %5636 = vrot.lane.b32.xlu0 %v5574, 56
  %v5637 = vpop.permute.xlu0 %5636
  %5638 = vrot.lane.b32.xlu0 %v5575, 56
  %v5639 = vpop.permute.xlu0 %5638
  %v5704 = vunpack.c.l.b16 %v2024
  %v5705 = vunpack.c.l.b16 %v2025
  %v5706 = vunpack.c.l.b16 %v2026
  %v5707 = vunpack.c.l.b16 %v2027
  %v5708 = vunpack.c.l.b16 %v2028
  %v5709 = vunpack.c.l.b16 %v2029
  %v5710 = vunpack.c.l.b16 %v2030
  %v5711 = vunpack.c.l.b16 %v2031
  %v5712 = vunpack.c.l.b16 %v2032
  %v5713 = vunpack.c.l.b16 %v2033
  %v5714 = vunpack.c.l.b16 %v2034
  %v5715 = vunpack.c.l.b16 %v2035
  %v5716 = vunpack.c.l.b16 %v2036
  %v5717 = vunpack.c.l.b16 %v2037
  %v5718 = vunpack.c.l.b16 %v2038
  %v5719 = vunpack.c.l.b16 %v2039
  %v5720 = vunpack.c.l.b16 %v2040
  %v5721 = vunpack.c.l.b16 %v2041
  %v5722 = vunpack.c.l.b16 %v2042
  %v5723 = vunpack.c.l.b16 %v2043
  %v5724 = vunpack.c.l.b16 %v2044
  %v5725 = vunpack.c.l.b16 %v2045
  %v5726 = vunpack.c.l.b16 %v2046
  %v5727 = vunpack.c.l.b16 %v2047
  %v5728 = vunpack.c.l.b16 %v2048
  %v5729 = vunpack.c.l.b16 %v2049
  %v5730 = vunpack.c.l.b16 %v2050
  %v5731 = vunpack.c.l.b16 %v2051
  %v5732 = vunpack.c.l.b16 %v2052
  %v5733 = vunpack.c.l.b16 %v2053
  %v5734 = vunpack.c.l.b16 %v2054
  %v5735 = vunpack.c.l.b16 %v2055
  %v5736 = vunpack.c.l.b16 %v2056
  %v5737 = vunpack.c.l.b16 %v2057
  %v5738 = vunpack.c.l.b16 %v2058
  %v5739 = vunpack.c.l.b16 %v2059
  %v5740 = vunpack.c.l.b16 %v2060
  %v5741 = vunpack.c.l.b16 %v2061
  %v5742 = vunpack.c.l.b16 %v2062
  %v5743 = vunpack.c.l.b16 %v2063
  %v5744 = vunpack.c.l.b16 %v2064
  %v5745 = vunpack.c.l.b16 %v2065
  %v5746 = vunpack.c.l.b16 %v2066
  %v5747 = vunpack.c.l.b16 %v2067
  %v5748 = vunpack.c.l.b16 %v2068
  %v5749 = vunpack.c.l.b16 %v2069
  %v5750 = vunpack.c.l.b16 %v2070
  %v5751 = vunpack.c.l.b16 %v2071
  %v5752 = vunpack.c.l.b16 %v2072
  %v5753 = vunpack.c.l.b16 %v2073
  %v5754 = vunpack.c.l.b16 %v2074
  %v5755 = vunpack.c.l.b16 %v2075
  %v5756 = vunpack.c.l.b16 %v2076
  %v5757 = vunpack.c.l.b16 %v2077
  %v5758 = vunpack.c.l.b16 %v2078
  %v5759 = vunpack.c.l.b16 %v2079
  %v5760 = vunpack.c.l.b16 %v2080
  %v5761 = vunpack.c.l.b16 %v2081
  %v5762 = vunpack.c.l.b16 %v2082
  %v5763 = vunpack.c.l.b16 %v2083
  %v5764 = vunpack.c.l.b16 %v2084
  %v5765 = vunpack.c.l.b16 %v2085
  %v5766 = vunpack.c.l.b16 %v2086
  %v5767 = vunpack.c.l.b16 %v2087
  %v5768 = vpack.c.b16 %v5705, %v5704
  %v5769 = vpack.c.b16 %v5707, %v5706
  %v5770 = vpack.c.b16 %v5709, %v5708
  %v5771 = vpack.c.b16 %v5711, %v5710
  %v5772 = vpack.c.b16 %v5713, %v5712
  %v5773 = vpack.c.b16 %v5715, %v5714
  %v5774 = vpack.c.b16 %v5717, %v5716
  %v5775 = vpack.c.b16 %v5719, %v5718
  %v5776 = vpack.c.b16 %v5721, %v5720
  %v5777 = vpack.c.b16 %v5723, %v5722
  %v5778 = vpack.c.b16 %v5725, %v5724
  %v5779 = vpack.c.b16 %v5727, %v5726
  %v5780 = vpack.c.b16 %v5729, %v5728
  %v5781 = vpack.c.b16 %v5731, %v5730
  %v5782 = vpack.c.b16 %v5733, %v5732
  %v5783 = vpack.c.b16 %v5735, %v5734
  %v5784 = vpack.c.b16 %v5737, %v5736
  %v5785 = vpack.c.b16 %v5739, %v5738
  %v5786 = vpack.c.b16 %v5741, %v5740
  %v5787 = vpack.c.b16 %v5743, %v5742
  %v5788 = vpack.c.b16 %v5745, %v5744
  %v5789 = vpack.c.b16 %v5747, %v5746
  %v5790 = vpack.c.b16 %v5749, %v5748
  %v5791 = vpack.c.b16 %v5751, %v5750
  %v5792 = vpack.c.b16 %v5753, %v5752
  %v5793 = vpack.c.b16 %v5755, %v5754
  %v5794 = vpack.c.b16 %v5757, %v5756
  %v5795 = vpack.c.b16 %v5759, %v5758
  %v5796 = vpack.c.b16 %v5761, %v5760
  %v5797 = vpack.c.b16 %v5763, %v5762
  %v5798 = vpack.c.b16 %v5765, %v5764
  %v5799 = vpack.c.b16 %v5767, %v5766
  %5800 = vrot.lane.b32.xlu0 %v5768, 60
  %v5801 = vpop.permute.xlu0 %5800
  %5802 = vrot.lane.b32.xlu0 %v5769, 60
  %v5803 = vpop.permute.xlu0 %5802
  %5804 = vrot.lane.b32.xlu0 %v5770, 60
  %v5805 = vpop.permute.xlu0 %5804
  %5806 = vrot.lane.b32.xlu0 %v5771, 60
  %v5807 = vpop.permute.xlu0 %5806
  %5808 = vrot.lane.b32.xlu0 %v5772, 60
  %v5809 = vpop.permute.xlu0 %5808
  %5810 = vrot.lane.b32.xlu0 %v5773, 60
  %v5811 = vpop.permute.xlu0 %5810
  %5812 = vrot.lane.b32.xlu0 %v5774, 60
  %v5813 = vpop.permute.xlu0 %5812
  %5814 = vrot.lane.b32.xlu0 %v5775, 60
  %v5815 = vpop.permute.xlu0 %5814
  %5816 = vrot.lane.b32.xlu0 %v5776, 60
  %v5817 = vpop.permute.xlu0 %5816
  %5818 = vrot.lane.b32.xlu0 %v5777, 60
  %v5819 = vpop.permute.xlu0 %5818
  %5820 = vrot.lane.b32.xlu0 %v5778, 60
  %v5821 = vpop.permute.xlu0 %5820
  %5822 = vrot.lane.b32.xlu0 %v5779, 60
  %v5823 = vpop.permute.xlu0 %5822
  %5824 = vrot.lane.b32.xlu0 %v5780, 60
  %v5825 = vpop.permute.xlu0 %5824
  %5826 = vrot.lane.b32.xlu0 %v5781, 60
  %v5827 = vpop.permute.xlu0 %5826
  %5828 = vrot.lane.b32.xlu0 %v5782, 60
  %v5829 = vpop.permute.xlu0 %5828
  %5830 = vrot.lane.b32.xlu0 %v5783, 60
  %v5831 = vpop.permute.xlu0 %5830
  %5832 = vrot.lane.b32.xlu0 %v5784, 60
  %v5833 = vpop.permute.xlu0 %5832
  %5834 = vrot.lane.b32.xlu0 %v5785, 60
  %v5835 = vpop.permute.xlu0 %5834
  %5836 = vrot.lane.b32.xlu0 %v5786, 60
  %v5837 = vpop.permute.xlu0 %5836
  %5838 = vrot.lane.b32.xlu0 %v5787, 60
  %v5839 = vpop.permute.xlu0 %5838
  %5840 = vrot.lane.b32.xlu0 %v5788, 60
  %v5841 = vpop.permute.xlu0 %5840
  %5842 = vrot.lane.b32.xlu0 %v5789, 60
  %v5843 = vpop.permute.xlu0 %5842
  %5844 = vrot.lane.b32.xlu0 %v5790, 60
  %v5845 = vpop.permute.xlu0 %5844
  %5846 = vrot.lane.b32.xlu0 %v5791, 60
  %v5847 = vpop.permute.xlu0 %5846
  %5848 = vrot.lane.b32.xlu0 %v5792, 60
  %v5849 = vpop.permute.xlu0 %5848
  %5850 = vrot.lane.b32.xlu0 %v5793, 60
  %v5851 = vpop.permute.xlu0 %5850
  %5852 = vrot.lane.b32.xlu0 %v5794, 60
  %v5853 = vpop.permute.xlu0 %5852
  %5854 = vrot.lane.b32.xlu0 %v5795, 60
  %v5855 = vpop.permute.xlu0 %5854
  %5856 = vrot.lane.b32.xlu0 %v5796, 60
  %v5857 = vpop.permute.xlu0 %5856
  %5858 = vrot.lane.b32.xlu0 %v5797, 60
  %v5859 = vpop.permute.xlu0 %5858
  %5860 = vrot.lane.b32.xlu0 %v5798, 60
  %v5861 = vpop.permute.xlu0 %5860
  %5862 = vrot.lane.b32.xlu0 %v5799, 60
  %v5863 = vpop.permute.xlu0 %5862
  %vm5864 = vcmask 31744
  %v5867 = vsel %vm5864, %v2472, %v2665
  %v5870 = vsel %vm5864, %v2473, %v2667
  %v5873 = vsel %vm5864, %v2474, %v2669
  %v5876 = vsel %vm5864, %v2475, %v2671
  %v5879 = vsel %vm5864, %v2476, %v2673
  %v5882 = vsel %vm5864, %v2477, %v2675
  %v5885 = vsel %vm5864, %v2478, %v2677
  %v5888 = vsel %vm5864, %v2479, %v2679
  %v5891 = vsel %vm5864, %v2480, %v2681
  %v5894 = vsel %vm5864, %v2481, %v2683
  %v5897 = vsel %vm5864, %v2482, %v2685
  %v5900 = vsel %vm5864, %v2483, %v2687
  %v5903 = vsel %vm5864, %v2484, %v2689
  %v5906 = vsel %vm5864, %v2485, %v2691
  %v5909 = vsel %vm5864, %v2486, %v2693
  %v5912 = vsel %vm5864, %v2487, %v2695
  %v5915 = vsel %vm5864, %v2488, %v2697
  %v5918 = vsel %vm5864, %v2489, %v2699
  %v5921 = vsel %vm5864, %v2490, %v2701
  %v5924 = vsel %vm5864, %v2491, %v2703
  %v5927 = vsel %vm5864, %v2492, %v2705
  %v5930 = vsel %vm5864, %v2493, %v2707
  %v5933 = vsel %vm5864, %v2494, %v2709
  %v5936 = vsel %vm5864, %v2495, %v2711
  %v5939 = vsel %vm5864, %v2496, %v2713
  %v5942 = vsel %vm5864, %v2497, %v2715
  %v5945 = vsel %vm5864, %v2498, %v2717
  %v5948 = vsel %vm5864, %v2499, %v2719
  %v5951 = vsel %vm5864, %v2500, %v2721
  %v5954 = vsel %vm5864, %v2501, %v2723
  %v5957 = vsel %vm5864, %v2502, %v2725
  %v5960 = vsel %vm5864, %v2503, %v2727
  %vm5961 = vcmask 64512
  %v5963 = vsel %vm5961, %v5867, %v2889
  %v5965 = vsel %vm5961, %v5870, %v2891
  %v5967 = vsel %vm5961, %v5873, %v2893
  %v5969 = vsel %vm5961, %v5876, %v2895
  %v5971 = vsel %vm5961, %v5879, %v2897
  %v5973 = vsel %vm5961, %v5882, %v2899
  %v5975 = vsel %vm5961, %v5885, %v2901
  %v5977 = vsel %vm5961, %v5888, %v2903
  %v5979 = vsel %vm5961, %v5891, %v2905
  %v5981 = vsel %vm5961, %v5894, %v2907
  %v5983 = vsel %vm5961, %v5897, %v2909
  %v5985 = vsel %vm5961, %v5900, %v2911
  %v5987 = vsel %vm5961, %v5903, %v2913
  %v5989 = vsel %vm5961, %v5906, %v2915
  %v5991 = vsel %vm5961, %v5909, %v2917
  %v5993 = vsel %vm5961, %v5912, %v2919
  %v5995 = vsel %vm5961, %v5915, %v2921
  %v5997 = vsel %vm5961, %v5918, %v2923
  %v5999 = vsel %vm5961, %v5921, %v2925
  %v6001 = vsel %vm5961, %v5924, %v2927
  %v6003 = vsel %vm5961, %v5927, %v2929
  %v6005 = vsel %vm5961, %v5930, %v2931
  %v6007 = vsel %vm5961, %v5933, %v2933
  %v6009 = vsel %vm5961, %v5936, %v2935
  %v6011 = vsel %vm5961, %v5939, %v2937
  %v6013 = vsel %vm5961, %v5942, %v2939
  %v6015 = vsel %vm5961, %v5945, %v2941
  %v6017 = vsel %vm5961, %v5948, %v2943
  %v6019 = vsel %vm5961, %v5951, %v2945
  %v6021 = vsel %vm5961, %v5954, %v2947
  %v6023 = vsel %vm5961, %v5957, %v2949
  %v6025 = vsel %vm5961, %v5960, %v2951
  %vm6026 = vcmask 97280
  %v6028 = vsel %vm6026, %v5963, %v3113
  %v6030 = vsel %vm6026, %v5965, %v3115
  %v6032 = vsel %vm6026, %v5967, %v3117
  %v6034 = vsel %vm6026, %v5969, %v3119
  %v6036 = vsel %vm6026, %v5971, %v3121
  %v6038 = vsel %vm6026, %v5973, %v3123
  %v6040 = vsel %vm6026, %v5975, %v3125
  %v6042 = vsel %vm6026, %v5977, %v3127
  %v6044 = vsel %vm6026, %v5979, %v3129
  %v6046 = vsel %vm6026, %v5981, %v3131
  %v6048 = vsel %vm6026, %v5983, %v3133
  %v6050 = vsel %vm6026, %v5985, %v3135
  %v6052 = vsel %vm6026, %v5987, %v3137
  %v6054 = vsel %vm6026, %v5989, %v3139
  %v6056 = vsel %vm6026, %v5991, %v3141
  %v6058 = vsel %vm6026, %v5993, %v3143
  %v6060 = vsel %vm6026, %v5995, %v3145
  %v6062 = vsel %vm6026, %v5997, %v3147
  %v6064 = vsel %vm6026, %v5999, %v3149
  %v6066 = vsel %vm6026, %v6001, %v3151
  %v6068 = vsel %vm6026, %v6003, %v3153
  %v6070 = vsel %vm6026, %v6005, %v3155
  %v6072 = vsel %vm6026, %v6007, %v3157
  %v6074 = vsel %vm6026, %v6009, %v3159
  %v6076 = vsel %vm6026, %v6011, %v3161
  %v6078 = vsel %vm6026, %v6013, %v3163
  %v6080 = vsel %vm6026, %v6015, %v3165
  %v6082 = vsel %vm6026, %v6017, %v3167
  %v6084 = vsel %vm6026, %v6019, %v3169
  %v6086 = vsel %vm6026, %v6021, %v3171
  %v6088 = vsel %vm6026, %v6023, %v3173
  %v6090 = vsel %vm6026, %v6025, %v3175
  %vm6091 = vcmask 130048
  %v6093 = vsel %vm6091, %v6028, %v3337
  %v6095 = vsel %vm6091, %v6030, %v3339
  %v6097 = vsel %vm6091, %v6032, %v3341
  %v6099 = vsel %vm6091, %v6034, %v3343
  %v6101 = vsel %vm6091, %v6036, %v3345
  %v6103 = vsel %vm6091, %v6038, %v3347
  %v6105 = vsel %vm6091, %v6040, %v3349
  %v6107 = vsel %vm6091, %v6042, %v3351
  %v6109 = vsel %vm6091, %v6044, %v3353
  %v6111 = vsel %vm6091, %v6046, %v3355
  %v6113 = vsel %vm6091, %v6048, %v3357
  %v6115 = vsel %vm6091, %v6050, %v3359
  %v6117 = vsel %vm6091, %v6052, %v3361
  %v6119 = vsel %vm6091, %v6054, %v3363
  %v6121 = vsel %vm6091, %v6056, %v3365
  %v6123 = vsel %vm6091, %v6058, %v3367
  %v6125 = vsel %vm6091, %v6060, %v3369
  %v6127 = vsel %vm6091, %v6062, %v3371
  %v6129 = vsel %vm6091, %v6064, %v3373
  %v6131 = vsel %vm6091, %v6066, %v3375
  %v6133 = vsel %vm6091, %v6068, %v3377
  %v6135 = vsel %vm6091, %v6070, %v3379
  %v6137 = vsel %vm6091, %v6072, %v3381
  %v6139 = vsel %vm6091, %v6074, %v3383
  %v6141 = vsel %vm6091, %v6076, %v3385
  %v6143 = vsel %vm6091, %v6078, %v3387
  %v6145 = vsel %vm6091, %v6080, %v3389
  %v6147 = vsel %vm6091, %v6082, %v3391
  %v6149 = vsel %vm6091, %v6084, %v3393
  %v6151 = vsel %vm6091, %v6086, %v3395
  %v6153 = vsel %vm6091, %v6088, %v3397
  %v6155 = vsel %vm6091, %v6090, %v3399
  %vm6156 = vcmask 162816
  %v6158 = vsel %vm6156, %v6093, %v3561
  %v6160 = vsel %vm6156, %v6095, %v3563
  %v6162 = vsel %vm6156, %v6097, %v3565
  %v6164 = vsel %vm6156, %v6099, %v3567
  %v6166 = vsel %vm6156, %v6101, %v3569
  %v6168 = vsel %vm6156, %v6103, %v3571
  %v6170 = vsel %vm6156, %v6105, %v3573
  %v6172 = vsel %vm6156, %v6107, %v3575
  %v6174 = vsel %vm6156, %v6109, %v3577
  %v6176 = vsel %vm6156, %v6111, %v3579
  %v6178 = vsel %vm6156, %v6113, %v3581
  %v6180 = vsel %vm6156, %v6115, %v3583
  %v6182 = vsel %vm6156, %v6117, %v3585
  %v6184 = vsel %vm6156, %v6119, %v3587
  %v6186 = vsel %vm6156, %v6121, %v3589
  %v6188 = vsel %vm6156, %v6123, %v3591
  %v6190 = vsel %vm6156, %v6125, %v3593
  %v6192 = vsel %vm6156, %v6127, %v3595
  %v6194 = vsel %vm6156, %v6129, %v3597
  %v6196 = vsel %vm6156, %v6131, %v3599
  %v6198 = vsel %vm6156, %v6133, %v3601
  %v6200 = vsel %vm6156, %v6135, %v3603
  %v6202 = vsel %vm6156, %v6137, %v3605
  %v6204 = vsel %vm6156, %v6139, %v3607
  %v6206 = vsel %vm6156, %v6141, %v3609
  %v6208 = vsel %vm6156, %v6143, %v3611
  %v6210 = vsel %vm6156, %v6145, %v3613
  %v6212 = vsel %vm6156, %v6147, %v3615
  %v6214 = vsel %vm6156, %v6149, %v3617
  %v6216 = vsel %vm6156, %v6151, %v3619
  %v6218 = vsel %vm6156, %v6153, %v3621
  %v6220 = vsel %vm6156, %v6155, %v3623
  %vm6221 = vcmask 195584
  %v6223 = vsel %vm6221, %v6158, %v3785
  %v6225 = vsel %vm6221, %v6160, %v3787
  %v6227 = vsel %vm6221, %v6162, %v3789
  %v6229 = vsel %vm6221, %v6164, %v3791
  %v6231 = vsel %vm6221, %v6166, %v3793
  %v6233 = vsel %vm6221, %v6168, %v3795
  %v6235 = vsel %vm6221, %v6170, %v3797
  %v6237 = vsel %vm6221, %v6172, %v3799
  %v6239 = vsel %vm6221, %v6174, %v3801
  %v6241 = vsel %vm6221, %v6176, %v3803
  %v6243 = vsel %vm6221, %v6178, %v3805
  %v6245 = vsel %vm6221, %v6180, %v3807
  %v6247 = vsel %vm6221, %v6182, %v3809
  %v6249 = vsel %vm6221, %v6184, %v3811
  %v6251 = vsel %vm6221, %v6186, %v3813
  %v6253 = vsel %vm6221, %v6188, %v3815
  %v6255 = vsel %vm6221, %v6190, %v3817
  %v6257 = vsel %vm6221, %v6192, %v3819
  %v6259 = vsel %vm6221, %v6194, %v3821
  %v6261 = vsel %vm6221, %v6196, %v3823
  %v6263 = vsel %vm6221, %v6198, %v3825
  %v6265 = vsel %vm6221, %v6200, %v3827
  %v6267 = vsel %vm6221, %v6202, %v3829
  %v6269 = vsel %vm6221, %v6204, %v3831
  %v6271 = vsel %vm6221, %v6206, %v3833
  %v6273 = vsel %vm6221, %v6208, %v3835
  %v6275 = vsel %vm6221, %v6210, %v3837
  %v6277 = vsel %vm6221, %v6212, %v3839
  %v6279 = vsel %vm6221, %v6214, %v3841
  %v6281 = vsel %vm6221, %v6216, %v3843
  %v6283 = vsel %vm6221, %v6218, %v3845
  %v6285 = vsel %vm6221, %v6220, %v3847
  %vm6286 = vcmask 228352
  %v6288 = vsel %vm6286, %v6223, %v4009
  %v6290 = vsel %vm6286, %v6225, %v4011
  %v6292 = vsel %vm6286, %v6227, %v4013
  %v6294 = vsel %vm6286, %v6229, %v4015
  %v6296 = vsel %vm6286, %v6231, %v4017
  %v6298 = vsel %vm6286, %v6233, %v4019
  %v6300 = vsel %vm6286, %v6235, %v4021
  %v6302 = vsel %vm6286, %v6237, %v4023
  %v6304 = vsel %vm6286, %v6239, %v4025
  %v6306 = vsel %vm6286, %v6241, %v4027
  %v6308 = vsel %vm6286, %v6243, %v4029
  %v6310 = vsel %vm6286, %v6245, %v4031
  %v6312 = vsel %vm6286, %v6247, %v4033
  %v6314 = vsel %vm6286, %v6249, %v4035
  %v6316 = vsel %vm6286, %v6251, %v4037
  %v6318 = vsel %vm6286, %v6253, %v4039
  %v6320 = vsel %vm6286, %v6255, %v4041
  %v6322 = vsel %vm6286, %v6257, %v4043
  %v6324 = vsel %vm6286, %v6259, %v4045
  %v6326 = vsel %vm6286, %v6261, %v4047
  %v6328 = vsel %vm6286, %v6263, %v4049
  %v6330 = vsel %vm6286, %v6265, %v4051
  %v6332 = vsel %vm6286, %v6267, %v4053
  %v6334 = vsel %vm6286, %v6269, %v4055
  %v6336 = vsel %vm6286, %v6271, %v4057
  %v6338 = vsel %vm6286, %v6273, %v4059
  %v6340 = vsel %vm6286, %v6275, %v4061
  %v6342 = vsel %vm6286, %v6277, %v4063
  %v6344 = vsel %vm6286, %v6279, %v4065
  %v6346 = vsel %vm6286, %v6281, %v4067
  %v6348 = vsel %vm6286, %v6283, %v4069
  %v6350 = vsel %vm6286, %v6285, %v4071
  %vm6351 = vcmask 261120
  %v6353 = vsel %vm6351, %v6288, %v4233
  %v6355 = vsel %vm6351, %v6290, %v4235
  %v6357 = vsel %vm6351, %v6292, %v4237
  %v6359 = vsel %vm6351, %v6294, %v4239
  %v6361 = vsel %vm6351, %v6296, %v4241
  %v6363 = vsel %vm6351, %v6298, %v4243
  %v6365 = vsel %vm6351, %v6300, %v4245
  %v6367 = vsel %vm6351, %v6302, %v4247
  %v6369 = vsel %vm6351, %v6304, %v4249
  %v6371 = vsel %vm6351, %v6306, %v4251
  %v6373 = vsel %vm6351, %v6308, %v4253
  %v6375 = vsel %vm6351, %v6310, %v4255
  %v6377 = vsel %vm6351, %v6312, %v4257
  %v6379 = vsel %vm6351, %v6314, %v4259
  %v6381 = vsel %vm6351, %v6316, %v4261
  %v6383 = vsel %vm6351, %v6318, %v4263
  %v6385 = vsel %vm6351, %v6320, %v4265
  %v6387 = vsel %vm6351, %v6322, %v4267
  %v6389 = vsel %vm6351, %v6324, %v4269
  %v6391 = vsel %vm6351, %v6326, %v4271
  %v6393 = vsel %vm6351, %v6328, %v4273
  %v6395 = vsel %vm6351, %v6330, %v4275
  %v6397 = vsel %vm6351, %v6332, %v4277
  %v6399 = vsel %vm6351, %v6334, %v4279
  %v6401 = vsel %vm6351, %v6336, %v4281
  %v6403 = vsel %vm6351, %v6338, %v4283
  %v6405 = vsel %vm6351, %v6340, %v4285
  %v6407 = vsel %vm6351, %v6342, %v4287
  %v6409 = vsel %vm6351, %v6344, %v4289
  %v6411 = vsel %vm6351, %v6346, %v4291
  %v6413 = vsel %vm6351, %v6348, %v4293
  %v6415 = vsel %vm6351, %v6350, %v4295
  %vm6416 = vcmask 293888
  %v6418 = vsel %vm6416, %v6353, %v4457
  %v6420 = vsel %vm6416, %v6355, %v4459
  %v6422 = vsel %vm6416, %v6357, %v4461
  %v6424 = vsel %vm6416, %v6359, %v4463
  %v6426 = vsel %vm6416, %v6361, %v4465
  %v6428 = vsel %vm6416, %v6363, %v4467
  %v6430 = vsel %vm6416, %v6365, %v4469
  %v6432 = vsel %vm6416, %v6367, %v4471
  %v6434 = vsel %vm6416, %v6369, %v4473
  %v6436 = vsel %vm6416, %v6371, %v4475
  %v6438 = vsel %vm6416, %v6373, %v4477
  %v6440 = vsel %vm6416, %v6375, %v4479
  %v6442 = vsel %vm6416, %v6377, %v4481
  %v6444 = vsel %vm6416, %v6379, %v4483
  %v6446 = vsel %vm6416, %v6381, %v4485
  %v6448 = vsel %vm6416, %v6383, %v4487
  %v6450 = vsel %vm6416, %v6385, %v4489
  %v6452 = vsel %vm6416, %v6387, %v4491
  %v6454 = vsel %vm6416, %v6389, %v4493
  %v6456 = vsel %vm6416, %v6391, %v4495
  %v6458 = vsel %vm6416, %v6393, %v4497
  %v6460 = vsel %vm6416, %v6395, %v4499
  %v6462 = vsel %vm6416, %v6397, %v4501
  %v6464 = vsel %vm6416, %v6399, %v4503
  %v6466 = vsel %vm6416, %v6401, %v4505
  %v6468 = vsel %vm6416, %v6403, %v4507
  %v6470 = vsel %vm6416, %v6405, %v4509
  %v6472 = vsel %vm6416, %v6407, %v4511
  %v6474 = vsel %vm6416, %v6409, %v4513
  %v6476 = vsel %vm6416, %v6411, %v4515
  %v6478 = vsel %vm6416, %v6413, %v4517
  %v6480 = vsel %vm6416, %v6415, %v4519
  %vm6481 = vcmask 326656
  %v6483 = vsel %vm6481, %v6418, %v4681
  %v6485 = vsel %vm6481, %v6420, %v4683
  %v6487 = vsel %vm6481, %v6422, %v4685
  %v6489 = vsel %vm6481, %v6424, %v4687
  %v6491 = vsel %vm6481, %v6426, %v4689
  %v6493 = vsel %vm6481, %v6428, %v4691
  %v6495 = vsel %vm6481, %v6430, %v4693
  %v6497 = vsel %vm6481, %v6432, %v4695
  %v6499 = vsel %vm6481, %v6434, %v4697
  %v6501 = vsel %vm6481, %v6436, %v4699
  %v6503 = vsel %vm6481, %v6438, %v4701
  %v6505 = vsel %vm6481, %v6440, %v4703
  %v6507 = vsel %vm6481, %v6442, %v4705
  %v6509 = vsel %vm6481, %v6444, %v4707
  %v6511 = vsel %vm6481, %v6446, %v4709
  %v6513 = vsel %vm6481, %v6448, %v4711
  %v6515 = vsel %vm6481, %v6450, %v4713
  %v6517 = vsel %vm6481, %v6452, %v4715
  %v6519 = vsel %vm6481, %v6454, %v4717
  %v6521 = vsel %vm6481, %v6456, %v4719
  %v6523 = vsel %vm6481, %v6458, %v4721
  %v6525 = vsel %vm6481, %v6460, %v4723
  %v6527 = vsel %vm6481, %v6462, %v4725
  %v6529 = vsel %vm6481, %v6464, %v4727
  %v6531 = vsel %vm6481, %v6466, %v4729
  %v6533 = vsel %vm6481, %v6468, %v4731
  %v6535 = vsel %vm6481, %v6470, %v4733
  %v6537 = vsel %vm6481, %v6472, %v4735
  %v6539 = vsel %vm6481, %v6474, %v4737
  %v6541 = vsel %vm6481, %v6476, %v4739
  %v6543 = vsel %vm6481, %v6478, %v4741
  %v6545 = vsel %vm6481, %v6480, %v4743
  %vm6546 = vcmask 359424
  %v6548 = vsel %vm6546, %v6483, %v4905
  %v6550 = vsel %vm6546, %v6485, %v4907
  %v6552 = vsel %vm6546, %v6487, %v4909
  %v6554 = vsel %vm6546, %v6489, %v4911
  %v6556 = vsel %vm6546, %v6491, %v4913
  %v6558 = vsel %vm6546, %v6493, %v4915
  %v6560 = vsel %vm6546, %v6495, %v4917
  %v6562 = vsel %vm6546, %v6497, %v4919
  %v6564 = vsel %vm6546, %v6499, %v4921
  %v6566 = vsel %vm6546, %v6501, %v4923
  %v6568 = vsel %vm6546, %v6503, %v4925
  %v6570 = vsel %vm6546, %v6505, %v4927
  %v6572 = vsel %vm6546, %v6507, %v4929
  %v6574 = vsel %vm6546, %v6509, %v4931
  %v6576 = vsel %vm6546, %v6511, %v4933
  %v6578 = vsel %vm6546, %v6513, %v4935
  %v6580 = vsel %vm6546, %v6515, %v4937
  %v6582 = vsel %vm6546, %v6517, %v4939
  %v6584 = vsel %vm6546, %v6519, %v4941
  %v6586 = vsel %vm6546, %v6521, %v4943
  %v6588 = vsel %vm6546, %v6523, %v4945
  %v6590 = vsel %vm6546, %v6525, %v4947
  %v6592 = vsel %vm6546, %v6527, %v4949
  %v6594 = vsel %vm6546, %v6529, %v4951
  %v6596 = vsel %vm6546, %v6531, %v4953
  %v6598 = vsel %vm6546, %v6533, %v4955
  %v6600 = vsel %vm6546, %v6535, %v4957
  %v6602 = vsel %vm6546, %v6537, %v4959
  %v6604 = vsel %vm6546, %v6539, %v4961
  %v6606 = vsel %vm6546, %v6541, %v4963
  %v6608 = vsel %vm6546, %v6543, %v4965
  %v6610 = vsel %vm6546, %v6545, %v4967
  %vm6611 = vcmask 392192
  %v6613 = vsel %vm6611, %v6548, %v5129
  %v6615 = vsel %vm6611, %v6550, %v5131
  %v6617 = vsel %vm6611, %v6552, %v5133
  %v6619 = vsel %vm6611, %v6554, %v5135
  %v6621 = vsel %vm6611, %v6556, %v5137
  %v6623 = vsel %vm6611, %v6558, %v5139
  %v6625 = vsel %vm6611, %v6560, %v5141
  %v6627 = vsel %vm6611, %v6562, %v5143
  %v6629 = vsel %vm6611, %v6564, %v5145
  %v6631 = vsel %vm6611, %v6566, %v5147
  %v6633 = vsel %vm6611, %v6568, %v5149
  %v6635 = vsel %vm6611, %v6570, %v5151
  %v6637 = vsel %vm6611, %v6572, %v5153
  %v6639 = vsel %vm6611, %v6574, %v5155
  %v6641 = vsel %vm6611, %v6576, %v5157
  %v6643 = vsel %vm6611, %v6578, %v5159
  %v6645 = vsel %vm6611, %v6580, %v5161
  %v6647 = vsel %vm6611, %v6582, %v5163
  %v6649 = vsel %vm6611, %v6584, %v5165
  %v6651 = vsel %vm6611, %v6586, %v5167
  %v6653 = vsel %vm6611, %v6588, %v5169
  %v6655 = vsel %vm6611, %v6590, %v5171
  %v6657 = vsel %vm6611, %v6592, %v5173
  %v6659 = vsel %vm6611, %v6594, %v5175
  %v6661 = vsel %vm6611, %v6596, %v5177
  %v6663 = vsel %vm6611, %v6598, %v5179
  %v6665 = vsel %vm6611, %v6600, %v5181
  %v6667 = vsel %vm6611, %v6602, %v5183
  %v6669 = vsel %vm6611, %v6604, %v5185
  %v6671 = vsel %vm6611, %v6606, %v5187
  %v6673 = vsel %vm6611, %v6608, %v5189
  %v6675 = vsel %vm6611, %v6610, %v5191
  %vm6676 = vcmask 424960
  %v6678 = vsel %vm6676, %v6613, %v5353
  %v6680 = vsel %vm6676, %v6615, %v5355
  %v6682 = vsel %vm6676, %v6617, %v5357
  %v6684 = vsel %vm6676, %v6619, %v5359
  %v6686 = vsel %vm6676, %v6621, %v5361
  %v6688 = vsel %vm6676, %v6623, %v5363
  %v6690 = vsel %vm6676, %v6625, %v5365
  %v6692 = vsel %vm6676, %v6627, %v5367
  %v6694 = vsel %vm6676, %v6629, %v5369
  %v6696 = vsel %vm6676, %v6631, %v5371
  %v6698 = vsel %vm6676, %v6633, %v5373
  %v6700 = vsel %vm6676, %v6635, %v5375
  %v6702 = vsel %vm6676, %v6637, %v5377
  %v6704 = vsel %vm6676, %v6639, %v5379
  %v6706 = vsel %vm6676, %v6641, %v5381
  %v6708 = vsel %vm6676, %v6643, %v5383
  %v6710 = vsel %vm6676, %v6645, %v5385
  %v6712 = vsel %vm6676, %v6647, %v5387
  %v6714 = vsel %vm6676, %v6649, %v5389
  %v6716 = vsel %vm6676, %v6651, %v5391
  %v6718 = vsel %vm6676, %v6653, %v5393
  %v6720 = vsel %vm6676, %v6655, %v5395
  %v6722 = vsel %vm6676, %v6657, %v5397
  %v6724 = vsel %vm6676, %v6659, %v5399
  %v6726 = vsel %vm6676, %v6661, %v5401
  %v6728 = vsel %vm6676, %v6663, %v5403
  %v6730 = vsel %vm6676, %v6665, %v5405
  %v6732 = vsel %vm6676, %v6667, %v5407
  %v6734 = vsel %vm6676, %v6669, %v5409
  %v6736 = vsel %vm6676, %v6671, %v5411
  %v6738 = vsel %vm6676, %v6673, %v5413
  %v6740 = vsel %vm6676, %v6675, %v5415
  %vm6741 = vcmask 457728
  %v6743 = vsel %vm6741, %v6678, %v5577
  %v6745 = vsel %vm6741, %v6680, %v5579
  %v6747 = vsel %vm6741, %v6682, %v5581
  %v6749 = vsel %vm6741, %v6684, %v5583
  %v6751 = vsel %vm6741, %v6686, %v5585
  %v6753 = vsel %vm6741, %v6688, %v5587
  %v6755 = vsel %vm6741, %v6690, %v5589
  %v6757 = vsel %vm6741, %v6692, %v5591
  %v6759 = vsel %vm6741, %v6694, %v5593
  %v6761 = vsel %vm6741, %v6696, %v5595
  %v6763 = vsel %vm6741, %v6698, %v5597
  %v6765 = vsel %vm6741, %v6700, %v5599
  %v6767 = vsel %vm6741, %v6702, %v5601
  %v6769 = vsel %vm6741, %v6704, %v5603
  %v6771 = vsel %vm6741, %v6706, %v5605
  %v6773 = vsel %vm6741, %v6708, %v5607
  %v6775 = vsel %vm6741, %v6710, %v5609
  %v6777 = vsel %vm6741, %v6712, %v5611
  %v6779 = vsel %vm6741, %v6714, %v5613
  %v6781 = vsel %vm6741, %v6716, %v5615
  %v6783 = vsel %vm6741, %v6718, %v5617
  %v6785 = vsel %vm6741, %v6720, %v5619
  %v6787 = vsel %vm6741, %v6722, %v5621
  %v6789 = vsel %vm6741, %v6724, %v5623
  %v6791 = vsel %vm6741, %v6726, %v5625
  %v6793 = vsel %vm6741, %v6728, %v5627
  %v6795 = vsel %vm6741, %v6730, %v5629
  %v6797 = vsel %vm6741, %v6732, %v5631
  %v6799 = vsel %vm6741, %v6734, %v5633
  %v6801 = vsel %vm6741, %v6736, %v5635
  %v6803 = vsel %vm6741, %v6738, %v5637
  %v6805 = vsel %vm6741, %v6740, %v5639
  %vm6806 = vcmask 490496
  %v6808 = vsel %vm6806, %v6743, %v5801
  %v6810 = vsel %vm6806, %v6745, %v5803
  %v6812 = vsel %vm6806, %v6747, %v5805
  %v6814 = vsel %vm6806, %v6749, %v5807
  %v6816 = vsel %vm6806, %v6751, %v5809
  %v6818 = vsel %vm6806, %v6753, %v5811
  %v6820 = vsel %vm6806, %v6755, %v5813
  %v6822 = vsel %vm6806, %v6757, %v5815
  %v6824 = vsel %vm6806, %v6759, %v5817
  %v6826 = vsel %vm6806, %v6761, %v5819
  %v6828 = vsel %vm6806, %v6763, %v5821
  %v6830 = vsel %vm6806, %v6765, %v5823
  %v6832 = vsel %vm6806, %v6767, %v5825
  %v6834 = vsel %vm6806, %v6769, %v5827
  %v6836 = vsel %vm6806, %v6771, %v5829
  %v6838 = vsel %vm6806, %v6773, %v5831
  %v6840 = vsel %vm6806, %v6775, %v5833
  %v6842 = vsel %vm6806, %v6777, %v5835
  %v6844 = vsel %vm6806, %v6779, %v5837
  %v6846 = vsel %vm6806, %v6781, %v5839
  %v6848 = vsel %vm6806, %v6783, %v5841
  %v6850 = vsel %vm6806, %v6785, %v5843
  %v6852 = vsel %vm6806, %v6787, %v5845
  %v6854 = vsel %vm6806, %v6789, %v5847
  %v6856 = vsel %vm6806, %v6791, %v5849
  %v6858 = vsel %vm6806, %v6793, %v5851
  %v6860 = vsel %vm6806, %v6795, %v5853
  %v6862 = vsel %vm6806, %v6797, %v5855
  %v6864 = vsel %vm6806, %v6799, %v5857
  %v6866 = vsel %vm6806, %v6801, %v5859
  %v6868 = vsel %vm6806, %v6803, %v5861
  %v6870 = vsel %vm6806, %v6805, %v5863
  %v6935 = vunpack.c.l.b16 %v2152
  %v6936 = vunpack.c.l.b16 %v2153
  %v6937 = vunpack.c.l.b16 %v2154
  %v6938 = vunpack.c.l.b16 %v2155
  %v6939 = vunpack.c.l.b16 %v2156
  %v6940 = vunpack.c.l.b16 %v2157
  %v6941 = vunpack.c.l.b16 %v2158
  %v6942 = vunpack.c.l.b16 %v2159
  %v6943 = vunpack.c.l.b16 %v2160
  %v6944 = vunpack.c.l.b16 %v2161
  %v6945 = vunpack.c.l.b16 %v2162
  %v6946 = vunpack.c.l.b16 %v2163
  %v6947 = vunpack.c.l.b16 %v2164
  %v6948 = vunpack.c.l.b16 %v2165
  %v6949 = vunpack.c.l.b16 %v2166
  %v6950 = vunpack.c.l.b16 %v2167
  %v6951 = vunpack.c.l.b16 %v2168
  %v6952 = vunpack.c.l.b16 %v2169
  %v6953 = vunpack.c.l.b16 %v2170
  %v6954 = vunpack.c.l.b16 %v2171
  %v6955 = vunpack.c.l.b16 %v2172
  %v6956 = vunpack.c.l.b16 %v2173
  %v6957 = vunpack.c.l.b16 %v2174
  %v6958 = vunpack.c.l.b16 %v2175
  %v6959 = vunpack.c.l.b16 %v2176
  %v6960 = vunpack.c.l.b16 %v2177
  %v6961 = vunpack.c.l.b16 %v2178
  %v6962 = vunpack.c.l.b16 %v2179
  %v6963 = vunpack.c.l.b16 %v2180
  %v6964 = vunpack.c.l.b16 %v2181
  %v6965 = vunpack.c.l.b16 %v2182
  %v6966 = vunpack.c.l.b16 %v2183
  %v6967 = vunpack.c.l.b16 %v2184
  %v6968 = vunpack.c.l.b16 %v2185
  %v6969 = vunpack.c.l.b16 %v2186
  %v6970 = vunpack.c.l.b16 %v2187
  %v6971 = vunpack.c.l.b16 %v2188
  %v6972 = vunpack.c.l.b16 %v2189
  %v6973 = vunpack.c.l.b16 %v2190
  %v6974 = vunpack.c.l.b16 %v2191
  %v6975 = vunpack.c.l.b16 %v2192
  %v6976 = vunpack.c.l.b16 %v2193
  %v6977 = vunpack.c.l.b16 %v2194
  %v6978 = vunpack.c.l.b16 %v2195
  %v6979 = vunpack.c.l.b16 %v2196
  %v6980 = vunpack.c.l.b16 %v2197
  %v6981 = vunpack.c.l.b16 %v2198
  %v6982 = vunpack.c.l.b16 %v2199
  %v6983 = vunpack.c.l.b16 %v2200
  %v6984 = vunpack.c.l.b16 %v2201
  %v6985 = vunpack.c.l.b16 %v2202
  %v6986 = vunpack.c.l.b16 %v2203
  %v6987 = vunpack.c.l.b16 %v2204
  %v6988 = vunpack.c.l.b16 %v2205
  %v6989 = vunpack.c.l.b16 %v2206
  %v6990 = vunpack.c.l.b16 %v2207
  %v6991 = vunpack.c.l.b16 %v2208
  %v6992 = vunpack.c.l.b16 %v2209
  %v6993 = vunpack.c.l.b16 %v2210
  %v6994 = vunpack.c.l.b16 %v2211
  %v6995 = vunpack.c.l.b16 %v2212
  %v6996 = vunpack.c.l.b16 %v2213
  %v6997 = vunpack.c.l.b16 %v2214
  %v6998 = vunpack.c.l.b16 %v2215
  %v6999 = vpack.c.b16 %v6936, %v6935
  %v7000 = vpack.c.b16 %v6938, %v6937
  %v7001 = vpack.c.b16 %v6940, %v6939
  %v7002 = vpack.c.b16 %v6942, %v6941
  %v7003 = vpack.c.b16 %v6944, %v6943
  %v7004 = vpack.c.b16 %v6946, %v6945
  %v7005 = vpack.c.b16 %v6948, %v6947
  %v7006 = vpack.c.b16 %v6950, %v6949
  %v7007 = vpack.c.b16 %v6952, %v6951
  %v7008 = vpack.c.b16 %v6954, %v6953
  %v7009 = vpack.c.b16 %v6956, %v6955
  %v7010 = vpack.c.b16 %v6958, %v6957
  %v7011 = vpack.c.b16 %v6960, %v6959
  %v7012 = vpack.c.b16 %v6962, %v6961
  %v7013 = vpack.c.b16 %v6964, %v6963
  %v7014 = vpack.c.b16 %v6966, %v6965
  %v7015 = vpack.c.b16 %v6968, %v6967
  %v7016 = vpack.c.b16 %v6970, %v6969
  %v7017 = vpack.c.b16 %v6972, %v6971
  %v7018 = vpack.c.b16 %v6974, %v6973
  %v7019 = vpack.c.b16 %v6976, %v6975
  %v7020 = vpack.c.b16 %v6978, %v6977
  %v7021 = vpack.c.b16 %v6980, %v6979
  %v7022 = vpack.c.b16 %v6982, %v6981
  %v7023 = vpack.c.b16 %v6984, %v6983
  %v7024 = vpack.c.b16 %v6986, %v6985
  %v7025 = vpack.c.b16 %v6988, %v6987
  %v7026 = vpack.c.b16 %v6990, %v6989
  %v7027 = vpack.c.b16 %v6992, %v6991
  %v7028 = vpack.c.b16 %v6994, %v6993
  %v7029 = vpack.c.b16 %v6996, %v6995
  %v7030 = vpack.c.b16 %v6998, %v6997
  %v7095 = vunpack.c.l.b16 %v2280
  %v7096 = vunpack.c.l.b16 %v2281
  %v7097 = vunpack.c.l.b16 %v2282
  %v7098 = vunpack.c.l.b16 %v2283
  %v7099 = vunpack.c.l.b16 %v2284
  %v7100 = vunpack.c.l.b16 %v2285
  %v7101 = vunpack.c.l.b16 %v2286
  %v7102 = vunpack.c.l.b16 %v2287
  %v7103 = vunpack.c.l.b16 %v2288
  %v7104 = vunpack.c.l.b16 %v2289
  %v7105 = vunpack.c.l.b16 %v2290
  %v7106 = vunpack.c.l.b16 %v2291
  %v7107 = vunpack.c.l.b16 %v2292
  %v7108 = vunpack.c.l.b16 %v2293
  %v7109 = vunpack.c.l.b16 %v2294
  %v7110 = vunpack.c.l.b16 %v2295
  %v7111 = vunpack.c.l.b16 %v2296
  %v7112 = vunpack.c.l.b16 %v2297
  %v7113 = vunpack.c.l.b16 %v2298
  %v7114 = vunpack.c.l.b16 %v2299
  %v7115 = vunpack.c.l.b16 %v2300
  %v7116 = vunpack.c.l.b16 %v2301
  %v7117 = vunpack.c.l.b16 %v2302
  %v7118 = vunpack.c.l.b16 %v2303
  %v7119 = vunpack.c.l.b16 %v2304
  %v7120 = vunpack.c.l.b16 %v2305
  %v7121 = vunpack.c.l.b16 %v2306
  %v7122 = vunpack.c.l.b16 %v2307
  %v7123 = vunpack.c.l.b16 %v2308
  %v7124 = vunpack.c.l.b16 %v2309
  %v7125 = vunpack.c.l.b16 %v2310
  %v7126 = vunpack.c.l.b16 %v2311
  %v7127 = vunpack.c.l.b16 %v2312
  %v7128 = vunpack.c.l.b16 %v2313
  %v7129 = vunpack.c.l.b16 %v2314
  %v7130 = vunpack.c.l.b16 %v2315
  %v7131 = vunpack.c.l.b16 %v2316
  %v7132 = vunpack.c.l.b16 %v2317
  %v7133 = vunpack.c.l.b16 %v2318
  %v7134 = vunpack.c.l.b16 %v2319
  %v7135 = vunpack.c.l.b16 %v2320
  %v7136 = vunpack.c.l.b16 %v2321
  %v7137 = vunpack.c.l.b16 %v2322
  %v7138 = vunpack.c.l.b16 %v2323
  %v7139 = vunpack.c.l.b16 %v2324
  %v7140 = vunpack.c.l.b16 %v2325
  %v7141 = vunpack.c.l.b16 %v2326
  %v7142 = vunpack.c.l.b16 %v2327
  %v7143 = vunpack.c.l.b16 %v2328
  %v7144 = vunpack.c.l.b16 %v2329
  %v7145 = vunpack.c.l.b16 %v2330
  %v7146 = vunpack.c.l.b16 %v2331
  %v7147 = vunpack.c.l.b16 %v2332
  %v7148 = vunpack.c.l.b16 %v2333
  %v7149 = vunpack.c.l.b16 %v2334
  %v7150 = vunpack.c.l.b16 %v2335
  %v7151 = vunpack.c.l.b16 %v2336
  %v7152 = vunpack.c.l.b16 %v2337
  %v7153 = vunpack.c.l.b16 %v2338
  %v7154 = vunpack.c.l.b16 %v2339
  %v7155 = vunpack.c.l.b16 %v2340
  %v7156 = vunpack.c.l.b16 %v2341
  %v7157 = vunpack.c.l.b16 %v2342
  %v7158 = vunpack.c.l.b16 %v2343
  %v7159 = vpack.c.b16 %v7096, %v7095
  %v7160 = vpack.c.b16 %v7098, %v7097
  %v7161 = vpack.c.b16 %v7100, %v7099
  %v7162 = vpack.c.b16 %v7102, %v7101
  %v7163 = vpack.c.b16 %v7104, %v7103
  %v7164 = vpack.c.b16 %v7106, %v7105
  %v7165 = vpack.c.b16 %v7108, %v7107
  %v7166 = vpack.c.b16 %v7110, %v7109
  %v7167 = vpack.c.b16 %v7112, %v7111
  %v7168 = vpack.c.b16 %v7114, %v7113
  %v7169 = vpack.c.b16 %v7116, %v7115
  %v7170 = vpack.c.b16 %v7118, %v7117
  %v7171 = vpack.c.b16 %v7120, %v7119
  %v7172 = vpack.c.b16 %v7122, %v7121
  %v7173 = vpack.c.b16 %v7124, %v7123
  %v7174 = vpack.c.b16 %v7126, %v7125
  %v7175 = vpack.c.b16 %v7128, %v7127
  %v7176 = vpack.c.b16 %v7130, %v7129
  %v7177 = vpack.c.b16 %v7132, %v7131
  %v7178 = vpack.c.b16 %v7134, %v7133
  %v7179 = vpack.c.b16 %v7136, %v7135
  %v7180 = vpack.c.b16 %v7138, %v7137
  %v7181 = vpack.c.b16 %v7140, %v7139
  %v7182 = vpack.c.b16 %v7142, %v7141
  %v7183 = vpack.c.b16 %v7144, %v7143
  %v7184 = vpack.c.b16 %v7146, %v7145
  %v7185 = vpack.c.b16 %v7148, %v7147
  %v7186 = vpack.c.b16 %v7150, %v7149
  %v7187 = vpack.c.b16 %v7152, %v7151
  %v7188 = vpack.c.b16 %v7154, %v7153
  %v7189 = vpack.c.b16 %v7156, %v7155
  %v7190 = vpack.c.b16 %v7158, %v7157
  %7191 = vrot.lane.b32.xlu0 %v7159, 4
  %v7192 = vpop.permute.xlu0 %7191
  %7193 = vrot.lane.b32.xlu0 %v7160, 4
  %v7194 = vpop.permute.xlu0 %7193
  %7195 = vrot.lane.b32.xlu0 %v7161, 4
  %v7196 = vpop.permute.xlu0 %7195
  %7197 = vrot.lane.b32.xlu0 %v7162, 4
  %v7198 = vpop.permute.xlu0 %7197
  %7199 = vrot.lane.b32.xlu0 %v7163, 4
  %v7200 = vpop.permute.xlu0 %7199
  %7201 = vrot.lane.b32.xlu0 %v7164, 4
  %v7202 = vpop.permute.xlu0 %7201
  %7203 = vrot.lane.b32.xlu0 %v7165, 4
  %v7204 = vpop.permute.xlu0 %7203
  %7205 = vrot.lane.b32.xlu0 %v7166, 4
  %v7206 = vpop.permute.xlu0 %7205
  %7207 = vrot.lane.b32.xlu0 %v7167, 4
  %v7208 = vpop.permute.xlu0 %7207
  %7209 = vrot.lane.b32.xlu0 %v7168, 4
  %v7210 = vpop.permute.xlu0 %7209
  %7211 = vrot.lane.b32.xlu0 %v7169, 4
  %v7212 = vpop.permute.xlu0 %7211
  %7213 = vrot.lane.b32.xlu0 %v7170, 4
  %v7214 = vpop.permute.xlu0 %7213
  %7215 = vrot.lane.b32.xlu0 %v7171, 4
  %v7216 = vpop.permute.xlu0 %7215
  %7217 = vrot.lane.b32.xlu0 %v7172, 4
  %v7218 = vpop.permute.xlu0 %7217
  %7219 = vrot.lane.b32.xlu0 %v7173, 4
  %v7220 = vpop.permute.xlu0 %7219
  %7221 = vrot.lane.b32.xlu0 %v7174, 4
  %v7222 = vpop.permute.xlu0 %7221
  %7223 = vrot.lane.b32.xlu0 %v7175, 4
  %v7224 = vpop.permute.xlu0 %7223
  %7225 = vrot.lane.b32.xlu0 %v7176, 4
  %v7226 = vpop.permute.xlu0 %7225
  %7227 = vrot.lane.b32.xlu0 %v7177, 4
  %v7228 = vpop.permute.xlu0 %7227
  %7229 = vrot.lane.b32.xlu0 %v7178, 4
  %v7230 = vpop.permute.xlu0 %7229
  %7231 = vrot.lane.b32.xlu0 %v7179, 4
  %v7232 = vpop.permute.xlu0 %7231
  %7233 = vrot.lane.b32.xlu0 %v7180, 4
  %v7234 = vpop.permute.xlu0 %7233
  %7235 = vrot.lane.b32.xlu0 %v7181, 4
  %v7236 = vpop.permute.xlu0 %7235
  %7237 = vrot.lane.b32.xlu0 %v7182, 4
  %v7238 = vpop.permute.xlu0 %7237
  %7239 = vrot.lane.b32.xlu0 %v7183, 4
  %v7240 = vpop.permute.xlu0 %7239
  %7241 = vrot.lane.b32.xlu0 %v7184, 4
  %v7242 = vpop.permute.xlu0 %7241
  %7243 = vrot.lane.b32.xlu0 %v7185, 4
  %v7244 = vpop.permute.xlu0 %7243
  %7245 = vrot.lane.b32.xlu0 %v7186, 4
  %v7246 = vpop.permute.xlu0 %7245
  %7247 = vrot.lane.b32.xlu0 %v7187, 4
  %v7248 = vpop.permute.xlu0 %7247
  %7249 = vrot.lane.b32.xlu0 %v7188, 4
  %v7250 = vpop.permute.xlu0 %7249
  %7251 = vrot.lane.b32.xlu0 %v7189, 4
  %v7252 = vpop.permute.xlu0 %7251
  %7253 = vrot.lane.b32.xlu0 %v7190, 4
  %v7254 = vpop.permute.xlu0 %7253
  %v7257 = vsel %vm5864, %v6999, %v7192
  %v7260 = vsel %vm5864, %v7000, %v7194
  %v7263 = vsel %vm5864, %v7001, %v7196
  %v7266 = vsel %vm5864, %v7002, %v7198
  %v7269 = vsel %vm5864, %v7003, %v7200
  %v7272 = vsel %vm5864, %v7004, %v7202
  %v7275 = vsel %vm5864, %v7005, %v7204
  %v7278 = vsel %vm5864, %v7006, %v7206
  %v7281 = vsel %vm5864, %v7007, %v7208
  %v7284 = vsel %vm5864, %v7008, %v7210
  %v7287 = vsel %vm5864, %v7009, %v7212
  %v7290 = vsel %vm5864, %v7010, %v7214
  %v7293 = vsel %vm5864, %v7011, %v7216
  %v7296 = vsel %vm5864, %v7012, %v7218
  %v7299 = vsel %vm5864, %v7013, %v7220
  %v7302 = vsel %vm5864, %v7014, %v7222
  %v7305 = vsel %vm5864, %v7015, %v7224
  %v7308 = vsel %vm5864, %v7016, %v7226
  %v7311 = vsel %vm5864, %v7017, %v7228
  %v7314 = vsel %vm5864, %v7018, %v7230
  %v7317 = vsel %vm5864, %v7019, %v7232
  %v7320 = vsel %vm5864, %v7020, %v7234
  %v7323 = vsel %vm5864, %v7021, %v7236
  %v7326 = vsel %vm5864, %v7022, %v7238
  %v7329 = vsel %vm5864, %v7023, %v7240
  %v7332 = vsel %vm5864, %v7024, %v7242
  %v7335 = vsel %vm5864, %v7025, %v7244
  %v7338 = vsel %vm5864, %v7026, %v7246
  %v7341 = vsel %vm5864, %v7027, %v7248
  %v7344 = vsel %vm5864, %v7028, %v7250
  %v7347 = vsel %vm5864, %v7029, %v7252
  %v7350 = vsel %vm5864, %v7030, %v7254
  %7383 = vrot.lane.b32.xlu0 %v7257, 64
  %v7384 = vpop.permute.xlu0 %7383
  %7385 = vrot.lane.b32.xlu0 %v7260, 64
  %v7386 = vpop.permute.xlu0 %7385
  %7387 = vrot.lane.b32.xlu0 %v7263, 64
  %v7388 = vpop.permute.xlu0 %7387
  %7389 = vrot.lane.b32.xlu0 %v7266, 64
  %v7390 = vpop.permute.xlu0 %7389
  %7391 = vrot.lane.b32.xlu0 %v7269, 64
  %v7392 = vpop.permute.xlu0 %7391
  %7393 = vrot.lane.b32.xlu0 %v7272, 64
  %v7394 = vpop.permute.xlu0 %7393
  %7395 = vrot.lane.b32.xlu0 %v7275, 64
  %v7396 = vpop.permute.xlu0 %7395
  %7397 = vrot.lane.b32.xlu0 %v7278, 64
  %v7398 = vpop.permute.xlu0 %7397
  %7399 = vrot.lane.b32.xlu0 %v7281, 64
  %v7400 = vpop.permute.xlu0 %7399
  %7401 = vrot.lane.b32.xlu0 %v7284, 64
  %v7402 = vpop.permute.xlu0 %7401
  %7403 = vrot.lane.b32.xlu0 %v7287, 64
  %v7404 = vpop.permute.xlu0 %7403
  %7405 = vrot.lane.b32.xlu0 %v7290, 64
  %v7406 = vpop.permute.xlu0 %7405
  %7407 = vrot.lane.b32.xlu0 %v7293, 64
  %v7408 = vpop.permute.xlu0 %7407
  %7409 = vrot.lane.b32.xlu0 %v7296, 64
  %v7410 = vpop.permute.xlu0 %7409
  %7411 = vrot.lane.b32.xlu0 %v7299, 64
  %v7412 = vpop.permute.xlu0 %7411
  %7413 = vrot.lane.b32.xlu0 %v7302, 64
  %v7414 = vpop.permute.xlu0 %7413
  %7415 = vrot.lane.b32.xlu0 %v7305, 64
  %v7416 = vpop.permute.xlu0 %7415
  %7417 = vrot.lane.b32.xlu0 %v7308, 64
  %v7418 = vpop.permute.xlu0 %7417
  %7419 = vrot.lane.b32.xlu0 %v7311, 64
  %v7420 = vpop.permute.xlu0 %7419
  %7421 = vrot.lane.b32.xlu0 %v7314, 64
  %v7422 = vpop.permute.xlu0 %7421
  %7423 = vrot.lane.b32.xlu0 %v7317, 64
  %v7424 = vpop.permute.xlu0 %7423
  %7425 = vrot.lane.b32.xlu0 %v7320, 64
  %v7426 = vpop.permute.xlu0 %7425
  %7427 = vrot.lane.b32.xlu0 %v7323, 64
  %v7428 = vpop.permute.xlu0 %7427
  %7429 = vrot.lane.b32.xlu0 %v7326, 64
  %v7430 = vpop.permute.xlu0 %7429
  %7431 = vrot.lane.b32.xlu0 %v7329, 64
  %v7432 = vpop.permute.xlu0 %7431
  %7433 = vrot.lane.b32.xlu0 %v7332, 64
  %v7434 = vpop.permute.xlu0 %7433
  %7435 = vrot.lane.b32.xlu0 %v7335, 64
  %v7436 = vpop.permute.xlu0 %7435
  %7437 = vrot.lane.b32.xlu0 %v7338, 64
  %v7438 = vpop.permute.xlu0 %7437
  %7439 = vrot.lane.b32.xlu0 %v7341, 64
  %v7440 = vpop.permute.xlu0 %7439
  %7441 = vrot.lane.b32.xlu0 %v7344, 64
  %v7442 = vpop.permute.xlu0 %7441
  %7443 = vrot.lane.b32.xlu0 %v7347, 64
  %v7444 = vpop.permute.xlu0 %7443
  %7445 = vrot.lane.b32.xlu0 %v7350, 64
  %v7446 = vpop.permute.xlu0 %7445
  %vm7447 = vcmask 523264
  %v7449 = vsel %vm7447, %v6808, %v7384
  %v7451 = vsel %vm7447, %v6810, %v7386
  %v7453 = vsel %vm7447, %v6812, %v7388
  %v7455 = vsel %vm7447, %v6814, %v7390
  %v7457 = vsel %vm7447, %v6816, %v7392
  %v7459 = vsel %vm7447, %v6818, %v7394
  %v7461 = vsel %vm7447, %v6820, %v7396
  %v7463 = vsel %vm7447, %v6822, %v7398
  %v7465 = vsel %vm7447, %v6824, %v7400
  %v7467 = vsel %vm7447, %v6826, %v7402
  %v7469 = vsel %vm7447, %v6828, %v7404
  %v7471 = vsel %vm7447, %v6830, %v7406
  %v7473 = vsel %vm7447, %v6832, %v7408
  %v7475 = vsel %vm7447, %v6834, %v7410
  %v7477 = vsel %vm7447, %v6836, %v7412
  %v7479 = vsel %vm7447, %v6838, %v7414
  %v7481 = vsel %vm7447, %v6840, %v7416
  %v7483 = vsel %vm7447, %v6842, %v7418
  %v7485 = vsel %vm7447, %v6844, %v7420
  %v7487 = vsel %vm7447, %v6846, %v7422
  %v7489 = vsel %vm7447, %v6848, %v7424
  %v7491 = vsel %vm7447, %v6850, %v7426
  %v7493 = vsel %vm7447, %v6852, %v7428
  %v7495 = vsel %vm7447, %v6854, %v7430
  %v7497 = vsel %vm7447, %v6856, %v7432
  %v7499 = vsel %vm7447, %v6858, %v7434
  %v7501 = vsel %vm7447, %v6860, %v7436
  %v7503 = vsel %vm7447, %v6862, %v7438
  %v7505 = vsel %vm7447, %v6864, %v7440
  %v7507 = vsel %vm7447, %v6866, %v7442
  %v7509 = vsel %vm7447, %v6868, %v7444
  %v7511 = vsel %vm7447, %v6870, %v7446
  %v7512 = vld [vmem:[%s2] sm:$0xf]
  %v7513 = vld [vmem:[%s2 + $0x4] sm:$0xf]
  %v7514 = vld [vmem:[%s2 + $0x8] sm:$0xf]
  %v7515 = vld [vmem:[%s2 + $0xc] sm:$0xf]
  %v7516 = vld [vmem:[%s2 + $0x10] sm:$0xf]
  %v7517 = vld [vmem:[%s2 + $0x14] sm:$0xf]
  %v7518 = vld [vmem:[%s2 + $0x18] sm:$0xf]
  %v7519 = vld [vmem:[%s2 + $0x1c] sm:$0xf]
  %v7520 = vld [vmem:[%s2 + $0x20] sm:$0xf]
  %v7521 = vld [vmem:[%s3] sm:$0x1]
  %v7523 = vperm.slane %v7521, 0
  %v7534 = vunpack.c.l.b16 %v7512
  %v7535 = vunpack.c.l.b16 %v7513
  %v7536 = vunpack.c.l.b16 %v7514
  %v7537 = vunpack.c.l.b16 %v7515
  %v7538 = vunpack.c.l.b16 %v7516
  %v7539 = vunpack.c.l.b16 %v7517
  %v7540 = vunpack.c.l.b16 %v7518
  %v7541 = vunpack.c.l.b16 %v7519
  %v7542 = vunpack.c.l.b16 %v7520
  %v7543 = vpack.c.b16 %v7535, %v7534
  %v7544 = vpack.c.b16 %v7537, %v7536
  %v7545 = vpack.c.b16 %v7539, %v7538
  %v7546 = vpack.c.b16 %v7541, %v7540
  %v7547 = vpack.c.b16 %v7542, %v7542
  %vm7552 = vcmask 588800
  %v7553 = vsel %vm7552, %v7449, 0
  %v7555 = vsel %vm7552, %v7451, 0
  %v7557 = vsel %vm7552, %v7453, 0
  %v7559 = vsel %vm7552, %v7455, 0
  %v7561 = vsel %vm7552, %v7457, 0
  %v7563 = vsel %vm7552, %v7459, 0
  %v7565 = vsel %vm7552, %v7461, 0
  %v7567 = vsel %vm7552, %v7463, 0
  %v7569 = vsel %vm7552, %v7465, 0
  %v7571 = vsel %vm7552, %v7467, 0
  %v7573 = vsel %vm7552, %v7469, 0
  %v7575 = vsel %vm7552, %v7471, 0
  %v7577 = vsel %vm7552, %v7473, 0
  %v7579 = vsel %vm7552, %v7475, 0
  %v7581 = vsel %vm7552, %v7477, 0
  %v7583 = vsel %vm7552, %v7479, 0
  %v7585 = vsel %vm7552, %v7481, 0
  %v7587 = vsel %vm7552, %v7483, 0
  %v7589 = vsel %vm7552, %v7485, 0
  %v7591 = vsel %vm7552, %v7487, 0
  %v7593 = vsel %vm7552, %v7489, 0
  %v7595 = vsel %vm7552, %v7491, 0
  %v7597 = vsel %vm7552, %v7493, 0
  %v7599 = vsel %vm7552, %v7495, 0
  %v7601 = vsel %vm7552, %v7497, 0
  %v7603 = vsel %vm7552, %v7499, 0
  %v7605 = vsel %vm7552, %v7501, 0
  %v7607 = vsel %vm7552, %v7503, 0
  %v7609 = vsel %vm7552, %v7505, 0
  %v7611 = vsel %vm7552, %v7507, 0
  %v7613 = vsel %vm7552, %v7509, 0
  %v7615 = vsel %vm7552, %v7511, 0
  %vm7617 = vcmask 1043456
  %v7619 = vsel %vm7617, %v7547, 0
  %7621 = vmatpush.bf16.msra.mxu0 0
  %7622 = vmatpush.bf16.msra.mxu0 0
  %7623 = vmatpush.bf16.msra.mxu0 0
  %7624 = vmatpush.bf16.msra.mxu0 %v7619
  %7625 = vmatpush.bf16.msra.mxu0 %v7546
  %7626 = vmatpush.bf16.msra.mxu0 %v7545
  %7627 = vmatpush.bf16.msra.mxu0 %v7544
  %7628 = vmatpush.bf16.msra.mxu0 %v7543
  %7629 = vmatmul.bf16.gmra.mxu0 %v7553
  %v7630 = vpop.f32.mrf.mxu0
  %v7631 = vadd.f32 %v7523, %v7630
  %v7632 = vpop.f32.mrf.mxu0
  %v7633 = vadd.f32 %v7523, %v7632
  %7634 = vmatmul.bf16.gmra.mxu0 %v7555
  %v7635 = vpop.f32.mrf.mxu0
  %v7636 = vadd.f32 %v7523, %v7635
  %v7637 = vpop.f32.mrf.mxu0
  %v7638 = vadd.f32 %v7523, %v7637
  %7639 = vmatmul.bf16.gmra.mxu0 %v7557
  %v7640 = vpop.f32.mrf.mxu0
  %v7641 = vadd.f32 %v7523, %v7640
  %v7642 = vpop.f32.mrf.mxu0
  %v7643 = vadd.f32 %v7523, %v7642
  %7644 = vmatmul.bf16.gmra.mxu0 %v7559
  %v7645 = vpop.f32.mrf.mxu0
  %v7646 = vadd.f32 %v7523, %v7645
  %v7647 = vpop.f32.mrf.mxu0
  %v7648 = vadd.f32 %v7523, %v7647
  %7649 = vmatmul.bf16.gmra.mxu0 %v7561
  %v7650 = vpop.f32.mrf.mxu0
  %v7651 = vadd.f32 %v7523, %v7650
  %v7652 = vpop.f32.mrf.mxu0
  %v7653 = vadd.f32 %v7523, %v7652
  %7654 = vmatmul.bf16.gmra.mxu0 %v7563
  %v7655 = vpop.f32.mrf.mxu0
  %v7656 = vadd.f32 %v7523, %v7655
  %v7657 = vpop.f32.mrf.mxu0
  %v7658 = vadd.f32 %v7523, %v7657
  %7659 = vmatmul.bf16.gmra.mxu0 %v7565
  %v7660 = vpop.f32.mrf.mxu0
  %v7661 = vadd.f32 %v7523, %v7660
  %v7662 = vpop.f32.mrf.mxu0
  %v7663 = vadd.f32 %v7523, %v7662
  %7664 = vmatmul.bf16.gmra.mxu0 %v7567
  %v7665 = vpop.f32.mrf.mxu0
  %v7666 = vadd.f32 %v7523, %v7665
  %v7667 = vpop.f32.mrf.mxu0
  %v7668 = vadd.f32 %v7523, %v7667
  %7669 = vmatmul.bf16.gmra.mxu0 %v7569
  %v7670 = vpop.f32.mrf.mxu0
  %v7671 = vadd.f32 %v7523, %v7670
  %v7672 = vpop.f32.mrf.mxu0
  %v7673 = vadd.f32 %v7523, %v7672
  %7674 = vmatmul.bf16.gmra.mxu0 %v7571
  %v7675 = vpop.f32.mrf.mxu0
  %v7676 = vadd.f32 %v7523, %v7675
  %v7677 = vpop.f32.mrf.mxu0
  %v7678 = vadd.f32 %v7523, %v7677
  %7679 = vmatmul.bf16.gmra.mxu0 %v7573
  %v7680 = vpop.f32.mrf.mxu0
  %v7681 = vadd.f32 %v7523, %v7680
  %v7682 = vpop.f32.mrf.mxu0
  %v7683 = vadd.f32 %v7523, %v7682
  %7684 = vmatmul.bf16.gmra.mxu0 %v7575
  %v7685 = vpop.f32.mrf.mxu0
  %v7686 = vadd.f32 %v7523, %v7685
  %v7687 = vpop.f32.mrf.mxu0
  %v7688 = vadd.f32 %v7523, %v7687
  %7689 = vmatmul.bf16.gmra.mxu0 %v7577
  %v7690 = vpop.f32.mrf.mxu0
  %v7691 = vadd.f32 %v7523, %v7690
  %v7692 = vpop.f32.mrf.mxu0
  %v7693 = vadd.f32 %v7523, %v7692
  %7694 = vmatmul.bf16.gmra.mxu0 %v7579
  %v7695 = vpop.f32.mrf.mxu0
  %v7696 = vadd.f32 %v7523, %v7695
  %v7697 = vpop.f32.mrf.mxu0
  %v7698 = vadd.f32 %v7523, %v7697
  %7699 = vmatmul.bf16.gmra.mxu0 %v7581
  %v7700 = vpop.f32.mrf.mxu0
  %v7701 = vadd.f32 %v7523, %v7700
  %v7702 = vpop.f32.mrf.mxu0
  %v7703 = vadd.f32 %v7523, %v7702
  %7704 = vmatmul.bf16.gmra.mxu0 %v7583
  %v7705 = vpop.f32.mrf.mxu0
  %v7706 = vadd.f32 %v7523, %v7705
  %v7707 = vpop.f32.mrf.mxu0
  %v7708 = vadd.f32 %v7523, %v7707
  %7709 = vmatmul.bf16.gmra.mxu0 %v7585
  %v7710 = vpop.f32.mrf.mxu0
  %v7711 = vadd.f32 %v7523, %v7710
  %v7712 = vpop.f32.mrf.mxu0
  %v7713 = vadd.f32 %v7523, %v7712
  %7714 = vmatmul.bf16.gmra.mxu0 %v7587
  %v7715 = vpop.f32.mrf.mxu0
  %v7716 = vadd.f32 %v7523, %v7715
  %v7717 = vpop.f32.mrf.mxu0
  %v7718 = vadd.f32 %v7523, %v7717
  %7719 = vmatmul.bf16.gmra.mxu0 %v7589
  %v7720 = vpop.f32.mrf.mxu0
  %v7721 = vadd.f32 %v7523, %v7720
  %v7722 = vpop.f32.mrf.mxu0
  %v7723 = vadd.f32 %v7523, %v7722
  %7724 = vmatmul.bf16.gmra.mxu0 %v7591
  %v7725 = vpop.f32.mrf.mxu0
  %v7726 = vadd.f32 %v7523, %v7725
  %v7727 = vpop.f32.mrf.mxu0
  %v7728 = vadd.f32 %v7523, %v7727
  %7729 = vmatmul.bf16.gmra.mxu0 %v7593
  %v7730 = vpop.f32.mrf.mxu0
  %v7731 = vadd.f32 %v7523, %v7730
  %v7732 = vpop.f32.mrf.mxu0
  %v7733 = vadd.f32 %v7523, %v7732
  %7734 = vmatmul.bf16.gmra.mxu0 %v7595
  %v7735 = vpop.f32.mrf.mxu0
  %v7736 = vadd.f32 %v7523, %v7735
  %v7737 = vpop.f32.mrf.mxu0
  %v7738 = vadd.f32 %v7523, %v7737
  %7739 = vmatmul.bf16.gmra.mxu0 %v7597
  %v7740 = vpop.f32.mrf.mxu0
  %v7741 = vadd.f32 %v7523, %v7740
  %v7742 = vpop.f32.mrf.mxu0
  %v7743 = vadd.f32 %v7523, %v7742
  %7744 = vmatmul.bf16.gmra.mxu0 %v7599
  %v7745 = vpop.f32.mrf.mxu0
  %v7746 = vadd.f32 %v7523, %v7745
  %v7747 = vpop.f32.mrf.mxu0
  %v7748 = vadd.f32 %v7523, %v7747
  %7749 = vmatmul.bf16.gmra.mxu0 %v7601
  %v7750 = vpop.f32.mrf.mxu0
  %v7751 = vadd.f32 %v7523, %v7750
  %v7752 = vpop.f32.mrf.mxu0
  %v7753 = vadd.f32 %v7523, %v7752
  %7754 = vmatmul.bf16.gmra.mxu0 %v7603
  %v7755 = vpop.f32.mrf.mxu0
  %v7756 = vadd.f32 %v7523, %v7755
  %v7757 = vpop.f32.mrf.mxu0
  %v7758 = vadd.f32 %v7523, %v7757
  %7759 = vmatmul.bf16.gmra.mxu0 %v7605
  %v7760 = vpop.f32.mrf.mxu0
  %v7761 = vadd.f32 %v7523, %v7760
  %v7762 = vpop.f32.mrf.mxu0
  %v7763 = vadd.f32 %v7523, %v7762
  %7764 = vmatmul.bf16.gmra.mxu0 %v7607
  %v7765 = vpop.f32.mrf.mxu0
  %v7766 = vadd.f32 %v7523, %v7765
  %v7767 = vpop.f32.mrf.mxu0
  %v7768 = vadd.f32 %v7523, %v7767
  %7769 = vmatmul.bf16.gmra.mxu0 %v7609
  %v7770 = vpop.f32.mrf.mxu0
  %v7771 = vadd.f32 %v7523, %v7770
  %v7772 = vpop.f32.mrf.mxu0
  %v7773 = vadd.f32 %v7523, %v7772
  %7774 = vmatmul.bf16.gmra.mxu0 %v7611
  %v7775 = vpop.f32.mrf.mxu0
  %v7776 = vadd.f32 %v7523, %v7775
  %v7777 = vpop.f32.mrf.mxu0
  %v7778 = vadd.f32 %v7523, %v7777
  %7779 = vmatmul.bf16.gmra.mxu0 %v7613
  %v7780 = vpop.f32.mrf.mxu0
  %v7781 = vadd.f32 %v7523, %v7780
  %v7782 = vpop.f32.mrf.mxu0
  %v7783 = vadd.f32 %v7523, %v7782
  %7784 = vmatmul.bf16.gmra.mxu0 %v7615
  %v7785 = vpop.f32.mrf.mxu0
  %v7786 = vadd.f32 %v7523, %v7785
  %v7787 = vpop.f32.mrf.mxu0
  %v7788 = vadd.f32 %v7523, %v7787
  %7789 = vdwg.mxu0
  %v7790 = vld [vmem:[%s4] sm:$0x1]
  %v7791 = vld [vmem:[%s5] sm:$0x1]
  %v7792 = vsel %vm5864, %v7631, 0.0
  %v7793 = vsel %vm5864, %v7633, 0.0
  %v7794 = vadd.f32 %v7792, %v7793
  %v7795 = vsel %vm5864, %v7636, 0.0
  %v7796 = vadd.f32 %v7794, %v7795
  %v7797 = vsel %vm5864, %v7638, 0.0
  %v7798 = vadd.f32 %v7796, %v7797
  %v7799 = vsel %vm5864, %v7641, 0.0
  %v7800 = vadd.f32 %v7798, %v7799
  %v7801 = vsel %vm5864, %v7643, 0.0
  %v7802 = vadd.f32 %v7800, %v7801
  %v7803 = vsel %vm5864, %v7646, 0.0
  %v7804 = vadd.f32 %v7802, %v7803
  %v7805 = vsel %vm5864, %v7648, 0.0
  %v7806 = vadd.f32 %v7804, %v7805
  %v7807 = vsel %vm5864, %v7651, 0.0
  %v7808 = vadd.f32 %v7806, %v7807
  %v7809 = vsel %vm5864, %v7653, 0.0
  %v7810 = vadd.f32 %v7808, %v7809
  %v7811 = vsel %vm5864, %v7656, 0.0
  %v7812 = vadd.f32 %v7810, %v7811
  %v7813 = vsel %vm5864, %v7658, 0.0
  %v7814 = vadd.f32 %v7812, %v7813
  %v7815 = vsel %vm5864, %v7661, 0.0
  %v7816 = vadd.f32 %v7814, %v7815
  %v7817 = vsel %vm5864, %v7663, 0.0
  %v7818 = vadd.f32 %v7816, %v7817
  %v7819 = vsel %vm5864, %v7666, 0.0
  %v7820 = vadd.f32 %v7818, %v7819
  %v7821 = vsel %vm5864, %v7668, 0.0
  %v7822 = vadd.f32 %v7820, %v7821
  %v7823 = vsel %vm5864, %v7671, 0.0
  %v7824 = vadd.f32 %v7822, %v7823
  %v7825 = vsel %vm5864, %v7673, 0.0
  %v7826 = vadd.f32 %v7824, %v7825
  %v7827 = vsel %vm5864, %v7676, 0.0
  %v7828 = vadd.f32 %v7826, %v7827
  %v7829 = vsel %vm5864, %v7678, 0.0
  %v7830 = vadd.f32 %v7828, %v7829
  %v7831 = vsel %vm5864, %v7681, 0.0
  %v7832 = vadd.f32 %v7830, %v7831
  %v7833 = vsel %vm5864, %v7683, 0.0
  %v7834 = vadd.f32 %v7832, %v7833
  %v7835 = vsel %vm5864, %v7686, 0.0
  %v7836 = vadd.f32 %v7834, %v7835
  %v7837 = vsel %vm5864, %v7688, 0.0
  %v7838 = vadd.f32 %v7836, %v7837
  %v7839 = vsel %vm5864, %v7691, 0.0
  %v7840 = vadd.f32 %v7838, %v7839
  %v7841 = vsel %vm5864, %v7693, 0.0
  %v7842 = vadd.f32 %v7840, %v7841
  %v7843 = vsel %vm5864, %v7696, 0.0
  %v7844 = vadd.f32 %v7842, %v7843
  %v7845 = vsel %vm5864, %v7698, 0.0
  %v7846 = vadd.f32 %v7844, %v7845
  %v7847 = vsel %vm5864, %v7701, 0.0
  %v7848 = vadd.f32 %v7846, %v7847
  %v7849 = vsel %vm5864, %v7703, 0.0
  %v7850 = vadd.f32 %v7848, %v7849
  %v7851 = vsel %vm5864, %v7706, 0.0
  %v7852 = vadd.f32 %v7850, %v7851
  %v7853 = vsel %vm5864, %v7708, 0.0
  %v7854 = vadd.f32 %v7852, %v7853
  %v7855 = vsel %vm5864, %v7711, 0.0
  %v7856 = vadd.f32 %v7854, %v7855
  %v7857 = vsel %vm5864, %v7713, 0.0
  %v7858 = vadd.f32 %v7856, %v7857
  %v7859 = vsel %vm5864, %v7716, 0.0
  %v7860 = vadd.f32 %v7858, %v7859
  %v7861 = vsel %vm5864, %v7718, 0.0
  %v7862 = vadd.f32 %v7860, %v7861
  %v7863 = vsel %vm5864, %v7721, 0.0
  %v7864 = vadd.f32 %v7862, %v7863
  %v7865 = vsel %vm5864, %v7723, 0.0
  %v7866 = vadd.f32 %v7864, %v7865
  %v7867 = vsel %vm5864, %v7726, 0.0
  %v7868 = vadd.f32 %v7866, %v7867
  %v7869 = vsel %vm5864, %v7728, 0.0
  %v7870 = vadd.f32 %v7868, %v7869
  %v7871 = vsel %vm5864, %v7731, 0.0
  %v7872 = vadd.f32 %v7870, %v7871
  %v7873 = vsel %vm5864, %v7733, 0.0
  %v7874 = vadd.f32 %v7872, %v7873
  %v7875 = vsel %vm5864, %v7736, 0.0
  %v7876 = vadd.f32 %v7874, %v7875
  %v7877 = vsel %vm5864, %v7738, 0.0
  %v7878 = vadd.f32 %v7876, %v7877
  %v7879 = vsel %vm5864, %v7741, 0.0
  %v7880 = vadd.f32 %v7878, %v7879
  %v7881 = vsel %vm5864, %v7743, 0.0
  %v7882 = vadd.f32 %v7880, %v7881
  %v7883 = vsel %vm5864, %v7746, 0.0
  %v7884 = vadd.f32 %v7882, %v7883
  %v7885 = vsel %vm5864, %v7748, 0.0
  %v7886 = vadd.f32 %v7884, %v7885
  %v7887 = vsel %vm5864, %v7751, 0.0
  %v7888 = vadd.f32 %v7886, %v7887
  %v7889 = vsel %vm5864, %v7753, 0.0
  %v7890 = vadd.f32 %v7888, %v7889
  %v7891 = vsel %vm5864, %v7756, 0.0
  %v7892 = vadd.f32 %v7890, %v7891
  %v7893 = vsel %vm5864, %v7758, 0.0
  %v7894 = vadd.f32 %v7892, %v7893
  %v7895 = vsel %vm5864, %v7761, 0.0
  %v7896 = vadd.f32 %v7894, %v7895
  %v7897 = vsel %vm5864, %v7763, 0.0
  %v7898 = vadd.f32 %v7896, %v7897
  %v7899 = vsel %vm5864, %v7766, 0.0
  %v7900 = vadd.f32 %v7898, %v7899
  %v7901 = vsel %vm5864, %v7768, 0.0
  %v7902 = vadd.f32 %v7900, %v7901
  %v7903 = vsel %vm5864, %v7771, 0.0
  %v7904 = vadd.f32 %v7902, %v7903
  %v7905 = vsel %vm5864, %v7773, 0.0
  %v7906 = vadd.f32 %v7904, %v7905
  %v7907 = vsel %vm5864, %v7776, 0.0
  %v7908 = vadd.f32 %v7906, %v7907
  %v7909 = vsel %vm5864, %v7778, 0.0
  %v7910 = vadd.f32 %v7908, %v7909
  %v7911 = vsel %vm5864, %v7781, 0.0
  %v7912 = vadd.f32 %v7910, %v7911
  %v7913 = vsel %vm5864, %v7783, 0.0
  %v7914 = vadd.f32 %v7912, %v7913
  %v7915 = vsel %vm5864, %v7786, 0.0
  %v7916 = vadd.f32 %v7914, %v7915
  %v7917 = vsel %vm5864, %v7788, 0.0
  %v7918 = vadd.f32 %v7916, %v7917
  %v7919 = vrot.slane %v7918, 4
  %v7920 = vadd.f32 %v7918, %v7919
  %v7921 = vrot.slane %v7920, 2
  %v7922 = vadd.f32 %v7920, %v7921
  %v7923 = vrot.slane %v7922, 1
  %v7924 = vadd.f32 %v7922, %v7923
  %v7925 = vrcp.pop 512.0
  %v7926 = vmul.f32 512.0, %v7925
  %v7927 = vsub.f32 1.0, %v7926
  %v7928 = vmul.f32 %v7925, %v7927
  %v7929 = vadd.f32 %v7925, %v7928
  %vm7930 = vweird.f32 %v7925
  %v7931 = vsel %vm7930, %v7925, %v7929
  %v7932 = vmul.f32 %v7924, %v7931
  %v7933 = vsub.f32 %v7631, %v7932
  %v7934 = vsub.f32 %v7633, %v7932
  %v7935 = vsub.f32 %v7636, %v7932
  %v7936 = vsub.f32 %v7638, %v7932
  %v7937 = vsub.f32 %v7641, %v7932
  %v7938 = vsub.f32 %v7643, %v7932
  %v7939 = vsub.f32 %v7646, %v7932
  %v7940 = vsub.f32 %v7648, %v7932
  %v7941 = vsub.f32 %v7651, %v7932
  %v7942 = vsub.f32 %v7653, %v7932
  %v7943 = vsub.f32 %v7656, %v7932
  %v7944 = vsub.f32 %v7658, %v7932
  %v7945 = vsub.f32 %v7661, %v7932
  %v7946 = vsub.f32 %v7663, %v7932
  %v7947 = vsub.f32 %v7666, %v7932
  %v7948 = vsub.f32 %v7668, %v7932
  %v7949 = vsub.f32 %v7671, %v7932
  %v7950 = vsub.f32 %v7673, %v7932
  %v7951 = vsub.f32 %v7676, %v7932
  %v7952 = vsub.f32 %v7678, %v7932
  %v7953 = vsub.f32 %v7681, %v7932
  %v7954 = vsub.f32 %v7683, %v7932
  %v7955 = vsub.f32 %v7686, %v7932
  %v7956 = vsub.f32 %v7688, %v7932
  %v7957 = vsub.f32 %v7691, %v7932
  %v7958 = vsub.f32 %v7693, %v7932
  %v7959 = vsub.f32 %v7696, %v7932
  %v7960 = vsub.f32 %v7698, %v7932
  %v7961 = vsub.f32 %v7701, %v7932
  %v7962 = vsub.f32 %v7703, %v7932
  %v7963 = vsub.f32 %v7706, %v7932
  %v7964 = vsub.f32 %v7708, %v7932
  %v7965 = vsub.f32 %v7711, %v7932
  %v7966 = vsub.f32 %v7713, %v7932
  %v7967 = vsub.f32 %v7716, %v7932
  %v7968 = vsub.f32 %v7718, %v7932
  %v7969 = vsub.f32 %v7721, %v7932
  %v7970 = vsub.f32 %v7723, %v7932
  %v7971 = vsub.f32 %v7726, %v7932
  %v7972 = vsub.f32 %v7728, %v7932
  %v7973 = vsub.f32 %v7731, %v7932
  %v7974 = vsub.f32 %v7733, %v7932
  %v7975 = vsub.f32 %v7736, %v7932
  %v7976 = vsub.f32 %v7738, %v7932
  %v7977 = vsub.f32 %v7741, %v7932
  %v7978 = vsub.f32 %v7743, %v7932
  %v7979 = vsub.f32 %v7746, %v7932
  %v7980 = vsub.f32 %v7748, %v7932
  %v7981 = vsub.f32 %v7751, %v7932
  %v7982 = vsub.f32 %v7753, %v7932
  %v7983 = vsub.f32 %v7756, %v7932
  %v7984 = vsub.f32 %v7758, %v7932
  %v7985 = vsub.f32 %v7761, %v7932
  %v7986 = vsub.f32 %v7763, %v7932
  %v7987 = vsub.f32 %v7766, %v7932
  %v7988 = vsub.f32 %v7768, %v7932
  %v7989 = vsub.f32 %v7771, %v7932
  %v7990 = vsub.f32 %v7773, %v7932
  %v7991 = vsub.f32 %v7776, %v7932
  %v7992 = vsub.f32 %v7778, %v7932
  %v7993 = vsub.f32 %v7781, %v7932
  %v7994 = vsub.f32 %v7783, %v7932
  %v7995 = vsub.f32 %v7786, %v7932
  %v7996 = vsub.f32 %v7788, %v7932
  %v7997 = vmul.f32 %v7933, %v7933
  %v7998 = vmul.f32 %v7934, %v7934
  %v7999 = vmul.f32 %v7935, %v7935
  %v8000 = vmul.f32 %v7936, %v7936
  %v8001 = vmul.f32 %v7937, %v7937
  %v8002 = vmul.f32 %v7938, %v7938
  %v8003 = vmul.f32 %v7939, %v7939
  %v8004 = vmul.f32 %v7940, %v7940
  %v8005 = vmul.f32 %v7941, %v7941
  %v8006 = vmul.f32 %v7942, %v7942
  %v8007 = vmul.f32 %v7943, %v7943
  %v8008 = vmul.f32 %v7944, %v7944
  %v8009 = vmul.f32 %v7945, %v7945
  %v8010 = vmul.f32 %v7946, %v7946
  %v8011 = vmul.f32 %v7947, %v7947
  %v8012 = vmul.f32 %v7948, %v7948
  %v8013 = vmul.f32 %v7949, %v7949
  %v8014 = vmul.f32 %v7950, %v7950
  %v8015 = vmul.f32 %v7951, %v7951
  %v8016 = vmul.f32 %v7952, %v7952
  %v8017 = vmul.f32 %v7953, %v7953
  %v8018 = vmul.f32 %v7954, %v7954
  %v8019 = vmul.f32 %v7955, %v7955
  %v8020 = vmul.f32 %v7956, %v7956
  %v8021 = vmul.f32 %v7957, %v7957
  %v8022 = vmul.f32 %v7958, %v7958
  %v8023 = vmul.f32 %v7959, %v7959
  %v8024 = vmul.f32 %v7960, %v7960
  %v8025 = vmul.f32 %v7961, %v7961
  %v8026 = vmul.f32 %v7962, %v7962
  %v8027 = vmul.f32 %v7963, %v7963
  %v8028 = vmul.f32 %v7964, %v7964
  %v8029 = vmul.f32 %v7965, %v7965
  %v8030 = vmul.f32 %v7966, %v7966
  %v8031 = vmul.f32 %v7967, %v7967
  %v8032 = vmul.f32 %v7968, %v7968
  %v8033 = vmul.f32 %v7969, %v7969
  %v8034 = vmul.f32 %v7970, %v7970
  %v8035 = vmul.f32 %v7971, %v7971
  %v8036 = vmul.f32 %v7972, %v7972
  %v8037 = vmul.f32 %v7973, %v7973
  %v8038 = vmul.f32 %v7974, %v7974
  %v8039 = vmul.f32 %v7975, %v7975
  %v8040 = vmul.f32 %v7976, %v7976
  %v8041 = vmul.f32 %v7977, %v7977
  %v8042 = vmul.f32 %v7978, %v7978
  %v8043 = vmul.f32 %v7979, %v7979
  %v8044 = vmul.f32 %v7980, %v7980
  %v8045 = vmul.f32 %v7981, %v7981
  %v8046 = vmul.f32 %v7982, %v7982
  %v8047 = vmul.f32 %v7983, %v7983
  %v8048 = vmul.f32 %v7984, %v7984
  %v8049 = vmul.f32 %v7985, %v7985
  %v8050 = vmul.f32 %v7986, %v7986
  %v8051 = vmul.f32 %v7987, %v7987
  %v8052 = vmul.f32 %v7988, %v7988
  %v8053 = vmul.f32 %v7989, %v7989
  %v8054 = vmul.f32 %v7990, %v7990
  %v8055 = vmul.f32 %v7991, %v7991
  %v8056 = vmul.f32 %v7992, %v7992
  %v8057 = vmul.f32 %v7993, %v7993
  %v8058 = vmul.f32 %v7994, %v7994
  %v8059 = vmul.f32 %v7995, %v7995
  %v8060 = vmul.f32 %v7996, %v7996
  %v8061 = vsel %vm5864, %v7997, 0.0
  %v8062 = vsel %vm5864, %v7998, 0.0
  %v8063 = vadd.f32 %v8061, %v8062
  %v8064 = vsel %vm5864, %v7999, 0.0
  %v8065 = vadd.f32 %v8063, %v8064
  %v8066 = vsel %vm5864, %v8000, 0.0
  %v8067 = vadd.f32 %v8065, %v8066
  %v8068 = vsel %vm5864, %v8001, 0.0
  %v8069 = vadd.f32 %v8067, %v8068
  %v8070 = vsel %vm5864, %v8002, 0.0
  %v8071 = vadd.f32 %v8069, %v8070
  %v8072 = vsel %vm5864, %v8003, 0.0
  %v8073 = vadd.f32 %v8071, %v8072
  %v8074 = vsel %vm5864, %v8004, 0.0
  %v8075 = vadd.f32 %v8073, %v8074
  %v8076 = vsel %vm5864, %v8005, 0.0
  %v8077 = vadd.f32 %v8075, %v8076
  %v8078 = vsel %vm5864, %v8006, 0.0
  %v8079 = vadd.f32 %v8077, %v8078
  %v8080 = vsel %vm5864, %v8007, 0.0
  %v8081 = vadd.f32 %v8079, %v8080
  %v8082 = vsel %vm5864, %v8008, 0.0
  %v8083 = vadd.f32 %v8081, %v8082
  %v8084 = vsel %vm5864, %v8009, 0.0
  %v8085 = vadd.f32 %v8083, %v8084
  %v8086 = vsel %vm5864, %v8010, 0.0
  %v8087 = vadd.f32 %v8085, %v8086
  %v8088 = vsel %vm5864, %v8011, 0.0
  %v8089 = vadd.f32 %v8087, %v8088
  %v8090 = vsel %vm5864, %v8012, 0.0
  %v8091 = vadd.f32 %v8089, %v8090
  %v8092 = vsel %vm5864, %v8013, 0.0
  %v8093 = vadd.f32 %v8091, %v8092
  %v8094 = vsel %vm5864, %v8014, 0.0
  %v8095 = vadd.f32 %v8093, %v8094
  %v8096 = vsel %vm5864, %v8015, 0.0
  %v8097 = vadd.f32 %v8095, %v8096
  %v8098 = vsel %vm5864, %v8016, 0.0
  %v8099 = vadd.f32 %v8097, %v8098
  %v8100 = vsel %vm5864, %v8017, 0.0
  %v8101 = vadd.f32 %v8099, %v8100
  %v8102 = vsel %vm5864, %v8018, 0.0
  %v8103 = vadd.f32 %v8101, %v8102
  %v8104 = vsel %vm5864, %v8019, 0.0
  %v8105 = vadd.f32 %v8103, %v8104
  %v8106 = vsel %vm5864, %v8020, 0.0
  %v8107 = vadd.f32 %v8105, %v8106
  %v8108 = vsel %vm5864, %v8021, 0.0
  %v8109 = vadd.f32 %v8107, %v8108
  %v8110 = vsel %vm5864, %v8022, 0.0
  %v8111 = vadd.f32 %v8109, %v8110
  %v8112 = vsel %vm5864, %v8023, 0.0
  %v8113 = vadd.f32 %v8111, %v8112
  %v8114 = vsel %vm5864, %v8024, 0.0
  %v8115 = vadd.f32 %v8113, %v8114
  %v8116 = vsel %vm5864, %v8025, 0.0
  %v8117 = vadd.f32 %v8115, %v8116
  %v8118 = vsel %vm5864, %v8026, 0.0
  %v8119 = vadd.f32 %v8117, %v8118
  %v8120 = vsel %vm5864, %v8027, 0.0
  %v8121 = vadd.f32 %v8119, %v8120
  %v8122 = vsel %vm5864, %v8028, 0.0
  %v8123 = vadd.f32 %v8121, %v8122
  %v8124 = vsel %vm5864, %v8029, 0.0
  %v8125 = vadd.f32 %v8123, %v8124
  %v8126 = vsel %vm5864, %v8030, 0.0
  %v8127 = vadd.f32 %v8125, %v8126
  %v8128 = vsel %vm5864, %v8031, 0.0
  %v8129 = vadd.f32 %v8127, %v8128
  %v8130 = vsel %vm5864, %v8032, 0.0
  %v8131 = vadd.f32 %v8129, %v8130
  %v8132 = vsel %vm5864, %v8033, 0.0
  %v8133 = vadd.f32 %v8131, %v8132
  %v8134 = vsel %vm5864, %v8034, 0.0
  %v8135 = vadd.f32 %v8133, %v8134
  %v8136 = vsel %vm5864, %v8035, 0.0
  %v8137 = vadd.f32 %v8135, %v8136
  %v8138 = vsel %vm5864, %v8036, 0.0
  %v8139 = vadd.f32 %v8137, %v8138
  %v8140 = vsel %vm5864, %v8037, 0.0
  %v8141 = vadd.f32 %v8139, %v8140
  %v8142 = vsel %vm5864, %v8038, 0.0
  %v8143 = vadd.f32 %v8141, %v8142
  %v8144 = vsel %vm5864, %v8039, 0.0
  %v8145 = vadd.f32 %v8143, %v8144
  %v8146 = vsel %vm5864, %v8040, 0.0
  %v8147 = vadd.f32 %v8145, %v8146
  %v8148 = vsel %vm5864, %v8041, 0.0
  %v8149 = vadd.f32 %v8147, %v8148
  %v8150 = vsel %vm5864, %v8042, 0.0
  %v8151 = vadd.f32 %v8149, %v8150
  %v8152 = vsel %vm5864, %v8043, 0.0
  %v8153 = vadd.f32 %v8151, %v8152
  %v8154 = vsel %vm5864, %v8044, 0.0
  %v8155 = vadd.f32 %v8153, %v8154
  %v8156 = vsel %vm5864, %v8045, 0.0
  %v8157 = vadd.f32 %v8155, %v8156
  %v8158 = vsel %vm5864, %v8046, 0.0
  %v8159 = vadd.f32 %v8157, %v8158
  %v8160 = vsel %vm5864, %v8047, 0.0
  %v8161 = vadd.f32 %v8159, %v8160
  %v8162 = vsel %vm5864, %v8048, 0.0
  %v8163 = vadd.f32 %v8161, %v8162
  %v8164 = vsel %vm5864, %v8049, 0.0
  %v8165 = vadd.f32 %v8163, %v8164
  %v8166 = vsel %vm5864, %v8050, 0.0
  %v8167 = vadd.f32 %v8165, %v8166
  %v8168 = vsel %vm5864, %v8051, 0.0
  %v8169 = vadd.f32 %v8167, %v8168
  %v8170 = vsel %vm5864, %v8052, 0.0
  %v8171 = vadd.f32 %v8169, %v8170
  %v8172 = vsel %vm5864, %v8053, 0.0
  %v8173 = vadd.f32 %v8171, %v8172
  %v8174 = vsel %vm5864, %v8054, 0.0
  %v8175 = vadd.f32 %v8173, %v8174
  %v8176 = vsel %vm5864, %v8055, 0.0
  %v8177 = vadd.f32 %v8175, %v8176
  %v8178 = vsel %vm5864, %v8056, 0.0
  %v8179 = vadd.f32 %v8177, %v8178
  %v8180 = vsel %vm5864, %v8057, 0.0
  %v8181 = vadd.f32 %v8179, %v8180
  %v8182 = vsel %vm5864, %v8058, 0.0
  %v8183 = vadd.f32 %v8181, %v8182
  %v8184 = vsel %vm5864, %v8059, 0.0
  %v8185 = vadd.f32 %v8183, %v8184
  %v8186 = vsel %vm5864, %v8060, 0.0
  %v8187 = vadd.f32 %v8185, %v8186
  %v8188 = vrot.slane %v8187, 4
  %v8189 = vadd.f32 %v8187, %v8188
  %v8190 = vrot.slane %v8189, 2
  %v8191 = vadd.f32 %v8189, %v8190
  %v8192 = vrot.slane %v8191, 1
  %v8193 = vadd.f32 %v8191, %v8192
  %v8194 = vmul.f32 %v8193, %v7931
  %v8195 = vadd.f32 %v8194, 1e-05
  %v8196 = vrsqrt.pop %v8195
  %v8197 = vmul.f32 %v8196, %v8195
  %v8198 = vmul.f32 %v8197, %v8196
  %v8199 = vmul.f32 0.5, %v8198
  %v8200 = vsub.f32 1.5, %v8199
  %v8201 = vmul.f32 %v8196, %v8200
  %vm8202 = vweird.f32 %v8195
  %vm8203 = vweird.f32 %v8196
  %vm8204 = vmor %vm8202, %vm8203
  %v8205 = vsel %vm8204, %v8196, %v8201
  %v8206 = vmul.f32 %v7933, %v8205
  %v8207 = vmul.f32 %v7934, %v8205
  %v8208 = vmul.f32 %v7935, %v8205
  %v8209 = vmul.f32 %v7936, %v8205
  %v8210 = vmul.f32 %v7937, %v8205
  %v8211 = vmul.f32 %v7938, %v8205
  %v8212 = vmul.f32 %v7939, %v8205
  %v8213 = vmul.f32 %v7940, %v8205
  %v8214 = vmul.f32 %v7941, %v8205
  %v8215 = vmul.f32 %v7942, %v8205
  %v8216 = vmul.f32 %v7943, %v8205
  %v8217 = vmul.f32 %v7944, %v8205
  %v8218 = vmul.f32 %v7945, %v8205
  %v8219 = vmul.f32 %v7946, %v8205
  %v8220 = vmul.f32 %v7947, %v8205
  %v8221 = vmul.f32 %v7948, %v8205
  %v8222 = vmul.f32 %v7949, %v8205
  %v8223 = vmul.f32 %v7950, %v8205
  %v8224 = vmul.f32 %v7951, %v8205
  %v8225 = vmul.f32 %v7952, %v8205
  %v8226 = vmul.f32 %v7953, %v8205
  %v8227 = vmul.f32 %v7954, %v8205
  %v8228 = vmul.f32 %v7955, %v8205
  %v8229 = vmul.f32 %v7956, %v8205
  %v8230 = vmul.f32 %v7957, %v8205
  %v8231 = vmul.f32 %v7958, %v8205
  %v8232 = vmul.f32 %v7959, %v8205
  %v8233 = vmul.f32 %v7960, %v8205
  %v8234 = vmul.f32 %v7961, %v8205
  %v8235 = vmul.f32 %v7962, %v8205
  %v8236 = vmul.f32 %v7963, %v8205
  %v8237 = vmul.f32 %v7964, %v8205
  %v8238 = vmul.f32 %v7965, %v8205
  %v8239 = vmul.f32 %v7966, %v8205
  %v8240 = vmul.f32 %v7967, %v8205
  %v8241 = vmul.f32 %v7968, %v8205
  %v8242 = vmul.f32 %v7969, %v8205
  %v8243 = vmul.f32 %v7970, %v8205
  %v8244 = vmul.f32 %v7971, %v8205
  %v8245 = vmul.f32 %v7972, %v8205
  %v8246 = vmul.f32 %v7973, %v8205
  %v8247 = vmul.f32 %v7974, %v8205
  %v8248 = vmul.f32 %v7975, %v8205
  %v8249 = vmul.f32 %v7976, %v8205
  %v8250 = vmul.f32 %v7977, %v8205
  %v8251 = vmul.f32 %v7978, %v8205
  %v8252 = vmul.f32 %v7979, %v8205
  %v8253 = vmul.f32 %v7980, %v8205
  %v8254 = vmul.f32 %v7981, %v8205
  %v8255 = vmul.f32 %v7982, %v8205
  %v8256 = vmul.f32 %v7983, %v8205
  %v8257 = vmul.f32 %v7984, %v8205
  %v8258 = vmul.f32 %v7985, %v8205
  %v8259 = vmul.f32 %v7986, %v8205
  %v8260 = vmul.f32 %v7987, %v8205
  %v8261 = vmul.f32 %v7988, %v8205
  %v8262 = vmul.f32 %v7989, %v8205
  %v8263 = vmul.f32 %v7990, %v8205
  %v8264 = vmul.f32 %v7991, %v8205
  %v8265 = vmul.f32 %v7992, %v8205
  %v8266 = vmul.f32 %v7993, %v8205
  %v8267 = vmul.f32 %v7994, %v8205
  %v8268 = vmul.f32 %v7995, %v8205
  %v8269 = vmul.f32 %v7996, %v8205
  %v8271 = vperm.slane %v7790, 0
  %v8273 = vmul.f32 %v8206, %v8271
  %v8274 = vmul.f32 %v8207, %v8271
  %v8275 = vmul.f32 %v8208, %v8271
  %v8276 = vmul.f32 %v8209, %v8271
  %v8277 = vmul.f32 %v8210, %v8271
  %v8278 = vmul.f32 %v8211, %v8271
  %v8279 = vmul.f32 %v8212, %v8271
  %v8280 = vmul.f32 %v8213, %v8271
  %v8281 = vmul.f32 %v8214, %v8271
  %v8282 = vmul.f32 %v8215, %v8271
  %v8283 = vmul.f32 %v8216, %v8271
  %v8284 = vmul.f32 %v8217, %v8271
  %v8285 = vmul.f32 %v8218, %v8271
  %v8286 = vmul.f32 %v8219, %v8271
  %v8287 = vmul.f32 %v8220, %v8271
  %v8288 = vmul.f32 %v8221, %v8271
  %v8289 = vmul.f32 %v8222, %v8271
  %v8290 = vmul.f32 %v8223, %v8271
  %v8291 = vmul.f32 %v8224, %v8271
  %v8292 = vmul.f32 %v8225, %v8271
  %v8293 = vmul.f32 %v8226, %v8271
  %v8294 = vmul.f32 %v8227, %v8271
  %v8295 = vmul.f32 %v8228, %v8271
  %v8296 = vmul.f32 %v8229, %v8271
  %v8297 = vmul.f32 %v8230, %v8271
  %v8298 = vmul.f32 %v8231, %v8271
  %v8299 = vmul.f32 %v8232, %v8271
  %v8300 = vmul.f32 %v8233, %v8271
  %v8301 = vmul.f32 %v8234, %v8271
  %v8302 = vmul.f32 %v8235, %v8271
  %v8303 = vmul.f32 %v8236, %v8271
  %v8304 = vmul.f32 %v8237, %v8271
  %v8305 = vmul.f32 %v8238, %v8271
  %v8306 = vmul.f32 %v8239, %v8271
  %v8307 = vmul.f32 %v8240, %v8271
  %v8308 = vmul.f32 %v8241, %v8271
  %v8309 = vmul.f32 %v8242, %v8271
  %v8310 = vmul.f32 %v8243, %v8271
  %v8311 = vmul.f32 %v8244, %v8271
  %v8312 = vmul.f32 %v8245, %v8271
  %v8313 = vmul.f32 %v8246, %v8271
  %v8314 = vmul.f32 %v8247, %v8271
  %v8315 = vmul.f32 %v8248, %v8271
  %v8316 = vmul.f32 %v8249, %v8271
  %v8317 = vmul.f32 %v8250, %v8271
  %v8318 = vmul.f32 %v8251, %v8271
  %v8319 = vmul.f32 %v8252, %v8271
  %v8320 = vmul.f32 %v8253, %v8271
  %v8321 = vmul.f32 %v8254, %v8271
  %v8322 = vmul.f32 %v8255, %v8271
  %v8323 = vmul.f32 %v8256, %v8271
  %v8324 = vmul.f32 %v8257, %v8271
  %v8325 = vmul.f32 %v8258, %v8271
  %v8326 = vmul.f32 %v8259, %v8271
  %v8327 = vmul.f32 %v8260, %v8271
  %v8328 = vmul.f32 %v8261, %v8271
  %v8329 = vmul.f32 %v8262, %v8271
  %v8330 = vmul.f32 %v8263, %v8271
  %v8331 = vmul.f32 %v8264, %v8271
  %v8332 = vmul.f32 %v8265, %v8271
  %v8333 = vmul.f32 %v8266, %v8271
  %v8334 = vmul.f32 %v8267, %v8271
  %v8335 = vmul.f32 %v8268, %v8271
  %v8336 = vmul.f32 %v8269, %v8271
  %v8338 = vperm.slane %v7791, 0
  %v8340 = vadd.f32 %v8273, %v8338
  %v8341 = vadd.f32 %v8274, %v8338
  %v8342 = vadd.f32 %v8275, %v8338
  %v8343 = vadd.f32 %v8276, %v8338
  %v8344 = vadd.f32 %v8277, %v8338
  %v8345 = vadd.f32 %v8278, %v8338
  %v8346 = vadd.f32 %v8279, %v8338
  %v8347 = vadd.f32 %v8280, %v8338
  %v8348 = vadd.f32 %v8281, %v8338
  %v8349 = vadd.f32 %v8282, %v8338
  %v8350 = vadd.f32 %v8283, %v8338
  %v8351 = vadd.f32 %v8284, %v8338
  %v8352 = vadd.f32 %v8285, %v8338
  %v8353 = vadd.f32 %v8286, %v8338
  %v8354 = vadd.f32 %v8287, %v8338
  %v8355 = vadd.f32 %v8288, %v8338
  %v8356 = vadd.f32 %v8289, %v8338
  %v8357 = vadd.f32 %v8290, %v8338
  %v8358 = vadd.f32 %v8291, %v8338
  %v8359 = vadd.f32 %v8292, %v8338
  %v8360 = vadd.f32 %v8293, %v8338
  %v8361 = vadd.f32 %v8294, %v8338
  %v8362 = vadd.f32 %v8295, %v8338
  %v8363 = vadd.f32 %v8296, %v8338
  %v8364 = vadd.f32 %v8297, %v8338
  %v8365 = vadd.f32 %v8298, %v8338
  %v8366 = vadd.f32 %v8299, %v8338
  %v8367 = vadd.f32 %v8300, %v8338
  %v8368 = vadd.f32 %v8301, %v8338
  %v8369 = vadd.f32 %v8302, %v8338
  %v8370 = vadd.f32 %v8303, %v8338
  %v8371 = vadd.f32 %v8304, %v8338
  %v8372 = vadd.f32 %v8305, %v8338
  %v8373 = vadd.f32 %v8306, %v8338
  %v8374 = vadd.f32 %v8307, %v8338
  %v8375 = vadd.f32 %v8308, %v8338
  %v8376 = vadd.f32 %v8309, %v8338
  %v8377 = vadd.f32 %v8310, %v8338
  %v8378 = vadd.f32 %v8311, %v8338
  %v8379 = vadd.f32 %v8312, %v8338
  %v8380 = vadd.f32 %v8313, %v8338
  %v8381 = vadd.f32 %v8314, %v8338
  %v8382 = vadd.f32 %v8315, %v8338
  %v8383 = vadd.f32 %v8316, %v8338
  %v8384 = vadd.f32 %v8317, %v8338
  %v8385 = vadd.f32 %v8318, %v8338
  %v8386 = vadd.f32 %v8319, %v8338
  %v8387 = vadd.f32 %v8320, %v8338
  %v8388 = vadd.f32 %v8321, %v8338
  %v8389 = vadd.f32 %v8322, %v8338
  %v8390 = vadd.f32 %v8323, %v8338
  %v8391 = vadd.f32 %v8324, %v8338
  %v8392 = vadd.f32 %v8325, %v8338
  %v8393 = vadd.f32 %v8326, %v8338
  %v8394 = vadd.f32 %v8327, %v8338
  %v8395 = vadd.f32 %v8328, %v8338
  %v8396 = vadd.f32 %v8329, %v8338
  %v8397 = vadd.f32 %v8330, %v8338
  %v8398 = vadd.f32 %v8331, %v8338
  %v8399 = vadd.f32 %v8332, %v8338
  %v8400 = vadd.f32 %v8333, %v8338
  %v8401 = vadd.f32 %v8334, %v8338
  %v8402 = vadd.f32 %v8335, %v8338
  %v8403 = vadd.f32 %v8336, %v8338
  %v8404 = vmax.f32 %v8340, 0.0
  %v8405 = vmax.f32 %v8341, 0.0
  %v8406 = vmax.f32 %v8342, 0.0
  %v8407 = vmax.f32 %v8343, 0.0
  %v8408 = vmax.f32 %v8344, 0.0
  %v8409 = vmax.f32 %v8345, 0.0
  %v8410 = vmax.f32 %v8346, 0.0
  %v8411 = vmax.f32 %v8347, 0.0
  %v8412 = vmax.f32 %v8348, 0.0
  %v8413 = vmax.f32 %v8349, 0.0
  %v8414 = vmax.f32 %v8350, 0.0
  %v8415 = vmax.f32 %v8351, 0.0
  %v8416 = vmax.f32 %v8352, 0.0
  %v8417 = vmax.f32 %v8353, 0.0
  %v8418 = vmax.f32 %v8354, 0.0
  %v8419 = vmax.f32 %v8355, 0.0
  %v8420 = vmax.f32 %v8356, 0.0
  %v8421 = vmax.f32 %v8357, 0.0
  %v8422 = vmax.f32 %v8358, 0.0
  %v8423 = vmax.f32 %v8359, 0.0
  %v8424 = vmax.f32 %v8360, 0.0
  %v8425 = vmax.f32 %v8361, 0.0
  %v8426 = vmax.f32 %v8362, 0.0
  %v8427 = vmax.f32 %v8363, 0.0
  %v8428 = vmax.f32 %v8364, 0.0
  %v8429 = vmax.f32 %v8365, 0.0
  %v8430 = vmax.f32 %v8366, 0.0
  %v8431 = vmax.f32 %v8367, 0.0
  %v8432 = vmax.f32 %v8368, 0.0
  %v8433 = vmax.f32 %v8369, 0.0
  %v8434 = vmax.f32 %v8370, 0.0
  %v8435 = vmax.f32 %v8371, 0.0
  %v8436 = vmax.f32 %v8372, 0.0
  %v8437 = vmax.f32 %v8373, 0.0
  %v8438 = vmax.f32 %v8374, 0.0
  %v8439 = vmax.f32 %v8375, 0.0
  %v8440 = vmax.f32 %v8376, 0.0
  %v8441 = vmax.f32 %v8377, 0.0
  %v8442 = vmax.f32 %v8378, 0.0
  %v8443 = vmax.f32 %v8379, 0.0
  %v8444 = vmax.f32 %v8380, 0.0
  %v8445 = vmax.f32 %v8381, 0.0
  %v8446 = vmax.f32 %v8382, 0.0
  %v8447 = vmax.f32 %v8383, 0.0
  %v8448 = vmax.f32 %v8384, 0.0
  %v8449 = vmax.f32 %v8385, 0.0
  %v8450 = vmax.f32 %v8386, 0.0
  %v8451 = vmax.f32 %v8387, 0.0
  %v8452 = vmax.f32 %v8388, 0.0
  %v8453 = vmax.f32 %v8389, 0.0
  %v8454 = vmax.f32 %v8390, 0.0
  %v8455 = vmax.f32 %v8391, 0.0
  %v8456 = vmax.f32 %v8392, 0.0
  %v8457 = vmax.f32 %v8393, 0.0
  %v8458 = vmax.f32 %v8394, 0.0
  %v8459 = vmax.f32 %v8395, 0.0
  %v8460 = vmax.f32 %v8396, 0.0
  %v8461 = vmax.f32 %v8397, 0.0
  %v8462 = vmax.f32 %v8398, 0.0
  %v8463 = vmax.f32 %v8399, 0.0
  %v8464 = vmax.f32 %v8400, 0.0
  %v8465 = vmax.f32 %v8401, 0.0
  %v8466 = vmax.f32 %v8402, 0.0
  %v8467 = vmax.f32 %v8403, 0.0
  %8468 = vst.msk [vmem:[#allocation2] sm:$0xff] %vm5864, 0.0
  %8469 = vst.msk [vmem:[#allocation2 + $0x8] sm:$0xff] %vm5864, 0.0
  %vm8470 = vcmask 25600
  %8471 = vst.msk [vmem:[#allocation2 + $0x10] sm:$0x3] %vm8470, 0.0
  %8472 = vst.msk [vmem:[#allocation2 + $0x1b0] sm:$0xff] %vm5864, 0.0
  %8473 = vst.msk [vmem:[#allocation2 + $0x1b8] sm:$0xff] %vm5864, 0.0
  %8474 = vst.msk [vmem:[#allocation2 + $0x1c0] sm:$0x3] %vm8470, 0.0
  %s8475 = scalar_lea.vmem [#allocation2], 408
  %8476 = vst.msk [vmem:[%s8475] sm:$0xff] %vm5864, 0.0
  %8477 = vst.msk [vmem:[%s8475 + $0x8] sm:$0xff] %vm5864, 0.0
  %8478 = vst.msk [vmem:[%s8475 + $0x10] sm:$0x3] %vm8470, 0.0
  %8479 = vst.msk [vmem:[%s8475 + $0x1b0] sm:$0xff] %vm5864, 0.0
  %8480 = vst.msk [vmem:[%s8475 + $0x1b8] sm:$0xff] %vm5864, 0.0
  %8481 = vst.msk [vmem:[%s8475 + $0x1c0] sm:$0x3] %vm8470, 0.0
  %vm8482 = vcmask 24576
  %8483 = vst.msk [vmem:[#allocation2] sm:$0x1] %vm8482, 0.0
  %8484 = vst.msk [vmem:[#allocation2 + $0x18] sm:$0x1] %vm8482, 0.0
  %8485 = vst.msk [vmem:[#allocation2 + $0x30] sm:$0x1] %vm8482, 0.0
  %8486 = vst.msk [vmem:[#allocation2 + $0x48] sm:$0x1] %vm8482, 0.0
  %8487 = vst.msk [vmem:[#allocation2 + $0x60] sm:$0x1] %vm8482, 0.0
  %8488 = vst.msk [vmem:[#allocation2 + $0x78] sm:$0x1] %vm8482, 0.0
  %8489 = vst.msk [vmem:[#allocation2 + $0x90] sm:$0x1] %vm8482, 0.0
  %8490 = vst.msk [vmem:[#allocation2 + $0xa8] sm:$0x1] %vm8482, 0.0
  %8491 = vst.msk [vmem:[#allocation2 + $0xc0] sm:$0x1] %vm8482, 0.0
  %8492 = vst.msk [vmem:[#allocation2 + $0xd8] sm:$0x1] %vm8482, 0.0
  %8493 = vst.msk [vmem:[#allocation2 + $0xf0] sm:$0x1] %vm8482, 0.0
  %8494 = vst.msk [vmem:[#allocation2 + $0x108] sm:$0x1] %vm8482, 0.0
  %8495 = vst.msk [vmem:[#allocation2 + $0x120] sm:$0x1] %vm8482, 0.0
  %8496 = vst.msk [vmem:[#allocation2 + $0x138] sm:$0x1] %vm8482, 0.0
  %8497 = vst.msk [vmem:[#allocation2 + $0x150] sm:$0x1] %vm8482, 0.0
  %8498 = vst.msk [vmem:[#allocation2 + $0x168] sm:$0x1] %vm8482, 0.0
  %8499 = vst.msk [vmem:[#allocation2 + $0x180] sm:$0x1] %vm8482, 0.0
  %8500 = vst.msk [vmem:[#allocation2 + $0x198] sm:$0x1] %vm8482, 0.0
  %8501 = vst.msk [vmem:[#allocation2 + $0x1b0] sm:$0x1] %vm8482, 0.0
  %8502 = vst.msk [vmem:[#allocation2 + $0x1c8] sm:$0x1] %vm8482, 0.0
  %8503 = vst.msk [vmem:[#allocation2 + $0x1e0] sm:$0x1] %vm8482, 0.0
  %8504 = vst.msk [vmem:[#allocation2 + $0x1f8] sm:$0x1] %vm8482, 0.0
  %8505 = vst.msk [vmem:[#allocation2 + $0x210] sm:$0x1] %vm8482, 0.0
  %8506 = vst.msk [vmem:[#allocation2 + $0x228] sm:$0x1] %vm8482, 0.0
  %8507 = vst.msk [vmem:[#allocation2 + $0x240] sm:$0x1] %vm8482, 0.0
  %8508 = vst.msk [vmem:[#allocation2 + $0x258] sm:$0x1] %vm8482, 0.0
  %8509 = vst.msk [vmem:[#allocation2 + $0x270] sm:$0x1] %vm8482, 0.0
  %8510 = vst.msk [vmem:[#allocation2 + $0x288] sm:$0x1] %vm8482, 0.0
  %8511 = vst.msk [vmem:[#allocation2 + $0x2a0] sm:$0x1] %vm8482, 0.0
  %8512 = vst.msk [vmem:[#allocation2 + $0x2b8] sm:$0x1] %vm8482, 0.0
  %8513 = vst.msk [vmem:[#allocation2 + $0x2d0] sm:$0x1] %vm8482, 0.0
  %8514 = vst.msk [vmem:[#allocation2 + $0x2e8] sm:$0x1] %vm8482, 0.0
  %8515 = vst.msk [vmem:[#allocation2 + $0x300] sm:$0x1] %vm8482, 0.0
  %8516 = vst.msk [vmem:[#allocation2 + $0x318] sm:$0x1] %vm8482, 0.0
  %8517 = vst.msk [vmem:[#allocation2 + $0x330] sm:$0x1] %vm8482, 0.0
  %8518 = vst.msk [vmem:[#allocation2 + $0x348] sm:$0x1] %vm8482, 0.0
  %8519 = vst.msk [vmem:[#allocation2 + $0x11] sm:$0x1] %vm8482, 0.0
  %8520 = vst.msk [vmem:[#allocation2 + $0x29] sm:$0x1] %vm8482, 0.0
  %8521 = vst.msk [vmem:[#allocation2 + $0x41] sm:$0x1] %vm8482, 0.0
  %8522 = vst.msk [vmem:[#allocation2 + $0x59] sm:$0x1] %vm8482, 0.0
  %8523 = vst.msk [vmem:[#allocation2 + $0x71] sm:$0x1] %vm8482, 0.0
  %8524 = vst.msk [vmem:[#allocation2 + $0x89] sm:$0x1] %vm8482, 0.0
  %8525 = vst.msk [vmem:[#allocation2 + $0xa1] sm:$0x1] %vm8482, 0.0
  %8526 = vst.msk [vmem:[#allocation2 + $0xb9] sm:$0x1] %vm8482, 0.0
  %8527 = vst.msk [vmem:[#allocation2 + $0xd1] sm:$0x1] %vm8482, 0.0
  %8528 = vst.msk [vmem:[#allocation2 + $0xe9] sm:$0x1] %vm8482, 0.0
  %8529 = vst.msk [vmem:[#allocation2 + $0x101] sm:$0x1] %vm8482, 0.0
  %8530 = vst.msk [vmem:[#allocation2 + $0x119] sm:$0x1] %vm8482, 0.0
  %8531 = vst.msk [vmem:[#allocation2 + $0x131] sm:$0x1] %vm8482, 0.0
  %8532 = vst.msk [vmem:[#allocation2 + $0x149] sm:$0x1] %vm8482, 0.0
  %8533 = vst.msk [vmem:[#allocation2 + $0x161] sm:$0x1] %vm8482, 0.0
  %8534 = vst.msk [vmem:[#allocation2 + $0x179] sm:$0x1] %vm8482, 0.0
  %8535 = vst.msk [vmem:[#allocation2 + $0x191] sm:$0x1] %vm8482, 0.0
  %8536 = vst.msk [vmem:[#allocation2 + $0x1a9] sm:$0x1] %vm8482, 0.0
  %8537 = vst.msk [vmem:[#allocation2 + $0x1c1] sm:$0x1] %vm8482, 0.0
  %8538 = vst.msk [vmem:[#allocation2 + $0x1d9] sm:$0x1] %vm8482, 0.0
  %8539 = vst.msk [vmem:[#allocation2 + $0x1f1] sm:$0x1] %vm8482, 0.0
  %8540 = vst.msk [vmem:[#allocation2 + $0x209] sm:$0x1] %vm8482, 0.0
  %8541 = vst.msk [vmem:[#allocation2 + $0x221] sm:$0x1] %vm8482, 0.0
  %8542 = vst.msk [vmem:[#allocation2 + $0x239] sm:$0x1] %vm8482, 0.0
  %8543 = vst.msk [vmem:[#allocation2 + $0x251] sm:$0x1] %vm8482, 0.0
  %8544 = vst.msk [vmem:[#allocation2 + $0x269] sm:$0x1] %vm8482, 0.0
  %8545 = vst.msk [vmem:[#allocation2 + $0x281] sm:$0x1] %vm8482, 0.0
  %8546 = vst.msk [vmem:[#allocation2 + $0x299] sm:$0x1] %vm8482, 0.0
  %8547 = vst.msk [vmem:[#allocation2 + $0x2b1] sm:$0x1] %vm8482, 0.0
  %8548 = vst.msk [vmem:[#allocation2 + $0x2c9] sm:$0x1] %vm8482, 0.0
  %8549 = vst.msk [vmem:[#allocation2 + $0x2e1] sm:$0x1] %vm8482, 0.0
  %8550 = vst.msk [vmem:[#allocation2 + $0x2f9] sm:$0x1] %vm8482, 0.0
  %8551 = vst.msk [vmem:[#allocation2 + $0x311] sm:$0x1] %vm8482, 0.0
  %8552 = vst.msk [vmem:[#allocation2 + $0x329] sm:$0x1] %vm8482, 0.0
  %8553 = vst.msk [vmem:[#allocation2 + $0x341] sm:$0x1] %vm8482, 0.0
  %8554 = vst.msk [vmem:[#allocation2 + $0x359] sm:$0x1] %vm8482, 0.0
  %s8555 = scalar_lea.vmem [#allocation2], 24
  %8556 = vst.msk [vmem:[%s8555 + $0x1] sm:$0xff] %vm5864, %v8404
  %8557 = vst.msk [vmem:[%s8555 + $0x9] sm:$0xff] %vm5864, %v8405
  %8558 = vst.msk [vmem:[%s8555 + $0x19] sm:$0xff] %vm5864, %v8406
  %8559 = vst.msk [vmem:[%s8555 + $0x21] sm:$0xff] %vm5864, %v8407
  %8560 = vst.msk [vmem:[%s8555 + $0x31] sm:$0xff] %vm5864, %v8408
  %8561 = vst.msk [vmem:[%s8555 + $0x39] sm:$0xff] %vm5864, %v8409
  %8562 = vst.msk [vmem:[%s8555 + $0x49] sm:$0xff] %vm5864, %v8410
  %8563 = vst.msk [vmem:[%s8555 + $0x51] sm:$0xff] %vm5864, %v8411
  %8564 = vst.msk [vmem:[%s8555 + $0x61] sm:$0xff] %vm5864, %v8412
  %8565 = vst.msk [vmem:[%s8555 + $0x69] sm:$0xff] %vm5864, %v8413
  %8566 = vst.msk [vmem:[%s8555 + $0x79] sm:$0xff] %vm5864, %v8414
  %8567 = vst.msk [vmem:[%s8555 + $0x81] sm:$0xff] %vm5864, %v8415
  %8568 = vst.msk [vmem:[%s8555 + $0x91] sm:$0xff] %vm5864, %v8416
  %8569 = vst.msk [vmem:[%s8555 + $0x99] sm:$0xff] %vm5864, %v8417
  %8570 = vst.msk [vmem:[%s8555 + $0xa9] sm:$0xff] %vm5864, %v8418
  %8571 = vst.msk [vmem:[%s8555 + $0xb1] sm:$0xff] %vm5864, %v8419
  %8572 = vst.msk [vmem:[%s8555 + $0xc1] sm:$0xff] %vm5864, %v8420
  %8573 = vst.msk [vmem:[%s8555 + $0xc9] sm:$0xff] %vm5864, %v8421
  %8574 = vst.msk [vmem:[%s8555 + $0xd9] sm:$0xff] %vm5864, %v8422
  %8575 = vst.msk [vmem:[%s8555 + $0xe1] sm:$0xff] %vm5864, %v8423
  %8576 = vst.msk [vmem:[%s8555 + $0xf1] sm:$0xff] %vm5864, %v8424
  %8577 = vst.msk [vmem:[%s8555 + $0xf9] sm:$0xff] %vm5864, %v8425
  %8578 = vst.msk [vmem:[%s8555 + $0x109] sm:$0xff] %vm5864, %v8426
  %8579 = vst.msk [vmem:[%s8555 + $0x111] sm:$0xff] %vm5864, %v8427
  %8580 = vst.msk [vmem:[%s8555 + $0x121] sm:$0xff] %vm5864, %v8428
  %8581 = vst.msk [vmem:[%s8555 + $0x129] sm:$0xff] %vm5864, %v8429
  %8582 = vst.msk [vmem:[%s8555 + $0x139] sm:$0xff] %vm5864, %v8430
  %8583 = vst.msk [vmem:[%s8555 + $0x141] sm:$0xff] %vm5864, %v8431
  %8584 = vst.msk [vmem:[%s8555 + $0x151] sm:$0xff] %vm5864, %v8432
  %8585 = vst.msk [vmem:[%s8555 + $0x159] sm:$0xff] %vm5864, %v8433
  %8586 = vst.msk [vmem:[%s8555 + $0x169] sm:$0xff] %vm5864, %v8434
  %8587 = vst.msk [vmem:[%s8555 + $0x171] sm:$0xff] %vm5864, %v8435
  %8588 = vst.msk [vmem:[%s8555 + $0x1b1] sm:$0xff] %vm5864, %v8436
  %8589 = vst.msk [vmem:[%s8555 + $0x1b9] sm:$0xff] %vm5864, %v8437
  %8590 = vst.msk [vmem:[%s8555 + $0x1c9] sm:$0xff] %vm5864, %v8438
  %8591 = vst.msk [vmem:[%s8555 + $0x1d1] sm:$0xff] %vm5864, %v8439
  %8592 = vst.msk [vmem:[%s8555 + $0x1e1] sm:$0xff] %vm5864, %v8440
  %8593 = vst.msk [vmem:[%s8555 + $0x1e9] sm:$0xff] %vm5864, %v8441
  %8594 = vst.msk [vmem:[%s8555 + $0x1f9] sm:$0xff] %vm5864, %v8442
  %8595 = vst.msk [vmem:[%s8555 + $0x201] sm:$0xff] %vm5864, %v8443
  %8596 = vst.msk [vmem:[%s8555 + $0x211] sm:$0xff] %vm5864, %v8444
  %8597 = vst.msk [vmem:[%s8555 + $0x219] sm:$0xff] %vm5864, %v8445
  %8598 = vst.msk [vmem:[%s8555 + $0x229] sm:$0xff] %vm5864, %v8446
  %8599 = vst.msk [vmem:[%s8555 + $0x231] sm:$0xff] %vm5864, %v8447
  %8600 = vst.msk [vmem:[%s8555 + $0x241] sm:$0xff] %vm5864, %v8448
  %8601 = vst.msk [vmem:[%s8555 + $0x249] sm:$0xff] %vm5864, %v8449
  %8602 = vst.msk [vmem:[%s8555 + $0x259] sm:$0xff] %vm5864, %v8450
  %8603 = vst.msk [vmem:[%s8555 + $0x261] sm:$0xff] %vm5864, %v8451
  %8604 = vst.msk [vmem:[%s8555 + $0x271] sm:$0xff] %vm5864, %v8452
  %8605 = vst.msk [vmem:[%s8555 + $0x279] sm:$0xff] %vm5864, %v8453
  %8606 = vst.msk [vmem:[%s8555 + $0x289] sm:$0xff] %vm5864, %v8454
  %8607 = vst.msk [vmem:[%s8555 + $0x291] sm:$0xff] %vm5864, %v8455
  %8608 = vst.msk [vmem:[%s8555 + $0x2a1] sm:$0xff] %vm5864, %v8456
  %8609 = vst.msk [vmem:[%s8555 + $0x2a9] sm:$0xff] %vm5864, %v8457
  %8610 = vst.msk [vmem:[%s8555 + $0x2b9] sm:$0xff] %vm5864, %v8458
  %8611 = vst.msk [vmem:[%s8555 + $0x2c1] sm:$0xff] %vm5864, %v8459
  %8612 = vst.msk [vmem:[%s8555 + $0x2d1] sm:$0xff] %vm5864, %v8460
  %8613 = vst.msk [vmem:[%s8555 + $0x2d9] sm:$0xff] %vm5864, %v8461
  %8614 = vst.msk [vmem:[%s8555 + $0x2e9] sm:$0xff] %vm5864, %v8462
  %8615 = vst.msk [vmem:[%s8555 + $0x2f1] sm:$0xff] %vm5864, %v8463
  %8616 = vst.msk [vmem:[%s8555 + $0x301] sm:$0xff] %vm5864, %v8464
  %8617 = vst.msk [vmem:[%s8555 + $0x309] sm:$0xff] %vm5864, %v8465
  %8618 = vst.msk [vmem:[%s8555 + $0x319] sm:$0xff] %vm5864, %v8466
  %8619 = vst.msk [vmem:[%s8555 + $0x321] sm:$0xff] %vm5864, %v8467
  %v8620 = vld [vmem:[#allocation2] sm:$0xff]
  %v8621 = vld [vmem:[#allocation2 + $0x8] sm:$0xff]
  %v8622 = vld [vmem:[#allocation2 + $0x18] sm:$0xff]
  %v8623 = vld [vmem:[#allocation2 + $0x20] sm:$0xff]
  %v8624 = vld [vmem:[#allocation2 + $0x30] sm:$0xff]
  %v8625 = vld [vmem:[#allocation2 + $0x38] sm:$0xff]
  %v8626 = vld [vmem:[#allocation2 + $0x48] sm:$0xff]
  %v8627 = vld [vmem:[#allocation2 + $0x50] sm:$0xff]
  %v8628 = vld [vmem:[#allocation2 + $0x60] sm:$0xff]
  %v8629 = vld [vmem:[#allocation2 + $0x68] sm:$0xff]
  %v8630 = vld [vmem:[#allocation2 + $0x78] sm:$0xff]
  %v8631 = vld [vmem:[#allocation2 + $0x80] sm:$0xff]
  %v8632 = vld [vmem:[#allocation2 + $0x90] sm:$0xff]
  %v8633 = vld [vmem:[#allocation2 + $0x98] sm:$0xff]
  %v8634 = vld [vmem:[#allocation2 + $0xa8] sm:$0xff]
  %v8635 = vld [vmem:[#allocation2 + $0xb0] sm:$0xff]
  %v8636 = vld [vmem:[#allocation2 + $0xc0] sm:$0xff]
  %v8637 = vld [vmem:[#allocation2 + $0xc8] sm:$0xff]
  %v8638 = vld [vmem:[#allocation2 + $0xd8] sm:$0xff]
  %v8639 = vld [vmem:[#allocation2 + $0xe0] sm:$0xff]
  %v8640 = vld [vmem:[#allocation2 + $0xf0] sm:$0xff]
  %v8641 = vld [vmem:[#allocation2 + $0xf8] sm:$0xff]
  %v8642 = vld [vmem:[#allocation2 + $0x108] sm:$0xff]
  %v8643 = vld [vmem:[#allocation2 + $0x110] sm:$0xff]
  %v8644 = vld [vmem:[#allocation2 + $0x120] sm:$0xff]
  %v8645 = vld [vmem:[#allocation2 + $0x128] sm:$0xff]
  %v8646 = vld [vmem:[#allocation2 + $0x138] sm:$0xff]
  %v8647 = vld [vmem:[#allocation2 + $0x140] sm:$0xff]
  %v8648 = vld [vmem:[#allocation2 + $0x150] sm:$0xff]
  %v8649 = vld [vmem:[#allocation2 + $0x158] sm:$0xff]
  %v8650 = vld [vmem:[#allocation2 + $0x168] sm:$0xff]
  %v8651 = vld [vmem:[#allocation2 + $0x170] sm:$0xff]
  %v8652 = vld [vmem:[#allocation2 + $0x1b0] sm:$0xff]
  %v8653 = vld [vmem:[#allocation2 + $0x1b8] sm:$0xff]
  %v8654 = vld [vmem:[#allocation2 + $0x1c8] sm:$0xff]
  %v8655 = vld [vmem:[#allocation2 + $0x1d0] sm:$0xff]
  %v8656 = vld [vmem:[#allocation2 + $0x1e0] sm:$0xff]
  %v8657 = vld [vmem:[#allocation2 + $0x1e8] sm:$0xff]
  %v8658 = vld [vmem:[#allocation2 + $0x1f8] sm:$0xff]
  %v8659 = vld [vmem:[#allocation2 + $0x200] sm:$0xff]
  %v8660 = vld [vmem:[#allocation2 + $0x210] sm:$0xff]
  %v8661 = vld [vmem:[#allocation2 + $0x218] sm:$0xff]
  %v8662 = vld [vmem:[#allocation2 + $0x228] sm:$0xff]
  %v8663 = vld [vmem:[#allocation2 + $0x230] sm:$0xff]
  %v8664 = vld [vmem:[#allocation2 + $0x240] sm:$0xff]
  %v8665 = vld [vmem:[#allocation2 + $0x248] sm:$0xff]
  %v8666 = vld [vmem:[#allocation2 + $0x258] sm:$0xff]
  %v8667 = vld [vmem:[#allocation2 + $0x260] sm:$0xff]
  %v8668 = vld [vmem:[#allocation2 + $0x270] sm:$0xff]
  %v8669 = vld [vmem:[#allocation2 + $0x278] sm:$0xff]
  %v8670 = vld [vmem:[#allocation2 + $0x288] sm:$0xff]
  %v8671 = vld [vmem:[#allocation2 + $0x290] sm:$0xff]
  %v8672 = vld [vmem:[#allocation2 + $0x2a0] sm:$0xff]
  %v8673 = vld [vmem:[#allocation2 + $0x2a8] sm:$0xff]
  %v8674 = vld [vmem:[#allocation2 + $0x2b8] sm:$0xff]
  %v8675 = vld [vmem:[#allocation2 + $0x2c0] sm:$0xff]
  %v8676 = vld [vmem:[#allocation2 + $0x2d0] sm:$0xff]
  %v8677 = vld [vmem:[#allocation2 + $0x2d8] sm:$0xff]
  %v8678 = vld [vmem:[#allocation2 + $0x2e8] sm:$0xff]
  %v8679 = vld [vmem:[#allocation2 + $0x2f0] sm:$0xff]
  %v8680 = vld [vmem:[#allocation2 + $0x300] sm:$0xff]
  %v8681 = vld [vmem:[#allocation2 + $0x308] sm:$0xff]
  %v8682 = vld [vmem:[#allocation2 + $0x318] sm:$0xff]
  %v8683 = vld [vmem:[#allocation2 + $0x320] sm:$0xff]
  %v8684 = vpack.c.bf16 %v8620, %v8620
  %v8685 = vpack.c.bf16 %v8621, %v8621
  %v8686 = vpack.c.bf16 %v8622, %v8622
  %v8687 = vpack.c.bf16 %v8623, %v8623
  %v8688 = vpack.c.bf16 %v8624, %v8624
  %v8689 = vpack.c.bf16 %v8625, %v8625
  %v8690 = vpack.c.bf16 %v8626, %v8626
  %v8691 = vpack.c.bf16 %v8627, %v8627
  %v8692 = vpack.c.bf16 %v8628, %v8628
  %v8693 = vpack.c.bf16 %v8629, %v8629
  %v8694 = vpack.c.bf16 %v8630, %v8630
  %v8695 = vpack.c.bf16 %v8631, %v8631
  %v8696 = vpack.c.bf16 %v8632, %v8632
  %v8697 = vpack.c.bf16 %v8633, %v8633
  %v8698 = vpack.c.bf16 %v8634, %v8634
  %v8699 = vpack.c.bf16 %v8635, %v8635
  %v8700 = vpack.c.bf16 %v8636, %v8636
  %v8701 = vpack.c.bf16 %v8637, %v8637
  %v8702 = vpack.c.bf16 %v8638, %v8638
  %v8703 = vpack.c.bf16 %v8639, %v8639
  %v8704 = vpack.c.bf16 %v8640, %v8640
  %v8705 = vpack.c.bf16 %v8641, %v8641
  %v8706 = vpack.c.bf16 %v8642, %v8642
  %v8707 = vpack.c.bf16 %v8643, %v8643
  %v8708 = vpack.c.bf16 %v8644, %v8644
  %v8709 = vpack.c.bf16 %v8645, %v8645
  %v8710 = vpack.c.bf16 %v8646, %v8646
  %v8711 = vpack.c.bf16 %v8647, %v8647
  %v8712 = vpack.c.bf16 %v8648, %v8648
  %v8713 = vpack.c.bf16 %v8649, %v8649
  %v8714 = vpack.c.bf16 %v8650, %v8650
  %v8715 = vpack.c.bf16 %v8651, %v8651
  %v8716 = vpack.c.bf16 %v8652, %v8652
  %v8717 = vpack.c.bf16 %v8653, %v8653
  %v8718 = vpack.c.bf16 %v8654, %v8654
  %v8719 = vpack.c.bf16 %v8655, %v8655
  %v8720 = vpack.c.bf16 %v8656, %v8656
  %v8721 = vpack.c.bf16 %v8657, %v8657
  %v8722 = vpack.c.bf16 %v8658, %v8658
  %v8723 = vpack.c.bf16 %v8659, %v8659
  %v8724 = vpack.c.bf16 %v8660, %v8660
  %v8725 = vpack.c.bf16 %v8661, %v8661
  %v8726 = vpack.c.bf16 %v8662, %v8662
  %v8727 = vpack.c.bf16 %v8663, %v8663
  %v8728 = vpack.c.bf16 %v8664, %v8664
  %v8729 = vpack.c.bf16 %v8665, %v8665
  %v8730 = vpack.c.bf16 %v8666, %v8666
  %v8731 = vpack.c.bf16 %v8667, %v8667
  %v8732 = vpack.c.bf16 %v8668, %v8668
  %v8733 = vpack.c.bf16 %v8669, %v8669
  %v8734 = vpack.c.bf16 %v8670, %v8670
  %v8735 = vpack.c.bf16 %v8671, %v8671
  %v8736 = vpack.c.bf16 %v8672, %v8672
  %v8737 = vpack.c.bf16 %v8673, %v8673
  %v8738 = vpack.c.bf16 %v8674, %v8674
  %v8739 = vpack.c.bf16 %v8675, %v8675
  %v8740 = vpack.c.bf16 %v8676, %v8676
  %v8741 = vpack.c.bf16 %v8677, %v8677
  %v8742 = vpack.c.bf16 %v8678, %v8678
  %v8743 = vpack.c.bf16 %v8679, %v8679
  %v8744 = vpack.c.bf16 %v8680, %v8680
  %v8745 = vpack.c.bf16 %v8681, %v8681
  %v8746 = vpack.c.bf16 %v8682, %v8682
  %v8747 = vpack.c.bf16 %v8683, %v8683
  %v8748 = vld [vmem:[#allocation2 + $0x1] sm:$0xff]
  %v8749 = vld [vmem:[#allocation2 + $0x9] sm:$0xff]
  %v8750 = vld [vmem:[#allocation2 + $0x19] sm:$0xff]
  %v8751 = vld [vmem:[#allocation2 + $0x21] sm:$0xff]
  %v8752 = vld [vmem:[#allocation2 + $0x31] sm:$0xff]
  %v8753 = vld [vmem:[#allocation2 + $0x39] sm:$0xff]
  %v8754 = vld [vmem:[#allocation2 + $0x49] sm:$0xff]
  %v8755 = vld [vmem:[#allocation2 + $0x51] sm:$0xff]
  %v8756 = vld [vmem:[#allocation2 + $0x61] sm:$0xff]
  %v8757 = vld [vmem:[#allocation2 + $0x69] sm:$0xff]
  %v8758 = vld [vmem:[#allocation2 + $0x79] sm:$0xff]
  %v8759 = vld [vmem:[#allocation2 + $0x81] sm:$0xff]
  %v8760 = vld [vmem:[#allocation2 + $0x91] sm:$0xff]
  %v8761 = vld [vmem:[#allocation2 + $0x99] sm:$0xff]
  %v8762 = vld [vmem:[#allocation2 + $0xa9] sm:$0xff]
  %v8763 = vld [vmem:[#allocation2 + $0xb1] sm:$0xff]
  %v8764 = vld [vmem:[#allocation2 + $0xc1] sm:$0xff]
  %v8765 = vld [vmem:[#allocation2 + $0xc9] sm:$0xff]
  %v8766 = vld [vmem:[#allocation2 + $0xd9] sm:$0xff]
  %v8767 = vld [vmem:[#allocation2 + $0xe1] sm:$0xff]
  %v8768 = vld [vmem:[#allocation2 + $0xf1] sm:$0xff]
  %v8769 = vld [vmem:[#allocation2 + $0xf9] sm:$0xff]
  %v8770 = vld [vmem:[#allocation2 + $0x109] sm:$0xff]
  %v8771 = vld [vmem:[#allocation2 + $0x111] sm:$0xff]
  %v8772 = vld [vmem:[#allocation2 + $0x121] sm:$0xff]
  %v8773 = vld [vmem:[#allocation2 + $0x129] sm:$0xff]
  %v8774 = vld [vmem:[#allocation2 + $0x139] sm:$0xff]
  %v8775 = vld [vmem:[#allocation2 + $0x141] sm:$0xff]
  %v8776 = vld [vmem:[#allocation2 + $0x151] sm:$0xff]
  %v8777 = vld [vmem:[#allocation2 + $0x159] sm:$0xff]
  %v8778 = vld [vmem:[#allocation2 + $0x169] sm:$0xff]
  %v8779 = vld [vmem:[#allocation2 + $0x171] sm:$0xff]
  %v8780 = vld [vmem:[#allocation2 + $0x1b1] sm:$0xff]
  %v8781 = vld [vmem:[#allocation2 + $0x1b9] sm:$0xff]
  %v8782 = vld [vmem:[#allocation2 + $0x1c9] sm:$0xff]
  %v8783 = vld [vmem:[#allocation2 + $0x1d1] sm:$0xff]
  %v8784 = vld [vmem:[#allocation2 + $0x1e1] sm:$0xff]
  %v8785 = vld [vmem:[#allocation2 + $0x1e9] sm:$0xff]
  %v8786 = vld [vmem:[#allocation2 + $0x1f9] sm:$0xff]
  %v8787 = vld [vmem:[#allocation2 + $0x201] sm:$0xff]
  %v8788 = vld [vmem:[#allocation2 + $0x211] sm:$0xff]
  %v8789 = vld [vmem:[#allocation2 + $0x219] sm:$0xff]
  %v8790 = vld [vmem:[#allocation2 + $0x229] sm:$0xff]
  %v8791 = vld [vmem:[#allocation2 + $0x231] sm:$0xff]
  %v8792 = vld [vmem:[#allocation2 + $0x241] sm:$0xff]
  %v8793 = vld [vmem:[#allocation2 + $0x249] sm:$0xff]
  %v8794 = vld [vmem:[#allocation2 + $0x259] sm:$0xff]
  %v8795 = vld [vmem:[#allocation2 + $0x261] sm:$0xff]
  %v8796 = vld [vmem:[#allocation2 + $0x271] sm:$0xff]
  %v8797 = vld [vmem:[#allocation2 + $0x279] sm:$0xff]
  %v8798 = vld [vmem:[#allocation2 + $0x289] sm:$0xff]
  %v8799 = vld [vmem:[#allocation2 + $0x291] sm:$0xff]
  %v8800 = vld [vmem:[#allocation2 + $0x2a1] sm:$0xff]
  %v8801 = vld [vmem:[#allocation2 + $0x2a9] sm:$0xff]
  %v8802 = vld [vmem:[#allocation2 + $0x2b9] sm:$0xff]
  %v8803 = vld [vmem:[#allocation2 + $0x2c1] sm:$0xff]
  %v8804 = vld [vmem:[#allocation2 + $0x2d1] sm:$0xff]
  %v8805 = vld [vmem:[#allocation2 + $0x2d9] sm:$0xff]
  %v8806 = vld [vmem:[#allocation2 + $0x2e9] sm:$0xff]
  %v8807 = vld [vmem:[#allocation2 + $0x2f1] sm:$0xff]
  %v8808 = vld [vmem:[#allocation2 + $0x301] sm:$0xff]
  %v8809 = vld [vmem:[#allocation2 + $0x309] sm:$0xff]
  %v8810 = vld [vmem:[#allocation2 + $0x319] sm:$0xff]
  %v8811 = vld [vmem:[#allocation2 + $0x321] sm:$0xff]
  %v8812 = vpack.c.bf16 %v8748, %v8748
  %v8813 = vpack.c.bf16 %v8749, %v8749
  %v8814 = vpack.c.bf16 %v8750, %v8750
  %v8815 = vpack.c.bf16 %v8751, %v8751
  %v8816 = vpack.c.bf16 %v8752, %v8752
  %v8817 = vpack.c.bf16 %v8753, %v8753
  %v8818 = vpack.c.bf16 %v8754, %v8754
  %v8819 = vpack.c.bf16 %v8755, %v8755
  %v8820 = vpack.c.bf16 %v8756, %v8756
  %v8821 = vpack.c.bf16 %v8757, %v8757
  %v8822 = vpack.c.bf16 %v8758, %v8758
  %v8823 = vpack.c.bf16 %v8759, %v8759
  %v8824 = vpack.c.bf16 %v8760, %v8760
  %v8825 = vpack.c.bf16 %v8761, %v8761
  %v8826 = vpack.c.bf16 %v8762, %v8762
  %v8827 = vpack.c.bf16 %v8763, %v8763
  %v8828 = vpack.c.bf16 %v8764, %v8764
  %v8829 = vpack.c.bf16 %v8765, %v8765
  %v8830 = vpack.c.bf16 %v8766, %v8766
  %v8831 = vpack.c.bf16 %v8767, %v8767
  %v8832 = vpack.c.bf16 %v8768, %v8768
  %v8833 = vpack.c.bf16 %v8769, %v8769
  %v8834 = vpack.c.bf16 %v8770, %v8770
  %v8835 = vpack.c.bf16 %v8771, %v8771
  %v8836 = vpack.c.bf16 %v8772, %v8772
  %v8837 = vpack.c.bf16 %v8773, %v8773
  %v8838 = vpack.c.bf16 %v8774, %v8774
  %v8839 = vpack.c.bf16 %v8775, %v8775
  %v8840 = vpack.c.bf16 %v8776, %v8776
  %v8841 = vpack.c.bf16 %v8777, %v8777
  %v8842 = vpack.c.bf16 %v8778, %v8778
  %v8843 = vpack.c.bf16 %v8779, %v8779
  %v8844 = vpack.c.bf16 %v8780, %v8780
  %v8845 = vpack.c.bf16 %v8781, %v8781
  %v8846 = vpack.c.bf16 %v8782, %v8782
  %v8847 = vpack.c.bf16 %v8783, %v8783
  %v8848 = vpack.c.bf16 %v8784, %v8784
  %v8849 = vpack.c.bf16 %v8785, %v8785
  %v8850 = vpack.c.bf16 %v8786, %v8786
  %v8851 = vpack.c.bf16 %v8787, %v8787
  %v8852 = vpack.c.bf16 %v8788, %v8788
  %v8853 = vpack.c.bf16 %v8789, %v8789
  %v8854 = vpack.c.bf16 %v8790, %v8790
  %v8855 = vpack.c.bf16 %v8791, %v8791
  %v8856 = vpack.c.bf16 %v8792, %v8792
  %v8857 = vpack.c.bf16 %v8793, %v8793
  %v8858 = vpack.c.bf16 %v8794, %v8794
  %v8859 = vpack.c.bf16 %v8795, %v8795
  %v8860 = vpack.c.bf16 %v8796, %v8796
  %v8861 = vpack.c.bf16 %v8797, %v8797
  %v8862 = vpack.c.bf16 %v8798, %v8798
  %v8863 = vpack.c.bf16 %v8799, %v8799
  %v8864 = vpack.c.bf16 %v8800, %v8800
  %v8865 = vpack.c.bf16 %v8801, %v8801
  %v8866 = vpack.c.bf16 %v8802, %v8802
  %v8867 = vpack.c.bf16 %v8803, %v8803
  %v8868 = vpack.c.bf16 %v8804, %v8804
  %v8869 = vpack.c.bf16 %v8805, %v8805
  %v8870 = vpack.c.bf16 %v8806, %v8806
  %v8871 = vpack.c.bf16 %v8807, %v8807
  %v8872 = vpack.c.bf16 %v8808, %v8808
  %v8873 = vpack.c.bf16 %v8809, %v8809
  %v8874 = vpack.c.bf16 %v8810, %v8810
  %v8875 = vpack.c.bf16 %v8811, %v8811
  %v8876 = vld [vmem:[#allocation2 + $0x2] sm:$0xff]
  %v8877 = vld [vmem:[#allocation2 + $0xa] sm:$0xff]
  %v8878 = vld [vmem:[#allocation2 + $0x1a] sm:$0xff]
  %v8879 = vld [vmem:[#allocation2 + $0x22] sm:$0xff]
  %v8880 = vld [vmem:[#allocation2 + $0x32] sm:$0xff]
  %v8881 = vld [vmem:[#allocation2 + $0x3a] sm:$0xff]
  %v8882 = vld [vmem:[#allocation2 + $0x4a] sm:$0xff]
  %v8883 = vld [vmem:[#allocation2 + $0x52] sm:$0xff]
  %v8884 = vld [vmem:[#allocation2 + $0x62] sm:$0xff]
  %v8885 = vld [vmem:[#allocation2 + $0x6a] sm:$0xff]
  %v8886 = vld [vmem:[#allocation2 + $0x7a] sm:$0xff]
  %v8887 = vld [vmem:[#allocation2 + $0x82] sm:$0xff]
  %v8888 = vld [vmem:[#allocation2 + $0x92] sm:$0xff]
  %v8889 = vld [vmem:[#allocation2 + $0x9a] sm:$0xff]
  %v8890 = vld [vmem:[#allocation2 + $0xaa] sm:$0xff]
  %v8891 = vld [vmem:[#allocation2 + $0xb2] sm:$0xff]
  %v8892 = vld [vmem:[#allocation2 + $0xc2] sm:$0xff]
  %v8893 = vld [vmem:[#allocation2 + $0xca] sm:$0xff]
  %v8894 = vld [vmem:[#allocation2 + $0xda] sm:$0xff]
  %v8895 = vld [vmem:[#allocation2 + $0xe2] sm:$0xff]
  %v8896 = vld [vmem:[#allocation2 + $0xf2] sm:$0xff]
  %v8897 = vld [vmem:[#allocation2 + $0xfa] sm:$0xff]
  %v8898 = vld [vmem:[#allocation2 + $0x10a] sm:$0xff]
  %v8899 = vld [vmem:[#allocation2 + $0x112] sm:$0xff]
  %v8900 = vld [vmem:[#allocation2 + $0x122] sm:$0xff]
  %v8901 = vld [vmem:[#allocation2 + $0x12a] sm:$0xff]
  %v8902 = vld [vmem:[#allocation2 + $0x13a] sm:$0xff]
  %v8903 = vld [vmem:[#allocation2 + $0x142] sm:$0xff]
  %v8904 = vld [vmem:[#allocation2 + $0x152] sm:$0xff]
  %v8905 = vld [vmem:[#allocation2 + $0x15a] sm:$0xff]
  %v8906 = vld [vmem:[#allocation2 + $0x16a] sm:$0xff]
  %v8907 = vld [vmem:[#allocation2 + $0x172] sm:$0xff]
  %v8908 = vld [vmem:[#allocation2 + $0x1b2] sm:$0xff]
  %v8909 = vld [vmem:[#allocation2 + $0x1ba] sm:$0xff]
  %v8910 = vld [vmem:[#allocation2 + $0x1ca] sm:$0xff]
  %v8911 = vld [vmem:[#allocation2 + $0x1d2] sm:$0xff]
  %v8912 = vld [vmem:[#allocation2 + $0x1e2] sm:$0xff]
  %v8913 = vld [vmem:[#allocation2 + $0x1ea] sm:$0xff]
  %v8914 = vld [vmem:[#allocation2 + $0x1fa] sm:$0xff]
  %v8915 = vld [vmem:[#allocation2 + $0x202] sm:$0xff]
  %v8916 = vld [vmem:[#allocation2 + $0x212] sm:$0xff]
  %v8917 = vld [vmem:[#allocation2 + $0x21a] sm:$0xff]
  %v8918 = vld [vmem:[#allocation2 + $0x22a] sm:$0xff]
  %v8919 = vld [vmem:[#allocation2 + $0x232] sm:$0xff]
  %v8920 = vld [vmem:[#allocation2 + $0x242] sm:$0xff]
  %v8921 = vld [vmem:[#allocation2 + $0x24a] sm:$0xff]
  %v8922 = vld [vmem:[#allocation2 + $0x25a] sm:$0xff]
  %v8923 = vld [vmem:[#allocation2 + $0x262] sm:$0xff]
  %v8924 = vld [vmem:[#allocation2 + $0x272] sm:$0xff]
  %v8925 = vld [vmem:[#allocation2 + $0x27a] sm:$0xff]
  %v8926 = vld [vmem:[#allocation2 + $0x28a] sm:$0xff]
  %v8927 = vld [vmem:[#allocation2 + $0x292] sm:$0xff]
  %v8928 = vld [vmem:[#allocation2 + $0x2a2] sm:$0xff]
  %v8929 = vld [vmem:[#allocation2 + $0x2aa] sm:$0xff]
  %v8930 = vld [vmem:[#allocation2 + $0x2ba] sm:$0xff]
  %v8931 = vld [vmem:[#allocation2 + $0x2c2] sm:$0xff]
  %v8932 = vld [vmem:[#allocation2 + $0x2d2] sm:$0xff]
  %v8933 = vld [vmem:[#allocation2 + $0x2da] sm:$0xff]
  %v8934 = vld [vmem:[#allocation2 + $0x2ea] sm:$0xff]
  %v8935 = vld [vmem:[#allocation2 + $0x2f2] sm:$0xff]
  %v8936 = vld [vmem:[#allocation2 + $0x302] sm:$0xff]
  %v8937 = vld [vmem:[#allocation2 + $0x30a] sm:$0xff]
  %v8938 = vld [vmem:[#allocation2 + $0x31a] sm:$0xff]
  %v8939 = vld [vmem:[#allocation2 + $0x322] sm:$0xff]
  %v8940 = vpack.c.bf16 %v8876, %v8876
  %v8941 = vpack.c.bf16 %v8877, %v8877
  %v8942 = vpack.c.bf16 %v8878, %v8878
  %v8943 = vpack.c.bf16 %v8879, %v8879
  %v8944 = vpack.c.bf16 %v8880, %v8880
  %v8945 = vpack.c.bf16 %v8881, %v8881
  %v8946 = vpack.c.bf16 %v8882, %v8882
  %v8947 = vpack.c.bf16 %v8883, %v8883
  %v8948 = vpack.c.bf16 %v8884, %v8884
  %v8949 = vpack.c.bf16 %v8885, %v8885
  %v8950 = vpack.c.bf16 %v8886, %v8886
  %v8951 = vpack.c.bf16 %v8887, %v8887
  %v8952 = vpack.c.bf16 %v8888, %v8888
  %v8953 = vpack.c.bf16 %v8889, %v8889
  %v8954 = vpack.c.bf16 %v8890, %v8890
  %v8955 = vpack.c.bf16 %v8891, %v8891
  %v8956 = vpack.c.bf16 %v8892, %v8892
  %v8957 = vpack.c.bf16 %v8893, %v8893
  %v8958 = vpack.c.bf16 %v8894, %v8894
  %v8959 = vpack.c.bf16 %v8895, %v8895
  %v8960 = vpack.c.bf16 %v8896, %v8896
  %v8961 = vpack.c.bf16 %v8897, %v8897
  %v8962 = vpack.c.bf16 %v8898, %v8898
  %v8963 = vpack.c.bf16 %v8899, %v8899
  %v8964 = vpack.c.bf16 %v8900, %v8900
  %v8965 = vpack.c.bf16 %v8901, %v8901
  %v8966 = vpack.c.bf16 %v8902, %v8902
  %v8967 = vpack.c.bf16 %v8903, %v8903
  %v8968 = vpack.c.bf16 %v8904, %v8904
  %v8969 = vpack.c.bf16 %v8905, %v8905
  %v8970 = vpack.c.bf16 %v8906, %v8906
  %v8971 = vpack.c.bf16 %v8907, %v8907
  %v8972 = vpack.c.bf16 %v8908, %v8908
  %v8973 = vpack.c.bf16 %v8909, %v8909
  %v8974 = vpack.c.bf16 %v8910, %v8910
  %v8975 = vpack.c.bf16 %v8911, %v8911
  %v8976 = vpack.c.bf16 %v8912, %v8912
  %v8977 = vpack.c.bf16 %v8913, %v8913
  %v8978 = vpack.c.bf16 %v8914, %v8914
  %v8979 = vpack.c.bf16 %v8915, %v8915
  %v8980 = vpack.c.bf16 %v8916, %v8916
  %v8981 = vpack.c.bf16 %v8917, %v8917
  %v8982 = vpack.c.bf16 %v8918, %v8918
  %v8983 = vpack.c.bf16 %v8919, %v8919
  %v8984 = vpack.c.bf16 %v8920, %v8920
  %v8985 = vpack.c.bf16 %v8921, %v8921
  %v8986 = vpack.c.bf16 %v8922, %v8922
  %v8987 = vpack.c.bf16 %v8923, %v8923
  %v8988 = vpack.c.bf16 %v8924, %v8924
  %v8989 = vpack.c.bf16 %v8925, %v8925
  %v8990 = vpack.c.bf16 %v8926, %v8926
  %v8991 = vpack.c.bf16 %v8927, %v8927
  %v8992 = vpack.c.bf16 %v8928, %v8928
  %v8993 = vpack.c.bf16 %v8929, %v8929
  %v8994 = vpack.c.bf16 %v8930, %v8930
  %v8995 = vpack.c.bf16 %v8931, %v8931
  %v8996 = vpack.c.bf16 %v8932, %v8932
  %v8997 = vpack.c.bf16 %v8933, %v8933
  %v8998 = vpack.c.bf16 %v8934, %v8934
  %v8999 = vpack.c.bf16 %v8935, %v8935
  %v9000 = vpack.c.bf16 %v8936, %v8936
  %v9001 = vpack.c.bf16 %v8937, %v8937
  %v9002 = vpack.c.bf16 %v8938, %v8938
  %v9003 = vpack.c.bf16 %v8939, %v8939
  %v9004 = vld [vmem:[%s8555] sm:$0xff]
  %v9005 = vld [vmem:[%s8555 + $0x8] sm:$0xff]
  %v9006 = vld [vmem:[%s8555 + $0x18] sm:$0xff]
  %v9007 = vld [vmem:[%s8555 + $0x20] sm:$0xff]
  %v9008 = vld [vmem:[%s8555 + $0x30] sm:$0xff]
  %v9009 = vld [vmem:[%s8555 + $0x38] sm:$0xff]
  %v9010 = vld [vmem:[%s8555 + $0x48] sm:$0xff]
  %v9011 = vld [vmem:[%s8555 + $0x50] sm:$0xff]
  %v9012 = vld [vmem:[%s8555 + $0x60] sm:$0xff]
  %v9013 = vld [vmem:[%s8555 + $0x68] sm:$0xff]
  %v9014 = vld [vmem:[%s8555 + $0x78] sm:$0xff]
  %v9015 = vld [vmem:[%s8555 + $0x80] sm:$0xff]
  %v9016 = vld [vmem:[%s8555 + $0x90] sm:$0xff]
  %v9017 = vld [vmem:[%s8555 + $0x98] sm:$0xff]
  %v9018 = vld [vmem:[%s8555 + $0xa8] sm:$0xff]
  %v9019 = vld [vmem:[%s8555 + $0xb0] sm:$0xff]
  %v9020 = vld [vmem:[%s8555 + $0xc0] sm:$0xff]
  %v9021 = vld [vmem:[%s8555 + $0xc8] sm:$0xff]
  %v9022 = vld [vmem:[%s8555 + $0xd8] sm:$0xff]
  %v9023 = vld [vmem:[%s8555 + $0xe0] sm:$0xff]
  %v9024 = vld [vmem:[%s8555 + $0xf0] sm:$0xff]
  %v9025 = vld [vmem:[%s8555 + $0xf8] sm:$0xff]
  %v9026 = vld [vmem:[%s8555 + $0x108] sm:$0xff]
  %v9027 = vld [vmem:[%s8555 + $0x110] sm:$0xff]
  %v9028 = vld [vmem:[%s8555 + $0x120] sm:$0xff]
  %v9029 = vld [vmem:[%s8555 + $0x128] sm:$0xff]
  %v9030 = vld [vmem:[%s8555 + $0x138] sm:$0xff]
  %v9031 = vld [vmem:[%s8555 + $0x140] sm:$0xff]
  %v9032 = vld [vmem:[%s8555 + $0x150] sm:$0xff]
  %v9033 = vld [vmem:[%s8555 + $0x158] sm:$0xff]
  %v9034 = vld [vmem:[%s8555 + $0x168] sm:$0xff]
  %v9035 = vld [vmem:[%s8555 + $0x170] sm:$0xff]
  %v9036 = vld [vmem:[%s8555 + $0x1b0] sm:$0xff]
  %v9037 = vld [vmem:[%s8555 + $0x1b8] sm:$0xff]
  %v9038 = vld [vmem:[%s8555 + $0x1c8] sm:$0xff]
  %v9039 = vld [vmem:[%s8555 + $0x1d0] sm:$0xff]
  %v9040 = vld [vmem:[%s8555 + $0x1e0] sm:$0xff]
  %v9041 = vld [vmem:[%s8555 + $0x1e8] sm:$0xff]
  %v9042 = vld [vmem:[%s8555 + $0x1f8] sm:$0xff]
  %v9043 = vld [vmem:[%s8555 + $0x200] sm:$0xff]
  %v9044 = vld [vmem:[%s8555 + $0x210] sm:$0xff]
  %v9045 = vld [vmem:[%s8555 + $0x218] sm:$0xff]
  %v9046 = vld [vmem:[%s8555 + $0x228] sm:$0xff]
  %v9047 = vld [vmem:[%s8555 + $0x230] sm:$0xff]
  %v9048 = vld [vmem:[%s8555 + $0x240] sm:$0xff]
  %v9049 = vld [vmem:[%s8555 + $0x248] sm:$0xff]
  %v9050 = vld [vmem:[%s8555 + $0x258] sm:$0xff]
  %v9051 = vld [vmem:[%s8555 + $0x260] sm:$0xff]
  %v9052 = vld [vmem:[%s8555 + $0x270] sm:$0xff]
  %v9053 = vld [vmem:[%s8555 + $0x278] sm:$0xff]
  %v9054 = vld [vmem:[%s8555 + $0x288] sm:$0xff]
  %v9055 = vld [vmem:[%s8555 + $0x290] sm:$0xff]
  %v9056 = vld [vmem:[%s8555 + $0x2a0] sm:$0xff]
  %v9057 = vld [vmem:[%s8555 + $0x2a8] sm:$0xff]
  %v9058 = vld [vmem:[%s8555 + $0x2b8] sm:$0xff]
  %v9059 = vld [vmem:[%s8555 + $0x2c0] sm:$0xff]
  %v9060 = vld [vmem:[%s8555 + $0x2d0] sm:$0xff]
  %v9061 = vld [vmem:[%s8555 + $0x2d8] sm:$0xff]
  %v9062 = vld [vmem:[%s8555 + $0x2e8] sm:$0xff]
  %v9063 = vld [vmem:[%s8555 + $0x2f0] sm:$0xff]
  %v9064 = vld [vmem:[%s8555 + $0x300] sm:$0xff]
  %v9065 = vld [vmem:[%s8555 + $0x308] sm:$0xff]
  %v9066 = vld [vmem:[%s8555 + $0x318] sm:$0xff]
  %v9067 = vld [vmem:[%s8555 + $0x320] sm:$0xff]
  %v9068 = vpack.c.bf16 %v9004, %v9004
  %v9069 = vpack.c.bf16 %v9005, %v9005
  %v9070 = vpack.c.bf16 %v9006, %v9006
  %v9071 = vpack.c.bf16 %v9007, %v9007
  %v9072 = vpack.c.bf16 %v9008, %v9008
  %v9073 = vpack.c.bf16 %v9009, %v9009
  %v9074 = vpack.c.bf16 %v9010, %v9010
  %v9075 = vpack.c.bf16 %v9011, %v9011
  %v9076 = vpack.c.bf16 %v9012, %v9012
  %v9077 = vpack.c.bf16 %v9013, %v9013
  %v9078 = vpack.c.bf16 %v9014, %v9014
  %v9079 = vpack.c.bf16 %v9015, %v9015
  %v9080 = vpack.c.bf16 %v9016, %v9016
  %v9081 = vpack.c.bf16 %v9017, %v9017
  %v9082 = vpack.c.bf16 %v9018, %v9018
  %v9083 = vpack.c.bf16 %v9019, %v9019
  %v9084 = vpack.c.bf16 %v9020, %v9020
  %v9085 = vpack.c.bf16 %v9021, %v9021
  %v9086 = vpack.c.bf16 %v9022, %v9022
  %v9087 = vpack.c.bf16 %v9023, %v9023
  %v9088 = vpack.c.bf16 %v9024, %v9024
  %v9089 = vpack.c.bf16 %v9025, %v9025
  %v9090 = vpack.c.bf16 %v9026, %v9026
  %v9091 = vpack.c.bf16 %v9027, %v9027
  %v9092 = vpack.c.bf16 %v9028, %v9028
  %v9093 = vpack.c.bf16 %v9029, %v9029
  %v9094 = vpack.c.bf16 %v9030, %v9030
  %v9095 = vpack.c.bf16 %v9031, %v9031
  %v9096 = vpack.c.bf16 %v9032, %v9032
  %v9097 = vpack.c.bf16 %v9033, %v9033
  %v9098 = vpack.c.bf16 %v9034, %v9034
  %v9099 = vpack.c.bf16 %v9035, %v9035
  %v9100 = vpack.c.bf16 %v9036, %v9036
  %v9101 = vpack.c.bf16 %v9037, %v9037
  %v9102 = vpack.c.bf16 %v9038, %v9038
  %v9103 = vpack.c.bf16 %v9039, %v9039
  %v9104 = vpack.c.bf16 %v9040, %v9040
  %v9105 = vpack.c.bf16 %v9041, %v9041
  %v9106 = vpack.c.bf16 %v9042, %v9042
  %v9107 = vpack.c.bf16 %v9043, %v9043
  %v9108 = vpack.c.bf16 %v9044, %v9044
  %v9109 = vpack.c.bf16 %v9045, %v9045
  %v9110 = vpack.c.bf16 %v9046, %v9046
  %v9111 = vpack.c.bf16 %v9047, %v9047
  %v9112 = vpack.c.bf16 %v9048, %v9048
  %v9113 = vpack.c.bf16 %v9049, %v9049
  %v9114 = vpack.c.bf16 %v9050, %v9050
  %v9115 = vpack.c.bf16 %v9051, %v9051
  %v9116 = vpack.c.bf16 %v9052, %v9052
  %v9117 = vpack.c.bf16 %v9053, %v9053
  %v9118 = vpack.c.bf16 %v9054, %v9054
  %v9119 = vpack.c.bf16 %v9055, %v9055
  %v9120 = vpack.c.bf16 %v9056, %v9056
  %v9121 = vpack.c.bf16 %v9057, %v9057
  %v9122 = vpack.c.bf16 %v9058, %v9058
  %v9123 = vpack.c.bf16 %v9059, %v9059
  %v9124 = vpack.c.bf16 %v9060, %v9060
  %v9125 = vpack.c.bf16 %v9061, %v9061
  %v9126 = vpack.c.bf16 %v9062, %v9062
  %v9127 = vpack.c.bf16 %v9063, %v9063
  %v9128 = vpack.c.bf16 %v9064, %v9064
  %v9129 = vpack.c.bf16 %v9065, %v9065
  %v9130 = vpack.c.bf16 %v9066, %v9066
  %v9131 = vpack.c.bf16 %v9067, %v9067
  %v9132 = vld [vmem:[%s8555 + $0x1] sm:$0xff]
  %v9133 = vld [vmem:[%s8555 + $0x9] sm:$0xff]
  %v9134 = vld [vmem:[%s8555 + $0x19] sm:$0xff]
  %v9135 = vld [vmem:[%s8555 + $0x21] sm:$0xff]
  %v9136 = vld [vmem:[%s8555 + $0x31] sm:$0xff]
  %v9137 = vld [vmem:[%s8555 + $0x39] sm:$0xff]
  %v9138 = vld [vmem:[%s8555 + $0x49] sm:$0xff]
  %v9139 = vld [vmem:[%s8555 + $0x51] sm:$0xff]
  %v9140 = vld [vmem:[%s8555 + $0x61] sm:$0xff]
  %v9141 = vld [vmem:[%s8555 + $0x69] sm:$0xff]
  %v9142 = vld [vmem:[%s8555 + $0x79] sm:$0xff]
  %v9143 = vld [vmem:[%s8555 + $0x81] sm:$0xff]
  %v9144 = vld [vmem:[%s8555 + $0x91] sm:$0xff]
  %v9145 = vld [vmem:[%s8555 + $0x99] sm:$0xff]
  %v9146 = vld [vmem:[%s8555 + $0xa9] sm:$0xff]
  %v9147 = vld [vmem:[%s8555 + $0xb1] sm:$0xff]
  %v9148 = vld [vmem:[%s8555 + $0xc1] sm:$0xff]
  %v9149 = vld [vmem:[%s8555 + $0xc9] sm:$0xff]
  %v9150 = vld [vmem:[%s8555 + $0xd9] sm:$0xff]
  %v9151 = vld [vmem:[%s8555 + $0xe1] sm:$0xff]
  %v9152 = vld [vmem:[%s8555 + $0xf1] sm:$0xff]
  %v9153 = vld [vmem:[%s8555 + $0xf9] sm:$0xff]
  %v9154 = vld [vmem:[%s8555 + $0x109] sm:$0xff]
  %v9155 = vld [vmem:[%s8555 + $0x111] sm:$0xff]
  %v9156 = vld [vmem:[%s8555 + $0x121] sm:$0xff]
  %v9157 = vld [vmem:[%s8555 + $0x129] sm:$0xff]
  %v9158 = vld [vmem:[%s8555 + $0x139] sm:$0xff]
  %v9159 = vld [vmem:[%s8555 + $0x141] sm:$0xff]
  %v9160 = vld [vmem:[%s8555 + $0x151] sm:$0xff]
  %v9161 = vld [vmem:[%s8555 + $0x159] sm:$0xff]
  %v9162 = vld [vmem:[%s8555 + $0x169] sm:$0xff]
  %v9163 = vld [vmem:[%s8555 + $0x171] sm:$0xff]
  %v9164 = vld [vmem:[%s8555 + $0x1b1] sm:$0xff]
  %v9165 = vld [vmem:[%s8555 + $0x1b9] sm:$0xff]
  %v9166 = vld [vmem:[%s8555 + $0x1c9] sm:$0xff]
  %v9167 = vld [vmem:[%s8555 + $0x1d1] sm:$0xff]
  %v9168 = vld [vmem:[%s8555 + $0x1e1] sm:$0xff]
  %v9169 = vld [vmem:[%s8555 + $0x1e9] sm:$0xff]
  %v9170 = vld [vmem:[%s8555 + $0x1f9] sm:$0xff]
  %v9171 = vld [vmem:[%s8555 + $0x201] sm:$0xff]
  %v9172 = vld [vmem:[%s8555 + $0x211] sm:$0xff]
  %v9173 = vld [vmem:[%s8555 + $0x219] sm:$0xff]
  %v9174 = vld [vmem:[%s8555 + $0x229] sm:$0xff]
  %v9175 = vld [vmem:[%s8555 + $0x231] sm:$0xff]
  %v9176 = vld [vmem:[%s8555 + $0x241] sm:$0xff]
  %v9177 = vld [vmem:[%s8555 + $0x249] sm:$0xff]
  %v9178 = vld [vmem:[%s8555 + $0x259] sm:$0xff]
  %v9179 = vld [vmem:[%s8555 + $0x261] sm:$0xff]
  %v9180 = vld [vmem:[%s8555 + $0x271] sm:$0xff]
  %v9181 = vld [vmem:[%s8555 + $0x279] sm:$0xff]
  %v9182 = vld [vmem:[%s8555 + $0x289] sm:$0xff]
  %v9183 = vld [vmem:[%s8555 + $0x291] sm:$0xff]
  %v9184 = vld [vmem:[%s8555 + $0x2a1] sm:$0xff]
  %v9185 = vld [vmem:[%s8555 + $0x2a9] sm:$0xff]
  %v9186 = vld [vmem:[%s8555 + $0x2b9] sm:$0xff]
  %v9187 = vld [vmem:[%s8555 + $0x2c1] sm:$0xff]
  %v9188 = vld [vmem:[%s8555 + $0x2d1] sm:$0xff]
  %v9189 = vld [vmem:[%s8555 + $0x2d9] sm:$0xff]
  %v9190 = vld [vmem:[%s8555 + $0x2e9] sm:$0xff]
  %v9191 = vld [vmem:[%s8555 + $0x2f1] sm:$0xff]
  %v9192 = vld [vmem:[%s8555 + $0x301] sm:$0xff]
  %v9193 = vld [vmem:[%s8555 + $0x309] sm:$0xff]
  %v9194 = vld [vmem:[%s8555 + $0x319] sm:$0xff]
  %v9195 = vld [vmem:[%s8555 + $0x321] sm:$0xff]
  %v9196 = vpack.c.bf16 %v9132, %v9132
  %v9197 = vpack.c.bf16 %v9133, %v9133
  %v9198 = vpack.c.bf16 %v9134, %v9134
  %v9199 = vpack.c.bf16 %v9135, %v9135
  %v9200 = vpack.c.bf16 %v9136, %v9136
  %v9201 = vpack.c.bf16 %v9137, %v9137
  %v9202 = vpack.c.bf16 %v9138, %v9138
  %v9203 = vpack.c.bf16 %v9139, %v9139
  %v9204 = vpack.c.bf16 %v9140, %v9140
  %v9205 = vpack.c.bf16 %v9141, %v9141
  %v9206 = vpack.c.bf16 %v9142, %v9142
  %v9207 = vpack.c.bf16 %v9143, %v9143
  %v9208 = vpack.c.bf16 %v9144, %v9144
  %v9209 = vpack.c.bf16 %v9145, %v9145
  %v9210 = vpack.c.bf16 %v9146, %v9146
  %v9211 = vpack.c.bf16 %v9147, %v9147
  %v9212 = vpack.c.bf16 %v9148, %v9148
  %v9213 = vpack.c.bf16 %v9149, %v9149
  %v9214 = vpack.c.bf16 %v9150, %v9150
  %v9215 = vpack.c.bf16 %v9151, %v9151
  %v9216 = vpack.c.bf16 %v9152, %v9152
  %v9217 = vpack.c.bf16 %v9153, %v9153
  %v9218 = vpack.c.bf16 %v9154, %v9154
  %v9219 = vpack.c.bf16 %v9155, %v9155
  %v9220 = vpack.c.bf16 %v9156, %v9156
  %v9221 = vpack.c.bf16 %v9157, %v9157
  %v9222 = vpack.c.bf16 %v9158, %v9158
  %v9223 = vpack.c.bf16 %v9159, %v9159
  %v9224 = vpack.c.bf16 %v9160, %v9160
  %v9225 = vpack.c.bf16 %v9161, %v9161
  %v9226 = vpack.c.bf16 %v9162, %v9162
  %v9227 = vpack.c.bf16 %v9163, %v9163
  %v9228 = vpack.c.bf16 %v9164, %v9164
  %v9229 = vpack.c.bf16 %v9165, %v9165
  %v9230 = vpack.c.bf16 %v9166, %v9166
  %v9231 = vpack.c.bf16 %v9167, %v9167
  %v9232 = vpack.c.bf16 %v9168, %v9168
  %v9233 = vpack.c.bf16 %v9169, %v9169
  %v9234 = vpack.c.bf16 %v9170, %v9170
  %v9235 = vpack.c.bf16 %v9171, %v9171
  %v9236 = vpack.c.bf16 %v9172, %v9172
  %v9237 = vpack.c.bf16 %v9173, %v9173
  %v9238 = vpack.c.bf16 %v9174, %v9174
  %v9239 = vpack.c.bf16 %v9175, %v9175
  %v9240 = vpack.c.bf16 %v9176, %v9176
  %v9241 = vpack.c.bf16 %v9177, %v9177
  %v9242 = vpack.c.bf16 %v9178, %v9178
  %v9243 = vpack.c.bf16 %v9179, %v9179
  %v9244 = vpack.c.bf16 %v9180, %v9180
  %v9245 = vpack.c.bf16 %v9181, %v9181
  %v9246 = vpack.c.bf16 %v9182, %v9182
  %v9247 = vpack.c.bf16 %v9183, %v9183
  %v9248 = vpack.c.bf16 %v9184, %v9184
  %v9249 = vpack.c.bf16 %v9185, %v9185
  %v9250 = vpack.c.bf16 %v9186, %v9186
  %v9251 = vpack.c.bf16 %v9187, %v9187
  %v9252 = vpack.c.bf16 %v9188, %v9188
  %v9253 = vpack.c.bf16 %v9189, %v9189
  %v9254 = vpack.c.bf16 %v9190, %v9190
  %v9255 = vpack.c.bf16 %v9191, %v9191
  %v9256 = vpack.c.bf16 %v9192, %v9192
  %v9257 = vpack.c.bf16 %v9193, %v9193
  %v9258 = vpack.c.bf16 %v9194, %v9194
  %v9259 = vpack.c.bf16 %v9195, %v9195
  %v9260 = vld [vmem:[%s8555 + $0x2] sm:$0xff]
  %v9261 = vld [vmem:[%s8555 + $0xa] sm:$0xff]
  %v9262 = vld [vmem:[%s8555 + $0x1a] sm:$0xff]
  %v9263 = vld [vmem:[%s8555 + $0x22] sm:$0xff]
  %v9264 = vld [vmem:[%s8555 + $0x32] sm:$0xff]
  %v9265 = vld [vmem:[%s8555 + $0x3a] sm:$0xff]
  %v9266 = vld [vmem:[%s8555 + $0x4a] sm:$0xff]
  %v9267 = vld [vmem:[%s8555 + $0x52] sm:$0xff]
  %v9268 = vld [vmem:[%s8555 + $0x62] sm:$0xff]
  %v9269 = vld [vmem:[%s8555 + $0x6a] sm:$0xff]
  %v9270 = vld [vmem:[%s8555 + $0x7a] sm:$0xff]
  %v9271 = vld [vmem:[%s8555 + $0x82] sm:$0xff]
  %v9272 = vld [vmem:[%s8555 + $0x92] sm:$0xff]
  %v9273 = vld [vmem:[%s8555 + $0x9a] sm:$0xff]
  %v9274 = vld [vmem:[%s8555 + $0xaa] sm:$0xff]
  %v9275 = vld [vmem:[%s8555 + $0xb2] sm:$0xff]
  %v9276 = vld [vmem:[%s8555 + $0xc2] sm:$0xff]
  %v9277 = vld [vmem:[%s8555 + $0xca] sm:$0xff]
  %v9278 = vld [vmem:[%s8555 + $0xda] sm:$0xff]
  %v9279 = vld [vmem:[%s8555 + $0xe2] sm:$0xff]
  %v9280 = vld [vmem:[%s8555 + $0xf2] sm:$0xff]
  %v9281 = vld [vmem:[%s8555 + $0xfa] sm:$0xff]
  %v9282 = vld [vmem:[%s8555 + $0x10a] sm:$0xff]
  %v9283 = vld [vmem:[%s8555 + $0x112] sm:$0xff]
  %v9284 = vld [vmem:[%s8555 + $0x122] sm:$0xff]
  %v9285 = vld [vmem:[%s8555 + $0x12a] sm:$0xff]
  %v9286 = vld [vmem:[%s8555 + $0x13a] sm:$0xff]
  %v9287 = vld [vmem:[%s8555 + $0x142] sm:$0xff]
  %v9288 = vld [vmem:[%s8555 + $0x152] sm:$0xff]
  %v9289 = vld [vmem:[%s8555 + $0x15a] sm:$0xff]
  %v9290 = vld [vmem:[%s8555 + $0x16a] sm:$0xff]
  %v9291 = vld [vmem:[%s8555 + $0x172] sm:$0xff]
  %v9292 = vld [vmem:[%s8555 + $0x1b2] sm:$0xff]
  %v9293 = vld [vmem:[%s8555 + $0x1ba] sm:$0xff]
  %v9294 = vld [vmem:[%s8555 + $0x1ca] sm:$0xff]
  %v9295 = vld [vmem:[%s8555 + $0x1d2] sm:$0xff]
  %v9296 = vld [vmem:[%s8555 + $0x1e2] sm:$0xff]
  %v9297 = vld [vmem:[%s8555 + $0x1ea] sm:$0xff]
  %v9298 = vld [vmem:[%s8555 + $0x1fa] sm:$0xff]
  %v9299 = vld [vmem:[%s8555 + $0x202] sm:$0xff]
  %v9300 = vld [vmem:[%s8555 + $0x212] sm:$0xff]
  %v9301 = vld [vmem:[%s8555 + $0x21a] sm:$0xff]
  %v9302 = vld [vmem:[%s8555 + $0x22a] sm:$0xff]
  %v9303 = vld [vmem:[%s8555 + $0x232] sm:$0xff]
  %v9304 = vld [vmem:[%s8555 + $0x242] sm:$0xff]
  %v9305 = vld [vmem:[%s8555 + $0x24a] sm:$0xff]
  %v9306 = vld [vmem:[%s8555 + $0x25a] sm:$0xff]
  %v9307 = vld [vmem:[%s8555 + $0x262] sm:$0xff]
  %v9308 = vld [vmem:[%s8555 + $0x272] sm:$0xff]
  %v9309 = vld [vmem:[%s8555 + $0x27a] sm:$0xff]
  %v9310 = vld [vmem:[%s8555 + $0x28a] sm:$0xff]
  %v9311 = vld [vmem:[%s8555 + $0x292] sm:$0xff]
  %v9312 = vld [vmem:[%s8555 + $0x2a2] sm:$0xff]
  %v9313 = vld [vmem:[%s8555 + $0x2aa] sm:$0xff]
  %v9314 = vld [vmem:[%s8555 + $0x2ba] sm:$0xff]
  %v9315 = vld [vmem:[%s8555 + $0x2c2] sm:$0xff]
  %v9316 = vld [vmem:[%s8555 + $0x2d2] sm:$0xff]
  %v9317 = vld [vmem:[%s8555 + $0x2da] sm:$0xff]
  %v9318 = vld [vmem:[%s8555 + $0x2ea] sm:$0xff]
  %v9319 = vld [vmem:[%s8555 + $0x2f2] sm:$0xff]
  %v9320 = vld [vmem:[%s8555 + $0x302] sm:$0xff]
  %v9321 = vld [vmem:[%s8555 + $0x30a] sm:$0xff]
  %v9322 = vld [vmem:[%s8555 + $0x31a] sm:$0xff]
  %v9323 = vld [vmem:[%s8555 + $0x322] sm:$0xff]
  %v9324 = vpack.c.bf16 %v9260, %v9260
  %v9325 = vpack.c.bf16 %v9261, %v9261
  %v9326 = vpack.c.bf16 %v9262, %v9262
  %v9327 = vpack.c.bf16 %v9263, %v9263
  %v9328 = vpack.c.bf16 %v9264, %v9264
  %v9329 = vpack.c.bf16 %v9265, %v9265
  %v9330 = vpack.c.bf16 %v9266, %v9266
  %v9331 = vpack.c.bf16 %v9267, %v9267
  %v9332 = vpack.c.bf16 %v9268, %v9268
  %v9333 = vpack.c.bf16 %v9269, %v9269
  %v9334 = vpack.c.bf16 %v9270, %v9270
  %v9335 = vpack.c.bf16 %v9271, %v9271
  %v9336 = vpack.c.bf16 %v9272, %v9272
  %v9337 = vpack.c.bf16 %v9273, %v9273
  %v9338 = vpack.c.bf16 %v9274, %v9274
  %v9339 = vpack.c.bf16 %v9275, %v9275
  %v9340 = vpack.c.bf16 %v9276, %v9276
  %v9341 = vpack.c.bf16 %v9277, %v9277
  %v9342 = vpack.c.bf16 %v9278, %v9278
  %v9343 = vpack.c.bf16 %v9279, %v9279
  %v9344 = vpack.c.bf16 %v9280, %v9280
  %v9345 = vpack.c.bf16 %v9281, %v9281
  %v9346 = vpack.c.bf16 %v9282, %v9282
  %v9347 = vpack.c.bf16 %v9283, %v9283
  %v9348 = vpack.c.bf16 %v9284, %v9284
  %v9349 = vpack.c.bf16 %v9285, %v9285
  %v9350 = vpack.c.bf16 %v9286, %v9286
  %v9351 = vpack.c.bf16 %v9287, %v9287
  %v9352 = vpack.c.bf16 %v9288, %v9288
  %v9353 = vpack.c.bf16 %v9289, %v9289
  %v9354 = vpack.c.bf16 %v9290, %v9290
  %v9355 = vpack.c.bf16 %v9291, %v9291
  %v9356 = vpack.c.bf16 %v9292, %v9292
  %v9357 = vpack.c.bf16 %v9293, %v9293
  %v9358 = vpack.c.bf16 %v9294, %v9294
  %v9359 = vpack.c.bf16 %v9295, %v9295
  %v9360 = vpack.c.bf16 %v9296, %v9296
  %v9361 = vpack.c.bf16 %v9297, %v9297
  %v9362 = vpack.c.bf16 %v9298, %v9298
  %v9363 = vpack.c.bf16 %v9299, %v9299
  %v9364 = vpack.c.bf16 %v9300, %v9300
  %v9365 = vpack.c.bf16 %v9301, %v9301
  %v9366 = vpack.c.bf16 %v9302, %v9302
  %v9367 = vpack.c.bf16 %v9303, %v9303
  %v9368 = vpack.c.bf16 %v9304, %v9304
  %v9369 = vpack.c.bf16 %v9305, %v9305
  %v9370 = vpack.c.bf16 %v9306, %v9306
  %v9371 = vpack.c.bf16 %v9307, %v9307
  %v9372 = vpack.c.bf16 %v9308, %v9308
  %v9373 = vpack.c.bf16 %v9309, %v9309
  %v9374 = vpack.c.bf16 %v9310, %v9310
  %v9375 = vpack.c.bf16 %v9311, %v9311
  %v9376 = vpack.c.bf16 %v9312, %v9312
  %v9377 = vpack.c.bf16 %v9313, %v9313
  %v9378 = vpack.c.bf16 %v9314, %v9314
  %v9379 = vpack.c.bf16 %v9315, %v9315
  %v9380 = vpack.c.bf16 %v9316, %v9316
  %v9381 = vpack.c.bf16 %v9317, %v9317
  %v9382 = vpack.c.bf16 %v9318, %v9318
  %v9383 = vpack.c.bf16 %v9319, %v9319
  %v9384 = vpack.c.bf16 %v9320, %v9320
  %v9385 = vpack.c.bf16 %v9321, %v9321
  %v9386 = vpack.c.bf16 %v9322, %v9322
  %v9387 = vpack.c.bf16 %v9323, %v9323
  %s9388 = scalar_lea.vmem [#allocation2], 48
  %v9389 = vld [vmem:[%s9388] sm:$0xff]
  %v9390 = vld [vmem:[%s9388 + $0x8] sm:$0xff]
  %v9391 = vld [vmem:[%s9388 + $0x18] sm:$0xff]
  %v9392 = vld [vmem:[%s9388 + $0x20] sm:$0xff]
  %v9393 = vld [vmem:[%s9388 + $0x30] sm:$0xff]
  %v9394 = vld [vmem:[%s9388 + $0x38] sm:$0xff]
  %v9395 = vld [vmem:[%s9388 + $0x48] sm:$0xff]
  %v9396 = vld [vmem:[%s9388 + $0x50] sm:$0xff]
  %v9397 = vld [vmem:[%s9388 + $0x60] sm:$0xff]
  %v9398 = vld [vmem:[%s9388 + $0x68] sm:$0xff]
  %v9399 = vld [vmem:[%s9388 + $0x78] sm:$0xff]
  %v9400 = vld [vmem:[%s9388 + $0x80] sm:$0xff]
  %v9401 = vld [vmem:[%s9388 + $0x90] sm:$0xff]
  %v9402 = vld [vmem:[%s9388 + $0x98] sm:$0xff]
  %v9403 = vld [vmem:[%s9388 + $0xa8] sm:$0xff]
  %v9404 = vld [vmem:[%s9388 + $0xb0] sm:$0xff]
  %v9405 = vld [vmem:[%s9388 + $0xc0] sm:$0xff]
  %v9406 = vld [vmem:[%s9388 + $0xc8] sm:$0xff]
  %v9407 = vld [vmem:[%s9388 + $0xd8] sm:$0xff]
  %v9408 = vld [vmem:[%s9388 + $0xe0] sm:$0xff]
  %v9409 = vld [vmem:[%s9388 + $0xf0] sm:$0xff]
  %v9410 = vld [vmem:[%s9388 + $0xf8] sm:$0xff]
  %v9411 = vld [vmem:[%s9388 + $0x108] sm:$0xff]
  %v9412 = vld [vmem:[%s9388 + $0x110] sm:$0xff]
  %v9413 = vld [vmem:[%s9388 + $0x120] sm:$0xff]
  %v9414 = vld [vmem:[%s9388 + $0x128] sm:$0xff]
  %v9415 = vld [vmem:[%s9388 + $0x138] sm:$0xff]
  %v9416 = vld [vmem:[%s9388 + $0x140] sm:$0xff]
  %v9417 = vld [vmem:[%s9388 + $0x150] sm:$0xff]
  %v9418 = vld [vmem:[%s9388 + $0x158] sm:$0xff]
  %v9419 = vld [vmem:[%s9388 + $0x168] sm:$0xff]
  %v9420 = vld [vmem:[%s9388 + $0x170] sm:$0xff]
  %v9421 = vld [vmem:[%s9388 + $0x1b0] sm:$0xff]
  %v9422 = vld [vmem:[%s9388 + $0x1b8] sm:$0xff]
  %v9423 = vld [vmem:[%s9388 + $0x1c8] sm:$0xff]
  %v9424 = vld [vmem:[%s9388 + $0x1d0] sm:$0xff]
  %v9425 = vld [vmem:[%s9388 + $0x1e0] sm:$0xff]
  %v9426 = vld [vmem:[%s9388 + $0x1e8] sm:$0xff]
  %v9427 = vld [vmem:[%s9388 + $0x1f8] sm:$0xff]
  %v9428 = vld [vmem:[%s9388 + $0x200] sm:$0xff]
  %v9429 = vld [vmem:[%s9388 + $0x210] sm:$0xff]
  %v9430 = vld [vmem:[%s9388 + $0x218] sm:$0xff]
  %v9431 = vld [vmem:[%s9388 + $0x228] sm:$0xff]
  %v9432 = vld [vmem:[%s9388 + $0x230] sm:$0xff]
  %v9433 = vld [vmem:[%s9388 + $0x240] sm:$0xff]
  %v9434 = vld [vmem:[%s9388 + $0x248] sm:$0xff]
  %v9435 = vld [vmem:[%s9388 + $0x258] sm:$0xff]
  %v9436 = vld [vmem:[%s9388 + $0x260] sm:$0xff]
  %v9437 = vld [vmem:[%s9388 + $0x270] sm:$0xff]
  %v9438 = vld [vmem:[%s9388 + $0x278] sm:$0xff]
  %v9439 = vld [vmem:[%s9388 + $0x288] sm:$0xff]
  %v9440 = vld [vmem:[%s9388 + $0x290] sm:$0xff]
  %v9441 = vld [vmem:[%s9388 + $0x2a0] sm:$0xff]
  %v9442 = vld [vmem:[%s9388 + $0x2a8] sm:$0xff]
  %v9443 = vld [vmem:[%s9388 + $0x2b8] sm:$0xff]
  %v9444 = vld [vmem:[%s9388 + $0x2c0] sm:$0xff]
  %v9445 = vld [vmem:[%s9388 + $0x2d0] sm:$0xff]
  %v9446 = vld [vmem:[%s9388 + $0x2d8] sm:$0xff]
  %v9447 = vld [vmem:[%s9388 + $0x2e8] sm:$0xff]
  %v9448 = vld [vmem:[%s9388 + $0x2f0] sm:$0xff]
  %v9449 = vld [vmem:[%s9388 + $0x300] sm:$0xff]
  %v9450 = vld [vmem:[%s9388 + $0x308] sm:$0xff]
  %v9451 = vld [vmem:[%s9388 + $0x318] sm:$0xff]
  %v9452 = vld [vmem:[%s9388 + $0x320] sm:$0xff]
  %v9453 = vpack.c.bf16 %v9389, %v9389
  %v9454 = vpack.c.bf16 %v9390, %v9390
  %v9455 = vpack.c.bf16 %v9391, %v9391
  %v9456 = vpack.c.bf16 %v9392, %v9392
  %v9457 = vpack.c.bf16 %v9393, %v9393
  %v9458 = vpack.c.bf16 %v9394, %v9394
  %v9459 = vpack.c.bf16 %v9395, %v9395
  %v9460 = vpack.c.bf16 %v9396, %v9396
  %v9461 = vpack.c.bf16 %v9397, %v9397
  %v9462 = vpack.c.bf16 %v9398, %v9398
  %v9463 = vpack.c.bf16 %v9399, %v9399
  %v9464 = vpack.c.bf16 %v9400, %v9400
  %v9465 = vpack.c.bf16 %v9401, %v9401
  %v9466 = vpack.c.bf16 %v9402, %v9402
  %v9467 = vpack.c.bf16 %v9403, %v9403
  %v9468 = vpack.c.bf16 %v9404, %v9404
  %v9469 = vpack.c.bf16 %v9405, %v9405
  %v9470 = vpack.c.bf16 %v9406, %v9406
  %v9471 = vpack.c.bf16 %v9407, %v9407
  %v9472 = vpack.c.bf16 %v9408, %v9408
  %v9473 = vpack.c.bf16 %v9409, %v9409
  %v9474 = vpack.c.bf16 %v9410, %v9410
  %v9475 = vpack.c.bf16 %v9411, %v9411
  %v9476 = vpack.c.bf16 %v9412, %v9412
  %v9477 = vpack.c.bf16 %v9413, %v9413
  %v9478 = vpack.c.bf16 %v9414, %v9414
  %v9479 = vpack.c.bf16 %v9415, %v9415
  %v9480 = vpack.c.bf16 %v9416, %v9416
  %v9481 = vpack.c.bf16 %v9417, %v9417
  %v9482 = vpack.c.bf16 %v9418, %v9418
  %v9483 = vpack.c.bf16 %v9419, %v9419
  %v9484 = vpack.c.bf16 %v9420, %v9420
  %v9485 = vpack.c.bf16 %v9421, %v9421
  %v9486 = vpack.c.bf16 %v9422, %v9422
  %v9487 = vpack.c.bf16 %v9423, %v9423
  %v9488 = vpack.c.bf16 %v9424, %v9424
  %v9489 = vpack.c.bf16 %v9425, %v9425
  %v9490 = vpack.c.bf16 %v9426, %v9426
  %v9491 = vpack.c.bf16 %v9427, %v9427
  %v9492 = vpack.c.bf16 %v9428, %v9428
  %v9493 = vpack.c.bf16 %v9429, %v9429
  %v9494 = vpack.c.bf16 %v9430, %v9430
  %v9495 = vpack.c.bf16 %v9431, %v9431
  %v9496 = vpack.c.bf16 %v9432, %v9432
  %v9497 = vpack.c.bf16 %v9433, %v9433
  %v9498 = vpack.c.bf16 %v9434, %v9434
  %v9499 = vpack.c.bf16 %v9435, %v9435
  %v9500 = vpack.c.bf16 %v9436, %v9436
  %v9501 = vpack.c.bf16 %v9437, %v9437
  %v9502 = vpack.c.bf16 %v9438, %v9438
  %v9503 = vpack.c.bf16 %v9439, %v9439
  %v9504 = vpack.c.bf16 %v9440, %v9440
  %v9505 = vpack.c.bf16 %v9441, %v9441
  %v9506 = vpack.c.bf16 %v9442, %v9442
  %v9507 = vpack.c.bf16 %v9443, %v9443
  %v9508 = vpack.c.bf16 %v9444, %v9444
  %v9509 = vpack.c.bf16 %v9445, %v9445
  %v9510 = vpack.c.bf16 %v9446, %v9446
  %v9511 = vpack.c.bf16 %v9447, %v9447
  %v9512 = vpack.c.bf16 %v9448, %v9448
  %v9513 = vpack.c.bf16 %v9449, %v9449
  %v9514 = vpack.c.bf16 %v9450, %v9450
  %v9515 = vpack.c.bf16 %v9451, %v9451
  %v9516 = vpack.c.bf16 %v9452, %v9452
  %v9517 = vld [vmem:[%s9388 + $0x1] sm:$0xff]
  %v9518 = vld [vmem:[%s9388 + $0x9] sm:$0xff]
  %v9519 = vld [vmem:[%s9388 + $0x19] sm:$0xff]
  %v9520 = vld [vmem:[%s9388 + $0x21] sm:$0xff]
  %v9521 = vld [vmem:[%s9388 + $0x31] sm:$0xff]
  %v9522 = vld [vmem:[%s9388 + $0x39] sm:$0xff]
  %v9523 = vld [vmem:[%s9388 + $0x49] sm:$0xff]
  %v9524 = vld [vmem:[%s9388 + $0x51] sm:$0xff]
  %v9525 = vld [vmem:[%s9388 + $0x61] sm:$0xff]
  %v9526 = vld [vmem:[%s9388 + $0x69] sm:$0xff]
  %v9527 = vld [vmem:[%s9388 + $0x79] sm:$0xff]
  %v9528 = vld [vmem:[%s9388 + $0x81] sm:$0xff]
  %v9529 = vld [vmem:[%s9388 + $0x91] sm:$0xff]
  %v9530 = vld [vmem:[%s9388 + $0x99] sm:$0xff]
  %v9531 = vld [vmem:[%s9388 + $0xa9] sm:$0xff]
  %v9532 = vld [vmem:[%s9388 + $0xb1] sm:$0xff]
  %v9533 = vld [vmem:[%s9388 + $0xc1] sm:$0xff]
  %v9534 = vld [vmem:[%s9388 + $0xc9] sm:$0xff]
  %v9535 = vld [vmem:[%s9388 + $0xd9] sm:$0xff]
  %v9536 = vld [vmem:[%s9388 + $0xe1] sm:$0xff]
  %v9537 = vld [vmem:[%s9388 + $0xf1] sm:$0xff]
  %v9538 = vld [vmem:[%s9388 + $0xf9] sm:$0xff]
  %v9539 = vld [vmem:[%s9388 + $0x109] sm:$0xff]
  %v9540 = vld [vmem:[%s9388 + $0x111] sm:$0xff]
  %v9541 = vld [vmem:[%s9388 + $0x121] sm:$0xff]
  %v9542 = vld [vmem:[%s9388 + $0x129] sm:$0xff]
  %v9543 = vld [vmem:[%s9388 + $0x139] sm:$0xff]
  %v9544 = vld [vmem:[%s9388 + $0x141] sm:$0xff]
  %v9545 = vld [vmem:[%s9388 + $0x151] sm:$0xff]
  %v9546 = vld [vmem:[%s9388 + $0x159] sm:$0xff]
  %v9547 = vld [vmem:[%s9388 + $0x169] sm:$0xff]
  %v9548 = vld [vmem:[%s9388 + $0x171] sm:$0xff]
  %v9549 = vld [vmem:[%s9388 + $0x1b1] sm:$0xff]
  %v9550 = vld [vmem:[%s9388 + $0x1b9] sm:$0xff]
  %v9551 = vld [vmem:[%s9388 + $0x1c9] sm:$0xff]
  %v9552 = vld [vmem:[%s9388 + $0x1d1] sm:$0xff]
  %v9553 = vld [vmem:[%s9388 + $0x1e1] sm:$0xff]
  %v9554 = vld [vmem:[%s9388 + $0x1e9] sm:$0xff]
  %v9555 = vld [vmem:[%s9388 + $0x1f9] sm:$0xff]
  %v9556 = vld [vmem:[%s9388 + $0x201] sm:$0xff]
  %v9557 = vld [vmem:[%s9388 + $0x211] sm:$0xff]
  %v9558 = vld [vmem:[%s9388 + $0x219] sm:$0xff]
  %v9559 = vld [vmem:[%s9388 + $0x229] sm:$0xff]
  %v9560 = vld [vmem:[%s9388 + $0x231] sm:$0xff]
  %v9561 = vld [vmem:[%s9388 + $0x241] sm:$0xff]
  %v9562 = vld [vmem:[%s9388 + $0x249] sm:$0xff]
  %v9563 = vld [vmem:[%s9388 + $0x259] sm:$0xff]
  %v9564 = vld [vmem:[%s9388 + $0x261] sm:$0xff]
  %v9565 = vld [vmem:[%s9388 + $0x271] sm:$0xff]
  %v9566 = vld [vmem:[%s9388 + $0x279] sm:$0xff]
  %v9567 = vld [vmem:[%s9388 + $0x289] sm:$0xff]
  %v9568 = vld [vmem:[%s9388 + $0x291] sm:$0xff]
  %v9569 = vld [vmem:[%s9388 + $0x2a1] sm:$0xff]
  %v9570 = vld [vmem:[%s9388 + $0x2a9] sm:$0xff]
  %v9571 = vld [vmem:[%s9388 + $0x2b9] sm:$0xff]
  %v9572 = vld [vmem:[%s9388 + $0x2c1] sm:$0xff]
  %v9573 = vld [vmem:[%s9388 + $0x2d1] sm:$0xff]
  %v9574 = vld [vmem:[%s9388 + $0x2d9] sm:$0xff]
  %v9575 = vld [vmem:[%s9388 + $0x2e9] sm:$0xff]
  %v9576 = vld [vmem:[%s9388 + $0x2f1] sm:$0xff]
  %v9577 = vld [vmem:[%s9388 + $0x301] sm:$0xff]
  %v9578 = vld [vmem:[%s9388 + $0x309] sm:$0xff]
  %v9579 = vld [vmem:[%s9388 + $0x319] sm:$0xff]
  %v9580 = vld [vmem:[%s9388 + $0x321] sm:$0xff]
  %v9581 = vpack.c.bf16 %v9517, %v9517
  %v9582 = vpack.c.bf16 %v9518, %v9518
  %v9583 = vpack.c.bf16 %v9519, %v9519
  %v9584 = vpack.c.bf16 %v9520, %v9520
  %v9585 = vpack.c.bf16 %v9521, %v9521
  %v9586 = vpack.c.bf16 %v9522, %v9522
  %v9587 = vpack.c.bf16 %v9523, %v9523
  %v9588 = vpack.c.bf16 %v9524, %v9524
  %v9589 = vpack.c.bf16 %v9525, %v9525
  %v9590 = vpack.c.bf16 %v9526, %v9526
  %v9591 = vpack.c.bf16 %v9527, %v9527
  %v9592 = vpack.c.bf16 %v9528, %v9528
  %v9593 = vpack.c.bf16 %v9529, %v9529
  %v9594 = vpack.c.bf16 %v9530, %v9530
  %v9595 = vpack.c.bf16 %v9531, %v9531
  %v9596 = vpack.c.bf16 %v9532, %v9532
  %v9597 = vpack.c.bf16 %v9533, %v9533
  %v9598 = vpack.c.bf16 %v9534, %v9534
  %v9599 = vpack.c.bf16 %v9535, %v9535
  %v9600 = vpack.c.bf16 %v9536, %v9536
  %v9601 = vpack.c.bf16 %v9537, %v9537
  %v9602 = vpack.c.bf16 %v9538, %v9538
  %v9603 = vpack.c.bf16 %v9539, %v9539
  %v9604 = vpack.c.bf16 %v9540, %v9540
  %v9605 = vpack.c.bf16 %v9541, %v9541
  %v9606 = vpack.c.bf16 %v9542, %v9542
  %v9607 = vpack.c.bf16 %v9543, %v9543
  %v9608 = vpack.c.bf16 %v9544, %v9544
  %v9609 = vpack.c.bf16 %v9545, %v9545
  %v9610 = vpack.c.bf16 %v9546, %v9546
  %v9611 = vpack.c.bf16 %v9547, %v9547
  %v9612 = vpack.c.bf16 %v9548, %v9548
  %v9613 = vpack.c.bf16 %v9549, %v9549
  %v9614 = vpack.c.bf16 %v9550, %v9550
  %v9615 = vpack.c.bf16 %v9551, %v9551
  %v9616 = vpack.c.bf16 %v9552, %v9552
  %v9617 = vpack.c.bf16 %v9553, %v9553
  %v9618 = vpack.c.bf16 %v9554, %v9554
  %v9619 = vpack.c.bf16 %v9555, %v9555
  %v9620 = vpack.c.bf16 %v9556, %v9556
  %v9621 = vpack.c.bf16 %v9557, %v9557
  %v9622 = vpack.c.bf16 %v9558, %v9558
  %v9623 = vpack.c.bf16 %v9559, %v9559
  %v9624 = vpack.c.bf16 %v9560, %v9560
  %v9625 = vpack.c.bf16 %v9561, %v9561
  %v9626 = vpack.c.bf16 %v9562, %v9562
  %v9627 = vpack.c.bf16 %v9563, %v9563
  %v9628 = vpack.c.bf16 %v9564, %v9564
  %v9629 = vpack.c.bf16 %v9565, %v9565
  %v9630 = vpack.c.bf16 %v9566, %v9566
  %v9631 = vpack.c.bf16 %v9567, %v9567
  %v9632 = vpack.c.bf16 %v9568, %v9568
  %v9633 = vpack.c.bf16 %v9569, %v9569
  %v9634 = vpack.c.bf16 %v9570, %v9570
  %v9635 = vpack.c.bf16 %v9571, %v9571
  %v9636 = vpack.c.bf16 %v9572, %v9572
  %v9637 = vpack.c.bf16 %v9573, %v9573
  %v9638 = vpack.c.bf16 %v9574, %v9574
  %v9639 = vpack.c.bf16 %v9575, %v9575
  %v9640 = vpack.c.bf16 %v9576, %v9576
  %v9641 = vpack.c.bf16 %v9577, %v9577
  %v9642 = vpack.c.bf16 %v9578, %v9578
  %v9643 = vpack.c.bf16 %v9579, %v9579
  %v9644 = vpack.c.bf16 %v9580, %v9580
  %v9645 = vld [vmem:[%s9388 + $0x2] sm:$0xff]
  %v9646 = vld [vmem:[%s9388 + $0xa] sm:$0xff]
  %v9647 = vld [vmem:[%s9388 + $0x1a] sm:$0xff]
  %v9648 = vld [vmem:[%s9388 + $0x22] sm:$0xff]
  %v9649 = vld [vmem:[%s9388 + $0x32] sm:$0xff]
  %v9650 = vld [vmem:[%s9388 + $0x3a] sm:$0xff]
  %v9651 = vld [vmem:[%s9388 + $0x4a] sm:$0xff]
  %v9652 = vld [vmem:[%s9388 + $0x52] sm:$0xff]
  %v9653 = vld [vmem:[%s9388 + $0x62] sm:$0xff]
  %v9654 = vld [vmem:[%s9388 + $0x6a] sm:$0xff]
  %v9655 = vld [vmem:[%s9388 + $0x7a] sm:$0xff]
  %v9656 = vld [vmem:[%s9388 + $0x82] sm:$0xff]
  %v9657 = vld [vmem:[%s9388 + $0x92] sm:$0xff]
  %v9658 = vld [vmem:[%s9388 + $0x9a] sm:$0xff]
  %v9659 = vld [vmem:[%s9388 + $0xaa] sm:$0xff]
  %v9660 = vld [vmem:[%s9388 + $0xb2] sm:$0xff]
  %v9661 = vld [vmem:[%s9388 + $0xc2] sm:$0xff]
  %v9662 = vld [vmem:[%s9388 + $0xca] sm:$0xff]
  %v9663 = vld [vmem:[%s9388 + $0xda] sm:$0xff]
  %v9664 = vld [vmem:[%s9388 + $0xe2] sm:$0xff]
  %v9665 = vld [vmem:[%s9388 + $0xf2] sm:$0xff]
  %v9666 = vld [vmem:[%s9388 + $0xfa] sm:$0xff]
  %v9667 = vld [vmem:[%s9388 + $0x10a] sm:$0xff]
  %v9668 = vld [vmem:[%s9388 + $0x112] sm:$0xff]
  %v9669 = vld [vmem:[%s9388 + $0x122] sm:$0xff]
  %v9670 = vld [vmem:[%s9388 + $0x12a] sm:$0xff]
  %v9671 = vld [vmem:[%s9388 + $0x13a] sm:$0xff]
  %v9672 = vld [vmem:[%s9388 + $0x142] sm:$0xff]
  %v9673 = vld [vmem:[%s9388 + $0x152] sm:$0xff]
  %v9674 = vld [vmem:[%s9388 + $0x15a] sm:$0xff]
  %v9675 = vld [vmem:[%s9388 + $0x16a] sm:$0xff]
  %v9676 = vld [vmem:[%s9388 + $0x172] sm:$0xff]
  %v9677 = vld [vmem:[%s9388 + $0x1b2] sm:$0xff]
  %v9678 = vld [vmem:[%s9388 + $0x1ba] sm:$0xff]
  %v9679 = vld [vmem:[%s9388 + $0x1ca] sm:$0xff]
  %v9680 = vld [vmem:[%s9388 + $0x1d2] sm:$0xff]
  %v9681 = vld [vmem:[%s9388 + $0x1e2] sm:$0xff]
  %v9682 = vld [vmem:[%s9388 + $0x1ea] sm:$0xff]
  %v9683 = vld [vmem:[%s9388 + $0x1fa] sm:$0xff]
  %v9684 = vld [vmem:[%s9388 + $0x202] sm:$0xff]
  %v9685 = vld [vmem:[%s9388 + $0x212] sm:$0xff]
  %v9686 = vld [vmem:[%s9388 + $0x21a] sm:$0xff]
  %v9687 = vld [vmem:[%s9388 + $0x22a] sm:$0xff]
  %v9688 = vld [vmem:[%s9388 + $0x232] sm:$0xff]
  %v9689 = vld [vmem:[%s9388 + $0x242] sm:$0xff]
  %v9690 = vld [vmem:[%s9388 + $0x24a] sm:$0xff]
  %v9691 = vld [vmem:[%s9388 + $0x25a] sm:$0xff]
  %v9692 = vld [vmem:[%s9388 + $0x262] sm:$0xff]
  %v9693 = vld [vmem:[%s9388 + $0x272] sm:$0xff]
  %v9694 = vld [vmem:[%s9388 + $0x27a] sm:$0xff]
  %v9695 = vld [vmem:[%s9388 + $0x28a] sm:$0xff]
  %v9696 = vld [vmem:[%s9388 + $0x292] sm:$0xff]
  %v9697 = vld [vmem:[%s9388 + $0x2a2] sm:$0xff]
  %v9698 = vld [vmem:[%s9388 + $0x2aa] sm:$0xff]
  %v9699 = vld [vmem:[%s9388 + $0x2ba] sm:$0xff]
  %v9700 = vld [vmem:[%s9388 + $0x2c2] sm:$0xff]
  %v9701 = vld [vmem:[%s9388 + $0x2d2] sm:$0xff]
  %v9702 = vld [vmem:[%s9388 + $0x2da] sm:$0xff]
  %v9703 = vld [vmem:[%s9388 + $0x2ea] sm:$0xff]
  %v9704 = vld [vmem:[%s9388 + $0x2f2] sm:$0xff]
  %v9705 = vld [vmem:[%s9388 + $0x302] sm:$0xff]
  %v9706 = vld [vmem:[%s9388 + $0x30a] sm:$0xff]
  %v9707 = vld [vmem:[%s9388 + $0x31a] sm:$0xff]
  %v9708 = vld [vmem:[%s9388 + $0x322] sm:$0xff]
  %v9709 = vpack.c.bf16 %v9645, %v9645
  %v9710 = vpack.c.bf16 %v9646, %v9646
  %v9711 = vpack.c.bf16 %v9647, %v9647
  %v9712 = vpack.c.bf16 %v9648, %v9648
  %v9713 = vpack.c.bf16 %v9649, %v9649
  %v9714 = vpack.c.bf16 %v9650, %v9650
  %v9715 = vpack.c.bf16 %v9651, %v9651
  %v9716 = vpack.c.bf16 %v9652, %v9652
  %v9717 = vpack.c.bf16 %v9653, %v9653
  %v9718 = vpack.c.bf16 %v9654, %v9654
  %v9719 = vpack.c.bf16 %v9655, %v9655
  %v9720 = vpack.c.bf16 %v9656, %v9656
  %v9721 = vpack.c.bf16 %v9657, %v9657
  %v9722 = vpack.c.bf16 %v9658, %v9658
  %v9723 = vpack.c.bf16 %v9659, %v9659
  %v9724 = vpack.c.bf16 %v9660, %v9660
  %v9725 = vpack.c.bf16 %v9661, %v9661
  %v9726 = vpack.c.bf16 %v9662, %v9662
  %v9727 = vpack.c.bf16 %v9663, %v9663
  %v9728 = vpack.c.bf16 %v9664, %v9664
  %v9729 = vpack.c.bf16 %v9665, %v9665
  %v9730 = vpack.c.bf16 %v9666, %v9666
  %v9731 = vpack.c.bf16 %v9667, %v9667
  %v9732 = vpack.c.bf16 %v9668, %v9668
  %v9733 = vpack.c.bf16 %v9669, %v9669
  %v9734 = vpack.c.bf16 %v9670, %v9670
  %v9735 = vpack.c.bf16 %v9671, %v9671
  %v9736 = vpack.c.bf16 %v9672, %v9672
  %v9737 = vpack.c.bf16 %v9673, %v9673
  %v9738 = vpack.c.bf16 %v9674, %v9674
  %v9739 = vpack.c.bf16 %v9675, %v9675
  %v9740 = vpack.c.bf16 %v9676, %v9676
  %v9741 = vpack.c.bf16 %v9677, %v9677
  %v9742 = vpack.c.bf16 %v9678, %v9678
  %v9743 = vpack.c.bf16 %v9679, %v9679
  %v9744 = vpack.c.bf16 %v9680, %v9680
  %v9745 = vpack.c.bf16 %v9681, %v9681
  %v9746 = vpack.c.bf16 %v9682, %v9682
  %v9747 = vpack.c.bf16 %v9683, %v9683
  %v9748 = vpack.c.bf16 %v9684, %v9684
  %v9749 = vpack.c.bf16 %v9685, %v9685
  %v9750 = vpack.c.bf16 %v9686, %v9686
  %v9751 = vpack.c.bf16 %v9687, %v9687
  %v9752 = vpack.c.bf16 %v9688, %v9688
  %v9753 = vpack.c.bf16 %v9689, %v9689
  %v9754 = vpack.c.bf16 %v9690, %v9690
  %v9755 = vpack.c.bf16 %v9691, %v9691
  %v9756 = vpack.c.bf16 %v9692, %v9692
  %v9757 = vpack.c.bf16 %v9693, %v9693
  %v9758 = vpack.c.bf16 %v9694, %v9694
  %v9759 = vpack.c.bf16 %v9695, %v9695
  %v9760 = vpack.c.bf16 %v9696, %v9696
  %v9761 = vpack.c.bf16 %v9697, %v9697
  %v9762 = vpack.c.bf16 %v9698, %v9698
  %v9763 = vpack.c.bf16 %v9699, %v9699
  %v9764 = vpack.c.bf16 %v9700, %v9700
  %v9765 = vpack.c.bf16 %v9701, %v9701
  %v9766 = vpack.c.bf16 %v9702, %v9702
  %v9767 = vpack.c.bf16 %v9703, %v9703
  %v9768 = vpack.c.bf16 %v9704, %v9704
  %v9769 = vpack.c.bf16 %v9705, %v9705
  %v9770 = vpack.c.bf16 %v9706, %v9706
  %v9771 = vpack.c.bf16 %v9707, %v9707
  %v9772 = vpack.c.bf16 %v9708, %v9708
  %v9837 = vunpack.c.l.b16 %v8684
  %v9838 = vunpack.c.l.b16 %v8685
  %v9839 = vunpack.c.l.b16 %v8686
  %v9840 = vunpack.c.l.b16 %v8687
  %v9841 = vunpack.c.l.b16 %v8688
  %v9842 = vunpack.c.l.b16 %v8689
  %v9843 = vunpack.c.l.b16 %v8690
  %v9844 = vunpack.c.l.b16 %v8691
  %v9845 = vunpack.c.l.b16 %v8692
  %v9846 = vunpack.c.l.b16 %v8693
  %v9847 = vunpack.c.l.b16 %v8694
  %v9848 = vunpack.c.l.b16 %v8695
  %v9849 = vunpack.c.l.b16 %v8696
  %v9850 = vunpack.c.l.b16 %v8697
  %v9851 = vunpack.c.l.b16 %v8698
  %v9852 = vunpack.c.l.b16 %v8699
  %v9853 = vunpack.c.l.b16 %v8700
  %v9854 = vunpack.c.l.b16 %v8701
  %v9855 = vunpack.c.l.b16 %v8702
  %v9856 = vunpack.c.l.b16 %v8703
  %v9857 = vunpack.c.l.b16 %v8704
  %v9858 = vunpack.c.l.b16 %v8705
  %v9859 = vunpack.c.l.b16 %v8706
  %v9860 = vunpack.c.l.b16 %v8707
  %v9861 = vunpack.c.l.b16 %v8708
  %v9862 = vunpack.c.l.b16 %v8709
  %v9863 = vunpack.c.l.b16 %v8710
  %v9864 = vunpack.c.l.b16 %v8711
  %v9865 = vunpack.c.l.b16 %v8712
  %v9866 = vunpack.c.l.b16 %v8713
  %v9867 = vunpack.c.l.b16 %v8714
  %v9868 = vunpack.c.l.b16 %v8715
  %v9869 = vunpack.c.l.b16 %v8716
  %v9870 = vunpack.c.l.b16 %v8717
  %v9871 = vunpack.c.l.b16 %v8718
  %v9872 = vunpack.c.l.b16 %v8719
  %v9873 = vunpack.c.l.b16 %v8720
  %v9874 = vunpack.c.l.b16 %v8721
  %v9875 = vunpack.c.l.b16 %v8722
  %v9876 = vunpack.c.l.b16 %v8723
  %v9877 = vunpack.c.l.b16 %v8724
  %v9878 = vunpack.c.l.b16 %v8725
  %v9879 = vunpack.c.l.b16 %v8726
  %v9880 = vunpack.c.l.b16 %v8727
  %v9881 = vunpack.c.l.b16 %v8728
  %v9882 = vunpack.c.l.b16 %v8729
  %v9883 = vunpack.c.l.b16 %v8730
  %v9884 = vunpack.c.l.b16 %v8731
  %v9885 = vunpack.c.l.b16 %v8732
  %v9886 = vunpack.c.l.b16 %v8733
  %v9887 = vunpack.c.l.b16 %v8734
  %v9888 = vunpack.c.l.b16 %v8735
  %v9889 = vunpack.c.l.b16 %v8736
  %v9890 = vunpack.c.l.b16 %v8737
  %v9891 = vunpack.c.l.b16 %v8738
  %v9892 = vunpack.c.l.b16 %v8739
  %v9893 = vunpack.c.l.b16 %v8740
  %v9894 = vunpack.c.l.b16 %v8741
  %v9895 = vunpack.c.l.b16 %v8742
  %v9896 = vunpack.c.l.b16 %v8743
  %v9897 = vunpack.c.l.b16 %v8744
  %v9898 = vunpack.c.l.b16 %v8745
  %v9899 = vunpack.c.l.b16 %v8746
  %v9900 = vunpack.c.l.b16 %v8747
  %v9901 = vpack.c.b16 %v9838, %v9837
  %v9902 = vpack.c.b16 %v9840, %v9839
  %v9903 = vpack.c.b16 %v9842, %v9841
  %v9904 = vpack.c.b16 %v9844, %v9843
  %v9905 = vpack.c.b16 %v9846, %v9845
  %v9906 = vpack.c.b16 %v9848, %v9847
  %v9907 = vpack.c.b16 %v9850, %v9849
  %v9908 = vpack.c.b16 %v9852, %v9851
  %v9909 = vpack.c.b16 %v9854, %v9853
  %v9910 = vpack.c.b16 %v9856, %v9855
  %v9911 = vpack.c.b16 %v9858, %v9857
  %v9912 = vpack.c.b16 %v9860, %v9859
  %v9913 = vpack.c.b16 %v9862, %v9861
  %v9914 = vpack.c.b16 %v9864, %v9863
  %v9915 = vpack.c.b16 %v9866, %v9865
  %v9916 = vpack.c.b16 %v9868, %v9867
  %v9917 = vpack.c.b16 %v9870, %v9869
  %v9918 = vpack.c.b16 %v9872, %v9871
  %v9919 = vpack.c.b16 %v9874, %v9873
  %v9920 = vpack.c.b16 %v9876, %v9875
  %v9921 = vpack.c.b16 %v9878, %v9877
  %v9922 = vpack.c.b16 %v9880, %v9879
  %v9923 = vpack.c.b16 %v9882, %v9881
  %v9924 = vpack.c.b16 %v9884, %v9883
  %v9925 = vpack.c.b16 %v9886, %v9885
  %v9926 = vpack.c.b16 %v9888, %v9887
  %v9927 = vpack.c.b16 %v9890, %v9889
  %v9928 = vpack.c.b16 %v9892, %v9891
  %v9929 = vpack.c.b16 %v9894, %v9893
  %v9930 = vpack.c.b16 %v9896, %v9895
  %v9931 = vpack.c.b16 %v9898, %v9897
  %v9932 = vpack.c.b16 %v9900, %v9899
  %v9997 = vunpack.c.l.b16 %v8812
  %v9998 = vunpack.c.l.b16 %v8813
  %v9999 = vunpack.c.l.b16 %v8814
  %v10000 = vunpack.c.l.b16 %v8815
  %v10001 = vunpack.c.l.b16 %v8816
  %v10002 = vunpack.c.l.b16 %v8817
  %v10003 = vunpack.c.l.b16 %v8818
  %v10004 = vunpack.c.l.b16 %v8819
  %v10005 = vunpack.c.l.b16 %v8820
  %v10006 = vunpack.c.l.b16 %v8821
  %v10007 = vunpack.c.l.b16 %v8822
  %v10008 = vunpack.c.l.b16 %v8823
  %v10009 = vunpack.c.l.b16 %v8824
  %v10010 = vunpack.c.l.b16 %v8825
  %v10011 = vunpack.c.l.b16 %v8826
  %v10012 = vunpack.c.l.b16 %v8827
  %v10013 = vunpack.c.l.b16 %v8828
  %v10014 = vunpack.c.l.b16 %v8829
  %v10015 = vunpack.c.l.b16 %v8830
  %v10016 = vunpack.c.l.b16 %v8831
  %v10017 = vunpack.c.l.b16 %v8832
  %v10018 = vunpack.c.l.b16 %v8833
  %v10019 = vunpack.c.l.b16 %v8834
  %v10020 = vunpack.c.l.b16 %v8835
  %v10021 = vunpack.c.l.b16 %v8836
  %v10022 = vunpack.c.l.b16 %v8837
  %v10023 = vunpack.c.l.b16 %v8838
  %v10024 = vunpack.c.l.b16 %v8839
  %v10025 = vunpack.c.l.b16 %v8840
  %v10026 = vunpack.c.l.b16 %v8841
  %v10027 = vunpack.c.l.b16 %v8842
  %v10028 = vunpack.c.l.b16 %v8843
  %v10029 = vunpack.c.l.b16 %v8844
  %v10030 = vunpack.c.l.b16 %v8845
  %v10031 = vunpack.c.l.b16 %v8846
  %v10032 = vunpack.c.l.b16 %v8847
  %v10033 = vunpack.c.l.b16 %v8848
  %v10034 = vunpack.c.l.b16 %v8849
  %v10035 = vunpack.c.l.b16 %v8850
  %v10036 = vunpack.c.l.b16 %v8851
  %v10037 = vunpack.c.l.b16 %v8852
  %v10038 = vunpack.c.l.b16 %v8853
  %v10039 = vunpack.c.l.b16 %v8854
  %v10040 = vunpack.c.l.b16 %v8855
  %v10041 = vunpack.c.l.b16 %v8856
  %v10042 = vunpack.c.l.b16 %v8857
  %v10043 = vunpack.c.l.b16 %v8858
  %v10044 = vunpack.c.l.b16 %v8859
  %v10045 = vunpack.c.l.b16 %v8860
  %v10046 = vunpack.c.l.b16 %v8861
  %v10047 = vunpack.c.l.b16 %v8862
  %v10048 = vunpack.c.l.b16 %v8863
  %v10049 = vunpack.c.l.b16 %v8864
  %v10050 = vunpack.c.l.b16 %v8865
  %v10051 = vunpack.c.l.b16 %v8866
  %v10052 = vunpack.c.l.b16 %v8867
  %v10053 = vunpack.c.l.b16 %v8868
  %v10054 = vunpack.c.l.b16 %v8869
  %v10055 = vunpack.c.l.b16 %v8870
  %v10056 = vunpack.c.l.b16 %v8871
  %v10057 = vunpack.c.l.b16 %v8872
  %v10058 = vunpack.c.l.b16 %v8873
  %v10059 = vunpack.c.l.b16 %v8874
  %v10060 = vunpack.c.l.b16 %v8875
  %v10061 = vpack.c.b16 %v9998, %v9997
  %v10062 = vpack.c.b16 %v10000, %v9999
  %v10063 = vpack.c.b16 %v10002, %v10001
  %v10064 = vpack.c.b16 %v10004, %v10003
  %v10065 = vpack.c.b16 %v10006, %v10005
  %v10066 = vpack.c.b16 %v10008, %v10007
  %v10067 = vpack.c.b16 %v10010, %v10009
  %v10068 = vpack.c.b16 %v10012, %v10011
  %v10069 = vpack.c.b16 %v10014, %v10013
  %v10070 = vpack.c.b16 %v10016, %v10015
  %v10071 = vpack.c.b16 %v10018, %v10017
  %v10072 = vpack.c.b16 %v10020, %v10019
  %v10073 = vpack.c.b16 %v10022, %v10021
  %v10074 = vpack.c.b16 %v10024, %v10023
  %v10075 = vpack.c.b16 %v10026, %v10025
  %v10076 = vpack.c.b16 %v10028, %v10027
  %v10077 = vpack.c.b16 %v10030, %v10029
  %v10078 = vpack.c.b16 %v10032, %v10031
  %v10079 = vpack.c.b16 %v10034, %v10033
  %v10080 = vpack.c.b16 %v10036, %v10035
  %v10081 = vpack.c.b16 %v10038, %v10037
  %v10082 = vpack.c.b16 %v10040, %v10039
  %v10083 = vpack.c.b16 %v10042, %v10041
  %v10084 = vpack.c.b16 %v10044, %v10043
  %v10085 = vpack.c.b16 %v10046, %v10045
  %v10086 = vpack.c.b16 %v10048, %v10047
  %v10087 = vpack.c.b16 %v10050, %v10049
  %v10088 = vpack.c.b16 %v10052, %v10051
  %v10089 = vpack.c.b16 %v10054, %v10053
  %v10090 = vpack.c.b16 %v10056, %v10055
  %v10091 = vpack.c.b16 %v10058, %v10057
  %v10092 = vpack.c.b16 %v10060, %v10059
  %10093 = vrot.lane.b32.xlu0 %v10061, 4
  %v10094 = vpop.permute.xlu0 %10093
  %10095 = vrot.lane.b32.xlu0 %v10062, 4
  %v10096 = vpop.permute.xlu0 %10095
  %10097 = vrot.lane.b32.xlu0 %v10063, 4
  %v10098 = vpop.permute.xlu0 %10097
  %10099 = vrot.lane.b32.xlu0 %v10064, 4
  %v10100 = vpop.permute.xlu0 %10099
  %10101 = vrot.lane.b32.xlu0 %v10065, 4
  %v10102 = vpop.permute.xlu0 %10101
  %10103 = vrot.lane.b32.xlu0 %v10066, 4
  %v10104 = vpop.permute.xlu0 %10103
  %10105 = vrot.lane.b32.xlu0 %v10067, 4
  %v10106 = vpop.permute.xlu0 %10105
  %10107 = vrot.lane.b32.xlu0 %v10068, 4
  %v10108 = vpop.permute.xlu0 %10107
  %10109 = vrot.lane.b32.xlu0 %v10069, 4
  %v10110 = vpop.permute.xlu0 %10109
  %10111 = vrot.lane.b32.xlu0 %v10070, 4
  %v10112 = vpop.permute.xlu0 %10111
  %10113 = vrot.lane.b32.xlu0 %v10071, 4
  %v10114 = vpop.permute.xlu0 %10113
  %10115 = vrot.lane.b32.xlu0 %v10072, 4
  %v10116 = vpop.permute.xlu0 %10115
  %10117 = vrot.lane.b32.xlu0 %v10073, 4
  %v10118 = vpop.permute.xlu0 %10117
  %10119 = vrot.lane.b32.xlu0 %v10074, 4
  %v10120 = vpop.permute.xlu0 %10119
  %10121 = vrot.lane.b32.xlu0 %v10075, 4
  %v10122 = vpop.permute.xlu0 %10121
  %10123 = vrot.lane.b32.xlu0 %v10076, 4
  %v10124 = vpop.permute.xlu0 %10123
  %10125 = vrot.lane.b32.xlu0 %v10077, 4
  %v10126 = vpop.permute.xlu0 %10125
  %10127 = vrot.lane.b32.xlu0 %v10078, 4
  %v10128 = vpop.permute.xlu0 %10127
  %10129 = vrot.lane.b32.xlu0 %v10079, 4
  %v10130 = vpop.permute.xlu0 %10129
  %10131 = vrot.lane.b32.xlu0 %v10080, 4
  %v10132 = vpop.permute.xlu0 %10131
  %10133 = vrot.lane.b32.xlu0 %v10081, 4
  %v10134 = vpop.permute.xlu0 %10133
  %10135 = vrot.lane.b32.xlu0 %v10082, 4
  %v10136 = vpop.permute.xlu0 %10135
  %10137 = vrot.lane.b32.xlu0 %v10083, 4
  %v10138 = vpop.permute.xlu0 %10137
  %10139 = vrot.lane.b32.xlu0 %v10084, 4
  %v10140 = vpop.permute.xlu0 %10139
  %10141 = vrot.lane.b32.xlu0 %v10085, 4
  %v10142 = vpop.permute.xlu0 %10141
  %10143 = vrot.lane.b32.xlu0 %v10086, 4
  %v10144 = vpop.permute.xlu0 %10143
  %10145 = vrot.lane.b32.xlu0 %v10087, 4
  %v10146 = vpop.permute.xlu0 %10145
  %10147 = vrot.lane.b32.xlu0 %v10088, 4
  %v10148 = vpop.permute.xlu0 %10147
  %10149 = vrot.lane.b32.xlu0 %v10089, 4
  %v10150 = vpop.permute.xlu0 %10149
  %10151 = vrot.lane.b32.xlu0 %v10090, 4
  %v10152 = vpop.permute.xlu0 %10151
  %10153 = vrot.lane.b32.xlu0 %v10091, 4
  %v10154 = vpop.permute.xlu0 %10153
  %10155 = vrot.lane.b32.xlu0 %v10092, 4
  %v10156 = vpop.permute.xlu0 %10155
  %v10221 = vunpack.c.l.b16 %v8940
  %v10222 = vunpack.c.l.b16 %v8941
  %v10223 = vunpack.c.l.b16 %v8942
  %v10224 = vunpack.c.l.b16 %v8943
  %v10225 = vunpack.c.l.b16 %v8944
  %v10226 = vunpack.c.l.b16 %v8945
  %v10227 = vunpack.c.l.b16 %v8946
  %v10228 = vunpack.c.l.b16 %v8947
  %v10229 = vunpack.c.l.b16 %v8948
  %v10230 = vunpack.c.l.b16 %v8949
  %v10231 = vunpack.c.l.b16 %v8950
  %v10232 = vunpack.c.l.b16 %v8951
  %v10233 = vunpack.c.l.b16 %v8952
  %v10234 = vunpack.c.l.b16 %v8953
  %v10235 = vunpack.c.l.b16 %v8954
  %v10236 = vunpack.c.l.b16 %v8955
  %v10237 = vunpack.c.l.b16 %v8956
  %v10238 = vunpack.c.l.b16 %v8957
  %v10239 = vunpack.c.l.b16 %v8958
  %v10240 = vunpack.c.l.b16 %v8959
  %v10241 = vunpack.c.l.b16 %v8960
  %v10242 = vunpack.c.l.b16 %v8961
  %v10243 = vunpack.c.l.b16 %v8962
  %v10244 = vunpack.c.l.b16 %v8963
  %v10245 = vunpack.c.l.b16 %v8964
  %v10246 = vunpack.c.l.b16 %v8965
  %v10247 = vunpack.c.l.b16 %v8966
  %v10248 = vunpack.c.l.b16 %v8967
  %v10249 = vunpack.c.l.b16 %v8968
  %v10250 = vunpack.c.l.b16 %v8969
  %v10251 = vunpack.c.l.b16 %v8970
  %v10252 = vunpack.c.l.b16 %v8971
  %v10253 = vunpack.c.l.b16 %v8972
  %v10254 = vunpack.c.l.b16 %v8973
  %v10255 = vunpack.c.l.b16 %v8974
  %v10256 = vunpack.c.l.b16 %v8975
  %v10257 = vunpack.c.l.b16 %v8976
  %v10258 = vunpack.c.l.b16 %v8977
  %v10259 = vunpack.c.l.b16 %v8978
  %v10260 = vunpack.c.l.b16 %v8979
  %v10261 = vunpack.c.l.b16 %v8980
  %v10262 = vunpack.c.l.b16 %v8981
  %v10263 = vunpack.c.l.b16 %v8982
  %v10264 = vunpack.c.l.b16 %v8983
  %v10265 = vunpack.c.l.b16 %v8984
  %v10266 = vunpack.c.l.b16 %v8985
  %v10267 = vunpack.c.l.b16 %v8986
  %v10268 = vunpack.c.l.b16 %v8987
  %v10269 = vunpack.c.l.b16 %v8988
  %v10270 = vunpack.c.l.b16 %v8989
  %v10271 = vunpack.c.l.b16 %v8990
  %v10272 = vunpack.c.l.b16 %v8991
  %v10273 = vunpack.c.l.b16 %v8992
  %v10274 = vunpack.c.l.b16 %v8993
  %v10275 = vunpack.c.l.b16 %v8994
  %v10276 = vunpack.c.l.b16 %v8995
  %v10277 = vunpack.c.l.b16 %v8996
  %v10278 = vunpack.c.l.b16 %v8997
  %v10279 = vunpack.c.l.b16 %v8998
  %v10280 = vunpack.c.l.b16 %v8999
  %v10281 = vunpack.c.l.b16 %v9000
  %v10282 = vunpack.c.l.b16 %v9001
  %v10283 = vunpack.c.l.b16 %v9002
  %v10284 = vunpack.c.l.b16 %v9003
  %v10285 = vpack.c.b16 %v10222, %v10221
  %v10286 = vpack.c.b16 %v10224, %v10223
  %v10287 = vpack.c.b16 %v10226, %v10225
  %v10288 = vpack.c.b16 %v10228, %v10227
  %v10289 = vpack.c.b16 %v10230, %v10229
  %v10290 = vpack.c.b16 %v10232, %v10231
  %v10291 = vpack.c.b16 %v10234, %v10233
  %v10292 = vpack.c.b16 %v10236, %v10235
  %v10293 = vpack.c.b16 %v10238, %v10237
  %v10294 = vpack.c.b16 %v10240, %v10239
  %v10295 = vpack.c.b16 %v10242, %v10241
  %v10296 = vpack.c.b16 %v10244, %v10243
  %v10297 = vpack.c.b16 %v10246, %v10245
  %v10298 = vpack.c.b16 %v10248, %v10247
  %v10299 = vpack.c.b16 %v10250, %v10249
  %v10300 = vpack.c.b16 %v10252, %v10251
  %v10301 = vpack.c.b16 %v10254, %v10253
  %v10302 = vpack.c.b16 %v10256, %v10255
  %v10303 = vpack.c.b16 %v10258, %v10257
  %v10304 = vpack.c.b16 %v10260, %v10259
  %v10305 = vpack.c.b16 %v10262, %v10261
  %v10306 = vpack.c.b16 %v10264, %v10263
  %v10307 = vpack.c.b16 %v10266, %v10265
  %v10308 = vpack.c.b16 %v10268, %v10267
  %v10309 = vpack.c.b16 %v10270, %v10269
  %v10310 = vpack.c.b16 %v10272, %v10271
  %v10311 = vpack.c.b16 %v10274, %v10273
  %v10312 = vpack.c.b16 %v10276, %v10275
  %v10313 = vpack.c.b16 %v10278, %v10277
  %v10314 = vpack.c.b16 %v10280, %v10279
  %v10315 = vpack.c.b16 %v10282, %v10281
  %v10316 = vpack.c.b16 %v10284, %v10283
  %10317 = vrot.lane.b32.xlu0 %v10285, 8
  %v10318 = vpop.permute.xlu0 %10317
  %10319 = vrot.lane.b32.xlu0 %v10286, 8
  %v10320 = vpop.permute.xlu0 %10319
  %10321 = vrot.lane.b32.xlu0 %v10287, 8
  %v10322 = vpop.permute.xlu0 %10321
  %10323 = vrot.lane.b32.xlu0 %v10288, 8
  %v10324 = vpop.permute.xlu0 %10323
  %10325 = vrot.lane.b32.xlu0 %v10289, 8
  %v10326 = vpop.permute.xlu0 %10325
  %10327 = vrot.lane.b32.xlu0 %v10290, 8
  %v10328 = vpop.permute.xlu0 %10327
  %10329 = vrot.lane.b32.xlu0 %v10291, 8
  %v10330 = vpop.permute.xlu0 %10329
  %10331 = vrot.lane.b32.xlu0 %v10292, 8
  %v10332 = vpop.permute.xlu0 %10331
  %10333 = vrot.lane.b32.xlu0 %v10293, 8
  %v10334 = vpop.permute.xlu0 %10333
  %10335 = vrot.lane.b32.xlu0 %v10294, 8
  %v10336 = vpop.permute.xlu0 %10335
  %10337 = vrot.lane.b32.xlu0 %v10295, 8
  %v10338 = vpop.permute.xlu0 %10337
  %10339 = vrot.lane.b32.xlu0 %v10296, 8
  %v10340 = vpop.permute.xlu0 %10339
  %10341 = vrot.lane.b32.xlu0 %v10297, 8
  %v10342 = vpop.permute.xlu0 %10341
  %10343 = vrot.lane.b32.xlu0 %v10298, 8
  %v10344 = vpop.permute.xlu0 %10343
  %10345 = vrot.lane.b32.xlu0 %v10299, 8
  %v10346 = vpop.permute.xlu0 %10345
  %10347 = vrot.lane.b32.xlu0 %v10300, 8
  %v10348 = vpop.permute.xlu0 %10347
  %10349 = vrot.lane.b32.xlu0 %v10301, 8
  %v10350 = vpop.permute.xlu0 %10349
  %10351 = vrot.lane.b32.xlu0 %v10302, 8
  %v10352 = vpop.permute.xlu0 %10351
  %10353 = vrot.lane.b32.xlu0 %v10303, 8
  %v10354 = vpop.permute.xlu0 %10353
  %10355 = vrot.lane.b32.xlu0 %v10304, 8
  %v10356 = vpop.permute.xlu0 %10355
  %10357 = vrot.lane.b32.xlu0 %v10305, 8
  %v10358 = vpop.permute.xlu0 %10357
  %10359 = vrot.lane.b32.xlu0 %v10306, 8
  %v10360 = vpop.permute.xlu0 %10359
  %10361 = vrot.lane.b32.xlu0 %v10307, 8
  %v10362 = vpop.permute.xlu0 %10361
  %10363 = vrot.lane.b32.xlu0 %v10308, 8
  %v10364 = vpop.permute.xlu0 %10363
  %10365 = vrot.lane.b32.xlu0 %v10309, 8
  %v10366 = vpop.permute.xlu0 %10365
  %10367 = vrot.lane.b32.xlu0 %v10310, 8
  %v10368 = vpop.permute.xlu0 %10367
  %10369 = vrot.lane.b32.xlu0 %v10311, 8
  %v10370 = vpop.permute.xlu0 %10369
  %10371 = vrot.lane.b32.xlu0 %v10312, 8
  %v10372 = vpop.permute.xlu0 %10371
  %10373 = vrot.lane.b32.xlu0 %v10313, 8
  %v10374 = vpop.permute.xlu0 %10373
  %10375 = vrot.lane.b32.xlu0 %v10314, 8
  %v10376 = vpop.permute.xlu0 %10375
  %10377 = vrot.lane.b32.xlu0 %v10315, 8
  %v10378 = vpop.permute.xlu0 %10377
  %10379 = vrot.lane.b32.xlu0 %v10316, 8
  %v10380 = vpop.permute.xlu0 %10379
  %v10445 = vunpack.c.l.b16 %v9068
  %v10446 = vunpack.c.l.b16 %v9069
  %v10447 = vunpack.c.l.b16 %v9070
  %v10448 = vunpack.c.l.b16 %v9071
  %v10449 = vunpack.c.l.b16 %v9072
  %v10450 = vunpack.c.l.b16 %v9073
  %v10451 = vunpack.c.l.b16 %v9074
  %v10452 = vunpack.c.l.b16 %v9075
  %v10453 = vunpack.c.l.b16 %v9076
  %v10454 = vunpack.c.l.b16 %v9077
  %v10455 = vunpack.c.l.b16 %v9078
  %v10456 = vunpack.c.l.b16 %v9079
  %v10457 = vunpack.c.l.b16 %v9080
  %v10458 = vunpack.c.l.b16 %v9081
  %v10459 = vunpack.c.l.b16 %v9082
  %v10460 = vunpack.c.l.b16 %v9083
  %v10461 = vunpack.c.l.b16 %v9084
  %v10462 = vunpack.c.l.b16 %v9085
  %v10463 = vunpack.c.l.b16 %v9086
  %v10464 = vunpack.c.l.b16 %v9087
  %v10465 = vunpack.c.l.b16 %v9088
  %v10466 = vunpack.c.l.b16 %v9089
  %v10467 = vunpack.c.l.b16 %v9090
  %v10468 = vunpack.c.l.b16 %v9091
  %v10469 = vunpack.c.l.b16 %v9092
  %v10470 = vunpack.c.l.b16 %v9093
  %v10471 = vunpack.c.l.b16 %v9094
  %v10472 = vunpack.c.l.b16 %v9095
  %v10473 = vunpack.c.l.b16 %v9096
  %v10474 = vunpack.c.l.b16 %v9097
  %v10475 = vunpack.c.l.b16 %v9098
  %v10476 = vunpack.c.l.b16 %v9099
  %v10477 = vunpack.c.l.b16 %v9100
  %v10478 = vunpack.c.l.b16 %v9101
  %v10479 = vunpack.c.l.b16 %v9102
  %v10480 = vunpack.c.l.b16 %v9103
  %v10481 = vunpack.c.l.b16 %v9104
  %v10482 = vunpack.c.l.b16 %v9105
  %v10483 = vunpack.c.l.b16 %v9106
  %v10484 = vunpack.c.l.b16 %v9107
  %v10485 = vunpack.c.l.b16 %v9108
  %v10486 = vunpack.c.l.b16 %v9109
  %v10487 = vunpack.c.l.b16 %v9110
  %v10488 = vunpack.c.l.b16 %v9111
  %v10489 = vunpack.c.l.b16 %v9112
  %v10490 = vunpack.c.l.b16 %v9113
  %v10491 = vunpack.c.l.b16 %v9114
  %v10492 = vunpack.c.l.b16 %v9115
  %v10493 = vunpack.c.l.b16 %v9116
  %v10494 = vunpack.c.l.b16 %v9117
  %v10495 = vunpack.c.l.b16 %v9118
  %v10496 = vunpack.c.l.b16 %v9119
  %v10497 = vunpack.c.l.b16 %v9120
  %v10498 = vunpack.c.l.b16 %v9121
  %v10499 = vunpack.c.l.b16 %v9122
  %v10500 = vunpack.c.l.b16 %v9123
  %v10501 = vunpack.c.l.b16 %v9124
  %v10502 = vunpack.c.l.b16 %v9125
  %v10503 = vunpack.c.l.b16 %v9126
  %v10504 = vunpack.c.l.b16 %v9127
  %v10505 = vunpack.c.l.b16 %v9128
  %v10506 = vunpack.c.l.b16 %v9129
  %v10507 = vunpack.c.l.b16 %v9130
  %v10508 = vunpack.c.l.b16 %v9131
  %v10509 = vpack.c.b16 %v10446, %v10445
  %v10510 = vpack.c.b16 %v10448, %v10447
  %v10511 = vpack.c.b16 %v10450, %v10449
  %v10512 = vpack.c.b16 %v10452, %v10451
  %v10513 = vpack.c.b16 %v10454, %v10453
  %v10514 = vpack.c.b16 %v10456, %v10455
  %v10515 = vpack.c.b16 %v10458, %v10457
  %v10516 = vpack.c.b16 %v10460, %v10459
  %v10517 = vpack.c.b16 %v10462, %v10461
  %v10518 = vpack.c.b16 %v10464, %v10463
  %v10519 = vpack.c.b16 %v10466, %v10465
  %v10520 = vpack.c.b16 %v10468, %v10467
  %v10521 = vpack.c.b16 %v10470, %v10469
  %v10522 = vpack.c.b16 %v10472, %v10471
  %v10523 = vpack.c.b16 %v10474, %v10473
  %v10524 = vpack.c.b16 %v10476, %v10475
  %v10525 = vpack.c.b16 %v10478, %v10477
  %v10526 = vpack.c.b16 %v10480, %v10479
  %v10527 = vpack.c.b16 %v10482, %v10481
  %v10528 = vpack.c.b16 %v10484, %v10483
  %v10529 = vpack.c.b16 %v10486, %v10485
  %v10530 = vpack.c.b16 %v10488, %v10487
  %v10531 = vpack.c.b16 %v10490, %v10489
  %v10532 = vpack.c.b16 %v10492, %v10491
  %v10533 = vpack.c.b16 %v10494, %v10493
  %v10534 = vpack.c.b16 %v10496, %v10495
  %v10535 = vpack.c.b16 %v10498, %v10497
  %v10536 = vpack.c.b16 %v10500, %v10499
  %v10537 = vpack.c.b16 %v10502, %v10501
  %v10538 = vpack.c.b16 %v10504, %v10503
  %v10539 = vpack.c.b16 %v10506, %v10505
  %v10540 = vpack.c.b16 %v10508, %v10507
  %10541 = vrot.lane.b32.xlu0 %v10509, 12
  %v10542 = vpop.permute.xlu0 %10541
  %10543 = vrot.lane.b32.xlu0 %v10510, 12
  %v10544 = vpop.permute.xlu0 %10543
  %10545 = vrot.lane.b32.xlu0 %v10511, 12
  %v10546 = vpop.permute.xlu0 %10545
  %10547 = vrot.lane.b32.xlu0 %v10512, 12
  %v10548 = vpop.permute.xlu0 %10547
  %10549 = vrot.lane.b32.xlu0 %v10513, 12
  %v10550 = vpop.permute.xlu0 %10549
  %10551 = vrot.lane.b32.xlu0 %v10514, 12
  %v10552 = vpop.permute.xlu0 %10551
  %10553 = vrot.lane.b32.xlu0 %v10515, 12
  %v10554 = vpop.permute.xlu0 %10553
  %10555 = vrot.lane.b32.xlu0 %v10516, 12
  %v10556 = vpop.permute.xlu0 %10555
  %10557 = vrot.lane.b32.xlu0 %v10517, 12
  %v10558 = vpop.permute.xlu0 %10557
  %10559 = vrot.lane.b32.xlu0 %v10518, 12
  %v10560 = vpop.permute.xlu0 %10559
  %10561 = vrot.lane.b32.xlu0 %v10519, 12
  %v10562 = vpop.permute.xlu0 %10561
  %10563 = vrot.lane.b32.xlu0 %v10520, 12
  %v10564 = vpop.permute.xlu0 %10563
  %10565 = vrot.lane.b32.xlu0 %v10521, 12
  %v10566 = vpop.permute.xlu0 %10565
  %10567 = vrot.lane.b32.xlu0 %v10522, 12
  %v10568 = vpop.permute.xlu0 %10567
  %10569 = vrot.lane.b32.xlu0 %v10523, 12
  %v10570 = vpop.permute.xlu0 %10569
  %10571 = vrot.lane.b32.xlu0 %v10524, 12
  %v10572 = vpop.permute.xlu0 %10571
  %10573 = vrot.lane.b32.xlu0 %v10525, 12
  %v10574 = vpop.permute.xlu0 %10573
  %10575 = vrot.lane.b32.xlu0 %v10526, 12
  %v10576 = vpop.permute.xlu0 %10575
  %10577 = vrot.lane.b32.xlu0 %v10527, 12
  %v10578 = vpop.permute.xlu0 %10577
  %10579 = vrot.lane.b32.xlu0 %v10528, 12
  %v10580 = vpop.permute.xlu0 %10579
  %10581 = vrot.lane.b32.xlu0 %v10529, 12
  %v10582 = vpop.permute.xlu0 %10581
  %10583 = vrot.lane.b32.xlu0 %v10530, 12
  %v10584 = vpop.permute.xlu0 %10583
  %10585 = vrot.lane.b32.xlu0 %v10531, 12
  %v10586 = vpop.permute.xlu0 %10585
  %10587 = vrot.lane.b32.xlu0 %v10532, 12
  %v10588 = vpop.permute.xlu0 %10587
  %10589 = vrot.lane.b32.xlu0 %v10533, 12
  %v10590 = vpop.permute.xlu0 %10589
  %10591 = vrot.lane.b32.xlu0 %v10534, 12
  %v10592 = vpop.permute.xlu0 %10591
  %10593 = vrot.lane.b32.xlu0 %v10535, 12
  %v10594 = vpop.permute.xlu0 %10593
  %10595 = vrot.lane.b32.xlu0 %v10536, 12
  %v10596 = vpop.permute.xlu0 %10595
  %10597 = vrot.lane.b32.xlu0 %v10537, 12
  %v10598 = vpop.permute.xlu0 %10597
  %10599 = vrot.lane.b32.xlu0 %v10538, 12
  %v10600 = vpop.permute.xlu0 %10599
  %10601 = vrot.lane.b32.xlu0 %v10539, 12
  %v10602 = vpop.permute.xlu0 %10601
  %10603 = vrot.lane.b32.xlu0 %v10540, 12
  %v10604 = vpop.permute.xlu0 %10603
  %v10669 = vunpack.c.l.b16 %v9196
  %v10670 = vunpack.c.l.b16 %v9197
  %v10671 = vunpack.c.l.b16 %v9198
  %v10672 = vunpack.c.l.b16 %v9199
  %v10673 = vunpack.c.l.b16 %v9200
  %v10674 = vunpack.c.l.b16 %v9201
  %v10675 = vunpack.c.l.b16 %v9202
  %v10676 = vunpack.c.l.b16 %v9203
  %v10677 = vunpack.c.l.b16 %v9204
  %v10678 = vunpack.c.l.b16 %v9205
  %v10679 = vunpack.c.l.b16 %v9206
  %v10680 = vunpack.c.l.b16 %v9207
  %v10681 = vunpack.c.l.b16 %v9208
  %v10682 = vunpack.c.l.b16 %v9209
  %v10683 = vunpack.c.l.b16 %v9210
  %v10684 = vunpack.c.l.b16 %v9211
  %v10685 = vunpack.c.l.b16 %v9212
  %v10686 = vunpack.c.l.b16 %v9213
  %v10687 = vunpack.c.l.b16 %v9214
  %v10688 = vunpack.c.l.b16 %v9215
  %v10689 = vunpack.c.l.b16 %v9216
  %v10690 = vunpack.c.l.b16 %v9217
  %v10691 = vunpack.c.l.b16 %v9218
  %v10692 = vunpack.c.l.b16 %v9219
  %v10693 = vunpack.c.l.b16 %v9220
  %v10694 = vunpack.c.l.b16 %v9221
  %v10695 = vunpack.c.l.b16 %v9222
  %v10696 = vunpack.c.l.b16 %v9223
  %v10697 = vunpack.c.l.b16 %v9224
  %v10698 = vunpack.c.l.b16 %v9225
  %v10699 = vunpack.c.l.b16 %v9226
  %v10700 = vunpack.c.l.b16 %v9227
  %v10701 = vunpack.c.l.b16 %v9228
  %v10702 = vunpack.c.l.b16 %v9229
  %v10703 = vunpack.c.l.b16 %v9230
  %v10704 = vunpack.c.l.b16 %v9231
  %v10705 = vunpack.c.l.b16 %v9232
  %v10706 = vunpack.c.l.b16 %v9233
  %v10707 = vunpack.c.l.b16 %v9234
  %v10708 = vunpack.c.l.b16 %v9235
  %v10709 = vunpack.c.l.b16 %v9236
  %v10710 = vunpack.c.l.b16 %v9237
  %v10711 = vunpack.c.l.b16 %v9238
  %v10712 = vunpack.c.l.b16 %v9239
  %v10713 = vunpack.c.l.b16 %v9240
  %v10714 = vunpack.c.l.b16 %v9241
  %v10715 = vunpack.c.l.b16 %v9242
  %v10716 = vunpack.c.l.b16 %v9243
  %v10717 = vunpack.c.l.b16 %v9244
  %v10718 = vunpack.c.l.b16 %v9245
  %v10719 = vunpack.c.l.b16 %v9246
  %v10720 = vunpack.c.l.b16 %v9247
  %v10721 = vunpack.c.l.b16 %v9248
  %v10722 = vunpack.c.l.b16 %v9249
  %v10723 = vunpack.c.l.b16 %v9250
  %v10724 = vunpack.c.l.b16 %v9251
  %v10725 = vunpack.c.l.b16 %v9252
  %v10726 = vunpack.c.l.b16 %v9253
  %v10727 = vunpack.c.l.b16 %v9254
  %v10728 = vunpack.c.l.b16 %v9255
  %v10729 = vunpack.c.l.b16 %v9256
  %v10730 = vunpack.c.l.b16 %v9257
  %v10731 = vunpack.c.l.b16 %v9258
  %v10732 = vunpack.c.l.b16 %v9259
  %v10733 = vpack.c.b16 %v10670, %v10669
  %v10734 = vpack.c.b16 %v10672, %v10671
  %v10735 = vpack.c.b16 %v10674, %v10673
  %v10736 = vpack.c.b16 %v10676, %v10675
  %v10737 = vpack.c.b16 %v10678, %v10677
  %v10738 = vpack.c.b16 %v10680, %v10679
  %v10739 = vpack.c.b16 %v10682, %v10681
  %v10740 = vpack.c.b16 %v10684, %v10683
  %v10741 = vpack.c.b16 %v10686, %v10685
  %v10742 = vpack.c.b16 %v10688, %v10687
  %v10743 = vpack.c.b16 %v10690, %v10689
  %v10744 = vpack.c.b16 %v10692, %v10691
  %v10745 = vpack.c.b16 %v10694, %v10693
  %v10746 = vpack.c.b16 %v10696, %v10695
  %v10747 = vpack.c.b16 %v10698, %v10697
  %v10748 = vpack.c.b16 %v10700, %v10699
  %v10749 = vpack.c.b16 %v10702, %v10701
  %v10750 = vpack.c.b16 %v10704, %v10703
  %v10751 = vpack.c.b16 %v10706, %v10705
  %v10752 = vpack.c.b16 %v10708, %v10707
  %v10753 = vpack.c.b16 %v10710, %v10709
  %v10754 = vpack.c.b16 %v10712, %v10711
  %v10755 = vpack.c.b16 %v10714, %v10713
  %v10756 = vpack.c.b16 %v10716, %v10715
  %v10757 = vpack.c.b16 %v10718, %v10717
  %v10758 = vpack.c.b16 %v10720, %v10719
  %v10759 = vpack.c.b16 %v10722, %v10721
  %v10760 = vpack.c.b16 %v10724, %v10723
  %v10761 = vpack.c.b16 %v10726, %v10725
  %v10762 = vpack.c.b16 %v10728, %v10727
  %v10763 = vpack.c.b16 %v10730, %v10729
  %v10764 = vpack.c.b16 %v10732, %v10731
  %10765 = vrot.lane.b32.xlu0 %v10733, 16
  %v10766 = vpop.permute.xlu0 %10765
  %10767 = vrot.lane.b32.xlu0 %v10734, 16
  %v10768 = vpop.permute.xlu0 %10767
  %10769 = vrot.lane.b32.xlu0 %v10735, 16
  %v10770 = vpop.permute.xlu0 %10769
  %10771 = vrot.lane.b32.xlu0 %v10736, 16
  %v10772 = vpop.permute.xlu0 %10771
  %10773 = vrot.lane.b32.xlu0 %v10737, 16
  %v10774 = vpop.permute.xlu0 %10773
  %10775 = vrot.lane.b32.xlu0 %v10738, 16
  %v10776 = vpop.permute.xlu0 %10775
  %10777 = vrot.lane.b32.xlu0 %v10739, 16
  %v10778 = vpop.permute.xlu0 %10777
  %10779 = vrot.lane.b32.xlu0 %v10740, 16
  %v10780 = vpop.permute.xlu0 %10779
  %10781 = vrot.lane.b32.xlu0 %v10741, 16
  %v10782 = vpop.permute.xlu0 %10781
  %10783 = vrot.lane.b32.xlu0 %v10742, 16
  %v10784 = vpop.permute.xlu0 %10783
  %10785 = vrot.lane.b32.xlu0 %v10743, 16
  %v10786 = vpop.permute.xlu0 %10785
  %10787 = vrot.lane.b32.xlu0 %v10744, 16
  %v10788 = vpop.permute.xlu0 %10787
  %10789 = vrot.lane.b32.xlu0 %v10745, 16
  %v10790 = vpop.permute.xlu0 %10789
  %10791 = vrot.lane.b32.xlu0 %v10746, 16
  %v10792 = vpop.permute.xlu0 %10791
  %10793 = vrot.lane.b32.xlu0 %v10747, 16
  %v10794 = vpop.permute.xlu0 %10793
  %10795 = vrot.lane.b32.xlu0 %v10748, 16
  %v10796 = vpop.permute.xlu0 %10795
  %10797 = vrot.lane.b32.xlu0 %v10749, 16
  %v10798 = vpop.permute.xlu0 %10797
  %10799 = vrot.lane.b32.xlu0 %v10750, 16
  %v10800 = vpop.permute.xlu0 %10799
  %10801 = vrot.lane.b32.xlu0 %v10751, 16
  %v10802 = vpop.permute.xlu0 %10801
  %10803 = vrot.lane.b32.xlu0 %v10752, 16
  %v10804 = vpop.permute.xlu0 %10803
  %10805 = vrot.lane.b32.xlu0 %v10753, 16
  %v10806 = vpop.permute.xlu0 %10805
  %10807 = vrot.lane.b32.xlu0 %v10754, 16
  %v10808 = vpop.permute.xlu0 %10807
  %10809 = vrot.lane.b32.xlu0 %v10755, 16
  %v10810 = vpop.permute.xlu0 %10809
  %10811 = vrot.lane.b32.xlu0 %v10756, 16
  %v10812 = vpop.permute.xlu0 %10811
  %10813 = vrot.lane.b32.xlu0 %v10757, 16
  %v10814 = vpop.permute.xlu0 %10813
  %10815 = vrot.lane.b32.xlu0 %v10758, 16
  %v10816 = vpop.permute.xlu0 %10815
  %10817 = vrot.lane.b32.xlu0 %v10759, 16
  %v10818 = vpop.permute.xlu0 %10817
  %10819 = vrot.lane.b32.xlu0 %v10760, 16
  %v10820 = vpop.permute.xlu0 %10819
  %10821 = vrot.lane.b32.xlu0 %v10761, 16
  %v10822 = vpop.permute.xlu0 %10821
  %10823 = vrot.lane.b32.xlu0 %v10762, 16
  %v10824 = vpop.permute.xlu0 %10823
  %10825 = vrot.lane.b32.xlu0 %v10763, 16
  %v10826 = vpop.permute.xlu0 %10825
  %10827 = vrot.lane.b32.xlu0 %v10764, 16
  %v10828 = vpop.permute.xlu0 %10827
  %v10893 = vunpack.c.l.b16 %v9324
  %v10894 = vunpack.c.l.b16 %v9325
  %v10895 = vunpack.c.l.b16 %v9326
  %v10896 = vunpack.c.l.b16 %v9327
  %v10897 = vunpack.c.l.b16 %v9328
  %v10898 = vunpack.c.l.b16 %v9329
  %v10899 = vunpack.c.l.b16 %v9330
  %v10900 = vunpack.c.l.b16 %v9331
  %v10901 = vunpack.c.l.b16 %v9332
  %v10902 = vunpack.c.l.b16 %v9333
  %v10903 = vunpack.c.l.b16 %v9334
  %v10904 = vunpack.c.l.b16 %v9335
  %v10905 = vunpack.c.l.b16 %v9336
  %v10906 = vunpack.c.l.b16 %v9337
  %v10907 = vunpack.c.l.b16 %v9338
  %v10908 = vunpack.c.l.b16 %v9339
  %v10909 = vunpack.c.l.b16 %v9340
  %v10910 = vunpack.c.l.b16 %v9341
  %v10911 = vunpack.c.l.b16 %v9342
  %v10912 = vunpack.c.l.b16 %v9343
  %v10913 = vunpack.c.l.b16 %v9344
  %v10914 = vunpack.c.l.b16 %v9345
  %v10915 = vunpack.c.l.b16 %v9346
  %v10916 = vunpack.c.l.b16 %v9347
  %v10917 = vunpack.c.l.b16 %v9348
  %v10918 = vunpack.c.l.b16 %v9349
  %v10919 = vunpack.c.l.b16 %v9350
  %v10920 = vunpack.c.l.b16 %v9351
  %v10921 = vunpack.c.l.b16 %v9352
  %v10922 = vunpack.c.l.b16 %v9353
  %v10923 = vunpack.c.l.b16 %v9354
  %v10924 = vunpack.c.l.b16 %v9355
  %v10925 = vunpack.c.l.b16 %v9356
  %v10926 = vunpack.c.l.b16 %v9357
  %v10927 = vunpack.c.l.b16 %v9358
  %v10928 = vunpack.c.l.b16 %v9359
  %v10929 = vunpack.c.l.b16 %v9360
  %v10930 = vunpack.c.l.b16 %v9361
  %v10931 = vunpack.c.l.b16 %v9362
  %v10932 = vunpack.c.l.b16 %v9363
  %v10933 = vunpack.c.l.b16 %v9364
  %v10934 = vunpack.c.l.b16 %v9365
  %v10935 = vunpack.c.l.b16 %v9366
  %v10936 = vunpack.c.l.b16 %v9367
  %v10937 = vunpack.c.l.b16 %v9368
  %v10938 = vunpack.c.l.b16 %v9369
  %v10939 = vunpack.c.l.b16 %v9370
  %v10940 = vunpack.c.l.b16 %v9371
  %v10941 = vunpack.c.l.b16 %v9372
  %v10942 = vunpack.c.l.b16 %v9373
  %v10943 = vunpack.c.l.b16 %v9374
  %v10944 = vunpack.c.l.b16 %v9375
  %v10945 = vunpack.c.l.b16 %v9376
  %v10946 = vunpack.c.l.b16 %v9377
  %v10947 = vunpack.c.l.b16 %v9378
  %v10948 = vunpack.c.l.b16 %v9379
  %v10949 = vunpack.c.l.b16 %v9380
  %v10950 = vunpack.c.l.b16 %v9381
  %v10951 = vunpack.c.l.b16 %v9382
  %v10952 = vunpack.c.l.b16 %v9383
  %v10953 = vunpack.c.l.b16 %v9384
  %v10954 = vunpack.c.l.b16 %v9385
  %v10955 = vunpack.c.l.b16 %v9386
  %v10956 = vunpack.c.l.b16 %v9387
  %v10957 = vpack.c.b16 %v10894, %v10893
  %v10958 = vpack.c.b16 %v10896, %v10895
  %v10959 = vpack.c.b16 %v10898, %v10897
  %v10960 = vpack.c.b16 %v10900, %v10899
  %v10961 = vpack.c.b16 %v10902, %v10901
  %v10962 = vpack.c.b16 %v10904, %v10903
  %v10963 = vpack.c.b16 %v10906, %v10905
  %v10964 = vpack.c.b16 %v10908, %v10907
  %v10965 = vpack.c.b16 %v10910, %v10909
  %v10966 = vpack.c.b16 %v10912, %v10911
  %v10967 = vpack.c.b16 %v10914, %v10913
  %v10968 = vpack.c.b16 %v10916, %v10915
  %v10969 = vpack.c.b16 %v10918, %v10917
  %v10970 = vpack.c.b16 %v10920, %v10919
  %v10971 = vpack.c.b16 %v10922, %v10921
  %v10972 = vpack.c.b16 %v10924, %v10923
  %v10973 = vpack.c.b16 %v10926, %v10925
  %v10974 = vpack.c.b16 %v10928, %v10927
  %v10975 = vpack.c.b16 %v10930, %v10929
  %v10976 = vpack.c.b16 %v10932, %v10931
  %v10977 = vpack.c.b16 %v10934, %v10933
  %v10978 = vpack.c.b16 %v10936, %v10935
  %v10979 = vpack.c.b16 %v10938, %v10937
  %v10980 = vpack.c.b16 %v10940, %v10939
  %v10981 = vpack.c.b16 %v10942, %v10941
  %v10982 = vpack.c.b16 %v10944, %v10943
  %v10983 = vpack.c.b16 %v10946, %v10945
  %v10984 = vpack.c.b16 %v10948, %v10947
  %v10985 = vpack.c.b16 %v10950, %v10949
  %v10986 = vpack.c.b16 %v10952, %v10951
  %v10987 = vpack.c.b16 %v10954, %v10953
  %v10988 = vpack.c.b16 %v10956, %v10955
  %10989 = vrot.lane.b32.xlu0 %v10957, 20
  %v10990 = vpop.permute.xlu0 %10989
  %10991 = vrot.lane.b32.xlu0 %v10958, 20
  %v10992 = vpop.permute.xlu0 %10991
  %10993 = vrot.lane.b32.xlu0 %v10959, 20
  %v10994 = vpop.permute.xlu0 %10993
  %10995 = vrot.lane.b32.xlu0 %v10960, 20
  %v10996 = vpop.permute.xlu0 %10995
  %10997 = vrot.lane.b32.xlu0 %v10961, 20
  %v10998 = vpop.permute.xlu0 %10997
  %10999 = vrot.lane.b32.xlu0 %v10962, 20
  %v11000 = vpop.permute.xlu0 %10999
  %11001 = vrot.lane.b32.xlu0 %v10963, 20
  %v11002 = vpop.permute.xlu0 %11001
  %11003 = vrot.lane.b32.xlu0 %v10964, 20
  %v11004 = vpop.permute.xlu0 %11003
  %11005 = vrot.lane.b32.xlu0 %v10965, 20
  %v11006 = vpop.permute.xlu0 %11005
  %11007 = vrot.lane.b32.xlu0 %v10966, 20
  %v11008 = vpop.permute.xlu0 %11007
  %11009 = vrot.lane.b32.xlu0 %v10967, 20
  %v11010 = vpop.permute.xlu0 %11009
  %11011 = vrot.lane.b32.xlu0 %v10968, 20
  %v11012 = vpop.permute.xlu0 %11011
  %11013 = vrot.lane.b32.xlu0 %v10969, 20
  %v11014 = vpop.permute.xlu0 %11013
  %11015 = vrot.lane.b32.xlu0 %v10970, 20
  %v11016 = vpop.permute.xlu0 %11015
  %11017 = vrot.lane.b32.xlu0 %v10971, 20
  %v11018 = vpop.permute.xlu0 %11017
  %11019 = vrot.lane.b32.xlu0 %v10972, 20
  %v11020 = vpop.permute.xlu0 %11019
  %11021 = vrot.lane.b32.xlu0 %v10973, 20
  %v11022 = vpop.permute.xlu0 %11021
  %11023 = vrot.lane.b32.xlu0 %v10974, 20
  %v11024 = vpop.permute.xlu0 %11023
  %11025 = vrot.lane.b32.xlu0 %v10975, 20
  %v11026 = vpop.permute.xlu0 %11025
  %11027 = vrot.lane.b32.xlu0 %v10976, 20
  %v11028 = vpop.permute.xlu0 %11027
  %11029 = vrot.lane.b32.xlu0 %v10977, 20
  %v11030 = vpop.permute.xlu0 %11029
  %11031 = vrot.lane.b32.xlu0 %v10978, 20
  %v11032 = vpop.permute.xlu0 %11031
  %11033 = vrot.lane.b32.xlu0 %v10979, 20
  %v11034 = vpop.permute.xlu0 %11033
  %11035 = vrot.lane.b32.xlu0 %v10980, 20
  %v11036 = vpop.permute.xlu0 %11035
  %11037 = vrot.lane.b32.xlu0 %v10981, 20
  %v11038 = vpop.permute.xlu0 %11037
  %11039 = vrot.lane.b32.xlu0 %v10982, 20
  %v11040 = vpop.permute.xlu0 %11039
  %11041 = vrot.lane.b32.xlu0 %v10983, 20
  %v11042 = vpop.permute.xlu0 %11041
  %11043 = vrot.lane.b32.xlu0 %v10984, 20
  %v11044 = vpop.permute.xlu0 %11043
  %11045 = vrot.lane.b32.xlu0 %v10985, 20
  %v11046 = vpop.permute.xlu0 %11045
  %11047 = vrot.lane.b32.xlu0 %v10986, 20
  %v11048 = vpop.permute.xlu0 %11047
  %11049 = vrot.lane.b32.xlu0 %v10987, 20
  %v11050 = vpop.permute.xlu0 %11049
  %11051 = vrot.lane.b32.xlu0 %v10988, 20
  %v11052 = vpop.permute.xlu0 %11051
  %v11117 = vunpack.c.l.b16 %v9453
  %v11118 = vunpack.c.l.b16 %v9454
  %v11119 = vunpack.c.l.b16 %v9455
  %v11120 = vunpack.c.l.b16 %v9456
  %v11121 = vunpack.c.l.b16 %v9457
  %v11122 = vunpack.c.l.b16 %v9458
  %v11123 = vunpack.c.l.b16 %v9459
  %v11124 = vunpack.c.l.b16 %v9460
  %v11125 = vunpack.c.l.b16 %v9461
  %v11126 = vunpack.c.l.b16 %v9462
  %v11127 = vunpack.c.l.b16 %v9463
  %v11128 = vunpack.c.l.b16 %v9464
  %v11129 = vunpack.c.l.b16 %v9465
  %v11130 = vunpack.c.l.b16 %v9466
  %v11131 = vunpack.c.l.b16 %v9467
  %v11132 = vunpack.c.l.b16 %v9468
  %v11133 = vunpack.c.l.b16 %v9469
  %v11134 = vunpack.c.l.b16 %v9470
  %v11135 = vunpack.c.l.b16 %v9471
  %v11136 = vunpack.c.l.b16 %v9472
  %v11137 = vunpack.c.l.b16 %v9473
  %v11138 = vunpack.c.l.b16 %v9474
  %v11139 = vunpack.c.l.b16 %v9475
  %v11140 = vunpack.c.l.b16 %v9476
  %v11141 = vunpack.c.l.b16 %v9477
  %v11142 = vunpack.c.l.b16 %v9478
  %v11143 = vunpack.c.l.b16 %v9479
  %v11144 = vunpack.c.l.b16 %v9480
  %v11145 = vunpack.c.l.b16 %v9481
  %v11146 = vunpack.c.l.b16 %v9482
  %v11147 = vunpack.c.l.b16 %v9483
  %v11148 = vunpack.c.l.b16 %v9484
  %v11149 = vunpack.c.l.b16 %v9485
  %v11150 = vunpack.c.l.b16 %v9486
  %v11151 = vunpack.c.l.b16 %v9487
  %v11152 = vunpack.c.l.b16 %v9488
  %v11153 = vunpack.c.l.b16 %v9489
  %v11154 = vunpack.c.l.b16 %v9490
  %v11155 = vunpack.c.l.b16 %v9491
  %v11156 = vunpack.c.l.b16 %v9492
  %v11157 = vunpack.c.l.b16 %v9493
  %v11158 = vunpack.c.l.b16 %v9494
  %v11159 = vunpack.c.l.b16 %v9495
  %v11160 = vunpack.c.l.b16 %v9496
  %v11161 = vunpack.c.l.b16 %v9497
  %v11162 = vunpack.c.l.b16 %v9498
  %v11163 = vunpack.c.l.b16 %v9499
  %v11164 = vunpack.c.l.b16 %v9500
  %v11165 = vunpack.c.l.b16 %v9501
  %v11166 = vunpack.c.l.b16 %v9502
  %v11167 = vunpack.c.l.b16 %v9503
  %v11168 = vunpack.c.l.b16 %v9504
  %v11169 = vunpack.c.l.b16 %v9505
  %v11170 = vunpack.c.l.b16 %v9506
  %v11171 = vunpack.c.l.b16 %v9507
  %v11172 = vunpack.c.l.b16 %v9508
  %v11173 = vunpack.c.l.b16 %v9509
  %v11174 = vunpack.c.l.b16 %v9510
  %v11175 = vunpack.c.l.b16 %v9511
  %v11176 = vunpack.c.l.b16 %v9512
  %v11177 = vunpack.c.l.b16 %v9513
  %v11178 = vunpack.c.l.b16 %v9514
  %v11179 = vunpack.c.l.b16 %v9515
  %v11180 = vunpack.c.l.b16 %v9516
  %v11181 = vpack.c.b16 %v11118, %v11117
  %v11182 = vpack.c.b16 %v11120, %v11119
  %v11183 = vpack.c.b16 %v11122, %v11121
  %v11184 = vpack.c.b16 %v11124, %v11123
  %v11185 = vpack.c.b16 %v11126, %v11125
  %v11186 = vpack.c.b16 %v11128, %v11127
  %v11187 = vpack.c.b16 %v11130, %v11129
  %v11188 = vpack.c.b16 %v11132, %v11131
  %v11189 = vpack.c.b16 %v11134, %v11133
  %v11190 = vpack.c.b16 %v11136, %v11135
  %v11191 = vpack.c.b16 %v11138, %v11137
  %v11192 = vpack.c.b16 %v11140, %v11139
  %v11193 = vpack.c.b16 %v11142, %v11141
  %v11194 = vpack.c.b16 %v11144, %v11143
  %v11195 = vpack.c.b16 %v11146, %v11145
  %v11196 = vpack.c.b16 %v11148, %v11147
  %v11197 = vpack.c.b16 %v11150, %v11149
  %v11198 = vpack.c.b16 %v11152, %v11151
  %v11199 = vpack.c.b16 %v11154, %v11153
  %v11200 = vpack.c.b16 %v11156, %v11155
  %v11201 = vpack.c.b16 %v11158, %v11157
  %v11202 = vpack.c.b16 %v11160, %v11159
  %v11203 = vpack.c.b16 %v11162, %v11161
  %v11204 = vpack.c.b16 %v11164, %v11163
  %v11205 = vpack.c.b16 %v11166, %v11165
  %v11206 = vpack.c.b16 %v11168, %v11167
  %v11207 = vpack.c.b16 %v11170, %v11169
  %v11208 = vpack.c.b16 %v11172, %v11171
  %v11209 = vpack.c.b16 %v11174, %v11173
  %v11210 = vpack.c.b16 %v11176, %v11175
  %v11211 = vpack.c.b16 %v11178, %v11177
  %v11212 = vpack.c.b16 %v11180, %v11179
  %11213 = vrot.lane.b32.xlu0 %v11181, 24
  %v11214 = vpop.permute.xlu0 %11213
  %11215 = vrot.lane.b32.xlu0 %v11182, 24
  %v11216 = vpop.permute.xlu0 %11215
  %11217 = vrot.lane.b32.xlu0 %v11183, 24
  %v11218 = vpop.permute.xlu0 %11217
  %11219 = vrot.lane.b32.xlu0 %v11184, 24
  %v11220 = vpop.permute.xlu0 %11219
  %11221 = vrot.lane.b32.xlu0 %v11185, 24
  %v11222 = vpop.permute.xlu0 %11221
  %11223 = vrot.lane.b32.xlu0 %v11186, 24
  %v11224 = vpop.permute.xlu0 %11223
  %11225 = vrot.lane.b32.xlu0 %v11187, 24
  %v11226 = vpop.permute.xlu0 %11225
  %11227 = vrot.lane.b32.xlu0 %v11188, 24
  %v11228 = vpop.permute.xlu0 %11227
  %11229 = vrot.lane.b32.xlu0 %v11189, 24
  %v11230 = vpop.permute.xlu0 %11229
  %11231 = vrot.lane.b32.xlu0 %v11190, 24
  %v11232 = vpop.permute.xlu0 %11231
  %11233 = vrot.lane.b32.xlu0 %v11191, 24
  %v11234 = vpop.permute.xlu0 %11233
  %11235 = vrot.lane.b32.xlu0 %v11192, 24
  %v11236 = vpop.permute.xlu0 %11235
  %11237 = vrot.lane.b32.xlu0 %v11193, 24
  %v11238 = vpop.permute.xlu0 %11237
  %11239 = vrot.lane.b32.xlu0 %v11194, 24
  %v11240 = vpop.permute.xlu0 %11239
  %11241 = vrot.lane.b32.xlu0 %v11195, 24
  %v11242 = vpop.permute.xlu0 %11241
  %11243 = vrot.lane.b32.xlu0 %v11196, 24
  %v11244 = vpop.permute.xlu0 %11243
  %11245 = vrot.lane.b32.xlu0 %v11197, 24
  %v11246 = vpop.permute.xlu0 %11245
  %11247 = vrot.lane.b32.xlu0 %v11198, 24
  %v11248 = vpop.permute.xlu0 %11247
  %11249 = vrot.lane.b32.xlu0 %v11199, 24
  %v11250 = vpop.permute.xlu0 %11249
  %11251 = vrot.lane.b32.xlu0 %v11200, 24
  %v11252 = vpop.permute.xlu0 %11251
  %11253 = vrot.lane.b32.xlu0 %v11201, 24
  %v11254 = vpop.permute.xlu0 %11253
  %11255 = vrot.lane.b32.xlu0 %v11202, 24
  %v11256 = vpop.permute.xlu0 %11255
  %11257 = vrot.lane.b32.xlu0 %v11203, 24
  %v11258 = vpop.permute.xlu0 %11257
  %11259 = vrot.lane.b32.xlu0 %v11204, 24
  %v11260 = vpop.permute.xlu0 %11259
  %11261 = vrot.lane.b32.xlu0 %v11205, 24
  %v11262 = vpop.permute.xlu0 %11261
  %11263 = vrot.lane.b32.xlu0 %v11206, 24
  %v11264 = vpop.permute.xlu0 %11263
  %11265 = vrot.lane.b32.xlu0 %v11207, 24
  %v11266 = vpop.permute.xlu0 %11265
  %11267 = vrot.lane.b32.xlu0 %v11208, 24
  %v11268 = vpop.permute.xlu0 %11267
  %11269 = vrot.lane.b32.xlu0 %v11209, 24
  %v11270 = vpop.permute.xlu0 %11269
  %11271 = vrot.lane.b32.xlu0 %v11210, 24
  %v11272 = vpop.permute.xlu0 %11271
  %11273 = vrot.lane.b32.xlu0 %v11211, 24
  %v11274 = vpop.permute.xlu0 %11273
  %11275 = vrot.lane.b32.xlu0 %v11212, 24
  %v11276 = vpop.permute.xlu0 %11275
  %v11341 = vunpack.c.l.b16 %v9581
  %v11342 = vunpack.c.l.b16 %v9582
  %v11343 = vunpack.c.l.b16 %v9583
  %v11344 = vunpack.c.l.b16 %v9584
  %v11345 = vunpack.c.l.b16 %v9585
  %v11346 = vunpack.c.l.b16 %v9586
  %v11347 = vunpack.c.l.b16 %v9587
  %v11348 = vunpack.c.l.b16 %v9588
  %v11349 = vunpack.c.l.b16 %v9589
  %v11350 = vunpack.c.l.b16 %v9590
  %v11351 = vunpack.c.l.b16 %v9591
  %v11352 = vunpack.c.l.b16 %v9592
  %v11353 = vunpack.c.l.b16 %v9593
  %v11354 = vunpack.c.l.b16 %v9594
  %v11355 = vunpack.c.l.b16 %v9595
  %v11356 = vunpack.c.l.b16 %v9596
  %v11357 = vunpack.c.l.b16 %v9597
  %v11358 = vunpack.c.l.b16 %v9598
  %v11359 = vunpack.c.l.b16 %v9599
  %v11360 = vunpack.c.l.b16 %v9600
  %v11361 = vunpack.c.l.b16 %v9601
  %v11362 = vunpack.c.l.b16 %v9602
  %v11363 = vunpack.c.l.b16 %v9603
  %v11364 = vunpack.c.l.b16 %v9604
  %v11365 = vunpack.c.l.b16 %v9605
  %v11366 = vunpack.c.l.b16 %v9606
  %v11367 = vunpack.c.l.b16 %v9607
  %v11368 = vunpack.c.l.b16 %v9608
  %v11369 = vunpack.c.l.b16 %v9609
  %v11370 = vunpack.c.l.b16 %v9610
  %v11371 = vunpack.c.l.b16 %v9611
  %v11372 = vunpack.c.l.b16 %v9612
  %v11373 = vunpack.c.l.b16 %v9613
  %v11374 = vunpack.c.l.b16 %v9614
  %v11375 = vunpack.c.l.b16 %v9615
  %v11376 = vunpack.c.l.b16 %v9616
  %v11377 = vunpack.c.l.b16 %v9617
  %v11378 = vunpack.c.l.b16 %v9618
  %v11379 = vunpack.c.l.b16 %v9619
  %v11380 = vunpack.c.l.b16 %v9620
  %v11381 = vunpack.c.l.b16 %v9621
  %v11382 = vunpack.c.l.b16 %v9622
  %v11383 = vunpack.c.l.b16 %v9623
  %v11384 = vunpack.c.l.b16 %v9624
  %v11385 = vunpack.c.l.b16 %v9625
  %v11386 = vunpack.c.l.b16 %v9626
  %v11387 = vunpack.c.l.b16 %v9627
  %v11388 = vunpack.c.l.b16 %v9628
  %v11389 = vunpack.c.l.b16 %v9629
  %v11390 = vunpack.c.l.b16 %v9630
  %v11391 = vunpack.c.l.b16 %v9631
  %v11392 = vunpack.c.l.b16 %v9632
  %v11393 = vunpack.c.l.b16 %v9633
  %v11394 = vunpack.c.l.b16 %v9634
  %v11395 = vunpack.c.l.b16 %v9635
  %v11396 = vunpack.c.l.b16 %v9636
  %v11397 = vunpack.c.l.b16 %v9637
  %v11398 = vunpack.c.l.b16 %v9638
  %v11399 = vunpack.c.l.b16 %v9639
  %v11400 = vunpack.c.l.b16 %v9640
  %v11401 = vunpack.c.l.b16 %v9641
  %v11402 = vunpack.c.l.b16 %v9642
  %v11403 = vunpack.c.l.b16 %v9643
  %v11404 = vunpack.c.l.b16 %v9644
  %v11405 = vpack.c.b16 %v11342, %v11341
  %v11406 = vpack.c.b16 %v11344, %v11343
  %v11407 = vpack.c.b16 %v11346, %v11345
  %v11408 = vpack.c.b16 %v11348, %v11347
  %v11409 = vpack.c.b16 %v11350, %v11349
  %v11410 = vpack.c.b16 %v11352, %v11351
  %v11411 = vpack.c.b16 %v11354, %v11353
  %v11412 = vpack.c.b16 %v11356, %v11355
  %v11413 = vpack.c.b16 %v11358, %v11357
  %v11414 = vpack.c.b16 %v11360, %v11359
  %v11415 = vpack.c.b16 %v11362, %v11361
  %v11416 = vpack.c.b16 %v11364, %v11363
  %v11417 = vpack.c.b16 %v11366, %v11365
  %v11418 = vpack.c.b16 %v11368, %v11367
  %v11419 = vpack.c.b16 %v11370, %v11369
  %v11420 = vpack.c.b16 %v11372, %v11371
  %v11421 = vpack.c.b16 %v11374, %v11373
  %v11422 = vpack.c.b16 %v11376, %v11375
  %v11423 = vpack.c.b16 %v11378, %v11377
  %v11424 = vpack.c.b16 %v11380, %v11379
  %v11425 = vpack.c.b16 %v11382, %v11381
  %v11426 = vpack.c.b16 %v11384, %v11383
  %v11427 = vpack.c.b16 %v11386, %v11385
  %v11428 = vpack.c.b16 %v11388, %v11387
  %v11429 = vpack.c.b16 %v11390, %v11389
  %v11430 = vpack.c.b16 %v11392, %v11391
  %v11431 = vpack.c.b16 %v11394, %v11393
  %v11432 = vpack.c.b16 %v11396, %v11395
  %v11433 = vpack.c.b16 %v11398, %v11397
  %v11434 = vpack.c.b16 %v11400, %v11399
  %v11435 = vpack.c.b16 %v11402, %v11401
  %v11436 = vpack.c.b16 %v11404, %v11403
  %11437 = vrot.lane.b32.xlu0 %v11405, 28
  %v11438 = vpop.permute.xlu0 %11437
  %11439 = vrot.lane.b32.xlu0 %v11406, 28
  %v11440 = vpop.permute.xlu0 %11439
  %11441 = vrot.lane.b32.xlu0 %v11407, 28
  %v11442 = vpop.permute.xlu0 %11441
  %11443 = vrot.lane.b32.xlu0 %v11408, 28
  %v11444 = vpop.permute.xlu0 %11443
  %11445 = vrot.lane.b32.xlu0 %v11409, 28
  %v11446 = vpop.permute.xlu0 %11445
  %11447 = vrot.lane.b32.xlu0 %v11410, 28
  %v11448 = vpop.permute.xlu0 %11447
  %11449 = vrot.lane.b32.xlu0 %v11411, 28
  %v11450 = vpop.permute.xlu0 %11449
  %11451 = vrot.lane.b32.xlu0 %v11412, 28
  %v11452 = vpop.permute.xlu0 %11451
  %11453 = vrot.lane.b32.xlu0 %v11413, 28
  %v11454 = vpop.permute.xlu0 %11453
  %11455 = vrot.lane.b32.xlu0 %v11414, 28
  %v11456 = vpop.permute.xlu0 %11455
  %11457 = vrot.lane.b32.xlu0 %v11415, 28
  %v11458 = vpop.permute.xlu0 %11457
  %11459 = vrot.lane.b32.xlu0 %v11416, 28
  %v11460 = vpop.permute.xlu0 %11459
  %11461 = vrot.lane.b32.xlu0 %v11417, 28
  %v11462 = vpop.permute.xlu0 %11461
  %11463 = vrot.lane.b32.xlu0 %v11418, 28
  %v11464 = vpop.permute.xlu0 %11463
  %11465 = vrot.lane.b32.xlu0 %v11419, 28
  %v11466 = vpop.permute.xlu0 %11465
  %11467 = vrot.lane.b32.xlu0 %v11420, 28
  %v11468 = vpop.permute.xlu0 %11467
  %11469 = vrot.lane.b32.xlu0 %v11421, 28
  %v11470 = vpop.permute.xlu0 %11469
  %11471 = vrot.lane.b32.xlu0 %v11422, 28
  %v11472 = vpop.permute.xlu0 %11471
  %11473 = vrot.lane.b32.xlu0 %v11423, 28
  %v11474 = vpop.permute.xlu0 %11473
  %11475 = vrot.lane.b32.xlu0 %v11424, 28
  %v11476 = vpop.permute.xlu0 %11475
  %11477 = vrot.lane.b32.xlu0 %v11425, 28
  %v11478 = vpop.permute.xlu0 %11477
  %11479 = vrot.lane.b32.xlu0 %v11426, 28
  %v11480 = vpop.permute.xlu0 %11479
  %11481 = vrot.lane.b32.xlu0 %v11427, 28
  %v11482 = vpop.permute.xlu0 %11481
  %11483 = vrot.lane.b32.xlu0 %v11428, 28
  %v11484 = vpop.permute.xlu0 %11483
  %11485 = vrot.lane.b32.xlu0 %v11429, 28
  %v11486 = vpop.permute.xlu0 %11485
  %11487 = vrot.lane.b32.xlu0 %v11430, 28
  %v11488 = vpop.permute.xlu0 %11487
  %11489 = vrot.lane.b32.xlu0 %v11431, 28
  %v11490 = vpop.permute.xlu0 %11489
  %11491 = vrot.lane.b32.xlu0 %v11432, 28
  %v11492 = vpop.permute.xlu0 %11491
  %11493 = vrot.lane.b32.xlu0 %v11433, 28
  %v11494 = vpop.permute.xlu0 %11493
  %11495 = vrot.lane.b32.xlu0 %v11434, 28
  %v11496 = vpop.permute.xlu0 %11495
  %11497 = vrot.lane.b32.xlu0 %v11435, 28
  %v11498 = vpop.permute.xlu0 %11497
  %11499 = vrot.lane.b32.xlu0 %v11436, 28
  %v11500 = vpop.permute.xlu0 %11499
  %v11565 = vunpack.c.l.b16 %v9709
  %v11566 = vunpack.c.l.b16 %v9710
  %v11567 = vunpack.c.l.b16 %v9711
  %v11568 = vunpack.c.l.b16 %v9712
  %v11569 = vunpack.c.l.b16 %v9713
  %v11570 = vunpack.c.l.b16 %v9714
  %v11571 = vunpack.c.l.b16 %v9715
  %v11572 = vunpack.c.l.b16 %v9716
  %v11573 = vunpack.c.l.b16 %v9717
  %v11574 = vunpack.c.l.b16 %v9718
  %v11575 = vunpack.c.l.b16 %v9719
  %v11576 = vunpack.c.l.b16 %v9720
  %v11577 = vunpack.c.l.b16 %v9721
  %v11578 = vunpack.c.l.b16 %v9722
  %v11579 = vunpack.c.l.b16 %v9723
  %v11580 = vunpack.c.l.b16 %v9724
  %v11581 = vunpack.c.l.b16 %v9725
  %v11582 = vunpack.c.l.b16 %v9726
  %v11583 = vunpack.c.l.b16 %v9727
  %v11584 = vunpack.c.l.b16 %v9728
  %v11585 = vunpack.c.l.b16 %v9729
  %v11586 = vunpack.c.l.b16 %v9730
  %v11587 = vunpack.c.l.b16 %v9731
  %v11588 = vunpack.c.l.b16 %v9732
  %v11589 = vunpack.c.l.b16 %v9733
  %v11590 = vunpack.c.l.b16 %v9734
  %v11591 = vunpack.c.l.b16 %v9735
  %v11592 = vunpack.c.l.b16 %v9736
  %v11593 = vunpack.c.l.b16 %v9737
  %v11594 = vunpack.c.l.b16 %v9738
  %v11595 = vunpack.c.l.b16 %v9739
  %v11596 = vunpack.c.l.b16 %v9740
  %v11597 = vunpack.c.l.b16 %v9741
  %v11598 = vunpack.c.l.b16 %v9742
  %v11599 = vunpack.c.l.b16 %v9743
  %v11600 = vunpack.c.l.b16 %v9744
  %v11601 = vunpack.c.l.b16 %v9745
  %v11602 = vunpack.c.l.b16 %v9746
  %v11603 = vunpack.c.l.b16 %v9747
  %v11604 = vunpack.c.l.b16 %v9748
  %v11605 = vunpack.c.l.b16 %v9749
  %v11606 = vunpack.c.l.b16 %v9750
  %v11607 = vunpack.c.l.b16 %v9751
  %v11608 = vunpack.c.l.b16 %v9752
  %v11609 = vunpack.c.l.b16 %v9753
  %v11610 = vunpack.c.l.b16 %v9754
  %v11611 = vunpack.c.l.b16 %v9755
  %v11612 = vunpack.c.l.b16 %v9756
  %v11613 = vunpack.c.l.b16 %v9757
  %v11614 = vunpack.c.l.b16 %v9758
  %v11615 = vunpack.c.l.b16 %v9759
  %v11616 = vunpack.c.l.b16 %v9760
  %v11617 = vunpack.c.l.b16 %v9761
  %v11618 = vunpack.c.l.b16 %v9762
  %v11619 = vunpack.c.l.b16 %v9763
  %v11620 = vunpack.c.l.b16 %v9764
  %v11621 = vunpack.c.l.b16 %v9765
  %v11622 = vunpack.c.l.b16 %v9766
  %v11623 = vunpack.c.l.b16 %v9767
  %v11624 = vunpack.c.l.b16 %v9768
  %v11625 = vunpack.c.l.b16 %v9769
  %v11626 = vunpack.c.l.b16 %v9770
  %v11627 = vunpack.c.l.b16 %v9771
  %v11628 = vunpack.c.l.b16 %v9772
  %v11629 = vpack.c.b16 %v11566, %v11565
  %v11630 = vpack.c.b16 %v11568, %v11567
  %v11631 = vpack.c.b16 %v11570, %v11569
  %v11632 = vpack.c.b16 %v11572, %v11571
  %v11633 = vpack.c.b16 %v11574, %v11573
  %v11634 = vpack.c.b16 %v11576, %v11575
  %v11635 = vpack.c.b16 %v11578, %v11577
  %v11636 = vpack.c.b16 %v11580, %v11579
  %v11637 = vpack.c.b16 %v11582, %v11581
  %v11638 = vpack.c.b16 %v11584, %v11583
  %v11639 = vpack.c.b16 %v11586, %v11585
  %v11640 = vpack.c.b16 %v11588, %v11587
  %v11641 = vpack.c.b16 %v11590, %v11589
  %v11642 = vpack.c.b16 %v11592, %v11591
  %v11643 = vpack.c.b16 %v11594, %v11593
  %v11644 = vpack.c.b16 %v11596, %v11595
  %v11645 = vpack.c.b16 %v11598, %v11597
  %v11646 = vpack.c.b16 %v11600, %v11599
  %v11647 = vpack.c.b16 %v11602, %v11601
  %v11648 = vpack.c.b16 %v11604, %v11603
  %v11649 = vpack.c.b16 %v11606, %v11605
  %v11650 = vpack.c.b16 %v11608, %v11607
  %v11651 = vpack.c.b16 %v11610, %v11609
  %v11652 = vpack.c.b16 %v11612, %v11611
  %v11653 = vpack.c.b16 %v11614, %v11613
  %v11654 = vpack.c.b16 %v11616, %v11615
  %v11655 = vpack.c.b16 %v11618, %v11617
  %v11656 = vpack.c.b16 %v11620, %v11619
  %v11657 = vpack.c.b16 %v11622, %v11621
  %v11658 = vpack.c.b16 %v11624, %v11623
  %v11659 = vpack.c.b16 %v11626, %v11625
  %v11660 = vpack.c.b16 %v11628, %v11627
  %11661 = vrot.lane.b32.xlu0 %v11629, 32
  %v11662 = vpop.permute.xlu0 %11661
  %11663 = vrot.lane.b32.xlu0 %v11630, 32
  %v11664 = vpop.permute.xlu0 %11663
  %11665 = vrot.lane.b32.xlu0 %v11631, 32
  %v11666 = vpop.permute.xlu0 %11665
  %11667 = vrot.lane.b32.xlu0 %v11632, 32
  %v11668 = vpop.permute.xlu0 %11667
  %11669 = vrot.lane.b32.xlu0 %v11633, 32
  %v11670 = vpop.permute.xlu0 %11669
  %11671 = vrot.lane.b32.xlu0 %v11634, 32
  %v11672 = vpop.permute.xlu0 %11671
  %11673 = vrot.lane.b32.xlu0 %v11635, 32
  %v11674 = vpop.permute.xlu0 %11673
  %11675 = vrot.lane.b32.xlu0 %v11636, 32
  %v11676 = vpop.permute.xlu0 %11675
  %11677 = vrot.lane.b32.xlu0 %v11637, 32
  %v11678 = vpop.permute.xlu0 %11677
  %11679 = vrot.lane.b32.xlu0 %v11638, 32
  %v11680 = vpop.permute.xlu0 %11679
  %11681 = vrot.lane.b32.xlu0 %v11639, 32
  %v11682 = vpop.permute.xlu0 %11681
  %11683 = vrot.lane.b32.xlu0 %v11640, 32
  %v11684 = vpop.permute.xlu0 %11683
  %11685 = vrot.lane.b32.xlu0 %v11641, 32
  %v11686 = vpop.permute.xlu0 %11685
  %11687 = vrot.lane.b32.xlu0 %v11642, 32
  %v11688 = vpop.permute.xlu0 %11687
  %11689 = vrot.lane.b32.xlu0 %v11643, 32
  %v11690 = vpop.permute.xlu0 %11689
  %11691 = vrot.lane.b32.xlu0 %v11644, 32
  %v11692 = vpop.permute.xlu0 %11691
  %11693 = vrot.lane.b32.xlu0 %v11645, 32
  %v11694 = vpop.permute.xlu0 %11693
  %11695 = vrot.lane.b32.xlu0 %v11646, 32
  %v11696 = vpop.permute.xlu0 %11695
  %11697 = vrot.lane.b32.xlu0 %v11647, 32
  %v11698 = vpop.permute.xlu0 %11697
  %11699 = vrot.lane.b32.xlu0 %v11648, 32
  %v11700 = vpop.permute.xlu0 %11699
  %11701 = vrot.lane.b32.xlu0 %v11649, 32
  %v11702 = vpop.permute.xlu0 %11701
  %11703 = vrot.lane.b32.xlu0 %v11650, 32
  %v11704 = vpop.permute.xlu0 %11703
  %11705 = vrot.lane.b32.xlu0 %v11651, 32
  %v11706 = vpop.permute.xlu0 %11705
  %11707 = vrot.lane.b32.xlu0 %v11652, 32
  %v11708 = vpop.permute.xlu0 %11707
  %11709 = vrot.lane.b32.xlu0 %v11653, 32
  %v11710 = vpop.permute.xlu0 %11709
  %11711 = vrot.lane.b32.xlu0 %v11654, 32
  %v11712 = vpop.permute.xlu0 %11711
  %11713 = vrot.lane.b32.xlu0 %v11655, 32
  %v11714 = vpop.permute.xlu0 %11713
  %11715 = vrot.lane.b32.xlu0 %v11656, 32
  %v11716 = vpop.permute.xlu0 %11715
  %11717 = vrot.lane.b32.xlu0 %v11657, 32
  %v11718 = vpop.permute.xlu0 %11717
  %11719 = vrot.lane.b32.xlu0 %v11658, 32
  %v11720 = vpop.permute.xlu0 %11719
  %11721 = vrot.lane.b32.xlu0 %v11659, 32
  %v11722 = vpop.permute.xlu0 %11721
  %11723 = vrot.lane.b32.xlu0 %v11660, 32
  %v11724 = vpop.permute.xlu0 %11723
  %v11727 = vsel %vm5864, %v9901, %v10094
  %v11730 = vsel %vm5864, %v9902, %v10096
  %v11733 = vsel %vm5864, %v9903, %v10098
  %v11736 = vsel %vm5864, %v9904, %v10100
  %v11739 = vsel %vm5864, %v9905, %v10102
  %v11742 = vsel %vm5864, %v9906, %v10104
  %v11745 = vsel %vm5864, %v9907, %v10106
  %v11748 = vsel %vm5864, %v9908, %v10108
  %v11751 = vsel %vm5864, %v9909, %v10110
  %v11754 = vsel %vm5864, %v9910, %v10112
  %v11757 = vsel %vm5864, %v9911, %v10114
  %v11760 = vsel %vm5864, %v9912, %v10116
  %v11763 = vsel %vm5864, %v9913, %v10118
  %v11766 = vsel %vm5864, %v9914, %v10120
  %v11769 = vsel %vm5864, %v9915, %v10122
  %v11772 = vsel %vm5864, %v9916, %v10124
  %v11775 = vsel %vm5864, %v9917, %v10126
  %v11778 = vsel %vm5864, %v9918, %v10128
  %v11781 = vsel %vm5864, %v9919, %v10130
  %v11784 = vsel %vm5864, %v9920, %v10132
  %v11787 = vsel %vm5864, %v9921, %v10134
  %v11790 = vsel %vm5864, %v9922, %v10136
  %v11793 = vsel %vm5864, %v9923, %v10138
  %v11796 = vsel %vm5864, %v9924, %v10140
  %v11799 = vsel %vm5864, %v9925, %v10142
  %v11802 = vsel %vm5864, %v9926, %v10144
  %v11805 = vsel %vm5864, %v9927, %v10146
  %v11808 = vsel %vm5864, %v9928, %v10148
  %v11811 = vsel %vm5864, %v9929, %v10150
  %v11814 = vsel %vm5864, %v9930, %v10152
  %v11817 = vsel %vm5864, %v9931, %v10154
  %v11820 = vsel %vm5864, %v9932, %v10156
  %v11822 = vsel %vm5961, %v11727, %v10318
  %v11824 = vsel %vm5961, %v11730, %v10320
  %v11826 = vsel %vm5961, %v11733, %v10322
  %v11828 = vsel %vm5961, %v11736, %v10324
  %v11830 = vsel %vm5961, %v11739, %v10326
  %v11832 = vsel %vm5961, %v11742, %v10328
  %v11834 = vsel %vm5961, %v11745, %v10330
  %v11836 = vsel %vm5961, %v11748, %v10332
  %v11838 = vsel %vm5961, %v11751, %v10334
  %v11840 = vsel %vm5961, %v11754, %v10336
  %v11842 = vsel %vm5961, %v11757, %v10338
  %v11844 = vsel %vm5961, %v11760, %v10340
  %v11846 = vsel %vm5961, %v11763, %v10342
  %v11848 = vsel %vm5961, %v11766, %v10344
  %v11850 = vsel %vm5961, %v11769, %v10346
  %v11852 = vsel %vm5961, %v11772, %v10348
  %v11854 = vsel %vm5961, %v11775, %v10350
  %v11856 = vsel %vm5961, %v11778, %v10352
  %v11858 = vsel %vm5961, %v11781, %v10354
  %v11860 = vsel %vm5961, %v11784, %v10356
  %v11862 = vsel %vm5961, %v11787, %v10358
  %v11864 = vsel %vm5961, %v11790, %v10360
  %v11866 = vsel %vm5961, %v11793, %v10362
  %v11868 = vsel %vm5961, %v11796, %v10364
  %v11870 = vsel %vm5961, %v11799, %v10366
  %v11872 = vsel %vm5961, %v11802, %v10368
  %v11874 = vsel %vm5961, %v11805, %v10370
  %v11876 = vsel %vm5961, %v11808, %v10372
  %v11878 = vsel %vm5961, %v11811, %v10374
  %v11880 = vsel %vm5961, %v11814, %v10376
  %v11882 = vsel %vm5961, %v11817, %v10378
  %v11884 = vsel %vm5961, %v11820, %v10380
  %v11886 = vsel %vm6026, %v11822, %v10542
  %v11888 = vsel %vm6026, %v11824, %v10544
  %v11890 = vsel %vm6026, %v11826, %v10546
  %v11892 = vsel %vm6026, %v11828, %v10548
  %v11894 = vsel %vm6026, %v11830, %v10550
  %v11896 = vsel %vm6026, %v11832, %v10552
  %v11898 = vsel %vm6026, %v11834, %v10554
  %v11900 = vsel %vm6026, %v11836, %v10556
  %v11902 = vsel %vm6026, %v11838, %v10558
  %v11904 = vsel %vm6026, %v11840, %v10560
  %v11906 = vsel %vm6026, %v11842, %v10562
  %v11908 = vsel %vm6026, %v11844, %v10564
  %v11910 = vsel %vm6026, %v11846, %v10566
  %v11912 = vsel %vm6026, %v11848, %v10568
  %v11914 = vsel %vm6026, %v11850, %v10570
  %v11916 = vsel %vm6026, %v11852, %v10572
  %v11918 = vsel %vm6026, %v11854, %v10574
  %v11920 = vsel %vm6026, %v11856, %v10576
  %v11922 = vsel %vm6026, %v11858, %v10578
  %v11924 = vsel %vm6026, %v11860, %v10580
  %v11926 = vsel %vm6026, %v11862, %v10582
  %v11928 = vsel %vm6026, %v11864, %v10584
  %v11930 = vsel %vm6026, %v11866, %v10586
  %v11932 = vsel %vm6026, %v11868, %v10588
  %v11934 = vsel %vm6026, %v11870, %v10590
  %v11936 = vsel %vm6026, %v11872, %v10592
  %v11938 = vsel %vm6026, %v11874, %v10594
  %v11940 = vsel %vm6026, %v11876, %v10596
  %v11942 = vsel %vm6026, %v11878, %v10598
  %v11944 = vsel %vm6026, %v11880, %v10600
  %v11946 = vsel %vm6026, %v11882, %v10602
  %v11948 = vsel %vm6026, %v11884, %v10604
  %v11950 = vsel %vm6091, %v11886, %v10766
  %v11952 = vsel %vm6091, %v11888, %v10768
  %v11954 = vsel %vm6091, %v11890, %v10770
  %v11956 = vsel %vm6091, %v11892, %v10772
  %v11958 = vsel %vm6091, %v11894, %v10774
  %v11960 = vsel %vm6091, %v11896, %v10776
  %v11962 = vsel %vm6091, %v11898, %v10778
  %v11964 = vsel %vm6091, %v11900, %v10780
  %v11966 = vsel %vm6091, %v11902, %v10782
  %v11968 = vsel %vm6091, %v11904, %v10784
  %v11970 = vsel %vm6091, %v11906, %v10786
  %v11972 = vsel %vm6091, %v11908, %v10788
  %v11974 = vsel %vm6091, %v11910, %v10790
  %v11976 = vsel %vm6091, %v11912, %v10792
  %v11978 = vsel %vm6091, %v11914, %v10794
  %v11980 = vsel %vm6091, %v11916, %v10796
  %v11982 = vsel %vm6091, %v11918, %v10798
  %v11984 = vsel %vm6091, %v11920, %v10800
  %v11986 = vsel %vm6091, %v11922, %v10802
  %v11988 = vsel %vm6091, %v11924, %v10804
  %v11990 = vsel %vm6091, %v11926, %v10806
  %v11992 = vsel %vm6091, %v11928, %v10808
  %v11994 = vsel %vm6091, %v11930, %v10810
  %v11996 = vsel %vm6091, %v11932, %v10812
  %v11998 = vsel %vm6091, %v11934, %v10814
  %v12000 = vsel %vm6091, %v11936, %v10816
  %v12002 = vsel %vm6091, %v11938, %v10818
  %v12004 = vsel %vm6091, %v11940, %v10820
  %v12006 = vsel %vm6091, %v11942, %v10822
  %v12008 = vsel %vm6091, %v11944, %v10824
  %v12010 = vsel %vm6091, %v11946, %v10826
  %v12012 = vsel %vm6091, %v11948, %v10828
  %v12014 = vsel %vm6156, %v11950, %v10990
  %v12016 = vsel %vm6156, %v11952, %v10992
  %v12018 = vsel %vm6156, %v11954, %v10994
  %v12020 = vsel %vm6156, %v11956, %v10996
  %v12022 = vsel %vm6156, %v11958, %v10998
  %v12024 = vsel %vm6156, %v11960, %v11000
  %v12026 = vsel %vm6156, %v11962, %v11002
  %v12028 = vsel %vm6156, %v11964, %v11004
  %v12030 = vsel %vm6156, %v11966, %v11006
  %v12032 = vsel %vm6156, %v11968, %v11008
  %v12034 = vsel %vm6156, %v11970, %v11010
  %v12036 = vsel %vm6156, %v11972, %v11012
  %v12038 = vsel %vm6156, %v11974, %v11014
  %v12040 = vsel %vm6156, %v11976, %v11016
  %v12042 = vsel %vm6156, %v11978, %v11018
  %v12044 = vsel %vm6156, %v11980, %v11020
  %v12046 = vsel %vm6156, %v11982, %v11022
  %v12048 = vsel %vm6156, %v11984, %v11024
  %v12050 = vsel %vm6156, %v11986, %v11026
  %v12052 = vsel %vm6156, %v11988, %v11028
  %v12054 = vsel %vm6156, %v11990, %v11030
  %v12056 = vsel %vm6156, %v11992, %v11032
  %v12058 = vsel %vm6156, %v11994, %v11034
  %v12060 = vsel %vm6156, %v11996, %v11036
  %v12062 = vsel %vm6156, %v11998, %v11038
  %v12064 = vsel %vm6156, %v12000, %v11040
  %v12066 = vsel %vm6156, %v12002, %v11042
  %v12068 = vsel %vm6156, %v12004, %v11044
  %v12070 = vsel %vm6156, %v12006, %v11046
  %v12072 = vsel %vm6156, %v12008, %v11048
  %v12074 = vsel %vm6156, %v12010, %v11050
  %v12076 = vsel %vm6156, %v12012, %v11052
  %v12078 = vsel %vm6221, %v12014, %v11214
  %v12080 = vsel %vm6221, %v12016, %v11216
  %v12082 = vsel %vm6221, %v12018, %v11218
  %v12084 = vsel %vm6221, %v12020, %v11220
  %v12086 = vsel %vm6221, %v12022, %v11222
  %v12088 = vsel %vm6221, %v12024, %v11224
  %v12090 = vsel %vm6221, %v12026, %v11226
  %v12092 = vsel %vm6221, %v12028, %v11228
  %v12094 = vsel %vm6221, %v12030, %v11230
  %v12096 = vsel %vm6221, %v12032, %v11232
  %v12098 = vsel %vm6221, %v12034, %v11234
  %v12100 = vsel %vm6221, %v12036, %v11236
  %v12102 = vsel %vm6221, %v12038, %v11238
  %v12104 = vsel %vm6221, %v12040, %v11240
  %v12106 = vsel %vm6221, %v12042, %v11242
  %v12108 = vsel %vm6221, %v12044, %v11244
  %v12110 = vsel %vm6221, %v12046, %v11246
  %v12112 = vsel %vm6221, %v12048, %v11248
  %v12114 = vsel %vm6221, %v12050, %v11250
  %v12116 = vsel %vm6221, %v12052, %v11252
  %v12118 = vsel %vm6221, %v12054, %v11254
  %v12120 = vsel %vm6221, %v12056, %v11256
  %v12122 = vsel %vm6221, %v12058, %v11258
  %v12124 = vsel %vm6221, %v12060, %v11260
  %v12126 = vsel %vm6221, %v12062, %v11262
  %v12128 = vsel %vm6221, %v12064, %v11264
  %v12130 = vsel %vm6221, %v12066, %v11266
  %v12132 = vsel %vm6221, %v12068, %v11268
  %v12134 = vsel %vm6221, %v12070, %v11270
  %v12136 = vsel %vm6221, %v12072, %v11272
  %v12138 = vsel %vm6221, %v12074, %v11274
  %v12140 = vsel %vm6221, %v12076, %v11276
  %v12142 = vsel %vm6286, %v12078, %v11438
  %v12144 = vsel %vm6286, %v12080, %v11440
  %v12146 = vsel %vm6286, %v12082, %v11442
  %v12148 = vsel %vm6286, %v12084, %v11444
  %v12150 = vsel %vm6286, %v12086, %v11446
  %v12152 = vsel %vm6286, %v12088, %v11448
  %v12154 = vsel %vm6286, %v12090, %v11450
  %v12156 = vsel %vm6286, %v12092, %v11452
  %v12158 = vsel %vm6286, %v12094, %v11454
  %v12160 = vsel %vm6286, %v12096, %v11456
  %v12162 = vsel %vm6286, %v12098, %v11458
  %v12164 = vsel %vm6286, %v12100, %v11460
  %v12166 = vsel %vm6286, %v12102, %v11462
  %v12168 = vsel %vm6286, %v12104, %v11464
  %v12170 = vsel %vm6286, %v12106, %v11466
  %v12172 = vsel %vm6286, %v12108, %v11468
  %v12174 = vsel %vm6286, %v12110, %v11470
  %v12176 = vsel %vm6286, %v12112, %v11472
  %v12178 = vsel %vm6286, %v12114, %v11474
  %v12180 = vsel %vm6286, %v12116, %v11476
  %v12182 = vsel %vm6286, %v12118, %v11478
  %v12184 = vsel %vm6286, %v12120, %v11480
  %v12186 = vsel %vm6286, %v12122, %v11482
  %v12188 = vsel %vm6286, %v12124, %v11484
  %v12190 = vsel %vm6286, %v12126, %v11486
  %v12192 = vsel %vm6286, %v12128, %v11488
  %v12194 = vsel %vm6286, %v12130, %v11490
  %v12196 = vsel %vm6286, %v12132, %v11492
  %v12198 = vsel %vm6286, %v12134, %v11494
  %v12200 = vsel %vm6286, %v12136, %v11496
  %v12202 = vsel %vm6286, %v12138, %v11498
  %v12204 = vsel %vm6286, %v12140, %v11500
  %v12206 = vsel %vm6351, %v12142, %v11662
  %v12208 = vsel %vm6351, %v12144, %v11664
  %v12210 = vsel %vm6351, %v12146, %v11666
  %v12212 = vsel %vm6351, %v12148, %v11668
  %v12214 = vsel %vm6351, %v12150, %v11670
  %v12216 = vsel %vm6351, %v12152, %v11672
  %v12218 = vsel %vm6351, %v12154, %v11674
  %v12220 = vsel %vm6351, %v12156, %v11676
  %v12222 = vsel %vm6351, %v12158, %v11678
  %v12224 = vsel %vm6351, %v12160, %v11680
  %v12226 = vsel %vm6351, %v12162, %v11682
  %v12228 = vsel %vm6351, %v12164, %v11684
  %v12230 = vsel %vm6351, %v12166, %v11686
  %v12232 = vsel %vm6351, %v12168, %v11688
  %v12234 = vsel %vm6351, %v12170, %v11690
  %v12236 = vsel %vm6351, %v12172, %v11692
  %v12238 = vsel %vm6351, %v12174, %v11694
  %v12240 = vsel %vm6351, %v12176, %v11696
  %v12242 = vsel %vm6351, %v12178, %v11698
  %v12244 = vsel %vm6351, %v12180, %v11700
  %v12246 = vsel %vm6351, %v12182, %v11702
  %v12248 = vsel %vm6351, %v12184, %v11704
  %v12250 = vsel %vm6351, %v12186, %v11706
  %v12252 = vsel %vm6351, %v12188, %v11708
  %v12254 = vsel %vm6351, %v12190, %v11710
  %v12256 = vsel %vm6351, %v12192, %v11712
  %v12258 = vsel %vm6351, %v12194, %v11714
  %v12260 = vsel %vm6351, %v12196, %v11716
  %v12262 = vsel %vm6351, %v12198, %v11718
  %v12264 = vsel %vm6351, %v12200, %v11720
  %v12266 = vsel %vm6351, %v12202, %v11722
  %v12268 = vsel %vm6351, %v12204, %v11724
  %v12269 = vld [vmem:[%s6] sm:$0xf]
  %v12270 = vld [vmem:[%s6 + $0x4] sm:$0xf]
  %v12271 = vld [vmem:[%s6 + $0x8] sm:$0xf]
  %v12272 = vld [vmem:[%s6 + $0xc] sm:$0xf]
  %v12273 = vld [vmem:[%s6 + $0x10] sm:$0x3]
  %v12274 = vld [vmem:[%s7] sm:$0x1]
  %v12276 = vperm.slane %v12274, 0
  %v12283 = vunpack.c.l.b16 %v12269
  %v12284 = vunpack.c.l.b16 %v12270
  %v12285 = vunpack.c.l.b16 %v12271
  %v12286 = vunpack.c.l.b16 %v12272
  %v12287 = vunpack.c.l.b16 %v12273
  %v12288 = vpack.c.b16 %v12284, %v12283
  %v12289 = vpack.c.b16 %v12286, %v12285
  %v12290 = vpack.c.b16 %v12287, %v12287
  %v12293 = vsel %vm6416, %v12206, 0
  %v12295 = vsel %vm6416, %v12208, 0
  %v12297 = vsel %vm6416, %v12210, 0
  %v12299 = vsel %vm6416, %v12212, 0
  %v12301 = vsel %vm6416, %v12214, 0
  %v12303 = vsel %vm6416, %v12216, 0
  %v12305 = vsel %vm6416, %v12218, 0
  %v12307 = vsel %vm6416, %v12220, 0
  %v12309 = vsel %vm6416, %v12222, 0
  %v12311 = vsel %vm6416, %v12224, 0
  %v12313 = vsel %vm6416, %v12226, 0
  %v12315 = vsel %vm6416, %v12228, 0
  %v12317 = vsel %vm6416, %v12230, 0
  %v12319 = vsel %vm6416, %v12232, 0
  %v12321 = vsel %vm6416, %v12234, 0
  %v12323 = vsel %vm6416, %v12236, 0
  %v12325 = vsel %vm6416, %v12238, 0
  %v12327 = vsel %vm6416, %v12240, 0
  %v12329 = vsel %vm6416, %v12242, 0
  %v12331 = vsel %vm6416, %v12244, 0
  %v12333 = vsel %vm6416, %v12246, 0
  %v12335 = vsel %vm6416, %v12248, 0
  %v12337 = vsel %vm6416, %v12250, 0
  %v12339 = vsel %vm6416, %v12252, 0
  %v12341 = vsel %vm6416, %v12254, 0
  %v12343 = vsel %vm6416, %v12256, 0
  %v12345 = vsel %vm6416, %v12258, 0
  %v12347 = vsel %vm6416, %v12260, 0
  %v12349 = vsel %vm6416, %v12262, 0
  %v12351 = vsel %vm6416, %v12264, 0
  %v12353 = vsel %vm6416, %v12266, 0
  %v12355 = vsel %vm6416, %v12268, 0
  %vm12357 = vcmask 1041408
  %v12359 = vsel %vm12357, %v12290, 0
  %12361 = vmatpush.bf16.msra.mxu0 0
  %12362 = vmatpush.bf16.msra.mxu0 0
  %12363 = vmatpush.bf16.msra.mxu0 0
  %12364 = vmatpush.bf16.msra.mxu0 0
  %12365 = vmatpush.bf16.msra.mxu0 0
  %12366 = vmatpush.bf16.msra.mxu0 %v12359
  %12367 = vmatpush.bf16.msra.mxu0 %v12289
  %12368 = vmatpush.bf16.msra.mxu0 %v12288
  %12369 = vmatmul.bf16.gmra.mxu0 %v12293
  %v12370 = vpop.f32.mrf.mxu0
  %v12371 = vadd.f32 %v12276, %v12370
  %v12372 = vpop.f32.mrf.mxu0
  %v12373 = vadd.f32 %v12276, %v12372
  %12374 = vmatmul.bf16.gmra.mxu0 %v12295
  %v12375 = vpop.f32.mrf.mxu0
  %v12376 = vadd.f32 %v12276, %v12375
  %v12377 = vpop.f32.mrf.mxu0
  %v12378 = vadd.f32 %v12276, %v12377
  %12379 = vmatmul.bf16.gmra.mxu0 %v12297
  %v12380 = vpop.f32.mrf.mxu0
  %v12381 = vadd.f32 %v12276, %v12380
  %v12382 = vpop.f32.mrf.mxu0
  %v12383 = vadd.f32 %v12276, %v12382
  %12384 = vmatmul.bf16.gmra.mxu0 %v12299
  %v12385 = vpop.f32.mrf.mxu0
  %v12386 = vadd.f32 %v12276, %v12385
  %v12387 = vpop.f32.mrf.mxu0
  %v12388 = vadd.f32 %v12276, %v12387
  %12389 = vmatmul.bf16.gmra.mxu0 %v12301
  %v12390 = vpop.f32.mrf.mxu0
  %v12391 = vadd.f32 %v12276, %v12390
  %v12392 = vpop.f32.mrf.mxu0
  %v12393 = vadd.f32 %v12276, %v12392
  %12394 = vmatmul.bf16.gmra.mxu0 %v12303
  %v12395 = vpop.f32.mrf.mxu0
  %v12396 = vadd.f32 %v12276, %v12395
  %v12397 = vpop.f32.mrf.mxu0
  %v12398 = vadd.f32 %v12276, %v12397
  %12399 = vmatmul.bf16.gmra.mxu0 %v12305
  %v12400 = vpop.f32.mrf.mxu0
  %v12401 = vadd.f32 %v12276, %v12400
  %v12402 = vpop.f32.mrf.mxu0
  %v12403 = vadd.f32 %v12276, %v12402
  %12404 = vmatmul.bf16.gmra.mxu0 %v12307
  %v12405 = vpop.f32.mrf.mxu0
  %v12406 = vadd.f32 %v12276, %v12405
  %v12407 = vpop.f32.mrf.mxu0
  %v12408 = vadd.f32 %v12276, %v12407
  %12409 = vmatmul.bf16.gmra.mxu0 %v12309
  %v12410 = vpop.f32.mrf.mxu0
  %v12411 = vadd.f32 %v12276, %v12410
  %v12412 = vpop.f32.mrf.mxu0
  %v12413 = vadd.f32 %v12276, %v12412
  %12414 = vmatmul.bf16.gmra.mxu0 %v12311
  %v12415 = vpop.f32.mrf.mxu0
  %v12416 = vadd.f32 %v12276, %v12415
  %v12417 = vpop.f32.mrf.mxu0
  %v12418 = vadd.f32 %v12276, %v12417
  %12419 = vmatmul.bf16.gmra.mxu0 %v12313
  %v12420 = vpop.f32.mrf.mxu0
  %v12421 = vadd.f32 %v12276, %v12420
  %v12422 = vpop.f32.mrf.mxu0
  %v12423 = vadd.f32 %v12276, %v12422
  %12424 = vmatmul.bf16.gmra.mxu0 %v12315
  %v12425 = vpop.f32.mrf.mxu0
  %v12426 = vadd.f32 %v12276, %v12425
  %v12427 = vpop.f32.mrf.mxu0
  %v12428 = vadd.f32 %v12276, %v12427
  %12429 = vmatmul.bf16.gmra.mxu0 %v12317
  %v12430 = vpop.f32.mrf.mxu0
  %v12431 = vadd.f32 %v12276, %v12430
  %v12432 = vpop.f32.mrf.mxu0
  %v12433 = vadd.f32 %v12276, %v12432
  %12434 = vmatmul.bf16.gmra.mxu0 %v12319
  %v12435 = vpop.f32.mrf.mxu0
  %v12436 = vadd.f32 %v12276, %v12435
  %v12437 = vpop.f32.mrf.mxu0
  %v12438 = vadd.f32 %v12276, %v12437
  %12439 = vmatmul.bf16.gmra.mxu0 %v12321
  %v12440 = vpop.f32.mrf.mxu0
  %v12441 = vadd.f32 %v12276, %v12440
  %v12442 = vpop.f32.mrf.mxu0
  %v12443 = vadd.f32 %v12276, %v12442
  %12444 = vmatmul.bf16.gmra.mxu0 %v12323
  %v12445 = vpop.f32.mrf.mxu0
  %v12446 = vadd.f32 %v12276, %v12445
  %v12447 = vpop.f32.mrf.mxu0
  %v12448 = vadd.f32 %v12276, %v12447
  %12449 = vmatmul.bf16.gmra.mxu0 %v12325
  %v12450 = vpop.f32.mrf.mxu0
  %v12451 = vadd.f32 %v12276, %v12450
  %v12452 = vpop.f32.mrf.mxu0
  %v12453 = vadd.f32 %v12276, %v12452
  %12454 = vmatmul.bf16.gmra.mxu0 %v12327
  %v12455 = vpop.f32.mrf.mxu0
  %v12456 = vadd.f32 %v12276, %v12455
  %v12457 = vpop.f32.mrf.mxu0
  %v12458 = vadd.f32 %v12276, %v12457
  %12459 = vmatmul.bf16.gmra.mxu0 %v12329
  %v12460 = vpop.f32.mrf.mxu0
  %v12461 = vadd.f32 %v12276, %v12460
  %v12462 = vpop.f32.mrf.mxu0
  %v12463 = vadd.f32 %v12276, %v12462
  %12464 = vmatmul.bf16.gmra.mxu0 %v12331
  %v12465 = vpop.f32.mrf.mxu0
  %v12466 = vadd.f32 %v12276, %v12465
  %v12467 = vpop.f32.mrf.mxu0
  %v12468 = vadd.f32 %v12276, %v12467
  %12469 = vmatmul.bf16.gmra.mxu0 %v12333
  %v12470 = vpop.f32.mrf.mxu0
  %v12471 = vadd.f32 %v12276, %v12470
  %v12472 = vpop.f32.mrf.mxu0
  %v12473 = vadd.f32 %v12276, %v12472
  %12474 = vmatmul.bf16.gmra.mxu0 %v12335
  %v12475 = vpop.f32.mrf.mxu0
  %v12476 = vadd.f32 %v12276, %v12475
  %v12477 = vpop.f32.mrf.mxu0
  %v12478 = vadd.f32 %v12276, %v12477
  %12479 = vmatmul.bf16.gmra.mxu0 %v12337
  %v12480 = vpop.f32.mrf.mxu0
  %v12481 = vadd.f32 %v12276, %v12480
  %v12482 = vpop.f32.mrf.mxu0
  %v12483 = vadd.f32 %v12276, %v12482
  %12484 = vmatmul.bf16.gmra.mxu0 %v12339
  %v12485 = vpop.f32.mrf.mxu0
  %v12486 = vadd.f32 %v12276, %v12485
  %v12487 = vpop.f32.mrf.mxu0
  %v12488 = vadd.f32 %v12276, %v12487
  %12489 = vmatmul.bf16.gmra.mxu0 %v12341
  %v12490 = vpop.f32.mrf.mxu0
  %v12491 = vadd.f32 %v12276, %v12490
  %v12492 = vpop.f32.mrf.mxu0
  %v12493 = vadd.f32 %v12276, %v12492
  %12494 = vmatmul.bf16.gmra.mxu0 %v12343
  %v12495 = vpop.f32.mrf.mxu0
  %v12496 = vadd.f32 %v12276, %v12495
  %v12497 = vpop.f32.mrf.mxu0
  %v12498 = vadd.f32 %v12276, %v12497
  %12499 = vmatmul.bf16.gmra.mxu0 %v12345
  %v12500 = vpop.f32.mrf.mxu0
  %v12501 = vadd.f32 %v12276, %v12500
  %v12502 = vpop.f32.mrf.mxu0
  %v12503 = vadd.f32 %v12276, %v12502
  %12504 = vmatmul.bf16.gmra.mxu0 %v12347
  %v12505 = vpop.f32.mrf.mxu0
  %v12506 = vadd.f32 %v12276, %v12505
  %v12507 = vpop.f32.mrf.mxu0
  %v12508 = vadd.f32 %v12276, %v12507
  %12509 = vmatmul.bf16.gmra.mxu0 %v12349
  %v12510 = vpop.f32.mrf.mxu0
  %v12511 = vadd.f32 %v12276, %v12510
  %v12512 = vpop.f32.mrf.mxu0
  %v12513 = vadd.f32 %v12276, %v12512
  %12514 = vmatmul.bf16.gmra.mxu0 %v12351
  %v12515 = vpop.f32.mrf.mxu0
  %v12516 = vadd.f32 %v12276, %v12515
  %v12517 = vpop.f32.mrf.mxu0
  %v12518 = vadd.f32 %v12276, %v12517
  %12519 = vmatmul.bf16.gmra.mxu0 %v12353
  %v12520 = vpop.f32.mrf.mxu0
  %v12521 = vadd.f32 %v12276, %v12520
  %v12522 = vpop.f32.mrf.mxu0
  %v12523 = vadd.f32 %v12276, %v12522
  %12524 = vmatmul.bf16.gmra.mxu0 %v12355
  %v12525 = vpop.f32.mrf.mxu0
  %v12526 = vadd.f32 %v12276, %v12525
  %v12527 = vpop.f32.mrf.mxu0
  %v12528 = vadd.f32 %v12276, %v12527
  %12529 = vdwg.mxu0
  %v12530 = vld [vmem:[%s8] sm:$0x1]
  %v12531 = vld [vmem:[%s9] sm:$0x1]
  %v12532 = vadd.f32 %v12371, %v12373
  %v12533 = vadd.f32 %v12532, %v12376
  %v12534 = vadd.f32 %v12533, %v12378
  %v12535 = vadd.f32 %v12534, %v12381
  %v12536 = vadd.f32 %v12535, %v12383
  %v12537 = vadd.f32 %v12536, %v12386
  %v12538 = vadd.f32 %v12537, %v12388
  %v12539 = vadd.f32 %v12538, %v12391
  %v12540 = vadd.f32 %v12539, %v12393
  %v12541 = vadd.f32 %v12540, %v12396
  %v12542 = vadd.f32 %v12541, %v12398
  %v12543 = vadd.f32 %v12542, %v12401
  %v12544 = vadd.f32 %v12543, %v12403
  %v12545 = vadd.f32 %v12544, %v12406
  %v12546 = vadd.f32 %v12545, %v12408
  %v12547 = vadd.f32 %v12546, %v12411
  %v12548 = vadd.f32 %v12547, %v12413
  %v12549 = vadd.f32 %v12548, %v12416
  %v12550 = vadd.f32 %v12549, %v12418
  %v12551 = vadd.f32 %v12550, %v12421
  %v12552 = vadd.f32 %v12551, %v12423
  %v12553 = vadd.f32 %v12552, %v12426
  %v12554 = vadd.f32 %v12553, %v12428
  %v12555 = vadd.f32 %v12554, %v12431
  %v12556 = vadd.f32 %v12555, %v12433
  %v12557 = vadd.f32 %v12556, %v12436
  %v12558 = vadd.f32 %v12557, %v12438
  %v12559 = vadd.f32 %v12558, %v12441
  %v12560 = vadd.f32 %v12559, %v12443
  %v12561 = vadd.f32 %v12560, %v12446
  %v12562 = vadd.f32 %v12561, %v12448
  %v12563 = vadd.f32 %v12562, %v12451
  %v12564 = vadd.f32 %v12563, %v12453
  %v12565 = vadd.f32 %v12564, %v12456
  %v12566 = vadd.f32 %v12565, %v12458
  %v12567 = vadd.f32 %v12566, %v12461
  %v12568 = vadd.f32 %v12567, %v12463
  %v12569 = vadd.f32 %v12568, %v12466
  %v12570 = vadd.f32 %v12569, %v12468
  %v12571 = vadd.f32 %v12570, %v12471
  %v12572 = vadd.f32 %v12571, %v12473
  %v12573 = vadd.f32 %v12572, %v12476
  %v12574 = vadd.f32 %v12573, %v12478
  %v12575 = vadd.f32 %v12574, %v12481
  %v12576 = vadd.f32 %v12575, %v12483
  %v12577 = vadd.f32 %v12576, %v12486
  %v12578 = vadd.f32 %v12577, %v12488
  %v12579 = vadd.f32 %v12578, %v12491
  %v12580 = vadd.f32 %v12579, %v12493
  %v12581 = vadd.f32 %v12580, %v12496
  %v12582 = vadd.f32 %v12581, %v12498
  %v12583 = vadd.f32 %v12582, %v12501
  %v12584 = vadd.f32 %v12583, %v12503
  %v12585 = vadd.f32 %v12584, %v12506
  %v12586 = vadd.f32 %v12585, %v12508
  %v12587 = vadd.f32 %v12586, %v12511
  %v12588 = vadd.f32 %v12587, %v12513
  %v12589 = vadd.f32 %v12588, %v12516
  %v12590 = vadd.f32 %v12589, %v12518
  %v12591 = vadd.f32 %v12590, %v12521
  %v12592 = vadd.f32 %v12591, %v12523
  %v12593 = vadd.f32 %v12592, %v12526
  %v12594 = vadd.f32 %v12593, %v12528
  %v12595 = vrot.slane %v12594, 4
  %v12596 = vadd.f32 %v12594, %v12595
  %v12597 = vrot.slane %v12596, 2
  %v12598 = vadd.f32 %v12596, %v12597
  %v12599 = vrot.slane %v12598, 1
  %v12600 = vadd.f32 %v12598, %v12599
  %v12601 = vmul.f32 %v12600, %v7931
  %v12602 = vsub.f32 %v12371, %v12601
  %v12603 = vsub.f32 %v12373, %v12601
  %v12604 = vsub.f32 %v12376, %v12601
  %v12605 = vsub.f32 %v12378, %v12601
  %v12606 = vsub.f32 %v12381, %v12601
  %v12607 = vsub.f32 %v12383, %v12601
  %v12608 = vsub.f32 %v12386, %v12601
  %v12609 = vsub.f32 %v12388, %v12601
  %v12610 = vsub.f32 %v12391, %v12601
  %v12611 = vsub.f32 %v12393, %v12601
  %v12612 = vsub.f32 %v12396, %v12601
  %v12613 = vsub.f32 %v12398, %v12601
  %v12614 = vsub.f32 %v12401, %v12601
  %v12615 = vsub.f32 %v12403, %v12601
  %v12616 = vsub.f32 %v12406, %v12601
  %v12617 = vsub.f32 %v12408, %v12601
  %v12618 = vsub.f32 %v12411, %v12601
  %v12619 = vsub.f32 %v12413, %v12601
  %v12620 = vsub.f32 %v12416, %v12601
  %v12621 = vsub.f32 %v12418, %v12601
  %v12622 = vsub.f32 %v12421, %v12601
  %v12623 = vsub.f32 %v12423, %v12601
  %v12624 = vsub.f32 %v12426, %v12601
  %v12625 = vsub.f32 %v12428, %v12601
  %v12626 = vsub.f32 %v12431, %v12601
  %v12627 = vsub.f32 %v12433, %v12601
  %v12628 = vsub.f32 %v12436, %v12601
  %v12629 = vsub.f32 %v12438, %v12601
  %v12630 = vsub.f32 %v12441, %v12601
  %v12631 = vsub.f32 %v12443, %v12601
  %v12632 = vsub.f32 %v12446, %v12601
  %v12633 = vsub.f32 %v12448, %v12601
  %v12634 = vsub.f32 %v12451, %v12601
  %v12635 = vsub.f32 %v12453, %v12601
  %v12636 = vsub.f32 %v12456, %v12601
  %v12637 = vsub.f32 %v12458, %v12601
  %v12638 = vsub.f32 %v12461, %v12601
  %v12639 = vsub.f32 %v12463, %v12601
  %v12640 = vsub.f32 %v12466, %v12601
  %v12641 = vsub.f32 %v12468, %v12601
  %v12642 = vsub.f32 %v12471, %v12601
  %v12643 = vsub.f32 %v12473, %v12601
  %v12644 = vsub.f32 %v12476, %v12601
  %v12645 = vsub.f32 %v12478, %v12601
  %v12646 = vsub.f32 %v12481, %v12601
  %v12647 = vsub.f32 %v12483, %v12601
  %v12648 = vsub.f32 %v12486, %v12601
  %v12649 = vsub.f32 %v12488, %v12601
  %v12650 = vsub.f32 %v12491, %v12601
  %v12651 = vsub.f32 %v12493, %v12601
  %v12652 = vsub.f32 %v12496, %v12601
  %v12653 = vsub.f32 %v12498, %v12601
  %v12654 = vsub.f32 %v12501, %v12601
  %v12655 = vsub.f32 %v12503, %v12601
  %v12656 = vsub.f32 %v12506, %v12601
  %v12657 = vsub.f32 %v12508, %v12601
  %v12658 = vsub.f32 %v12511, %v12601
  %v12659 = vsub.f32 %v12513, %v12601
  %v12660 = vsub.f32 %v12516, %v12601
  %v12661 = vsub.f32 %v12518, %v12601
  %v12662 = vsub.f32 %v12521, %v12601
  %v12663 = vsub.f32 %v12523, %v12601
  %v12664 = vsub.f32 %v12526, %v12601
  %v12665 = vsub.f32 %v12528, %v12601
  %v12666 = vmul.f32 %v12602, %v12602
  %v12667 = vmul.f32 %v12603, %v12603
  %v12668 = vmul.f32 %v12604, %v12604
  %v12669 = vmul.f32 %v12605, %v12605
  %v12670 = vmul.f32 %v12606, %v12606
  %v12671 = vmul.f32 %v12607, %v12607
  %v12672 = vmul.f32 %v12608, %v12608
  %v12673 = vmul.f32 %v12609, %v12609
  %v12674 = vmul.f32 %v12610, %v12610
  %v12675 = vmul.f32 %v12611, %v12611
  %v12676 = vmul.f32 %v12612, %v12612
  %v12677 = vmul.f32 %v12613, %v12613
  %v12678 = vmul.f32 %v12614, %v12614
  %v12679 = vmul.f32 %v12615, %v12615
  %v12680 = vmul.f32 %v12616, %v12616
  %v12681 = vmul.f32 %v12617, %v12617
  %v12682 = vmul.f32 %v12618, %v12618
  %v12683 = vmul.f32 %v12619, %v12619
  %v12684 = vmul.f32 %v12620, %v12620
  %v12685 = vmul.f32 %v12621, %v12621
  %v12686 = vmul.f32 %v12622, %v12622
  %v12687 = vmul.f32 %v12623, %v12623
  %v12688 = vmul.f32 %v12624, %v12624
  %v12689 = vmul.f32 %v12625, %v12625
  %v12690 = vmul.f32 %v12626, %v12626
  %v12691 = vmul.f32 %v12627, %v12627
  %v12692 = vmul.f32 %v12628, %v12628
  %v12693 = vmul.f32 %v12629, %v12629
  %v12694 = vmul.f32 %v12630, %v12630
  %v12695 = vmul.f32 %v12631, %v12631
  %v12696 = vmul.f32 %v12632, %v12632
  %v12697 = vmul.f32 %v12633, %v12633
  %v12698 = vmul.f32 %v12634, %v12634
  %v12699 = vmul.f32 %v12635, %v12635
  %v12700 = vmul.f32 %v12636, %v12636
  %v12701 = vmul.f32 %v12637, %v12637
  %v12702 = vmul.f32 %v12638, %v12638
  %v12703 = vmul.f32 %v12639, %v12639
  %v12704 = vmul.f32 %v12640, %v12640
  %v12705 = vmul.f32 %v12641, %v12641
  %v12706 = vmul.f32 %v12642, %v12642
  %v12707 = vmul.f32 %v12643, %v12643
  %v12708 = vmul.f32 %v12644, %v12644
  %v12709 = vmul.f32 %v12645, %v12645
  %v12710 = vmul.f32 %v12646, %v12646
  %v12711 = vmul.f32 %v12647, %v12647
  %v12712 = vmul.f32 %v12648, %v12648
  %v12713 = vmul.f32 %v12649, %v12649
  %v12714 = vmul.f32 %v12650, %v12650
  %v12715 = vmul.f32 %v12651, %v12651
  %v12716 = vmul.f32 %v12652, %v12652
  %v12717 = vmul.f32 %v12653, %v12653
  %v12718 = vmul.f32 %v12654, %v12654
  %v12719 = vmul.f32 %v12655, %v12655
  %v12720 = vmul.f32 %v12656, %v12656
  %v12721 = vmul.f32 %v12657, %v12657
  %v12722 = vmul.f32 %v12658, %v12658
  %v12723 = vmul.f32 %v12659, %v12659
  %v12724 = vmul.f32 %v12660, %v12660
  %v12725 = vmul.f32 %v12661, %v12661
  %v12726 = vmul.f32 %v12662, %v12662
  %v12727 = vmul.f32 %v12663, %v12663
  %v12728 = vmul.f32 %v12664, %v12664
  %v12729 = vmul.f32 %v12665, %v12665
  %v12730 = vadd.f32 %v12666, %v12667
  %v12731 = vadd.f32 %v12730, %v12668
  %v12732 = vadd.f32 %v12731, %v12669
  %v12733 = vadd.f32 %v12732, %v12670
  %v12734 = vadd.f32 %v12733, %v12671
  %v12735 = vadd.f32 %v12734, %v12672
  %v12736 = vadd.f32 %v12735, %v12673
  %v12737 = vadd.f32 %v12736, %v12674
  %v12738 = vadd.f32 %v12737, %v12675
  %v12739 = vadd.f32 %v12738, %v12676
  %v12740 = vadd.f32 %v12739, %v12677
  %v12741 = vadd.f32 %v12740, %v12678
  %v12742 = vadd.f32 %v12741, %v12679
  %v12743 = vadd.f32 %v12742, %v12680
  %v12744 = vadd.f32 %v12743, %v12681
  %v12745 = vadd.f32 %v12744, %v12682
  %v12746 = vadd.f32 %v12745, %v12683
  %v12747 = vadd.f32 %v12746, %v12684
  %v12748 = vadd.f32 %v12747, %v12685
  %v12749 = vadd.f32 %v12748, %v12686
  %v12750 = vadd.f32 %v12749, %v12687
  %v12751 = vadd.f32 %v12750, %v12688
  %v12752 = vadd.f32 %v12751, %v12689
  %v12753 = vadd.f32 %v12752, %v12690
  %v12754 = vadd.f32 %v12753, %v12691
  %v12755 = vadd.f32 %v12754, %v12692
  %v12756 = vadd.f32 %v12755, %v12693
  %v12757 = vadd.f32 %v12756, %v12694
  %v12758 = vadd.f32 %v12757, %v12695
  %v12759 = vadd.f32 %v12758, %v12696
  %v12760 = vadd.f32 %v12759, %v12697
  %v12761 = vadd.f32 %v12760, %v12698
  %v12762 = vadd.f32 %v12761, %v12699
  %v12763 = vadd.f32 %v12762, %v12700
  %v12764 = vadd.f32 %v12763, %v12701
  %v12765 = vadd.f32 %v12764, %v12702
  %v12766 = vadd.f32 %v12765, %v12703
  %v12767 = vadd.f32 %v12766, %v12704
  %v12768 = vadd.f32 %v12767, %v12705
  %v12769 = vadd.f32 %v12768, %v12706
  %v12770 = vadd.f32 %v12769, %v12707
  %v12771 = vadd.f32 %v12770, %v12708
  %v12772 = vadd.f32 %v12771, %v12709
  %v12773 = vadd.f32 %v12772, %v12710
  %v12774 = vadd.f32 %v12773, %v12711
  %v12775 = vadd.f32 %v12774, %v12712
  %v12776 = vadd.f32 %v12775, %v12713
  %v12777 = vadd.f32 %v12776, %v12714
  %v12778 = vadd.f32 %v12777, %v12715
  %v12779 = vadd.f32 %v12778, %v12716
  %v12780 = vadd.f32 %v12779, %v12717
  %v12781 = vadd.f32 %v12780, %v12718
  %v12782 = vadd.f32 %v12781, %v12719
  %v12783 = vadd.f32 %v12782, %v12720
  %v12784 = vadd.f32 %v12783, %v12721
  %v12785 = vadd.f32 %v12784, %v12722
  %v12786 = vadd.f32 %v12785, %v12723
  %v12787 = vadd.f32 %v12786, %v12724
  %v12788 = vadd.f32 %v12787, %v12725
  %v12789 = vadd.f32 %v12788, %v12726
  %v12790 = vadd.f32 %v12789, %v12727
  %v12791 = vadd.f32 %v12790, %v12728
  %v12792 = vadd.f32 %v12791, %v12729
  %v12793 = vrot.slane %v12792, 4
  %v12794 = vadd.f32 %v12792, %v12793
  %v12795 = vrot.slane %v12794, 2
  %v12796 = vadd.f32 %v12794, %v12795
  %v12797 = vrot.slane %v12796, 1
  %v12798 = vadd.f32 %v12796, %v12797
  %v12799 = vmul.f32 %v12798, %v7931
  %v12800 = vadd.f32 %v12799, 1e-05
  %v12801 = vrsqrt.pop %v12800
  %v12802 = vmul.f32 %v12801, %v12800
  %v12803 = vmul.f32 %v12802, %v12801
  %v12804 = vmul.f32 0.5, %v12803
  %v12805 = vsub.f32 1.5, %v12804
  %v12806 = vmul.f32 %v12801, %v12805
  %vm12807 = vweird.f32 %v12800
  %vm12808 = vweird.f32 %v12801
  %vm12809 = vmor %vm12807, %vm12808
  %v12810 = vsel %vm12809, %v12801, %v12806
  %v12811 = vmul.f32 %v12602, %v12810
  %v12812 = vmul.f32 %v12603, %v12810
  %v12813 = vmul.f32 %v12604, %v12810
  %v12814 = vmul.f32 %v12605, %v12810
  %v12815 = vmul.f32 %v12606, %v12810
  %v12816 = vmul.f32 %v12607, %v12810
  %v12817 = vmul.f32 %v12608, %v12810
  %v12818 = vmul.f32 %v12609, %v12810
  %v12819 = vmul.f32 %v12610, %v12810
  %v12820 = vmul.f32 %v12611, %v12810
  %v12821 = vmul.f32 %v12612, %v12810
  %v12822 = vmul.f32 %v12613, %v12810
  %v12823 = vmul.f32 %v12614, %v12810
  %v12824 = vmul.f32 %v12615, %v12810
  %v12825 = vmul.f32 %v12616, %v12810
  %v12826 = vmul.f32 %v12617, %v12810
  %v12827 = vmul.f32 %v12618, %v12810
  %v12828 = vmul.f32 %v12619, %v12810
  %v12829 = vmul.f32 %v12620, %v12810
  %v12830 = vmul.f32 %v12621, %v12810
  %v12831 = vmul.f32 %v12622, %v12810
  %v12832 = vmul.f32 %v12623, %v12810
  %v12833 = vmul.f32 %v12624, %v12810
  %v12834 = vmul.f32 %v12625, %v12810
  %v12835 = vmul.f32 %v12626, %v12810
  %v12836 = vmul.f32 %v12627, %v12810
  %v12837 = vmul.f32 %v12628, %v12810
  %v12838 = vmul.f32 %v12629, %v12810
  %v12839 = vmul.f32 %v12630, %v12810
  %v12840 = vmul.f32 %v12631, %v12810
  %v12841 = vmul.f32 %v12632, %v12810
  %v12842 = vmul.f32 %v12633, %v12810
  %v12843 = vmul.f32 %v12634, %v12810
  %v12844 = vmul.f32 %v12635, %v12810
  %v12845 = vmul.f32 %v12636, %v12810
  %v12846 = vmul.f32 %v12637, %v12810
  %v12847 = vmul.f32 %v12638, %v12810
  %v12848 = vmul.f32 %v12639, %v12810
  %v12849 = vmul.f32 %v12640, %v12810
  %v12850 = vmul.f32 %v12641, %v12810
  %v12851 = vmul.f32 %v12642, %v12810
  %v12852 = vmul.f32 %v12643, %v12810
  %v12853 = vmul.f32 %v12644, %v12810
  %v12854 = vmul.f32 %v12645, %v12810
  %v12855 = vmul.f32 %v12646, %v12810
  %v12856 = vmul.f32 %v12647, %v12810
  %v12857 = vmul.f32 %v12648, %v12810
  %v12858 = vmul.f32 %v12649, %v12810
  %v12859 = vmul.f32 %v12650, %v12810
  %v12860 = vmul.f32 %v12651, %v12810
  %v12861 = vmul.f32 %v12652, %v12810
  %v12862 = vmul.f32 %v12653, %v12810
  %v12863 = vmul.f32 %v12654, %v12810
  %v12864 = vmul.f32 %v12655, %v12810
  %v12865 = vmul.f32 %v12656, %v12810
  %v12866 = vmul.f32 %v12657, %v12810
  %v12867 = vmul.f32 %v12658, %v12810
  %v12868 = vmul.f32 %v12659, %v12810
  %v12869 = vmul.f32 %v12660, %v12810
  %v12870 = vmul.f32 %v12661, %v12810
  %v12871 = vmul.f32 %v12662, %v12810
  %v12872 = vmul.f32 %v12663, %v12810
  %v12873 = vmul.f32 %v12664, %v12810
  %v12874 = vmul.f32 %v12665, %v12810
  %v12876 = vperm.slane %v12530, 0
  %v12878 = vmul.f32 %v12811, %v12876
  %v12879 = vmul.f32 %v12812, %v12876
  %v12880 = vmul.f32 %v12813, %v12876
  %v12881 = vmul.f32 %v12814, %v12876
  %v12882 = vmul.f32 %v12815, %v12876
  %v12883 = vmul.f32 %v12816, %v12876
  %v12884 = vmul.f32 %v12817, %v12876
  %v12885 = vmul.f32 %v12818, %v12876
  %v12886 = vmul.f32 %v12819, %v12876
  %v12887 = vmul.f32 %v12820, %v12876
  %v12888 = vmul.f32 %v12821, %v12876
  %v12889 = vmul.f32 %v12822, %v12876
  %v12890 = vmul.f32 %v12823, %v12876
  %v12891 = vmul.f32 %v12824, %v12876
  %v12892 = vmul.f32 %v12825, %v12876
  %v12893 = vmul.f32 %v12826, %v12876
  %v12894 = vmul.f32 %v12827, %v12876
  %v12895 = vmul.f32 %v12828, %v12876
  %v12896 = vmul.f32 %v12829, %v12876
  %v12897 = vmul.f32 %v12830, %v12876
  %v12898 = vmul.f32 %v12831, %v12876
  %v12899 = vmul.f32 %v12832, %v12876
  %v12900 = vmul.f32 %v12833, %v12876
  %v12901 = vmul.f32 %v12834, %v12876
  %v12902 = vmul.f32 %v12835, %v12876
  %v12903 = vmul.f32 %v12836, %v12876
  %v12904 = vmul.f32 %v12837, %v12876
  %v12905 = vmul.f32 %v12838, %v12876
  %v12906 = vmul.f32 %v12839, %v12876
  %v12907 = vmul.f32 %v12840, %v12876
  %v12908 = vmul.f32 %v12841, %v12876
  %v12909 = vmul.f32 %v12842, %v12876
  %v12910 = vmul.f32 %v12843, %v12876
  %v12911 = vmul.f32 %v12844, %v12876
  %v12912 = vmul.f32 %v12845, %v12876
  %v12913 = vmul.f32 %v12846, %v12876
  %v12914 = vmul.f32 %v12847, %v12876
  %v12915 = vmul.f32 %v12848, %v12876
  %v12916 = vmul.f32 %v12849, %v12876
  %v12917 = vmul.f32 %v12850, %v12876
  %v12918 = vmul.f32 %v12851, %v12876
  %v12919 = vmul.f32 %v12852, %v12876
  %v12920 = vmul.f32 %v12853, %v12876
  %v12921 = vmul.f32 %v12854, %v12876
  %v12922 = vmul.f32 %v12855, %v12876
  %v12923 = vmul.f32 %v12856, %v12876
  %v12924 = vmul.f32 %v12857, %v12876
  %v12925 = vmul.f32 %v12858, %v12876
  %v12926 = vmul.f32 %v12859, %v12876
  %v12927 = vmul.f32 %v12860, %v12876
  %v12928 = vmul.f32 %v12861, %v12876
  %v12929 = vmul.f32 %v12862, %v12876
  %v12930 = vmul.f32 %v12863, %v12876
  %v12931 = vmul.f32 %v12864, %v12876
  %v12932 = vmul.f32 %v12865, %v12876
  %v12933 = vmul.f32 %v12866, %v12876
  %v12934 = vmul.f32 %v12867, %v12876
  %v12935 = vmul.f32 %v12868, %v12876
  %v12936 = vmul.f32 %v12869, %v12876
  %v12937 = vmul.f32 %v12870, %v12876
  %v12938 = vmul.f32 %v12871, %v12876
  %v12939 = vmul.f32 %v12872, %v12876
  %v12940 = vmul.f32 %v12873, %v12876
  %v12941 = vmul.f32 %v12874, %v12876
  %v12943 = vperm.slane %v12531, 0
  %v12945 = vadd.f32 %v12878, %v12943
  %v12946 = vadd.f32 %v12879, %v12943
  %v12947 = vadd.f32 %v12880, %v12943
  %v12948 = vadd.f32 %v12881, %v12943
  %v12949 = vadd.f32 %v12882, %v12943
  %v12950 = vadd.f32 %v12883, %v12943
  %v12951 = vadd.f32 %v12884, %v12943
  %v12952 = vadd.f32 %v12885, %v12943
  %v12953 = vadd.f32 %v12886, %v12943
  %v12954 = vadd.f32 %v12887, %v12943
  %v12955 = vadd.f32 %v12888, %v12943
  %v12956 = vadd.f32 %v12889, %v12943
  %v12957 = vadd.f32 %v12890, %v12943
  %v12958 = vadd.f32 %v12891, %v12943
  %v12959 = vadd.f32 %v12892, %v12943
  %v12960 = vadd.f32 %v12893, %v12943
  %v12961 = vadd.f32 %v12894, %v12943
  %v12962 = vadd.f32 %v12895, %v12943
  %v12963 = vadd.f32 %v12896, %v12943
  %v12964 = vadd.f32 %v12897, %v12943
  %v12965 = vadd.f32 %v12898, %v12943
  %v12966 = vadd.f32 %v12899, %v12943
  %v12967 = vadd.f32 %v12900, %v12943
  %v12968 = vadd.f32 %v12901, %v12943
  %v12969 = vadd.f32 %v12902, %v12943
  %v12970 = vadd.f32 %v12903, %v12943
  %v12971 = vadd.f32 %v12904, %v12943
  %v12972 = vadd.f32 %v12905, %v12943
  %v12973 = vadd.f32 %v12906, %v12943
  %v12974 = vadd.f32 %v12907, %v12943
  %v12975 = vadd.f32 %v12908, %v12943
  %v12976 = vadd.f32 %v12909, %v12943
  %v12977 = vadd.f32 %v12910, %v12943
  %v12978 = vadd.f32 %v12911, %v12943
  %v12979 = vadd.f32 %v12912, %v12943
  %v12980 = vadd.f32 %v12913, %v12943
  %v12981 = vadd.f32 %v12914, %v12943
  %v12982 = vadd.f32 %v12915, %v12943
  %v12983 = vadd.f32 %v12916, %v12943
  %v12984 = vadd.f32 %v12917, %v12943
  %v12985 = vadd.f32 %v12918, %v12943
  %v12986 = vadd.f32 %v12919, %v12943
  %v12987 = vadd.f32 %v12920, %v12943
  %v12988 = vadd.f32 %v12921, %v12943
  %v12989 = vadd.f32 %v12922, %v12943
  %v12990 = vadd.f32 %v12923, %v12943
  %v12991 = vadd.f32 %v12924, %v12943
  %v12992 = vadd.f32 %v12925, %v12943
  %v12993 = vadd.f32 %v12926, %v12943
  %v12994 = vadd.f32 %v12927, %v12943
  %v12995 = vadd.f32 %v12928, %v12943
  %v12996 = vadd.f32 %v12929, %v12943
  %v12997 = vadd.f32 %v12930, %v12943
  %v12998 = vadd.f32 %v12931, %v12943
  %v12999 = vadd.f32 %v12932, %v12943
  %v13000 = vadd.f32 %v12933, %v12943
  %v13001 = vadd.f32 %v12934, %v12943
  %v13002 = vadd.f32 %v12935, %v12943
  %v13003 = vadd.f32 %v12936, %v12943
  %v13004 = vadd.f32 %v12937, %v12943
  %v13005 = vadd.f32 %v12938, %v12943
  %v13006 = vadd.f32 %v12939, %v12943
  %v13007 = vadd.f32 %v12940, %v12943
  %v13008 = vadd.f32 %v12941, %v12943
  %v13009 = vmax.f32 %v12945, 0.0
  %v13010 = vmax.f32 %v12946, 0.0
  %v13011 = vmax.f32 %v12947, 0.0
  %v13012 = vmax.f32 %v12948, 0.0
  %v13013 = vmax.f32 %v12949, 0.0
  %v13014 = vmax.f32 %v12950, 0.0
  %v13015 = vmax.f32 %v12951, 0.0
  %v13016 = vmax.f32 %v12952, 0.0
  %v13017 = vmax.f32 %v12953, 0.0
  %v13018 = vmax.f32 %v12954, 0.0
  %v13019 = vmax.f32 %v12955, 0.0
  %v13020 = vmax.f32 %v12956, 0.0
  %v13021 = vmax.f32 %v12957, 0.0
  %v13022 = vmax.f32 %v12958, 0.0
  %v13023 = vmax.f32 %v12959, 0.0
  %v13024 = vmax.f32 %v12960, 0.0
  %v13025 = vmax.f32 %v12961, 0.0
  %v13026 = vmax.f32 %v12962, 0.0
  %v13027 = vmax.f32 %v12963, 0.0
  %v13028 = vmax.f32 %v12964, 0.0
  %v13029 = vmax.f32 %v12965, 0.0
  %v13030 = vmax.f32 %v12966, 0.0
  %v13031 = vmax.f32 %v12967, 0.0
  %v13032 = vmax.f32 %v12968, 0.0
  %v13033 = vmax.f32 %v12969, 0.0
  %v13034 = vmax.f32 %v12970, 0.0
  %v13035 = vmax.f32 %v12971, 0.0
  %v13036 = vmax.f32 %v12972, 0.0
  %v13037 = vmax.f32 %v12973, 0.0
  %v13038 = vmax.f32 %v12974, 0.0
  %v13039 = vmax.f32 %v12975, 0.0
  %v13040 = vmax.f32 %v12976, 0.0
  %v13041 = vmax.f32 %v12977, 0.0
  %v13042 = vmax.f32 %v12978, 0.0
  %v13043 = vmax.f32 %v12979, 0.0
  %v13044 = vmax.f32 %v12980, 0.0
  %v13045 = vmax.f32 %v12981, 0.0
  %v13046 = vmax.f32 %v12982, 0.0
  %v13047 = vmax.f32 %v12983, 0.0
  %v13048 = vmax.f32 %v12984, 0.0
  %v13049 = vmax.f32 %v12985, 0.0
  %v13050 = vmax.f32 %v12986, 0.0
  %v13051 = vmax.f32 %v12987, 0.0
  %v13052 = vmax.f32 %v12988, 0.0
  %v13053 = vmax.f32 %v12989, 0.0
  %v13054 = vmax.f32 %v12990, 0.0
  %v13055 = vmax.f32 %v12991, 0.0
  %v13056 = vmax.f32 %v12992, 0.0
  %v13057 = vmax.f32 %v12993, 0.0
  %v13058 = vmax.f32 %v12994, 0.0
  %v13059 = vmax.f32 %v12995, 0.0
  %v13060 = vmax.f32 %v12996, 0.0
  %v13061 = vmax.f32 %v12997, 0.0
  %v13062 = vmax.f32 %v12998, 0.0
  %v13063 = vmax.f32 %v12999, 0.0
  %v13064 = vmax.f32 %v13000, 0.0
  %v13065 = vmax.f32 %v13001, 0.0
  %v13066 = vmax.f32 %v13002, 0.0
  %v13067 = vmax.f32 %v13003, 0.0
  %v13068 = vmax.f32 %v13004, 0.0
  %v13069 = vmax.f32 %v13005, 0.0
  %v13070 = vmax.f32 %v13006, 0.0
  %v13071 = vmax.f32 %v13007, 0.0
  %v13072 = vmax.f32 %v13008, 0.0
  %13073 = vst [vmem:[%s10] sm:$0xff] %v13009
  %13074 = vst [vmem:[%s10 + $0x8] sm:$0xff] %v13010
  %13075 = vst [vmem:[%s10 + $0x10] sm:$0xff] %v13011
  %13076 = vst [vmem:[%s10 + $0x18] sm:$0xff] %v13012
  %13077 = vst [vmem:[%s10 + $0x20] sm:$0xff] %v13013
  %13078 = vst [vmem:[%s10 + $0x28] sm:$0xff] %v13014
  %13079 = vst [vmem:[%s10 + $0x30] sm:$0xff] %v13015
  %13080 = vst [vmem:[%s10 + $0x38] sm:$0xff] %v13016
  %13081 = vst [vmem:[%s10 + $0x40] sm:$0xff] %v13017
  %13082 = vst [vmem:[%s10 + $0x48] sm:$0xff] %v13018
  %13083 = vst [vmem:[%s10 + $0x50] sm:$0xff] %v13019
  %13084 = vst [vmem:[%s10 + $0x58] sm:$0xff] %v13020
  %13085 = vst [vmem:[%s10 + $0x60] sm:$0xff] %v13021
  %13086 = vst [vmem:[%s10 + $0x68] sm:$0xff] %v13022
  %13087 = vst [vmem:[%s10 + $0x70] sm:$0xff] %v13023
  %13088 = vst [vmem:[%s10 + $0x78] sm:$0xff] %v13024
  %13089 = vst [vmem:[%s10 + $0x80] sm:$0xff] %v13025
  %13090 = vst [vmem:[%s10 + $0x88] sm:$0xff] %v13026
  %13091 = vst [vmem:[%s10 + $0x90] sm:$0xff] %v13027
  %13092 = vst [vmem:[%s10 + $0x98] sm:$0xff] %v13028
  %13093 = vst [vmem:[%s10 + $0xa0] sm:$0xff] %v13029
  %13094 = vst [vmem:[%s10 + $0xa8] sm:$0xff] %v13030
  %13095 = vst [vmem:[%s10 + $0xb0] sm:$0xff] %v13031
  %13096 = vst [vmem:[%s10 + $0xb8] sm:$0xff] %v13032
  %13097 = vst [vmem:[%s10 + $0xc0] sm:$0xff] %v13033
  %13098 = vst [vmem:[%s10 + $0xc8] sm:$0xff] %v13034
  %13099 = vst [vmem:[%s10 + $0xd0] sm:$0xff] %v13035
  %13100 = vst [vmem:[%s10 + $0xd8] sm:$0xff] %v13036
  %13101 = vst [vmem:[%s10 + $0xe0] sm:$0xff] %v13037
  %13102 = vst [vmem:[%s10 + $0xe8] sm:$0xff] %v13038
  %13103 = vst [vmem:[%s10 + $0xf0] sm:$0xff] %v13039
  %13104 = vst [vmem:[%s10 + $0xf8] sm:$0xff] %v13040
  %13105 = vst [vmem:[%s10 + $0x100] sm:$0xff] %v13041
  %13106 = vst [vmem:[%s10 + $0x108] sm:$0xff] %v13042
  %13107 = vst [vmem:[%s10 + $0x110] sm:$0xff] %v13043
  %13108 = vst [vmem:[%s10 + $0x118] sm:$0xff] %v13044
  %13109 = vst [vmem:[%s10 + $0x120] sm:$0xff] %v13045
  %13110 = vst [vmem:[%s10 + $0x128] sm:$0xff] %v13046
  %13111 = vst [vmem:[%s10 + $0x130] sm:$0xff] %v13047
  %13112 = vst [vmem:[%s10 + $0x138] sm:$0xff] %v13048
  %13113 = vst [vmem:[%s10 + $0x140] sm:$0xff] %v13049
  %13114 = vst [vmem:[%s10 + $0x148] sm:$0xff] %v13050
  %13115 = vst [vmem:[%s10 + $0x150] sm:$0xff] %v13051
  %13116 = vst [vmem:[%s10 + $0x158] sm:$0xff] %v13052
  %13117 = vst [vmem:[%s10 + $0x160] sm:$0xff] %v13053
  %13118 = vst [vmem:[%s10 + $0x168] sm:$0xff] %v13054
  %13119 = vst [vmem:[%s10 + $0x170] sm:$0xff] %v13055
  %13120 = vst [vmem:[%s10 + $0x178] sm:$0xff] %v13056
  %13121 = vst [vmem:[%s10 + $0x180] sm:$0xff] %v13057
  %13122 = vst [vmem:[%s10 + $0x188] sm:$0xff] %v13058
  %13123 = vst [vmem:[%s10 + $0x190] sm:$0xff] %v13059
  %13124 = vst [vmem:[%s10 + $0x198] sm:$0xff] %v13060
  %13125 = vst [vmem:[%s10 + $0x1a0] sm:$0xff] %v13061
  %13126 = vst [vmem:[%s10 + $0x1a8] sm:$0xff] %v13062
  %13127 = vst [vmem:[%s10 + $0x1b0] sm:$0xff] %v13063
  %13128 = vst [vmem:[%s10 + $0x1b8] sm:$0xff] %v13064
  %13129 = vst [vmem:[%s10 + $0x1c0] sm:$0xff] %v13065
  %13130 = vst [vmem:[%s10 + $0x1c8] sm:$0xff] %v13066
  %13131 = vst [vmem:[%s10 + $0x1d0] sm:$0xff] %v13067
  %13132 = vst [vmem:[%s10 + $0x1d8] sm:$0xff] %v13068
  %13133 = vst [vmem:[%s10 + $0x1e0] sm:$0xff] %v13069
  %13134 = vst [vmem:[%s10 + $0x1e8] sm:$0xff] %v13070
  %13135 = vst [vmem:[%s10 + $0x1f0] sm:$0xff] %v13071
  %13136 = vst [vmem:[%s10 + $0x1f8] sm:$0xff] %v13072
  // Predicated region
  $region42: #{up_forward.3} parent=0 // pred_check
    _
  $region43: #{up_forward.3} parent=0 // pred_check_branch
    %13138 = sbr.rel (0) target = $region45
  $region44: #{up_forward.3} parent=0 // pred_region
    _
  $region45: #{up_forward.3} parent=0 // pred_fallthru
    _
  // Predicated region
  $region46: #{up_forward.3} parent=0 // pred_check
    _
  $region47: #{up_forward.3} parent=0 // pred_check_branch
    %13140 = sbr.rel (0) target = $region49
  $region48: #{up_forward.3} parent=0 // pred_region
    _
  $region49: #{up_forward.3} parent=0 // pred_fallthru
    _

</llo_original>
